<compile_context>
chip_gen: v7x
topology: tpu7x:2x2x1
jax: 0.10.0
libtpu: 0.0.40
codegen_flags: <defaults>
</compile_context>

<pallas_src>
import jax
import jax.numpy as jnp
from jax.experimental import pallas as pl
from jax.experimental.pallas import tpu as pltpu

LANE = 128


def _round_up(n, m):
    return ((n + m - 1) // m) * m


# ------------------------------ Pallas kernel ------------------------------ #

def _grasp_head_kernel(x_ref, w1_ref, b1_ref, w2_ref, b2_ref, w3_ref, b3_ref,
                       wh_ref, bh_ref, o_ref, mid_ref, pad_ref):
    """Fused GraspHead forward for one batch image.

    x_ref:  (1, H, W, Cp)    bf16 NHWC activations (Cp = channels padded to 128)
    w1_ref: (3, Cp, Pp) bf16, b1_ref: (3, 1, Pp) f32   -- 1x1 reduce convs (BN folded)
    w2_ref: (3, 9, Pp, Pp) bf16, b2_ref: (3, 1, Pp) f32 -- 3x3 conv taps (kh*3+kw)
    w3_ref: (3, Pp, Cp) bf16, b3_ref: (3, 1, Cp) f32   -- 1x1 expand convs
    wh_ref: (9, Cp, Np) bf16, bh_ref: (1, Np) f32      -- fused cls+reg 3x3 conv
    o_ref:  (1, H, W, Np)    f32 packed head output (cls | reg | zero-pad)
    mid_ref: VMEM (H+2, W+2, Pp) bf16 scratch  -- haloed bottleneck intermediate
    pad_ref: VMEM (H+2, W+2, Cp) bf16 scratch  -- haloed input to the head convs
    """
    _, H, W, Cp = x_ref.shape
    n_blocks = w1_ref.shape[0]
    Pp = w1_ref.shape[2]
    Np = wh_ref.shape[2]
    HW = H * W

    # Zero the halos once per invocation; interior stores never touch them, so
    # they stay zero across all three bottlenecks.
    mid_ref[...] = jnp.zeros_like(mid_ref)
    pad_ref[...] = jnp.zeros_like(pad_ref)

    x2d = x_ref[0].reshape(HW, Cp)                                 # bf16 identity

    for i in range(n_blocks):
        # conv1 (1x1) + BN1 + ReLU -> planes
        h1 = jnp.dot(x2d, w1_ref[i], preferred_element_type=jnp.float32)
        h1 = jnp.maximum(h1 + b1_ref[i], 0.0)

        # conv2 (3x3, pad=1) + BN2 + ReLU: 9 accumulated MXU matmuls over a
        # haloed VMEM tile.
        mid_ref[1:H + 1, 1:W + 1, :] = h1.reshape(H, W, Pp).astype(mid_ref.dtype)
        acc = jnp.broadcast_to(b2_ref[i], (HW, Pp))                # bias hoisted
        for kh in range(3):
            for kw in range(3):
                win = mid_ref[kh:kh + H, kw:kw + W, :].reshape(HW, Pp)
                acc = acc + jnp.dot(win, w2_ref[i, 3 * kh + kw],
                                    preferred_element_type=jnp.float32)
        h2 = jnp.maximum(acc, 0.0).astype(jnp.bfloat16)

        # conv3 (1x1) + BN3 + identity residual + ReLU
        h3 = jnp.dot(h2, w3_ref[i], preferred_element_type=jnp.float32)
        x2d = jnp.maximum(h3 + b3_ref[i] + x2d.astype(jnp.float32),
                          0.0).astype(jnp.bfloat16)

    # Fused conv_cls + conv_reg (3x3, pad=1) as one lane-dense GEMM.
    pad_ref[1:H + 1, 1:W + 1, :] = x2d.reshape(H, W, Cp)
    acc = jnp.broadcast_to(bh_ref[...], (HW, Np))
    for kh in range(3):
        for kw in range(3):
            win = pad_ref[kh:kh + H, kw:kw + W, :].reshape(HW, Cp)
            acc = acc + jnp.dot(win, wh_ref[3 * kh + kw],
                                preferred_element_type=jnp.float32)
    o_ref[0] = acc.reshape(H, W, Np).astype(o_ref.dtype)


# --------------------------- pallas_call wrapper ---------------------------- #

_COMPILER_PARAMS = pltpu.CompilerParams(
    dimension_semantics=("parallel",),          # batch grid -> both TCs on v7x
    vmem_limit_bytes=32 * 1024 * 1024,
)


def grasp_head_call(x, prep):
    B, H, W, Cp = x.shape
    Pp = prep["w1s"].shape[2]
    Np = prep["w_heads"].shape[2]
    return pl.pallas_call(
        _grasp_head_kernel,
        out_shape=jax.ShapeDtypeStruct((B, H, W, Np), jnp.float32),
        grid=(B,),
        in_specs=[
            pl.BlockSpec((1, H, W, Cp), lambda b: (b, 0, 0, 0)),     # activations
            pl.BlockSpec((3, Cp, Pp), lambda b: (0, 0, 0)),          # w1 stacked
            pl.BlockSpec((3, 1, Pp), lambda b: (0, 0, 0)),           # b1
            pl.BlockSpec((3, 9, Pp, Pp), lambda b: (0, 0, 0, 0)),    # w2 taps
            pl.BlockSpec((3, 1, Pp), lambda b: (0, 0, 0)),           # b2
            pl.BlockSpec((3, Pp, Cp), lambda b: (0, 0, 0)),          # w3
            pl.BlockSpec((3, 1, Cp), lambda b: (0, 0, 0)),           # b3
            pl.BlockSpec((9, Cp, Np), lambda b: (0, 0, 0)),          # head taps
            pl.BlockSpec((1, Np), lambda b: (0, 0)),                 # head bias
        ],
        out_specs=pl.BlockSpec((1, H, W, Np), lambda b: (b, 0, 0, 0)),
        scratch_shapes=[pltpu.VMEM((H + 2, W + 2, Pp), jnp.bfloat16),
                        pltpu.VMEM((H + 2, W + 2, Cp), jnp.bfloat16)],
        compiler_params=_COMPILER_PARAMS,
    )(x, prep["w1s"], prep["b1s"], prep["w2s"], prep["b2s"],
      prep["w3s"], prep["b3s"], prep["w_heads"], prep["b_heads"])


# ------------------------------ parameter prep ------------------------------ #

def fold_bn(w, bn, eps=1e-5):
    """Fold eval-mode BatchNorm into the preceding bias-free conv."""
    gamma, beta, mean, var = bn
    s = gamma / jnp.sqrt(var + eps)
    return w * s[:, None, None, None], beta - s * mean


def _pad_2d(a, rows, cols):
    r, c = a.shape
    return jnp.pad(a, ((0, rows - r), (0, cols - c)))


def prepare_params(params, in_channels):
    """BN folding + GEMM layout + zero channel-padding to LANE + bf16 cast,
    with the three bottlenecks' weights stacked for the fused kernel."""
    C = in_channels
    P = C // 4
    Cp = _round_up(C, LANE)
    Pp = _round_up(P, LANE)

    w1s, b1s, w2s, b2s, w3s, b3s = [], [], [], [], [], []
    for bp in params["bottlenecks"]:
        w1, b1 = fold_bn(bp["w1"], bp["bn1"])                    # (P, C, 1, 1)
        w1s.append(_pad_2d(w1.reshape(P, C).T, Cp, Pp).astype(jnp.bfloat16))
        b1s.append(_pad_2d(b1.reshape(1, P), 1, Pp).astype(jnp.float32))

        w2, b2 = fold_bn(bp["w2"], bp["bn2"])                    # (P, P, 3, 3)
        w2t = jnp.transpose(w2, (2, 3, 1, 0)).reshape(9, P, P)   # (kh,kw,Cin,Cout)
        w2s.append(jnp.pad(w2t, ((0, 0), (0, Pp - P), (0, Pp - P))).astype(jnp.bfloat16))
        b2s.append(_pad_2d(b2.reshape(1, P), 1, Pp).astype(jnp.float32))

        w3, b3 = fold_bn(bp["w3"], bp["bn3"])                    # (C, P, 1, 1)
        w3s.append(_pad_2d(w3.reshape(C, P).T, Pp, Cp).astype(jnp.bfloat16))
        b3s.append(_pad_2d(b3.reshape(1, C), 1, Cp).astype(jnp.float32))

    # Fuse conv_cls + conv_reg into one 3x3 GEMM, Cout padded to a lane multiple.
    n_cls = params["w_cls"].shape[0]
    n_reg = params["w_reg"].shape[0]
    Nh = n_cls + n_reg
    Np = _round_up(Nh, LANE)
    wh = jnp.concatenate([params["w_cls"], params["w_reg"]], axis=0)  # (Nh,C,3,3)
    bh = jnp.concatenate([params["b_cls"], params["b_reg"]], axis=0)  # (Nh,)
    wht = jnp.transpose(wh, (2, 3, 1, 0)).reshape(9, C, Nh)
    whm = jnp.pad(wht, ((0, 0), (0, Cp - C), (0, Np - Nh))).astype(jnp.bfloat16)
    bhm = _pad_2d(bh.reshape(1, Nh), 1, Np).astype(jnp.float32)

    return dict(w1s=jnp.stack(w1s), b1s=jnp.stack(b1s),
                w2s=jnp.stack(w2s), b2s=jnp.stack(b2s),
                w3s=jnp.stack(w3s), b3s=jnp.stack(b3s),
                w_heads=whm, b_heads=bhm,
                n_cls=n_cls, n_reg=n_reg, C=C, Cp=Cp, Pp=Pp)


# -------------------------------- forward ----------------------------------- #

def grasp_head_forward(x_nchw, prep):
    """Equivalent of GraspHead.forward (eval mode): 3 Bottlenecks -> heads."""
    B, C, H, W = x_nchw.shape
    Cp = prep["Cp"]
    x = jnp.transpose(x_nchw, (0, 2, 3, 1))                      # NCHW -> NHWC
    x = jnp.pad(x, ((0, 0), (0, 0), (0, 0), (0, Cp - C))).astype(jnp.bfloat16)
    heads = grasp_head_call(x, prep)                             # (B, H, W, Np) f32
    n_cls, n_reg = prep["n_cls"], prep["n_reg"]
    # NHWC outputs already equal PyTorch's .permute(0, 2, 3, 1) of NCHW convs.
    cls_score = heads[..., :n_cls]
    bbox_pred = heads[..., n_cls:n_cls + n_reg]
    return cls_score, bbox_pred


# ------------------------------ test harness -------------------------------- #

def make_params(key, in_channels, num_anchors, num_classes, bbox_dim):
    planes = in_channels // 4
    nk = iter(jax.random.split(key, 64))

    def bn_params(c):
        return (
            1.0 + 0.1 * jax.random.normal(next(nk), (c,), jnp.float32),   # gamma
            0.05 * jax.random.normal(next(nk), (c,), jnp.float32),        # beta
            0.05 * jax.random.normal(next(nk), (c,), jnp.float32),        # running_mean
            1.0 + 0.1 * jax.random.uniform(next(nk), (c,), jnp.float32),  # running_var
        )

    bottlenecks = []
    for _ in range(3):
        bottlenecks.append(dict(
            w1=0.1 * jax.random.normal(next(nk), (planes, in_channels, 1, 1), jnp.float32),
            bn1=bn_params(planes),
            w2=0.1 * jax.random.normal(next(nk), (planes, planes, 3, 3), jnp.float32),
            bn2=bn_params(planes),
            w3=0.1 * jax.random.normal(next(nk), (in_channels, planes, 1, 1), jnp.float32),
            bn3=bn_params(in_channels),
        ))

    c_cls = num_anchors * num_classes
    c_reg = num_anchors * bbox_dim
    return dict(
        bottlenecks=bottlenecks,
        w_cls=0.01 * jax.random.normal(next(nk), (c_cls, in_channels, 3, 3), jnp.float32),
        b_cls=jnp.zeros((c_cls,), jnp.float32),
        w_reg=0.001 * jax.random.normal(next(nk), (c_reg, in_channels, 3, 3), jnp.float32),
        b_reg=jnp.zeros((c_reg,), jnp.float32),
    )


if __name__ == "__main__":
    # Small, module-consistent shapes.
    B, C, H, W = 2, 16, 8, 8            # in_channels must be divisible by 4
    num_anchors = 3 * 3 * 1             # scales x ratios x angles
    num_classes = 2
    bbox_dim = 5

    key = jax.random.PRNGKey(0)
    kp, kx = jax.random.split(key)
    params = make_params(kp, C, num_anchors, num_classes, bbox_dim)
    x = jax.random.normal(kx, (B, C, H, W), jnp.float32)  # NCHW, like PyTorch

    prep = prepare_params(params, C)     # BN fold + stack + pad + bf16 cast, once
    fwd = jax.jit(lambda inp: grasp_head_forward(inp, prep))
    cls_score, bbox_pred = fwd(x)
    jax.block_until_ready((cls_score, bbox_pred))

    assert cls_score.shape == (B, H, W, num_anchors * num_classes), cls_score.shape
    assert bbox_pred.shape == (B, H, W, num_anchors * bbox_dim), bbox_pred.shape
    assert bool(jnp.all(jnp.isfinite(cls_score))) and bool(jnp.all(jnp.isfinite(bbox_pred)))
    print("KERNEL_OK")
</pallas_src>

<mosaic_0001>
module attributes {stable_mosaic.version = 11 : i64} {
  func.func @_grasp_head_kernel(%arg0: i32, %arg1: memref<1x8x8x128xbf16, #tpu.memory_space<vmem>>, %arg2: memref<3x128x128xbf16, #tpu.memory_space<vmem>>, %arg3: memref<3x1x128xf32, #tpu.memory_space<vmem>>, %arg4: memref<3x9x128x128xbf16, #tpu.memory_space<vmem>>, %arg5: memref<3x1x128xf32, #tpu.memory_space<vmem>>, %arg6: memref<3x128x128xbf16, #tpu.memory_space<vmem>>, %arg7: memref<3x1x128xf32, #tpu.memory_space<vmem>>, %arg8: memref<9x128x128xbf16, #tpu.memory_space<vmem>>, %arg9: memref<1x128xf32, #tpu.memory_space<vmem>>, %arg10: memref<1x8x8x128xf32, #tpu.memory_space<vmem>>, %arg11: memref<10x10x128xbf16, #tpu.memory_space<vmem>>, %arg12: memref<10x10x128xbf16, #tpu.memory_space<vmem>>) attributes {dimension_semantics = [#tpu.dimension_semantics<parallel>], iteration_bounds = array<i64: 2>, scalar_prefetch = 0 : i64, scratch_operands = 2 : i64, tpu.core_type = #tpu.core_type<tc>, window_params = [{transform_indices = @transform_0, window_bounds = array<i64: 1, 8, 8, 128>}, {pipeline_mode = #tpu.pipeline_mode<synchronous>, transform_indices = @transform_1, window_bounds = array<i64: 3, 128, 128>}, {pipeline_mode = #tpu.pipeline_mode<synchronous>, transform_indices = @transform_2, window_bounds = array<i64: 3, 1, 128>}, {pipeline_mode = #tpu.pipeline_mode<synchronous>, transform_indices = @transform_3, window_bounds = array<i64: 3, 9, 128, 128>}, {pipeline_mode = #tpu.pipeline_mode<synchronous>, transform_indices = @transform_4, window_bounds = array<i64: 3, 1, 128>}, {pipeline_mode = #tpu.pipeline_mode<synchronous>, transform_indices = @transform_5, window_bounds = array<i64: 3, 128, 128>}, {pipeline_mode = #tpu.pipeline_mode<synchronous>, transform_indices = @transform_6, window_bounds = array<i64: 3, 1, 128>}, {pipeline_mode = #tpu.pipeline_mode<synchronous>, transform_indices = @transform_7, window_bounds = array<i64: 9, 128, 128>}, {pipeline_mode = #tpu.pipeline_mode<synchronous>, transform_indices = @transform_8, window_bounds = array<i64: 1, 128>}, {transform_indices = @transform_9, window_bounds = array<i64: 1, 8, 8, 128>}]} {
    %cst = arith.constant 0.000000e+00 : bf16
    %0 = vector.broadcast %cst : bf16 to vector<10x10x128xbf16>
    %c0 = arith.constant 0 : index
    %c0_0 = arith.constant 0 : index
    %c0_1 = arith.constant 0 : index
    %1 = vector.load %arg11[%c0, %c0_0, %c0_1] : memref<10x10x128xbf16, #tpu.memory_space<vmem>>, vector<10x10x128xbf16>
    tpu.vector_store %arg11[%c0, %c0_0, %c0_1], %0 {strides = array<i32>} : memref<10x10x128xbf16, #tpu.memory_space<vmem>>, vector<10x10x128xbf16>,
    %cst_2 = arith.constant 0.000000e+00 : bf16
    %2 = vector.broadcast %cst_2 : bf16 to vector<10x10x128xbf16>
    %c0_3 = arith.constant 0 : index
    %c0_4 = arith.constant 0 : index
    %c0_5 = arith.constant 0 : index
    %3 = vector.load %arg12[%c0_3, %c0_4, %c0_5] : memref<10x10x128xbf16, #tpu.memory_space<vmem>>, vector<10x10x128xbf16>
    tpu.vector_store %arg12[%c0_3, %c0_4, %c0_5], %2 {strides = array<i32>} : memref<10x10x128xbf16, #tpu.memory_space<vmem>>, vector<10x10x128xbf16>,
    %c0_6 = arith.constant 0 : index
    %c0_7 = arith.constant 0 : index
    %c0_8 = arith.constant 0 : index
    %c0_9 = arith.constant 0 : index
    %4 = vector.load %arg1[%c0_6, %c0_7, %c0_8, %c0_9] : memref<1x8x8x128xbf16, #tpu.memory_space<vmem>>, vector<1x8x8x128xbf16>
    %5 = vector.shape_cast %4 : vector<1x8x8x128xbf16> to vector<8x8x128xbf16>
    %6 = vector.shape_cast %5 : vector<8x8x128xbf16> to vector<64x128xbf16>
    %c0_10 = arith.constant 0 : index
    %c0_11 = arith.constant 0 : index
    %c0_12 = arith.constant 0 : index
    %7 = vector.load %arg2[%c0_10, %c0_11, %c0_12] : memref<3x128x128xbf16, #tpu.memory_space<vmem>>, vector<1x128x128xbf16>
    %8 = vector.shape_cast %7 : vector<1x128x128xbf16> to vector<128x128xbf16>
    %cst_13 = arith.constant dense<0.000000e+00> : vector<64x128xf32>
    %9 = tpu.matmul %6, %8, %cst_13 {dimension_numbers = #tpu.dot_dimension_numbers<[1], [0], [0], [1], [0, 0, 1, 1], [], []>} : vector<64x128xbf16>, vector<128x128xbf16>, vector<64x128xf32> -> vector<64x128xf32>
    %c0_14 = arith.constant 0 : index
    %c0_15 = arith.constant 0 : index
    %c0_16 = arith.constant 0 : index
    %10 = vector.load %arg3[%c0_14, %c0_15, %c0_16] : memref<3x1x128xf32, #tpu.memory_space<vmem>>, vector<1x1x128xf32>
    %11 = vector.shape_cast %10 : vector<1x1x128xf32> to vector<1x128xf32>
    %12 = vector.broadcast %11 : vector<1x128xf32> to vector<64x128xf32>
    %13 = arith.addf %9, %12 : vector<64x128xf32>
    %cst_17 = arith.constant 0.000000e+00 : f32
    %14 = vector.broadcast %cst_17 : f32 to vector<64x128xf32>
    %15 = arith.maximumf %13, %14 : vector<64x128xf32>
    %16 = vector.shape_cast %15 : vector<64x128xf32> to vector<8x8x128xf32>
    %17 = arith.truncf %16 : vector<8x8x128xf32> to vector<8x8x128xbf16>
    %c1 = arith.constant 1 : index
    %c1_18 = arith.constant 1 : index
    %c0_19 = arith.constant 0 : index
    %18 = vector.load %arg11[%c1, %c1_18, %c0_19] : memref<10x10x128xbf16, #tpu.memory_space<vmem>>, vector<8x8x128xbf16>
    tpu.vector_store %arg11[%c1, %c1_18, %c0_19], %17 {strides = array<i32>} : memref<10x10x128xbf16, #tpu.memory_space<vmem>>, vector<8x8x128xbf16>,
    %c0_20 = arith.constant 0 : index
    %c0_21 = arith.constant 0 : index
    %c0_22 = arith.constant 0 : index
    %19 = vector.load %arg5[%c0_20, %c0_21, %c0_22] : memref<3x1x128xf32, #tpu.memory_space<vmem>>, vector<1x1x128xf32>
    %20 = vector.shape_cast %19 : vector<1x1x128xf32> to vector<1x128xf32>
    %21 = vector.shape_cast %20 : vector<1x128xf32> to vector<1x128xf32>
    %22 = vector.broadcast %21 : vector<1x128xf32> to vector<64x128xf32>
    %c0_23 = arith.constant 0 : index
    %c0_24 = arith.constant 0 : index
    %c0_25 = arith.constant 0 : index
    %23 = vector.load %arg11[%c0_23, %c0_24, %c0_25] : memref<10x10x128xbf16, #tpu.memory_space<vmem>>, vector<8x8x128xbf16>
    %24 = vector.shape_cast %23 : vector<8x8x128xbf16> to vector<64x128xbf16>
    %c0_26 = arith.constant 0 : index
    %c0_27 = arith.constant 0 : index
    %c0_28 = arith.constant 0 : index
    %c0_29 = arith.constant 0 : index
    %25 = vector.load %arg4[%c0_26, %c0_27, %c0_28, %c0_29] : memref<3x9x128x128xbf16, #tpu.memory_space<vmem>>, vector<1x1x128x128xbf16>
    %26 = vector.shape_cast %25 : vector<1x1x128x128xbf16> to vector<128x128xbf16>
    %cst_30 = arith.constant dense<0.000000e+00> : vector<64x128xf32>
    %27 = tpu.matmul %24, %26, %cst_30 {dimension_numbers = #tpu.dot_dimension_numbers<[1], [0], [0], [1], [0, 0, 1, 1], [], []>} : vector<64x128xbf16>, vector<128x128xbf16>, vector<64x128xf32> -> vector<64x128xf32>
    %28 = arith.addf %22, %27 : vector<64x128xf32>
    %c0_31 = arith.constant 0 : index
    %c1_32 = arith.constant 1 : index
    %c0_33 = arith.constant 0 : index
    %29 = vector.load %arg11[%c0_31, %c1_32, %c0_33] : memref<10x10x128xbf16, #tpu.memory_space<vmem>>, vector<8x8x128xbf16>
    %30 = vector.shape_cast %29 : vector<8x8x128xbf16> to vector<64x128xbf16>
    %c0_34 = arith.constant 0 : index
    %c1_35 = arith.constant 1 : index
    %c0_36 = arith.constant 0 : index
    %c0_37 = arith.constant 0 : index
    %31 = vector.load %arg4[%c0_34, %c1_35, %c0_36, %c0_37] : memref<3x9x128x128xbf16, #tpu.memory_space<vmem>>, vector<1x1x128x128xbf16>
    %32 = vector.shape_cast %31 : vector<1x1x128x128xbf16> to vector<128x128xbf16>
    %cst_38 = arith.constant dense<0.000000e+00> : vector<64x128xf32>
    %33 = tpu.matmul %30, %32, %cst_38 {dimension_numbers = #tpu.dot_dimension_numbers<[1], [0], [0], [1], [0, 0, 1, 1], [], []>} : vector<64x128xbf16>, vector<128x128xbf16>, vector<64x128xf32> -> vector<64x128xf32>
    %34 = arith.addf %28, %33 : vector<64x128xf32>
    %c0_39 = arith.constant 0 : index
    %c2 = arith.constant 2 : index
    %c0_40 = arith.constant 0 : index
    %35 = vector.load %arg11[%c0_39, %c2, %c0_40] : memref<10x10x128xbf16, #tpu.memory_space<vmem>>, vector<8x8x128xbf16>
    %36 = vector.shape_cast %35 : vector<8x8x128xbf16> to vector<64x128xbf16>
    %c0_41 = arith.constant 0 : index
    %c2_42 = arith.constant 2 : index
    %c0_43 = arith.constant 0 : index
    %c0_44 = arith.constant 0 : index
    %37 = vector.load %arg4[%c0_41, %c2_42, %c0_43, %c0_44] : memref<3x9x128x128xbf16, #tpu.memory_space<vmem>>, vector<1x1x128x128xbf16>
    %38 = vector.shape_cast %37 : vector<1x1x128x128xbf16> to vector<128x128xbf16>
    %cst_45 = arith.constant dense<0.000000e+00> : vector<64x128xf32>
    %39 = tpu.matmul %36, %38, %cst_45 {dimension_numbers = #tpu.dot_dimension_numbers<[1], [0], [0], [1], [0, 0, 1, 1], [], []>} : vector<64x128xbf16>, vector<128x128xbf16>, vector<64x128xf32> -> vector<64x128xf32>
    %40 = arith.addf %34, %39 : vector<64x128xf32>
    %c1_46 = arith.constant 1 : index
    %c0_47 = arith.constant 0 : index
    %c0_48 = arith.constant 0 : index
    %41 = vector.load %arg11[%c1_46, %c0_47, %c0_48] : memref<10x10x128xbf16, #tpu.memory_space<vmem>>, vector<8x8x128xbf16>
    %42 = vector.shape_cast %41 : vector<8x8x128xbf16> to vector<64x128xbf16>
    %c0_49 = arith.constant 0 : index
    %c3 = arith.constant 3 : index
    %c0_50 = arith.constant 0 : index
    %c0_51 = arith.constant 0 : index
    %43 = vector.load %arg4[%c0_49, %c3, %c0_50, %c0_51] : memref<3x9x128x128xbf16, #tpu.memory_space<vmem>>, vector<1x1x128x128xbf16>
    %44 = vector.shape_cast %43 : vector<1x1x128x128xbf16> to vector<128x128xbf16>
    %cst_52 = arith.constant dense<0.000000e+00> : vector<64x128xf32>
    %45 = tpu.matmul %42, %44, %cst_52 {dimension_numbers = #tpu.dot_dimension_numbers<[1], [0], [0], [1], [0, 0, 1, 1], [], []>} : vector<64x128xbf16>, vector<128x128xbf16>, vector<64x128xf32> -> vector<64x128xf32>
    %46 = arith.addf %40, %45 : vector<64x128xf32>
    %c1_53 = arith.constant 1 : index
    %c1_54 = arith.constant 1 : index
    %c0_55 = arith.constant 0 : index
    %47 = vector.load %arg11[%c1_53, %c1_54, %c0_55] : memref<10x10x128xbf16, #tpu.memory_space<vmem>>, vector<8x8x128xbf16>
    %48 = vector.shape_cast %47 : vector<8x8x128xbf16> to vector<64x128xbf16>
    %c0_56 = arith.constant 0 : index
    %c4 = arith.constant 4 : index
    %c0_57 = arith.constant 0 : index
    %c0_58 = arith.constant 0 : index
    %49 = vector.load %arg4[%c0_56, %c4, %c0_57, %c0_58] : memref<3x9x128x128xbf16, #tpu.memory_space<vmem>>, vector<1x1x128x128xbf16>
    %50 = vector.shape_cast %49 : vector<1x1x128x128xbf16> to vector<128x128xbf16>
    %cst_59 = arith.constant dense<0.000000e+00> : vector<64x128xf32>
    %51 = tpu.matmul %48, %50, %cst_59 {dimension_numbers = #tpu.dot_dimension_numbers<[1], [0], [0], [1], [0, 0, 1, 1], [], []>} : vector<64x128xbf16>, vector<128x128xbf16>, vector<64x128xf32> -> vector<64x128xf32>
    %52 = arith.addf %46, %51 : vector<64x128xf32>
    %c1_60 = arith.constant 1 : index
    %c2_61 = arith.constant 2 : index
    %c0_62 = arith.constant 0 : index
    %53 = vector.load %arg11[%c1_60, %c2_61, %c0_62] : memref<10x10x128xbf16, #tpu.memory_space<vmem>>, vector<8x8x128xbf16>
    %54 = vector.shape_cast %53 : vector<8x8x128xbf16> to vector<64x128xbf16>
    %c0_63 = arith.constant 0 : index
    %c5 = arith.constant 5 : index
    %c0_64 = arith.constant 0 : index
    %c0_65 = arith.constant 0 : index
    %55 = vector.load %arg4[%c0_63, %c5, %c0_64, %c0_65] : memref<3x9x128x128xbf16, #tpu.memory_space<vmem>>, vector<1x1x128x128xbf16>
    %56 = vector.shape_cast %55 : vector<1x1x128x128xbf16> to vector<128x128xbf16>
    %cst_66 = arith.constant dense<0.000000e+00> : vector<64x128xf32>
    %57 = tpu.matmul %54, %56, %cst_66 {dimension_numbers = #tpu.dot_dimension_numbers<[1], [0], [0], [1], [0, 0, 1, 1], [], []>} : vector<64x128xbf16>, vector<128x128xbf16>, vector<64x128xf32> -> vector<64x128xf32>
    %58 = arith.addf %52, %57 : vector<64x128xf32>
    %c2_67 = arith.constant 2 : index
    %c0_68 = arith.constant 0 : index
    %c0_69 = arith.constant 0 : index
    %59 = vector.load %arg11[%c2_67, %c0_68, %c0_69] : memref<10x10x128xbf16, #tpu.memory_space<vmem>>, vector<8x8x128xbf16>
    %60 = vector.shape_cast %59 : vector<8x8x128xbf16> to vector<64x128xbf16>
    %c0_70 = arith.constant 0 : index
    %c6 = arith.constant 6 : index
    %c0_71 = arith.constant 0 : index
    %c0_72 = arith.constant 0 : index
    %61 = vector.load %arg4[%c0_70, %c6, %c0_71, %c0_72] : memref<3x9x128x128xbf16, #tpu.memory_space<vmem>>, vector<1x1x128x128xbf16>
    %62 = vector.shape_cast %61 : vector<1x1x128x128xbf16> to vector<128x128xbf16>
    %cst_73 = arith.constant dense<0.000000e+00> : vector<64x128xf32>
    %63 = tpu.matmul %60, %62, %cst_73 {dimension_numbers = #tpu.dot_dimension_numbers<[1], [0], [0], [1], [0, 0, 1, 1], [], []>} : vector<64x128xbf16>, vector<128x128xbf16>, vector<64x128xf32> -> vector<64x128xf32>
    %64 = arith.addf %58, %63 : vector<64x128xf32>
    %c2_74 = arith.constant 2 : index
    %c1_75 = arith.constant 1 : index
    %c0_76 = arith.constant 0 : index
    %65 = vector.load %arg11[%c2_74, %c1_75, %c0_76] : memref<10x10x128xbf16, #tpu.memory_space<vmem>>, vector<8x8x128xbf16>
    %66 = vector.shape_cast %65 : vector<8x8x128xbf16> to vector<64x128xbf16>
    %c0_77 = arith.constant 0 : index
    %c7 = arith.constant 7 : index
    %c0_78 = arith.constant 0 : index
    %c0_79 = arith.constant 0 : index
    %67 = vector.load %arg4[%c0_77, %c7, %c0_78, %c0_79] : memref<3x9x128x128xbf16, #tpu.memory_space<vmem>>, vector<1x1x128x128xbf16>
    %68 = vector.shape_cast %67 : vector<1x1x128x128xbf16> to vector<128x128xbf16>
    %cst_80 = arith.constant dense<0.000000e+00> : vector<64x128xf32>
    %69 = tpu.matmul %66, %68, %cst_80 {dimension_numbers = #tpu.dot_dimension_numbers<[1], [0], [0], [1], [0, 0, 1, 1], [], []>} : vector<64x128xbf16>, vector<128x128xbf16>, vector<64x128xf32> -> vector<64x128xf32>
    %70 = arith.addf %64, %69 : vector<64x128xf32>
    %c2_81 = arith.constant 2 : index
    %c2_82 = arith.constant 2 : index
    %c0_83 = arith.constant 0 : index
    %71 = vector.load %arg11[%c2_81, %c2_82, %c0_83] : memref<10x10x128xbf16, #tpu.memory_space<vmem>>, vector<8x8x128xbf16>
    %72 = vector.shape_cast %71 : vector<8x8x128xbf16> to vector<64x128xbf16>
    %c0_84 = arith.constant 0 : index
    %c8 = arith.constant 8 : index
    %c0_85 = arith.constant 0 : index
    %c0_86 = arith.constant 0 : index
    %73 = vector.load %arg4[%c0_84, %c8, %c0_85, %c0_86] : memref<3x9x128x128xbf16, #tpu.memory_space<vmem>>, vector<1x1x128x128xbf16>
    %74 = vector.shape_cast %73 : vector<1x1x128x128xbf16> to vector<128x128xbf16>
    %cst_87 = arith.constant dense<0.000000e+00> : vector<64x128xf32>
    %75 = tpu.matmul %72, %74, %cst_87 {dimension_numbers = #tpu.dot_dimension_numbers<[1], [0], [0], [1], [0, 0, 1, 1], [], []>} : vector<64x128xbf16>, vector<128x128xbf16>, vector<64x128xf32> -> vector<64x128xf32>
    %76 = arith.addf %70, %75 : vector<64x128xf32>
    %cst_88 = arith.constant 0.000000e+00 : f32
    %77 = vector.broadcast %cst_88 : f32 to vector<64x128xf32>
    %78 = arith.maximumf %76, %77 : vector<64x128xf32>
    %79 = arith.truncf %78 : vector<64x128xf32> to vector<64x128xbf16>
    %c0_89 = arith.constant 0 : index
    %c0_90 = arith.constant 0 : index
    %c0_91 = arith.constant 0 : index
    %80 = vector.load %arg6[%c0_89, %c0_90, %c0_91] : memref<3x128x128xbf16, #tpu.memory_space<vmem>>, vector<1x128x128xbf16>
    %81 = vector.shape_cast %80 : vector<1x128x128xbf16> to vector<128x128xbf16>
    %cst_92 = arith.constant dense<0.000000e+00> : vector<64x128xf32>
    %82 = tpu.matmul %79, %81, %cst_92 {dimension_numbers = #tpu.dot_dimension_numbers<[1], [0], [0], [1], [0, 0, 1, 1], [], []>} : vector<64x128xbf16>, vector<128x128xbf16>, vector<64x128xf32> -> vector<64x128xf32>
    %c0_93 = arith.constant 0 : index
    %c0_94 = arith.constant 0 : index
    %c0_95 = arith.constant 0 : index
    %83 = vector.load %arg7[%c0_93, %c0_94, %c0_95] : memref<3x1x128xf32, #tpu.memory_space<vmem>>, vector<1x1x128xf32>
    %84 = vector.shape_cast %83 : vector<1x1x128xf32> to vector<1x128xf32>
    %85 = vector.broadcast %84 : vector<1x128xf32> to vector<64x128xf32>
    %86 = arith.addf %82, %85 : vector<64x128xf32>
    %87 = arith.extf %6 : vector<64x128xbf16> to vector<64x128xf32>
    %88 = arith.addf %86, %87 : vector<64x128xf32>
    %cst_96 = arith.constant 0.000000e+00 : f32
    %89 = vector.broadcast %cst_96 : f32 to vector<64x128xf32>
    %90 = arith.maximumf %88, %89 : vector<64x128xf32>
    %91 = arith.truncf %90 : vector<64x128xf32> to vector<64x128xbf16>
    %c1_97 = arith.constant 1 : index
    %c0_98 = arith.constant 0 : index
    %c0_99 = arith.constant 0 : index
    %92 = vector.load %arg2[%c1_97, %c0_98, %c0_99] : memref<3x128x128xbf16, #tpu.memory_space<vmem>>, vector<1x128x128xbf16>
    %93 = vector.shape_cast %92 : vector<1x128x128xbf16> to vector<128x128xbf16>
    %cst_100 = arith.constant dense<0.000000e+00> : vector<64x128xf32>
    %94 = tpu.matmul %91, %93, %cst_100 {dimension_numbers = #tpu.dot_dimension_numbers<[1], [0], [0], [1], [0, 0, 1, 1], [], []>} : vector<64x128xbf16>, vector<128x128xbf16>, vector<64x128xf32> -> vector<64x128xf32>
    %c1_101 = arith.constant 1 : index
    %c0_102 = arith.constant 0 : index
    %c0_103 = arith.constant 0 : index
    %95 = vector.load %arg3[%c1_101, %c0_102, %c0_103] : memref<3x1x128xf32, #tpu.memory_space<vmem>>, vector<1x1x128xf32>
    %96 = vector.shape_cast %95 : vector<1x1x128xf32> to vector<1x128xf32>
    %97 = vector.broadcast %96 : vector<1x128xf32> to vector<64x128xf32>
    %98 = arith.addf %94, %97 : vector<64x128xf32>
    %cst_104 = arith.constant 0.000000e+00 : f32
    %99 = vector.broadcast %cst_104 : f32 to vector<64x128xf32>
    %100 = arith.maximumf %98, %99 : vector<64x128xf32>
    %101 = vector.shape_cast %100 : vector<64x128xf32> to vector<8x8x128xf32>
    %102 = arith.truncf %101 : vector<8x8x128xf32> to vector<8x8x128xbf16>
    %c1_105 = arith.constant 1 : index
    %c1_106 = arith.constant 1 : index
    %c0_107 = arith.constant 0 : index
    %103 = vector.load %arg11[%c1_105, %c1_106, %c0_107] : memref<10x10x128xbf16, #tpu.memory_space<vmem>>, vector<8x8x128xbf16>
    tpu.vector_store %arg11[%c1_105, %c1_106, %c0_107], %102 {strides = array<i32>} : memref<10x10x128xbf16, #tpu.memory_space<vmem>>, vector<8x8x128xbf16>,
    %c1_108 = arith.constant 1 : index
    %c0_109 = arith.constant 0 : index
    %c0_110 = arith.constant 0 : index
    %104 = vector.load %arg5[%c1_108, %c0_109, %c0_110] : memref<3x1x128xf32, #tpu.memory_space<vmem>>, vector<1x1x128xf32>
    %105 = vector.shape_cast %104 : vector<1x1x128xf32> to vector<1x128xf32>
    %106 = vector.shape_cast %105 : vector<1x128xf32> to vector<1x128xf32>
    %107 = vector.broadcast %106 : vector<1x128xf32> to vector<64x128xf32>
    %c0_111 = arith.constant 0 : index
    %c0_112 = arith.constant 0 : index
    %c0_113 = arith.constant 0 : index
    %108 = vector.load %arg11[%c0_111, %c0_112, %c0_113] : memref<10x10x128xbf16, #tpu.memory_space<vmem>>, vector<8x8x128xbf16>
    %109 = vector.shape_cast %108 : vector<8x8x128xbf16> to vector<64x128xbf16>
    %c1_114 = arith.constant 1 : index
    %c0_115 = arith.constant 0 : index
    %c0_116 = arith.constant 0 : index
    %c0_117 = arith.constant 0 : index
    %110 = vector.load %arg4[%c1_114, %c0_115, %c0_116, %c0_117] : memref<3x9x128x128xbf16, #tpu.memory_space<vmem>>, vector<1x1x128x128xbf16>
    %111 = vector.shape_cast %110 : vector<1x1x128x128xbf16> to vector<128x128xbf16>
    %cst_118 = arith.constant dense<0.000000e+00> : vector<64x128xf32>
    %112 = tpu.matmul %109, %111, %cst_118 {dimension_numbers = #tpu.dot_dimension_numbers<[1], [0], [0], [1], [0, 0, 1, 1], [], []>} : vector<64x128xbf16>, vector<128x128xbf16>, vector<64x128xf32> -> vector<64x128xf32>
    %113 = arith.addf %107, %112 : vector<64x128xf32>
    %c0_119 = arith.constant 0 : index
    %c1_120 = arith.constant 1 : index
    %c0_121 = arith.constant 0 : index
    %114 = vector.load %arg11[%c0_119, %c1_120, %c0_121] : memref<10x10x128xbf16, #tpu.memory_space<vmem>>, vector<8x8x128xbf16>
    %115 = vector.shape_cast %114 : vector<8x8x128xbf16> to vector<64x128xbf16>
    %c1_122 = arith.constant 1 : index
    %c1_123 = arith.constant 1 : index
    %c0_124 = arith.constant 0 : index
    %c0_125 = arith.constant 0 : index
    %116 = vector.load %arg4[%c1_122, %c1_123, %c0_124, %c0_125] : memref<3x9x128x128xbf16, #tpu.memory_space<vmem>>, vector<1x1x128x128xbf16>
    %117 = vector.shape_cast %116 : vector<1x1x128x128xbf16> to vector<128x128xbf16>
    %cst_126 = arith.constant dense<0.000000e+00> : vector<64x128xf32>
    %118 = tpu.matmul %115, %117, %cst_126 {dimension_numbers = #tpu.dot_dimension_numbers<[1], [0], [0], [1], [0, 0, 1, 1], [], []>} : vector<64x128xbf16>, vector<128x128xbf16>, vector<64x128xf32> -> vector<64x128xf32>
    %119 = arith.addf %113, %118 : vector<64x128xf32>
    %c0_127 = arith.constant 0 : index
    %c2_128 = arith.constant 2 : index
    %c0_129 = arith.constant 0 : index
    %120 = vector.load %arg11[%c0_127, %c2_128, %c0_129] : memref<10x10x128xbf16, #tpu.memory_space<vmem>>, vector<8x8x128xbf16>
    %121 = vector.shape_cast %120 : vector<8x8x128xbf16> to vector<64x128xbf16>
    %c1_130 = arith.constant 1 : index
    %c2_131 = arith.constant 2 : index
    %c0_132 = arith.constant 0 : index
    %c0_133 = arith.constant 0 : index
    %122 = vector.load %arg4[%c1_130, %c2_131, %c0_132, %c0_133] : memref<3x9x128x128xbf16, #tpu.memory_space<vmem>>, vector<1x1x128x128xbf16>
    %123 = vector.shape_cast %122 : vector<1x1x128x128xbf16> to vector<128x128xbf16>
    %cst_134 = arith.constant dense<0.000000e+00> : vector<64x128xf32>
    %124 = tpu.matmul %121, %123, %cst_134 {dimension_numbers = #tpu.dot_dimension_numbers<[1], [0], [0], [1], [0, 0, 1, 1], [], []>} : vector<64x128xbf16>, vector<128x128xbf16>, vector<64x128xf32> -> vector<64x128xf32>
    %125 = arith.addf %119, %124 : vector<64x128xf32>
    %c1_135 = arith.constant 1 : index
    %c0_136 = arith.constant 0 : index
    %c0_137 = arith.constant 0 : index
    %126 = vector.load %arg11[%c1_135, %c0_136, %c0_137] : memref<10x10x128xbf16, #tpu.memory_space<vmem>>, vector<8x8x128xbf16>
    %127 = vector.shape_cast %126 : vector<8x8x128xbf16> to vector<64x128xbf16>
    %c1_138 = arith.constant 1 : index
    %c3_139 = arith.constant 3 : index
    %c0_140 = arith.constant 0 : index
    %c0_141 = arith.constant 0 : index
    %128 = vector.load %arg4[%c1_138, %c3_139, %c0_140, %c0_141] : memref<3x9x128x128xbf16, #tpu.memory_space<vmem>>, vector<1x1x128x128xbf16>
    %129 = vector.shape_cast %128 : vector<1x1x128x128xbf16> to vector<128x128xbf16>
    %cst_142 = arith.constant dense<0.000000e+00> : vector<64x128xf32>
    %130 = tpu.matmul %127, %129, %cst_142 {dimension_numbers = #tpu.dot_dimension_numbers<[1], [0], [0], [1], [0, 0, 1, 1], [], []>} : vector<64x128xbf16>, vector<128x128xbf16>, vector<64x128xf32> -> vector<64x128xf32>
    %131 = arith.addf %125, %130 : vector<64x128xf32>
    %c1_143 = arith.constant 1 : index
    %c1_144 = arith.constant 1 : index
    %c0_145 = arith.constant 0 : index
    %132 = vector.load %arg11[%c1_143, %c1_144, %c0_145] : memref<10x10x128xbf16, #tpu.memory_space<vmem>>, vector<8x8x128xbf16>
    %133 = vector.shape_cast %132 : vector<8x8x128xbf16> to vector<64x128xbf16>
    %c1_146 = arith.constant 1 : index
    %c4_147 = arith.constant 4 : index
    %c0_148 = arith.constant 0 : index
    %c0_149 = arith.constant 0 : index
    %134 = vector.load %arg4[%c1_146, %c4_147, %c0_148, %c0_149] : memref<3x9x128x128xbf16, #tpu.memory_space<vmem>>, vector<1x1x128x128xbf16>
    %135 = vector.shape_cast %134 : vector<1x1x128x128xbf16> to vector<128x128xbf16>
    %cst_150 = arith.constant dense<0.000000e+00> : vector<64x128xf32>
    %136 = tpu.matmul %133, %135, %cst_150 {dimension_numbers = #tpu.dot_dimension_numbers<[1], [0], [0], [1], [0, 0, 1, 1], [], []>} : vector<64x128xbf16>, vector<128x128xbf16>, vector<64x128xf32> -> vector<64x128xf32>
    %137 = arith.addf %131, %136 : vector<64x128xf32>
    %c1_151 = arith.constant 1 : index
    %c2_152 = arith.constant 2 : index
    %c0_153 = arith.constant 0 : index
    %138 = vector.load %arg11[%c1_151, %c2_152, %c0_153] : memref<10x10x128xbf16, #tpu.memory_space<vmem>>, vector<8x8x128xbf16>
    %139 = vector.shape_cast %138 : vector<8x8x128xbf16> to vector<64x128xbf16>
    %c1_154 = arith.constant 1 : index
    %c5_155 = arith.constant 5 : index
    %c0_156 = arith.constant 0 : index
    %c0_157 = arith.constant 0 : index
    %140 = vector.load %arg4[%c1_154, %c5_155, %c0_156, %c0_157] : memref<3x9x128x128xbf16, #tpu.memory_space<vmem>>, vector<1x1x128x128xbf16>
    %141 = vector.shape_cast %140 : vector<1x1x128x128xbf16> to vector<128x128xbf16>
    %cst_158 = arith.constant dense<0.000000e+00> : vector<64x128xf32>
    %142 = tpu.matmul %139, %141, %cst_158 {dimension_numbers = #tpu.dot_dimension_numbers<[1], [0], [0], [1], [0, 0, 1, 1], [], []>} : vector<64x128xbf16>, vector<128x128xbf16>, vector<64x128xf32> -> vector<64x128xf32>
    %143 = arith.addf %137, %142 : vector<64x128xf32>
    %c2_159 = arith.constant 2 : index
    %c0_160 = arith.constant 0 : index
    %c0_161 = arith.constant 0 : index
    %144 = vector.load %arg11[%c2_159, %c0_160, %c0_161] : memref<10x10x128xbf16, #tpu.memory_space<vmem>>, vector<8x8x128xbf16>
    %145 = vector.shape_cast %144 : vector<8x8x128xbf16> to vector<64x128xbf16>
    %c1_162 = arith.constant 1 : index
    %c6_163 = arith.constant 6 : index
    %c0_164 = arith.constant 0 : index
    %c0_165 = arith.constant 0 : index
    %146 = vector.load %arg4[%c1_162, %c6_163, %c0_164, %c0_165] : memref<3x9x128x128xbf16, #tpu.memory_space<vmem>>, vector<1x1x128x128xbf16>
    %147 = vector.shape_cast %146 : vector<1x1x128x128xbf16> to vector<128x128xbf16>
    %cst_166 = arith.constant dense<0.000000e+00> : vector<64x128xf32>
    %148 = tpu.matmul %145, %147, %cst_166 {dimension_numbers = #tpu.dot_dimension_numbers<[1], [0], [0], [1], [0, 0, 1, 1], [], []>} : vector<64x128xbf16>, vector<128x128xbf16>, vector<64x128xf32> -> vector<64x128xf32>
    %149 = arith.addf %143, %148 : vector<64x128xf32>
    %c2_167 = arith.constant 2 : index
    %c1_168 = arith.constant 1 : index
    %c0_169 = arith.constant 0 : index
    %150 = vector.load %arg11[%c2_167, %c1_168, %c0_169] : memref<10x10x128xbf16, #tpu.memory_space<vmem>>, vector<8x8x128xbf16>
    %151 = vector.shape_cast %150 : vector<8x8x128xbf16> to vector<64x128xbf16>
    %c1_170 = arith.constant 1 : index
    %c7_171 = arith.constant 7 : index
    %c0_172 = arith.constant 0 : index
    %c0_173 = arith.constant 0 : index
    %152 = vector.load %arg4[%c1_170, %c7_171, %c0_172, %c0_173] : memref<3x9x128x128xbf16, #tpu.memory_space<vmem>>, vector<1x1x128x128xbf16>
    %153 = vector.shape_cast %152 : vector<1x1x128x128xbf16> to vector<128x128xbf16>
    %cst_174 = arith.constant dense<0.000000e+00> : vector<64x128xf32>
    %154 = tpu.matmul %151, %153, %cst_174 {dimension_numbers = #tpu.dot_dimension_numbers<[1], [0], [0], [1], [0, 0, 1, 1], [], []>} : vector<64x128xbf16>, vector<128x128xbf16>, vector<64x128xf32> -> vector<64x128xf32>
    %155 = arith.addf %149, %154 : vector<64x128xf32>
    %c2_175 = arith.constant 2 : index
    %c2_176 = arith.constant 2 : index
    %c0_177 = arith.constant 0 : index
    %156 = vector.load %arg11[%c2_175, %c2_176, %c0_177] : memref<10x10x128xbf16, #tpu.memory_space<vmem>>, vector<8x8x128xbf16>
    %157 = vector.shape_cast %156 : vector<8x8x128xbf16> to vector<64x128xbf16>
    %c1_178 = arith.constant 1 : index
    %c8_179 = arith.constant 8 : index
    %c0_180 = arith.constant 0 : index
    %c0_181 = arith.constant 0 : index
    %158 = vector.load %arg4[%c1_178, %c8_179, %c0_180, %c0_181] : memref<3x9x128x128xbf16, #tpu.memory_space<vmem>>, vector<1x1x128x128xbf16>
    %159 = vector.shape_cast %158 : vector<1x1x128x128xbf16> to vector<128x128xbf16>
    %cst_182 = arith.constant dense<0.000000e+00> : vector<64x128xf32>
    %160 = tpu.matmul %157, %159, %cst_182 {dimension_numbers = #tpu.dot_dimension_numbers<[1], [0], [0], [1], [0, 0, 1, 1], [], []>} : vector<64x128xbf16>, vector<128x128xbf16>, vector<64x128xf32> -> vector<64x128xf32>
    %161 = arith.addf %155, %160 : vector<64x128xf32>
    %cst_183 = arith.constant 0.000000e+00 : f32
    %162 = vector.broadcast %cst_183 : f32 to vector<64x128xf32>
    %163 = arith.maximumf %161, %162 : vector<64x128xf32>
    %164 = arith.truncf %163 : vector<64x128xf32> to vector<64x128xbf16>
    %c1_184 = arith.constant 1 : index
    %c0_185 = arith.constant 0 : index
    %c0_186 = arith.constant 0 : index
    %165 = vector.load %arg6[%c1_184, %c0_185, %c0_186] : memref<3x128x128xbf16, #tpu.memory_space<vmem>>, vector<1x128x128xbf16>
    %166 = vector.shape_cast %165 : vector<1x128x128xbf16> to vector<128x128xbf16>
    %cst_187 = arith.constant dense<0.000000e+00> : vector<64x128xf32>
    %167 = tpu.matmul %164, %166, %cst_187 {dimension_numbers = #tpu.dot_dimension_numbers<[1], [0], [0], [1], [0, 0, 1, 1], [], []>} : vector<64x128xbf16>, vector<128x128xbf16>, vector<64x128xf32> -> vector<64x128xf32>
    %c1_188 = arith.constant 1 : index
    %c0_189 = arith.constant 0 : index
    %c0_190 = arith.constant 0 : index
    %168 = vector.load %arg7[%c1_188, %c0_189, %c0_190] : memref<3x1x128xf32, #tpu.memory_space<vmem>>, vector<1x1x128xf32>
    %169 = vector.shape_cast %168 : vector<1x1x128xf32> to vector<1x128xf32>
    %170 = vector.broadcast %169 : vector<1x128xf32> to vector<64x128xf32>
    %171 = arith.addf %167, %170 : vector<64x128xf32>
    %172 = arith.extf %91 : vector<64x128xbf16> to vector<64x128xf32>
    %173 = arith.addf %171, %172 : vector<64x128xf32>
    %cst_191 = arith.constant 0.000000e+00 : f32
    %174 = vector.broadcast %cst_191 : f32 to vector<64x128xf32>
    %175 = arith.maximumf %173, %174 : vector<64x128xf32>
    %176 = arith.truncf %175 : vector<64x128xf32> to vector<64x128xbf16>
    %c2_192 = arith.constant 2 : index
    %c0_193 = arith.constant 0 : index
    %c0_194 = arith.constant 0 : index
    %177 = vector.load %arg2[%c2_192, %c0_193, %c0_194] : memref<3x128x128xbf16, #tpu.memory_space<vmem>>, vector<1x128x128xbf16>
    %178 = vector.shape_cast %177 : vector<1x128x128xbf16> to vector<128x128xbf16>
    %cst_195 = arith.constant dense<0.000000e+00> : vector<64x128xf32>
    %179 = tpu.matmul %176, %178, %cst_195 {dimension_numbers = #tpu.dot_dimension_numbers<[1], [0], [0], [1], [0, 0, 1, 1], [], []>} : vector<64x128xbf16>, vector<128x128xbf16>, vector<64x128xf32> -> vector<64x128xf32>
    %c2_196 = arith.constant 2 : index
    %c0_197 = arith.constant 0 : index
    %c0_198 = arith.constant 0 : index
    %180 = vector.load %arg3[%c2_196, %c0_197, %c0_198] : memref<3x1x128xf32, #tpu.memory_space<vmem>>, vector<1x1x128xf32>
    %181 = vector.shape_cast %180 : vector<1x1x128xf32> to vector<1x128xf32>
    %182 = vector.broadcast %181 : vector<1x128xf32> to vector<64x128xf32>
    %183 = arith.addf %179, %182 : vector<64x128xf32>
    %cst_199 = arith.constant 0.000000e+00 : f32
    %184 = vector.broadcast %cst_199 : f32 to vector<64x128xf32>
    %185 = arith.maximumf %183, %184 : vector<64x128xf32>
    %186 = vector.shape_cast %185 : vector<64x128xf32> to vector<8x8x128xf32>
    %187 = arith.truncf %186 : vector<8x8x128xf32> to vector<8x8x128xbf16>
    %c1_200 = arith.constant 1 : index
    %c1_201 = arith.constant 1 : index
    %c0_202 = arith.constant 0 : index
    %188 = vector.load %arg11[%c1_200, %c1_201, %c0_202] : memref<10x10x128xbf16, #tpu.memory_space<vmem>>, vector<8x8x128xbf16>
    tpu.vector_store %arg11[%c1_200, %c1_201, %c0_202], %187 {strides = array<i32>} : memref<10x10x128xbf16, #tpu.memory_space<vmem>>, vector<8x8x128xbf16>,
    %c2_203 = arith.constant 2 : index
    %c0_204 = arith.constant 0 : index
    %c0_205 = arith.constant 0 : index
    %189 = vector.load %arg5[%c2_203, %c0_204, %c0_205] : memref<3x1x128xf32, #tpu.memory_space<vmem>>, vector<1x1x128xf32>
    %190 = vector.shape_cast %189 : vector<1x1x128xf32> to vector<1x128xf32>
    %191 = vector.shape_cast %190 : vector<1x128xf32> to vector<1x128xf32>
    %192 = vector.broadcast %191 : vector<1x128xf32> to vector<64x128xf32>
    %c0_206 = arith.constant 0 : index
    %c0_207 = arith.constant 0 : index
    %c0_208 = arith.constant 0 : index
    %193 = vector.load %arg11[%c0_206, %c0_207, %c0_208] : memref<10x10x128xbf16, #tpu.memory_space<vmem>>, vector<8x8x128xbf16>
    %194 = vector.shape_cast %193 : vector<8x8x128xbf16> to vector<64x128xbf16>
    %c2_209 = arith.constant 2 : index
    %c0_210 = arith.constant 0 : index
    %c0_211 = arith.constant 0 : index
    %c0_212 = arith.constant 0 : index
    %195 = vector.load %arg4[%c2_209, %c0_210, %c0_211, %c0_212] : memref<3x9x128x128xbf16, #tpu.memory_space<vmem>>, vector<1x1x128x128xbf16>
    %196 = vector.shape_cast %195 : vector<1x1x128x128xbf16> to vector<128x128xbf16>
    %cst_213 = arith.constant dense<0.000000e+00> : vector<64x128xf32>
    %197 = tpu.matmul %194, %196, %cst_213 {dimension_numbers = #tpu.dot_dimension_numbers<[1], [0], [0], [1], [0, 0, 1, 1], [], []>} : vector<64x128xbf16>, vector<128x128xbf16>, vector<64x128xf32> -> vector<64x128xf32>
    %198 = arith.addf %192, %197 : vector<64x128xf32>
    %c0_214 = arith.constant 0 : index
    %c1_215 = arith.constant 1 : index
    %c0_216 = arith.constant 0 : index
    %199 = vector.load %arg11[%c0_214, %c1_215, %c0_216] : memref<10x10x128xbf16, #tpu.memory_space<vmem>>, vector<8x8x128xbf16>
    %200 = vector.shape_cast %199 : vector<8x8x128xbf16> to vector<64x128xbf16>
    %c2_217 = arith.constant 2 : index
    %c1_218 = arith.constant 1 : index
    %c0_219 = arith.constant 0 : index
    %c0_220 = arith.constant 0 : index
    %201 = vector.load %arg4[%c2_217, %c1_218, %c0_219, %c0_220] : memref<3x9x128x128xbf16, #tpu.memory_space<vmem>>, vector<1x1x128x128xbf16>
    %202 = vector.shape_cast %201 : vector<1x1x128x128xbf16> to vector<128x128xbf16>
    %cst_221 = arith.constant dense<0.000000e+00> : vector<64x128xf32>
    %203 = tpu.matmul %200, %202, %cst_221 {dimension_numbers = #tpu.dot_dimension_numbers<[1], [0], [0], [1], [0, 0, 1, 1], [], []>} : vector<64x128xbf16>, vector<128x128xbf16>, vector<64x128xf32> -> vector<64x128xf32>
    %204 = arith.addf %198, %203 : vector<64x128xf32>
    %c0_222 = arith.constant 0 : index
    %c2_223 = arith.constant 2 : index
    %c0_224 = arith.constant 0 : index
    %205 = vector.load %arg11[%c0_222, %c2_223, %c0_224] : memref<10x10x128xbf16, #tpu.memory_space<vmem>>, vector<8x8x128xbf16>
    %206 = vector.shape_cast %205 : vector<8x8x128xbf16> to vector<64x128xbf16>
    %c2_225 = arith.constant 2 : index
    %c2_226 = arith.constant 2 : index
    %c0_227 = arith.constant 0 : index
    %c0_228 = arith.constant 0 : index
    %207 = vector.load %arg4[%c2_225, %c2_226, %c0_227, %c0_228] : memref<3x9x128x128xbf16, #tpu.memory_space<vmem>>, vector<1x1x128x128xbf16>
    %208 = vector.shape_cast %207 : vector<1x1x128x128xbf16> to vector<128x128xbf16>
    %cst_229 = arith.constant dense<0.000000e+00> : vector<64x128xf32>
    %209 = tpu.matmul %206, %208, %cst_229 {dimension_numbers = #tpu.dot_dimension_numbers<[1], [0], [0], [1], [0, 0, 1, 1], [], []>} : vector<64x128xbf16>, vector<128x128xbf16>, vector<64x128xf32> -> vector<64x128xf32>
    %210 = arith.addf %204, %209 : vector<64x128xf32>
    %c1_230 = arith.constant 1 : index
    %c0_231 = arith.constant 0 : index
    %c0_232 = arith.constant 0 : index
    %211 = vector.load %arg11[%c1_230, %c0_231, %c0_232] : memref<10x10x128xbf16, #tpu.memory_space<vmem>>, vector<8x8x128xbf16>
    %212 = vector.shape_cast %211 : vector<8x8x128xbf16> to vector<64x128xbf16>
    %c2_233 = arith.constant 2 : index
    %c3_234 = arith.constant 3 : index
    %c0_235 = arith.constant 0 : index
    %c0_236 = arith.constant 0 : index
    %213 = vector.load %arg4[%c2_233, %c3_234, %c0_235, %c0_236] : memref<3x9x128x128xbf16, #tpu.memory_space<vmem>>, vector<1x1x128x128xbf16>
    %214 = vector.shape_cast %213 : vector<1x1x128x128xbf16> to vector<128x128xbf16>
    %cst_237 = arith.constant dense<0.000000e+00> : vector<64x128xf32>
    %215 = tpu.matmul %212, %214, %cst_237 {dimension_numbers = #tpu.dot_dimension_numbers<[1], [0], [0], [1], [0, 0, 1, 1], [], []>} : vector<64x128xbf16>, vector<128x128xbf16>, vector<64x128xf32> -> vector<64x128xf32>
    %216 = arith.addf %210, %215 : vector<64x128xf32>
    %c1_238 = arith.constant 1 : index
    %c1_239 = arith.constant 1 : index
    %c0_240 = arith.constant 0 : index
    %217 = vector.load %arg11[%c1_238, %c1_239, %c0_240] : memref<10x10x128xbf16, #tpu.memory_space<vmem>>, vector<8x8x128xbf16>
    %218 = vector.shape_cast %217 : vector<8x8x128xbf16> to vector<64x128xbf16>
    %c2_241 = arith.constant 2 : index
    %c4_242 = arith.constant 4 : index
    %c0_243 = arith.constant 0 : index
    %c0_244 = arith.constant 0 : index
    %219 = vector.load %arg4[%c2_241, %c4_242, %c0_243, %c0_244] : memref<3x9x128x128xbf16, #tpu.memory_space<vmem>>, vector<1x1x128x128xbf16>
    %220 = vector.shape_cast %219 : vector<1x1x128x128xbf16> to vector<128x128xbf16>
    %cst_245 = arith.constant dense<0.000000e+00> : vector<64x128xf32>
    %221 = tpu.matmul %218, %220, %cst_245 {dimension_numbers = #tpu.dot_dimension_numbers<[1], [0], [0], [1], [0, 0, 1, 1], [], []>} : vector<64x128xbf16>, vector<128x128xbf16>, vector<64x128xf32> -> vector<64x128xf32>
    %222 = arith.addf %216, %221 : vector<64x128xf32>
    %c1_246 = arith.constant 1 : index
    %c2_247 = arith.constant 2 : index
    %c0_248 = arith.constant 0 : index
    %223 = vector.load %arg11[%c1_246, %c2_247, %c0_248] : memref<10x10x128xbf16, #tpu.memory_space<vmem>>, vector<8x8x128xbf16>
    %224 = vector.shape_cast %223 : vector<8x8x128xbf16> to vector<64x128xbf16>
    %c2_249 = arith.constant 2 : index
    %c5_250 = arith.constant 5 : index
    %c0_251 = arith.constant 0 : index
    %c0_252 = arith.constant 0 : index
    %225 = vector.load %arg4[%c2_249, %c5_250, %c0_251, %c0_252] : memref<3x9x128x128xbf16, #tpu.memory_space<vmem>>, vector<1x1x128x128xbf16>
    %226 = vector.shape_cast %225 : vector<1x1x128x128xbf16> to vector<128x128xbf16>
    %cst_253 = arith.constant dense<0.000000e+00> : vector<64x128xf32>
    %227 = tpu.matmul %224, %226, %cst_253 {dimension_numbers = #tpu.dot_dimension_numbers<[1], [0], [0], [1], [0, 0, 1, 1], [], []>} : vector<64x128xbf16>, vector<128x128xbf16>, vector<64x128xf32> -> vector<64x128xf32>
    %228 = arith.addf %222, %227 : vector<64x128xf32>
    %c2_254 = arith.constant 2 : index
    %c0_255 = arith.constant 0 : index
    %c0_256 = arith.constant 0 : index
    %229 = vector.load %arg11[%c2_254, %c0_255, %c0_256] : memref<10x10x128xbf16, #tpu.memory_space<vmem>>, vector<8x8x128xbf16>
    %230 = vector.shape_cast %229 : vector<8x8x128xbf16> to vector<64x128xbf16>
    %c2_257 = arith.constant 2 : index
    %c6_258 = arith.constant 6 : index
    %c0_259 = arith.constant 0 : index
    %c0_260 = arith.constant 0 : index
    %231 = vector.load %arg4[%c2_257, %c6_258, %c0_259, %c0_260] : memref<3x9x128x128xbf16, #tpu.memory_space<vmem>>, vector<1x1x128x128xbf16>
    %232 = vector.shape_cast %231 : vector<1x1x128x128xbf16> to vector<128x128xbf16>
    %cst_261 = arith.constant dense<0.000000e+00> : vector<64x128xf32>
    %233 = tpu.matmul %230, %232, %cst_261 {dimension_numbers = #tpu.dot_dimension_numbers<[1], [0], [0], [1], [0, 0, 1, 1], [], []>} : vector<64x128xbf16>, vector<128x128xbf16>, vector<64x128xf32> -> vector<64x128xf32>
    %234 = arith.addf %228, %233 : vector<64x128xf32>
    %c2_262 = arith.constant 2 : index
    %c1_263 = arith.constant 1 : index
    %c0_264 = arith.constant 0 : index
    %235 = vector.load %arg11[%c2_262, %c1_263, %c0_264] : memref<10x10x128xbf16, #tpu.memory_space<vmem>>, vector<8x8x128xbf16>
    %236 = vector.shape_cast %235 : vector<8x8x128xbf16> to vector<64x128xbf16>
    %c2_265 = arith.constant 2 : index
    %c7_266 = arith.constant 7 : index
    %c0_267 = arith.constant 0 : index
    %c0_268 = arith.constant 0 : index
    %237 = vector.load %arg4[%c2_265, %c7_266, %c0_267, %c0_268] : memref<3x9x128x128xbf16, #tpu.memory_space<vmem>>, vector<1x1x128x128xbf16>
    %238 = vector.shape_cast %237 : vector<1x1x128x128xbf16> to vector<128x128xbf16>
    %cst_269 = arith.constant dense<0.000000e+00> : vector<64x128xf32>
    %239 = tpu.matmul %236, %238, %cst_269 {dimension_numbers = #tpu.dot_dimension_numbers<[1], [0], [0], [1], [0, 0, 1, 1], [], []>} : vector<64x128xbf16>, vector<128x128xbf16>, vector<64x128xf32> -> vector<64x128xf32>
    %240 = arith.addf %234, %239 : vector<64x128xf32>
    %c2_270 = arith.constant 2 : index
    %c2_271 = arith.constant 2 : index
    %c0_272 = arith.constant 0 : index
    %241 = vector.load %arg11[%c2_270, %c2_271, %c0_272] : memref<10x10x128xbf16, #tpu.memory_space<vmem>>, vector<8x8x128xbf16>
    %242 = vector.shape_cast %241 : vector<8x8x128xbf16> to vector<64x128xbf16>
    %c2_273 = arith.constant 2 : index
    %c8_274 = arith.constant 8 : index
    %c0_275 = arith.constant 0 : index
    %c0_276 = arith.constant 0 : index
    %243 = vector.load %arg4[%c2_273, %c8_274, %c0_275, %c0_276] : memref<3x9x128x128xbf16, #tpu.memory_space<vmem>>, vector<1x1x128x128xbf16>
    %244 = vector.shape_cast %243 : vector<1x1x128x128xbf16> to vector<128x128xbf16>
    %cst_277 = arith.constant dense<0.000000e+00> : vector<64x128xf32>
    %245 = tpu.matmul %242, %244, %cst_277 {dimension_numbers = #tpu.dot_dimension_numbers<[1], [0], [0], [1], [0, 0, 1, 1], [], []>} : vector<64x128xbf16>, vector<128x128xbf16>, vector<64x128xf32> -> vector<64x128xf32>
    %246 = arith.addf %240, %245 : vector<64x128xf32>
    %cst_278 = arith.constant 0.000000e+00 : f32
    %247 = vector.broadcast %cst_278 : f32 to vector<64x128xf32>
    %248 = arith.maximumf %246, %247 : vector<64x128xf32>
    %249 = arith.truncf %248 : vector<64x128xf32> to vector<64x128xbf16>
    %c2_279 = arith.constant 2 : index
    %c0_280 = arith.constant 0 : index
    %c0_281 = arith.constant 0 : index
    %250 = vector.load %arg6[%c2_279, %c0_280, %c0_281] : memref<3x128x128xbf16, #tpu.memory_space<vmem>>, vector<1x128x128xbf16>
    %251 = vector.shape_cast %250 : vector<1x128x128xbf16> to vector<128x128xbf16>
    %cst_282 = arith.constant dense<0.000000e+00> : vector<64x128xf32>
    %252 = tpu.matmul %249, %251, %cst_282 {dimension_numbers = #tpu.dot_dimension_numbers<[1], [0], [0], [1], [0, 0, 1, 1], [], []>} : vector<64x128xbf16>, vector<128x128xbf16>, vector<64x128xf32> -> vector<64x128xf32>
    %c2_283 = arith.constant 2 : index
    %c0_284 = arith.constant 0 : index
    %c0_285 = arith.constant 0 : index
    %253 = vector.load %arg7[%c2_283, %c0_284, %c0_285] : memref<3x1x128xf32, #tpu.memory_space<vmem>>, vector<1x1x128xf32>
    %254 = vector.shape_cast %253 : vector<1x1x128xf32> to vector<1x128xf32>
    %255 = vector.broadcast %254 : vector<1x128xf32> to vector<64x128xf32>
    %256 = arith.addf %252, %255 : vector<64x128xf32>
    %257 = arith.extf %176 : vector<64x128xbf16> to vector<64x128xf32>
    %258 = arith.addf %256, %257 : vector<64x128xf32>
    %cst_286 = arith.constant 0.000000e+00 : f32
    %259 = vector.broadcast %cst_286 : f32 to vector<64x128xf32>
    %260 = arith.maximumf %258, %259 : vector<64x128xf32>
    %261 = arith.truncf %260 : vector<64x128xf32> to vector<64x128xbf16>
    %262 = vector.shape_cast %261 : vector<64x128xbf16> to vector<8x8x128xbf16>
    %c1_287 = arith.constant 1 : index
    %c1_288 = arith.constant 1 : index
    %c0_289 = arith.constant 0 : index
    %263 = vector.load %arg12[%c1_287, %c1_288, %c0_289] : memref<10x10x128xbf16, #tpu.memory_space<vmem>>, vector<8x8x128xbf16>
    tpu.vector_store %arg12[%c1_287, %c1_288, %c0_289], %262 {strides = array<i32>} : memref<10x10x128xbf16, #tpu.memory_space<vmem>>, vector<8x8x128xbf16>,
    %c0_290 = arith.constant 0 : index
    %c0_291 = arith.constant 0 : index
    %264 = vector.load %arg9[%c0_290, %c0_291] : memref<1x128xf32, #tpu.memory_space<vmem>>, vector<1x128xf32>
    %265 = vector.shape_cast %264 : vector<1x128xf32> to vector<1x128xf32>
    %266 = vector.broadcast %265 : vector<1x128xf32> to vector<64x128xf32>
    %c0_292 = arith.constant 0 : index
    %c0_293 = arith.constant 0 : index
    %c0_294 = arith.constant 0 : index
    %267 = vector.load %arg12[%c0_292, %c0_293, %c0_294] : memref<10x10x128xbf16, #tpu.memory_space<vmem>>, vector<8x8x128xbf16>
    %268 = vector.shape_cast %267 : vector<8x8x128xbf16> to vector<64x128xbf16>
    %c0_295 = arith.constant 0 : index
    %c0_296 = arith.constant 0 : index
    %c0_297 = arith.constant 0 : index
    %269 = vector.load %arg8[%c0_295, %c0_296, %c0_297] : memref<9x128x128xbf16, #tpu.memory_space<vmem>>, vector<1x128x128xbf16>
    %270 = vector.shape_cast %269 : vector<1x128x128xbf16> to vector<128x128xbf16>
    %cst_298 = arith.constant dense<0.000000e+00> : vector<64x128xf32>
    %271 = tpu.matmul %268, %270, %cst_298 {dimension_numbers = #tpu.dot_dimension_numbers<[1], [0], [0], [1], [0, 0, 1, 1], [], []>} : vector<64x128xbf16>, vector<128x128xbf16>, vector<64x128xf32> -> vector<64x128xf32>
    %272 = arith.addf %266, %271 : vector<64x128xf32>
    %c0_299 = arith.constant 0 : index
    %c1_300 = arith.constant 1 : index
    %c0_301 = arith.constant 0 : index
    %273 = vector.load %arg12[%c0_299, %c1_300, %c0_301] : memref<10x10x128xbf16, #tpu.memory_space<vmem>>, vector<8x8x128xbf16>
    %274 = vector.shape_cast %273 : vector<8x8x128xbf16> to vector<64x128xbf16>
    %c1_302 = arith.constant 1 : index
    %c0_303 = arith.constant 0 : index
    %c0_304 = arith.constant 0 : index
    %275 = vector.load %arg8[%c1_302, %c0_303, %c0_304] : memref<9x128x128xbf16, #tpu.memory_space<vmem>>, vector<1x128x128xbf16>
    %276 = vector.shape_cast %275 : vector<1x128x128xbf16> to vector<128x128xbf16>
    %cst_305 = arith.constant dense<0.000000e+00> : vector<64x128xf32>
    %277 = tpu.matmul %274, %276, %cst_305 {dimension_numbers = #tpu.dot_dimension_numbers<[1], [0], [0], [1], [0, 0, 1, 1], [], []>} : vector<64x128xbf16>, vector<128x128xbf16>, vector<64x128xf32> -> vector<64x128xf32>
    %278 = arith.addf %272, %277 : vector<64x128xf32>
    %c0_306 = arith.constant 0 : index
    %c2_307 = arith.constant 2 : index
    %c0_308 = arith.constant 0 : index
    %279 = vector.load %arg12[%c0_306, %c2_307, %c0_308] : memref<10x10x128xbf16, #tpu.memory_space<vmem>>, vector<8x8x128xbf16>
    %280 = vector.shape_cast %279 : vector<8x8x128xbf16> to vector<64x128xbf16>
    %c2_309 = arith.constant 2 : index
    %c0_310 = arith.constant 0 : index
    %c0_311 = arith.constant 0 : index
    %281 = vector.load %arg8[%c2_309, %c0_310, %c0_311] : memref<9x128x128xbf16, #tpu.memory_space<vmem>>, vector<1x128x128xbf16>
    %282 = vector.shape_cast %281 : vector<1x128x128xbf16> to vector<128x128xbf16>
    %cst_312 = arith.constant dense<0.000000e+00> : vector<64x128xf32>
    %283 = tpu.matmul %280, %282, %cst_312 {dimension_numbers = #tpu.dot_dimension_numbers<[1], [0], [0], [1], [0, 0, 1, 1], [], []>} : vector<64x128xbf16>, vector<128x128xbf16>, vector<64x128xf32> -> vector<64x128xf32>
    %284 = arith.addf %278, %283 : vector<64x128xf32>
    %c1_313 = arith.constant 1 : index
    %c0_314 = arith.constant 0 : index
    %c0_315 = arith.constant 0 : index
    %285 = vector.load %arg12[%c1_313, %c0_314, %c0_315] : memref<10x10x128xbf16, #tpu.memory_space<vmem>>, vector<8x8x128xbf16>
    %286 = vector.shape_cast %285 : vector<8x8x128xbf16> to vector<64x128xbf16>
    %c3_316 = arith.constant 3 : index
    %c0_317 = arith.constant 0 : index
    %c0_318 = arith.constant 0 : index
    %287 = vector.load %arg8[%c3_316, %c0_317, %c0_318] : memref<9x128x128xbf16, #tpu.memory_space<vmem>>, vector<1x128x128xbf16>
    %288 = vector.shape_cast %287 : vector<1x128x128xbf16> to vector<128x128xbf16>
    %cst_319 = arith.constant dense<0.000000e+00> : vector<64x128xf32>
    %289 = tpu.matmul %286, %288, %cst_319 {dimension_numbers = #tpu.dot_dimension_numbers<[1], [0], [0], [1], [0, 0, 1, 1], [], []>} : vector<64x128xbf16>, vector<128x128xbf16>, vector<64x128xf32> -> vector<64x128xf32>
    %290 = arith.addf %284, %289 : vector<64x128xf32>
    %c1_320 = arith.constant 1 : index
    %c1_321 = arith.constant 1 : index
    %c0_322 = arith.constant 0 : index
    %291 = vector.load %arg12[%c1_320, %c1_321, %c0_322] : memref<10x10x128xbf16, #tpu.memory_space<vmem>>, vector<8x8x128xbf16>
    %292 = vector.shape_cast %291 : vector<8x8x128xbf16> to vector<64x128xbf16>
    %c4_323 = arith.constant 4 : index
    %c0_324 = arith.constant 0 : index
    %c0_325 = arith.constant 0 : index
    %293 = vector.load %arg8[%c4_323, %c0_324, %c0_325] : memref<9x128x128xbf16, #tpu.memory_space<vmem>>, vector<1x128x128xbf16>
    %294 = vector.shape_cast %293 : vector<1x128x128xbf16> to vector<128x128xbf16>
    %cst_326 = arith.constant dense<0.000000e+00> : vector<64x128xf32>
    %295 = tpu.matmul %292, %294, %cst_326 {dimension_numbers = #tpu.dot_dimension_numbers<[1], [0], [0], [1], [0, 0, 1, 1], [], []>} : vector<64x128xbf16>, vector<128x128xbf16>, vector<64x128xf32> -> vector<64x128xf32>
    %296 = arith.addf %290, %295 : vector<64x128xf32>
    %c1_327 = arith.constant 1 : index
    %c2_328 = arith.constant 2 : index
    %c0_329 = arith.constant 0 : index
    %297 = vector.load %arg12[%c1_327, %c2_328, %c0_329] : memref<10x10x128xbf16, #tpu.memory_space<vmem>>, vector<8x8x128xbf16>
    %298 = vector.shape_cast %297 : vector<8x8x128xbf16> to vector<64x128xbf16>
    %c5_330 = arith.constant 5 : index
    %c0_331 = arith.constant 0 : index
    %c0_332 = arith.constant 0 : index
    %299 = vector.load %arg8[%c5_330, %c0_331, %c0_332] : memref<9x128x128xbf16, #tpu.memory_space<vmem>>, vector<1x128x128xbf16>
    %300 = vector.shape_cast %299 : vector<1x128x128xbf16> to vector<128x128xbf16>
    %cst_333 = arith.constant dense<0.000000e+00> : vector<64x128xf32>
    %301 = tpu.matmul %298, %300, %cst_333 {dimension_numbers = #tpu.dot_dimension_numbers<[1], [0], [0], [1], [0, 0, 1, 1], [], []>} : vector<64x128xbf16>, vector<128x128xbf16>, vector<64x128xf32> -> vector<64x128xf32>
    %302 = arith.addf %296, %301 : vector<64x128xf32>
    %c2_334 = arith.constant 2 : index
    %c0_335 = arith.constant 0 : index
    %c0_336 = arith.constant 0 : index
    %303 = vector.load %arg12[%c2_334, %c0_335, %c0_336] : memref<10x10x128xbf16, #tpu.memory_space<vmem>>, vector<8x8x128xbf16>
    %304 = vector.shape_cast %303 : vector<8x8x128xbf16> to vector<64x128xbf16>
    %c6_337 = arith.constant 6 : index
    %c0_338 = arith.constant 0 : index
    %c0_339 = arith.constant 0 : index
    %305 = vector.load %arg8[%c6_337, %c0_338, %c0_339] : memref<9x128x128xbf16, #tpu.memory_space<vmem>>, vector<1x128x128xbf16>
    %306 = vector.shape_cast %305 : vector<1x128x128xbf16> to vector<128x128xbf16>
    %cst_340 = arith.constant dense<0.000000e+00> : vector<64x128xf32>
    %307 = tpu.matmul %304, %306, %cst_340 {dimension_numbers = #tpu.dot_dimension_numbers<[1], [0], [0], [1], [0, 0, 1, 1], [], []>} : vector<64x128xbf16>, vector<128x128xbf16>, vector<64x128xf32> -> vector<64x128xf32>
    %308 = arith.addf %302, %307 : vector<64x128xf32>
    %c2_341 = arith.constant 2 : index
    %c1_342 = arith.constant 1 : index
    %c0_343 = arith.constant 0 : index
    %309 = vector.load %arg12[%c2_341, %c1_342, %c0_343] : memref<10x10x128xbf16, #tpu.memory_space<vmem>>, vector<8x8x128xbf16>
    %310 = vector.shape_cast %309 : vector<8x8x128xbf16> to vector<64x128xbf16>
    %c7_344 = arith.constant 7 : index
    %c0_345 = arith.constant 0 : index
    %c0_346 = arith.constant 0 : index
    %311 = vector.load %arg8[%c7_344, %c0_345, %c0_346] : memref<9x128x128xbf16, #tpu.memory_space<vmem>>, vector<1x128x128xbf16>
    %312 = vector.shape_cast %311 : vector<1x128x128xbf16> to vector<128x128xbf16>
    %cst_347 = arith.constant dense<0.000000e+00> : vector<64x128xf32>
    %313 = tpu.matmul %310, %312, %cst_347 {dimension_numbers = #tpu.dot_dimension_numbers<[1], [0], [0], [1], [0, 0, 1, 1], [], []>} : vector<64x128xbf16>, vector<128x128xbf16>, vector<64x128xf32> -> vector<64x128xf32>
    %314 = arith.addf %308, %313 : vector<64x128xf32>
    %c2_348 = arith.constant 2 : index
    %c2_349 = arith.constant 2 : index
    %c0_350 = arith.constant 0 : index
    %315 = vector.load %arg12[%c2_348, %c2_349, %c0_350] : memref<10x10x128xbf16, #tpu.memory_space<vmem>>, vector<8x8x128xbf16>
    %316 = vector.shape_cast %315 : vector<8x8x128xbf16> to vector<64x128xbf16>
    %c8_351 = arith.constant 8 : index
    %c0_352 = arith.constant 0 : index
    %c0_353 = arith.constant 0 : index
    %317 = vector.load %arg8[%c8_351, %c0_352, %c0_353] : memref<9x128x128xbf16, #tpu.memory_space<vmem>>, vector<1x128x128xbf16>
    %318 = vector.shape_cast %317 : vector<1x128x128xbf16> to vector<128x128xbf16>
    %cst_354 = arith.constant dense<0.000000e+00> : vector<64x128xf32>
    %319 = tpu.matmul %316, %318, %cst_354 {dimension_numbers = #tpu.dot_dimension_numbers<[1], [0], [0], [1], [0, 0, 1, 1], [], []>} : vector<64x128xbf16>, vector<128x128xbf16>, vector<64x128xf32> -> vector<64x128xf32>
    %320 = arith.addf %314, %319 : vector<64x128xf32>
    %321 = vector.shape_cast %320 : vector<64x128xf32> to vector<8x8x128xf32>
    %c0_355 = arith.constant 0 : index
    %c0_356 = arith.constant 0 : index
    %c0_357 = arith.constant 0 : index
    %c0_358 = arith.constant 0 : index
    %322 = vector.load %arg10[%c0_355, %c0_356, %c0_357, %c0_358] : memref<1x8x8x128xf32, #tpu.memory_space<vmem>>, vector<1x8x8x128xf32>
    %323 = vector.shape_cast %322 : vector<1x8x8x128xf32> to vector<8x8x128xf32>
    %324 = vector.shape_cast %321 : vector<8x8x128xf32> to vector<1x8x8x128xf32>
    tpu.vector_store %arg10[%c0_355, %c0_356, %c0_357, %c0_358], %324 {strides = array<i32>} : memref<1x8x8x128xf32, #tpu.memory_space<vmem>>, vector<1x8x8x128xf32>,
    return
  }
  func.func @transform_0(%arg0: i32) -> (i32, i32, i32, i32) {
    %c0_i32 = arith.constant 0 : i32
    %c0_i32_0 = arith.constant 0 : i32
    %c0_i32_1 = arith.constant 0 : i32
    %c0_i32_2 = arith.constant 0 : i32
    return %arg0, %c0_i32, %c0_i32_0, %c0_i32_1 : i32, i32, i32, i32
  }
  func.func @transform_1(%arg0: i32) -> (i32, i32, i32) {
    %c0_i32 = arith.constant 0 : i32
    %c0_i32_0 = arith.constant 0 : i32
    %c0_i32_1 = arith.constant 0 : i32
    %c0_i32_2 = arith.constant 0 : i32
    return %c0_i32, %c0_i32_0, %c0_i32_1 : i32, i32, i32
  }
  func.func @transform_2(%arg0: i32) -> (i32, i32, i32) {
    %c0_i32 = arith.constant 0 : i32
    %c0_i32_0 = arith.constant 0 : i32
    %c0_i32_1 = arith.constant 0 : i32
    %c0_i32_2 = arith.constant 0 : i32
    return %c0_i32, %c0_i32_0, %c0_i32_1 : i32, i32, i32
  }
  func.func @transform_3(%arg0: i32) -> (i32, i32, i32, i32) {
    %c0_i32 = arith.constant 0 : i32
    %c0_i32_0 = arith.constant 0 : i32
    %c0_i32_1 = arith.constant 0 : i32
    %c0_i32_2 = arith.constant 0 : i32
    %c0_i32_3 = arith.constant 0 : i32
    return %c0_i32, %c0_i32_0, %c0_i32_1, %c0_i32_2 : i32, i32, i32, i32
  }
  func.func @transform_4(%arg0: i32) -> (i32, i32, i32) {
    %c0_i32 = arith.constant 0 : i32
    %c0_i32_0 = arith.constant 0 : i32
    %c0_i32_1 = arith.constant 0 : i32
    %c0_i32_2 = arith.constant 0 : i32
    return %c0_i32, %c0_i32_0, %c0_i32_1 : i32, i32, i32
  }
  func.func @transform_5(%arg0: i32) -> (i32, i32, i32) {
    %c0_i32 = arith.constant 0 : i32
    %c0_i32_0 = arith.constant 0 : i32
    %c0_i32_1 = arith.constant 0 : i32
    %c0_i32_2 = arith.constant 0 : i32
    return %c0_i32, %c0_i32_0, %c0_i32_1 : i32, i32, i32
  }
  func.func @transform_6(%arg0: i32) -> (i32, i32, i32) {
    %c0_i32 = arith.constant 0 : i32
    %c0_i32_0 = arith.constant 0 : i32
    %c0_i32_1 = arith.constant 0 : i32
    %c0_i32_2 = arith.constant 0 : i32
    return %c0_i32, %c0_i32_0, %c0_i32_1 : i32, i32, i32
  }
  func.func @transform_7(%arg0: i32) -> (i32, i32, i32) {
    %c0_i32 = arith.constant 0 : i32
    %c0_i32_0 = arith.constant 0 : i32
    %c0_i32_1 = arith.constant 0 : i32
    %c0_i32_2 = arith.constant 0 : i32
    return %c0_i32, %c0_i32_0, %c0_i32_1 : i32, i32, i32
  }
  func.func @transform_8(%arg0: i32) -> (i32, i32) {
    %c0_i32 = arith.constant 0 : i32
    %c0_i32_0 = arith.constant 0 : i32
    %c0_i32_1 = arith.constant 0 : i32
    return %c0_i32, %c0_i32_0 : i32, i32
  }
  func.func @transform_9(%arg0: i32) -> (i32, i32, i32, i32) {
    %c0_i32 = arith.constant 0 : i32
    %c0_i32_0 = arith.constant 0 : i32
    %c0_i32_1 = arith.constant 0 : i32
    %c0_i32_2 = arith.constant 0 : i32
    return %arg0, %c0_i32, %c0_i32_0, %c0_i32_1 : i32, i32, i32, i32
  }
}

</mosaic_0001>

<llo_original>
// kernel: _lambda_.1
$region0: #{_lambda_.1}
  #allocation0 [shape = 'u32[]', space=smem, size = 0x4, offset = 0x4, fixed_abs, tag = 'smem constant byte address 0x4 - core index']
  #allocation1 [shape = 'u32[144,128]{1,0:T(1,128)}', space=vmem, size = 0x12000, scoped, tag = 'internal scratch']
  #allocation2 [shape = 'bf16[10,10,128]{2,1,0:T(8,128)(2,1)}', space=vmem, size = 0xa000, scoped, tag = 'scratch operand']
  #allocation3 [shape = 'bf16[10,10,128]{2,1,0:T(8,128)(2,1)}', space=vmem, size = 0xa000, scoped, tag = 'scratch operand']
  %s0 = inlined_call_operand.vmem [shape: bf16[2,8,8,128], index: 0, kind: input, shape index: {}]
  %s1 = inlined_call_operand.hbm [shape: bf16[3,128,128], index: 1, kind: input, shape index: {}]
  %s2 = inlined_call_operand.vmem [shape: f32[3,1,128], index: 2, kind: input, shape index: {}]
  %s3 = inlined_call_operand.hbm [shape: bf16[3,9,128,128], index: 3, kind: input, shape index: {}]
  %s4 = inlined_call_operand.vmem [shape: f32[3,1,128], index: 4, kind: input, shape index: {}]
  %s5 = inlined_call_operand.vmem [shape: bf16[3,128,128], index: 5, kind: input, shape index: {}]
  %s6 = inlined_call_operand.vmem [shape: f32[3,1,128], index: 6, kind: input, shape index: {}]
  %s7 = inlined_call_operand.hbm [shape: bf16[9,128,128], index: 7, kind: input, shape index: {}]
  %s8 = inlined_call_operand.vmem [shape: f32[1,128], index: 8, kind: input, shape index: {}]
  %s9 = inlined_call_operand.vmem [shape: f32[2,8,8,128], index: 9, kind: output, shape index: {}]
  %s10 = sld [smem:[#allocation0]]
  $region81: #{_lambda_.1} parent=0
    _
  %s12 = ssub.s32 1, %s10
  %s13 = scalar_select 0, %s12, %s10
  $region1: #{_lambda_.1} parent=0
    #allocation4 [shape = 'u8[98304]{0}', space=vmem, size = 0x18000, scoped, tag = 'input window, operand 1, single buffered']
    #allocation5 [shape = 's32[2]{0}', space=sflag, size = 0x8, scoped, tag = 'scoped memory for _lambda_.1']
    #allocation6 [shape = 'u8[884736]{0}', space=vmem, size = 0xd8000, scoped, tag = 'input window, operand 3, single buffered']
    #allocation7 [shape = 's32[1]{0}', space=sflag, size = 0x4, scoped, tag = 'scoped memory for _lambda_.1']
    #allocation8 [shape = 'u8[294912]{0}', space=vmem, size = 0x48000, scoped, tag = 'input window, operand 7, single buffered']
    %14 = vsyncpa [#allocation5], 0
    %15 = vsyncpa [#allocation7], 0
    loop: start=0, step=1, limit=4
    $region2: #{_lambda_.1} parent=1 // loop_pre_header
      _
    $region3: #{_lambda_.1} parent=1 // loop_header
      %s17 = sphi 0, %s21
      %p18 = scmp.ge.s32.totalorder %s17, 4
      %s27 = sphi 0, %s29
      %s30 = sphi 0, %s27
      %s31 = sphi 0, %s30
      %s47 = sphi 0, %s31
      %s51 = sphi 0, %s51
      %s53 = sphi 0, %s51
      %s54 = sphi 0, %s53
      %s68 = sphi 0, %s54
      %s72 = sphi 0, %s72
      %s74 = sphi 0, %s72
      %s75 = sphi 0, %s74
      %s89 = sphi 0, %s75
      %s93 = sphi 0, %s93
      %s95 = sphi 0, %s93
      %s96 = sphi 0, %s95
      %s110 = sphi 0, %s96
      %s114 = sphi 0, %s114
      %s116 = sphi 0, %s114
      %s117 = sphi 0, %s116
      %s131 = sphi 0, %s117
      %s135 = sphi 0, %s135
      %s137 = sphi 0, %s135
      %s138 = sphi 0, %s137
      %s152 = sphi 0, %s138
      %s156 = sphi 0, %s156
      %s158 = sphi 0, %s156
      %s159 = sphi 0, %s158
      %s173 = sphi 0, %s159
      %s177 = sphi 0, %s177
      %s179 = sphi 0, %s177
      %s180 = sphi 0, %s179
      %s194 = sphi 0, %s180
      %s198 = sphi 0, %s198
      %s200 = sphi 0, %s198
      %s201 = sphi 0, %s200
      %s215 = sphi 0, %s201
      %s221 = sphi 0, %s223
      %s224 = sphi 0, %s221
      %s225 = sphi 0, %s224
      %s241 = sphi 0, %s225
    $region4: #{_lambda_.1} parent=1 // loop_header_branch
      %20 = sbr.rel (%p18) target = $region8
    $region5: #{_lambda_.1} parent=1 // loop_body
      %s22 = ssub.s32 %s17, 1
      %s23 = ssub.s32 %s17, 2
      %s24 = sadd.s32 %s17, 1
      %s25 = ssub.s32 %s17, %s24
      %p26 = scmp.eq.s32.totalorder %s25, 0
      %s28 = sadd.s32 %s27, 1
      %s29 = scalar_select %p26, %s27, %s28
      %p32 = pneg %p26
      %p33 = scmp.eq.s32.totalorder %s17, 1
      %p34 = por %p32, %p33
      %p35 = scmp.ne.s32.totalorder %s27, %s30
      %p36 = scmp.eq.s32.totalorder %s17, 0
      %p37 = por %p35, %p36
      %p38 = scmp.ne.s32.totalorder %s27, %s30
      %p39 = scmp.eq.s32.totalorder %s22, 1
      %p40 = por %p38, %p39
      %p41 = scmp.ne.s32.totalorder %s30, %s31
      %p42 = scmp.eq.s32.totalorder %s22, 0
      %p43 = por %p41, %p42
      %p44 = scmp.ne.s32.totalorder %s30, %s31
      %p45 = scmp.eq.s32.totalorder %s23, 1
      %p46 = por %p44, %p45
      %p48 = scmp.ne.s32.totalorder %s31, %s47
      %p49 = scmp.eq.s32.totalorder %s23, 0
      %p50 = por %p48, %p49
      %s52 = sadd.s32 %s51, 1
      %p55 = scmp.eq.s32.totalorder %s17, 1
      %p56 = scmp.ne.s32.totalorder %s51, %s53
      %p57 = scmp.eq.s32.totalorder %s17, 0
      %p58 = por %p56, %p57
      %p59 = scmp.ne.s32.totalorder %s51, %s53
      %p60 = scmp.eq.s32.totalorder %s22, 1
      %p61 = por %p59, %p60
      %p62 = scmp.ne.s32.totalorder %s53, %s54
      %p63 = scmp.eq.s32.totalorder %s22, 0
      %p64 = por %p62, %p63
      %p65 = scmp.ne.s32.totalorder %s53, %s54
      %p66 = scmp.eq.s32.totalorder %s23, 1
      %p67 = por %p65, %p66
      %p69 = scmp.ne.s32.totalorder %s54, %s68
      %p70 = scmp.eq.s32.totalorder %s23, 0
      %p71 = por %p69, %p70
      %s73 = sadd.s32 %s72, 1
      %p76 = scmp.eq.s32.totalorder %s17, 1
      %p77 = scmp.ne.s32.totalorder %s72, %s74
      %p78 = scmp.eq.s32.totalorder %s17, 0
      %p79 = por %p77, %p78
      %p80 = scmp.ne.s32.totalorder %s72, %s74
      %p81 = scmp.eq.s32.totalorder %s22, 1
      %p82 = por %p80, %p81
      %p83 = scmp.ne.s32.totalorder %s74, %s75
      %p84 = scmp.eq.s32.totalorder %s22, 0
      %p85 = por %p83, %p84
      %p86 = scmp.ne.s32.totalorder %s74, %s75
      %p87 = scmp.eq.s32.totalorder %s23, 1
      %p88 = por %p86, %p87
      %p90 = scmp.ne.s32.totalorder %s75, %s89
      %p91 = scmp.eq.s32.totalorder %s23, 0
      %p92 = por %p90, %p91
      %s94 = sadd.s32 %s93, 1
      %p97 = scmp.eq.s32.totalorder %s17, 1
      %p98 = scmp.ne.s32.totalorder %s93, %s95
      %p99 = scmp.eq.s32.totalorder %s17, 0
      %p100 = por %p98, %p99
      %p101 = scmp.ne.s32.totalorder %s93, %s95
      %p102 = scmp.eq.s32.totalorder %s22, 1
      %p103 = por %p101, %p102
      %p104 = scmp.ne.s32.totalorder %s95, %s96
      %p105 = scmp.eq.s32.totalorder %s22, 0
      %p106 = por %p104, %p105
      %p107 = scmp.ne.s32.totalorder %s95, %s96
      %p108 = scmp.eq.s32.totalorder %s23, 1
      %p109 = por %p107, %p108
      %p111 = scmp.ne.s32.totalorder %s96, %s110
      %p112 = scmp.eq.s32.totalorder %s23, 0
      %p113 = por %p111, %p112
      %s115 = sadd.s32 %s114, 1
      %p118 = scmp.eq.s32.totalorder %s17, 1
      %p119 = scmp.ne.s32.totalorder %s114, %s116
      %p120 = scmp.eq.s32.totalorder %s17, 0
      %p121 = por %p119, %p120
      %p122 = scmp.ne.s32.totalorder %s114, %s116
      %p123 = scmp.eq.s32.totalorder %s22, 1
      %p124 = por %p122, %p123
      %p125 = scmp.ne.s32.totalorder %s116, %s117
      %p126 = scmp.eq.s32.totalorder %s22, 0
      %p127 = por %p125, %p126
      %p128 = scmp.ne.s32.totalorder %s116, %s117
      %p129 = scmp.eq.s32.totalorder %s23, 1
      %p130 = por %p128, %p129
      %p132 = scmp.ne.s32.totalorder %s117, %s131
      %p133 = scmp.eq.s32.totalorder %s23, 0
      %p134 = por %p132, %p133
      %s136 = sadd.s32 %s135, 1
      %p139 = scmp.eq.s32.totalorder %s17, 1
      %p140 = scmp.ne.s32.totalorder %s135, %s137
      %p141 = scmp.eq.s32.totalorder %s17, 0
      %p142 = por %p140, %p141
      %p143 = scmp.ne.s32.totalorder %s135, %s137
      %p144 = scmp.eq.s32.totalorder %s22, 1
      %p145 = por %p143, %p144
      %p146 = scmp.ne.s32.totalorder %s137, %s138
      %p147 = scmp.eq.s32.totalorder %s22, 0
      %p148 = por %p146, %p147
      %p149 = scmp.ne.s32.totalorder %s137, %s138
      %p150 = scmp.eq.s32.totalorder %s23, 1
      %p151 = por %p149, %p150
      %p153 = scmp.ne.s32.totalorder %s138, %s152
      %p154 = scmp.eq.s32.totalorder %s23, 0
      %p155 = por %p153, %p154
      %s157 = sadd.s32 %s156, 1
      %p160 = scmp.eq.s32.totalorder %s17, 1
      %p161 = scmp.ne.s32.totalorder %s156, %s158
      %p162 = scmp.eq.s32.totalorder %s17, 0
      %p163 = por %p161, %p162
      %p164 = scmp.ne.s32.totalorder %s156, %s158
      %p165 = scmp.eq.s32.totalorder %s22, 1
      %p166 = por %p164, %p165
      %p167 = scmp.ne.s32.totalorder %s158, %s159
      %p168 = scmp.eq.s32.totalorder %s22, 0
      %p169 = por %p167, %p168
      %p170 = scmp.ne.s32.totalorder %s158, %s159
      %p171 = scmp.eq.s32.totalorder %s23, 1
      %p172 = por %p170, %p171
      %p174 = scmp.ne.s32.totalorder %s159, %s173
      %p175 = scmp.eq.s32.totalorder %s23, 0
      %p176 = por %p174, %p175
      %s178 = sadd.s32 %s177, 1
      %p181 = scmp.eq.s32.totalorder %s17, 1
      %p182 = scmp.ne.s32.totalorder %s177, %s179
      %p183 = scmp.eq.s32.totalorder %s17, 0
      %p184 = por %p182, %p183
      %p185 = scmp.ne.s32.totalorder %s177, %s179
      %p186 = scmp.eq.s32.totalorder %s22, 1
      %p187 = por %p185, %p186
      %p188 = scmp.ne.s32.totalorder %s179, %s180
      %p189 = scmp.eq.s32.totalorder %s22, 0
      %p190 = por %p188, %p189
      %p191 = scmp.ne.s32.totalorder %s179, %s180
      %p192 = scmp.eq.s32.totalorder %s23, 1
      %p193 = por %p191, %p192
      %p195 = scmp.ne.s32.totalorder %s180, %s194
      %p196 = scmp.eq.s32.totalorder %s23, 0
      %p197 = por %p195, %p196
      %s199 = sadd.s32 %s198, 1
      %p202 = scmp.eq.s32.totalorder %s17, 1
      %p203 = scmp.ne.s32.totalorder %s198, %s200
      %p204 = scmp.eq.s32.totalorder %s17, 0
      %p205 = por %p203, %p204
      %p206 = scmp.ne.s32.totalorder %s198, %s200
      %p207 = scmp.eq.s32.totalorder %s22, 1
      %p208 = por %p206, %p207
      %p209 = scmp.ne.s32.totalorder %s200, %s201
      %p210 = scmp.eq.s32.totalorder %s22, 0
      %p211 = por %p209, %p210
      %p212 = scmp.ne.s32.totalorder %s200, %s201
      %p213 = scmp.eq.s32.totalorder %s23, 1
      %p214 = por %p212, %p213
      %p216 = scmp.ne.s32.totalorder %s201, %s215
      %p217 = scmp.eq.s32.totalorder %s23, 0
      %p218 = por %p216, %p217
      %s219 = ssub.s32 %s17, %s24
      %p220 = scmp.eq.s32.totalorder %s219, 0
      %s222 = sadd.s32 %s221, 1
      %s223 = scalar_select %p220, %s221, %s222
      %p226 = pneg %p220
      %p227 = scmp.eq.s32.totalorder %s17, 1
      %p228 = por %p226, %p227
      %p229 = scmp.ne.s32.totalorder %s221, %s224
      %p230 = scmp.eq.s32.totalorder %s17, 0
      %p231 = por %p229, %p230
      %p232 = scmp.ne.s32.totalorder %s221, %s224
      %p233 = scmp.eq.s32.totalorder %s22, 1
      %p234 = por %p232, %p233
      %p235 = scmp.ne.s32.totalorder %s224, %s225
      %p236 = scmp.eq.s32.totalorder %s22, 0
      %p237 = por %p235, %p236
      %p238 = scmp.ne.s32.totalorder %s224, %s225
      %p239 = scmp.eq.s32.totalorder %s23, 1
      %p240 = por %p238, %p239
      %p242 = scmp.ne.s32.totalorder %s225, %s241
      %p243 = scmp.eq.s32.totalorder %s23, 0
      %p244 = por %p242, %p243
      %p245 = scmp.le.s32.totalorder 1, %s17
      %p246 = scmp.lt.s32.totalorder %s17, 3
      %p247 = pnand %p245, %p246
      %p248 = pneg %p247
      // Predicated region
      $region9: #{_lambda_.1} parent=5 // pred_check
        _
      $region10: #{_lambda_.1} parent=5 // pred_check_branch
        %250 = sbr.rel (%p247) target = $region12
      $region11: #{_lambda_.1} parent=5 // pred_region
        %s251 = ssub.s32 %s17, 1
        // Predicated region
        $region13: #{_lambda_.1} parent=11 // pred_check
          %p252 = pneg %p64
        $region14: #{_lambda_.1} parent=11 // pred_check_branch
          %254 = sbr.rel (%p252) target = $region16
        $region15: #{_lambda_.1} parent=11 // pred_region
          %s256 = ssub.s32 3072, 3072
          %257 = vsyncadd [#allocation5], %s256
          %s258 = sshll.u32 [#allocation4], 4
          %s259 = int_to_ptr.vmem [resolvable:$true] %s258
          %264 = dma.hbm_to_vmem [thread:$0]  %s1, 3072, %s259, [#allocation5], 64, 64, 4
        $region16: #{_lambda_.1} parent=11 // pred_fallthru
          _
        // Predicated region
        $region17: #{_lambda_.1} parent=11 // pred_check
          %p265 = pneg %p85
        $region18: #{_lambda_.1} parent=11 // pred_check_branch
          %267 = sbr.rel (%p265) target = $region20
        $region19: #{_lambda_.1} parent=11 // pred_region
          _
        $region20: #{_lambda_.1} parent=11 // pred_fallthru
          _
        // Predicated region
        $region21: #{_lambda_.1} parent=11 // pred_check
          %p268 = pneg %p106
        $region22: #{_lambda_.1} parent=11 // pred_check_branch
          %270 = sbr.rel (%p268) target = $region24
        $region23: #{_lambda_.1} parent=11 // pred_region
          %s272 = ssub.s32 27648, 27648
          %273 = vsyncadd [#allocation7], %s272
          %s274 = sshll.u32 [#allocation6], 4
          %s275 = int_to_ptr.vmem [resolvable:$true] %s274
          %280 = dma.hbm_to_vmem [thread:$0]  %s3, 27648, %s275, [#allocation7], 64, 64, 4
        $region24: #{_lambda_.1} parent=11 // pred_fallthru
          _
        // Predicated region
        $region25: #{_lambda_.1} parent=11 // pred_check
          %p281 = pneg %p127
        $region26: #{_lambda_.1} parent=11 // pred_check_branch
          %283 = sbr.rel (%p281) target = $region28
        $region27: #{_lambda_.1} parent=11 // pred_region
          _
        $region28: #{_lambda_.1} parent=11 // pred_fallthru
          _
        // Predicated region
        $region29: #{_lambda_.1} parent=11 // pred_check
          %p284 = pneg %p148
        $region30: #{_lambda_.1} parent=11 // pred_check_branch
          %286 = sbr.rel (%p284) target = $region32
        $region31: #{_lambda_.1} parent=11 // pred_region
          _
        $region32: #{_lambda_.1} parent=11 // pred_fallthru
          _
        // Predicated region
        $region33: #{_lambda_.1} parent=11 // pred_check
          %p287 = pneg %p169
        $region34: #{_lambda_.1} parent=11 // pred_check_branch
          %289 = sbr.rel (%p287) target = $region36
        $region35: #{_lambda_.1} parent=11 // pred_region
          _
        $region36: #{_lambda_.1} parent=11 // pred_fallthru
          _
        // Predicated region
        $region37: #{_lambda_.1} parent=11 // pred_check
          %p290 = pneg %p190
        $region38: #{_lambda_.1} parent=11 // pred_check_branch
          %292 = sbr.rel (%p290) target = $region40
        $region39: #{_lambda_.1} parent=11 // pred_region
          %s294 = ssub.s32 9216, 9216
          %295 = vsyncadd [#allocation7], %s294
          %s296 = sshll.u32 [#allocation8], 4
          %s297 = int_to_ptr.vmem [resolvable:$true] %s296
          %302 = dma.hbm_to_vmem [thread:$0]  %s7, 9216, %s297, [#allocation7], 64, 64, 4
        $region40: #{_lambda_.1} parent=11 // pred_fallthru
          _
        // Predicated region
        $region41: #{_lambda_.1} parent=11 // pred_check
          %p303 = pneg %p211
        $region42: #{_lambda_.1} parent=11 // pred_check_branch
          %305 = sbr.rel (%p303) target = $region44
        $region43: #{_lambda_.1} parent=11 // pred_region
          _
        $region44: #{_lambda_.1} parent=11 // pred_fallthru
          _
      $region12: #{_lambda_.1} parent=5 // pred_fallthru
        _
      %p306 = scmp.lt.s32.totalorder %s17, 2
      // Predicated region
      $region45: #{_lambda_.1} parent=5 // pred_check
        %p307 = pneg %p306
      $region46: #{_lambda_.1} parent=5 // pred_check_branch
        %309 = sbr.rel (%p307) target = $region48
      $region47: #{_lambda_.1} parent=5 // pred_region
        // Predicated region
        $region49: #{_lambda_.1} parent=47 // pred_check
          %p310 = pneg %p37
        $region50: #{_lambda_.1} parent=47 // pred_check_branch
          %312 = sbr.rel (%p310) target = $region52
        $region51: #{_lambda_.1} parent=47 // pred_region
          %p313 = scmp.lt.s32.totalorder %s17, 1
          %s314 = scalar_select %p313, %s17, 1
          %s315 = smul.addr %s314, 8
          %s316 = smul.addr %s315, 4
          %s317 = scalar_lea.vmem %s0, %s316
        $region52: #{_lambda_.1} parent=47 // pred_fallthru
          _
      $region48: #{_lambda_.1} parent=5 // pred_fallthru
        _
      %p318 = scmp.le.s32.totalorder 1, %s17
      %p319 = scmp.lt.s32.totalorder %s17, 3
      %p320 = pnand %p318, %p319
      %p321 = pneg %p320
      // Predicated region
      $region53: #{_lambda_.1} parent=5 // pred_check
        _
      $region54: #{_lambda_.1} parent=5 // pred_check_branch
        %323 = sbr.rel (%p320) target = $region56
      $region55: #{_lambda_.1} parent=5 // pred_region
        %s324 = ssub.s32 %s17, 1
        // Predicated region
        $region57: #{_lambda_.1} parent=55 // pred_check
          %p325 = pneg %p64
        $region58: #{_lambda_.1} parent=55 // pred_check_branch
          %327 = sbr.rel (%p325) target = $region60
        $region59: #{_lambda_.1} parent=55 // pred_region
          %328 = dma.done [#allocation5], 3072
        $region60: #{_lambda_.1} parent=55 // pred_fallthru
          _
        // Predicated region
        $region61: #{_lambda_.1} parent=55 // pred_check
          %p329 = pneg %p106
        $region62: #{_lambda_.1} parent=55 // pred_check_branch
          %331 = sbr.rel (%p329) target = $region64
        $region63: #{_lambda_.1} parent=55 // pred_region
          %332 = dma.done [#allocation7], 27648
        $region64: #{_lambda_.1} parent=55 // pred_fallthru
          _
        // Predicated region
        $region65: #{_lambda_.1} parent=55 // pred_check
          %p333 = pneg %p190
        $region66: #{_lambda_.1} parent=55 // pred_check_branch
          %335 = sbr.rel (%p333) target = $region68
        $region67: #{_lambda_.1} parent=55 // pred_region
          %336 = dma.done [#allocation7], 9216
        $region68: #{_lambda_.1} parent=55 // pred_fallthru
          _
        %p337 = scmp.lt.s32.totalorder %s22, 1
        %s338 = scalar_select %p337, %s22, 1
        %s339 = smul.addr %s338, 8
        %s340 = smul.addr %s339, 4
        %s341 = scalar_lea.vmem %s0, %s340
        %p342 = pneg %p43
        %p343 = pneg %p40
        %p344 = pneg %p64
        %p345 = pneg %p61
        %p346 = pneg %p85
        %p347 = pneg %p82
        %p348 = pneg %p106
        %p349 = pneg %p103
        %p350 = pneg %p127
        %p351 = pneg %p124
        %p352 = pneg %p148
        %p353 = pneg %p145
        %p354 = pneg %p169
        %p355 = pneg %p166
        %p356 = pneg %p190
        %p357 = pneg %p187
        %p358 = pneg %p211
        %p359 = pneg %p208
        %p360 = pneg %p237
        %p361 = pneg %p234
        %p362 = scmp.lt.s32.totalorder %s22, 1
        %s363 = scalar_select %p362, %s22, 1
        %s364 = smul.addr %s363, 8
        %s365 = smul.addr %s364, 8
        %s366 = scalar_lea.vmem %s9, %s365
        %p367 = scmp.lt.s32.totalorder %s22, 1
        %s368 = scalar_select %p367, %s22, 1
        %s369 = smul.addr %s368, 8
        %s370 = smul.addr %s369, 4
        %s371 = scalar_lea.vmem %s0, %s370
        %p372 = scmp.lt.s32.totalorder %s22, 1
        %s373 = scalar_select %p372, %s22, 1
        %s374 = smul.addr %s373, 8
        %s375 = smul.addr %s374, 8
        %s376 = scalar_lea.vmem %s9, %s375
        %378 = vst [vmem:[#allocation2] sm:$0xf] 0
        %379 = vst [vmem:[#allocation2 + $0x4] sm:$0x1] 0
        %380 = vst [vmem:[#allocation2 + $0x8] sm:$0xf] 0
        %381 = vst [vmem:[#allocation2 + $0xc] sm:$0x1] 0
        %382 = vst [vmem:[#allocation2 + $0x10] sm:$0xf] 0
        %383 = vst [vmem:[#allocation2 + $0x14] sm:$0x1] 0
        %384 = vst [vmem:[#allocation2 + $0x18] sm:$0xf] 0
        %385 = vst [vmem:[#allocation2 + $0x1c] sm:$0x1] 0
        %386 = vst [vmem:[#allocation2 + $0x20] sm:$0xf] 0
        %387 = vst [vmem:[#allocation2 + $0x24] sm:$0x1] 0
        %388 = vst [vmem:[#allocation2 + $0x28] sm:$0xf] 0
        %389 = vst [vmem:[#allocation2 + $0x2c] sm:$0x1] 0
        %390 = vst [vmem:[#allocation2 + $0x30] sm:$0xf] 0
        %391 = vst [vmem:[#allocation2 + $0x34] sm:$0x1] 0
        %392 = vst [vmem:[#allocation2 + $0x38] sm:$0xf] 0
        %393 = vst [vmem:[#allocation2 + $0x3c] sm:$0x1] 0
        %394 = vst [vmem:[#allocation2 + $0x40] sm:$0xf] 0
        %395 = vst [vmem:[#allocation2 + $0x44] sm:$0x1] 0
        %396 = vst [vmem:[#allocation2 + $0x48] sm:$0xf] 0
        %397 = vst [vmem:[#allocation2 + $0x4c] sm:$0x1] 0
        %398 = vst [vmem:[#allocation3] sm:$0xf] 0
        %399 = vst [vmem:[#allocation3 + $0x4] sm:$0x1] 0
        %400 = vst [vmem:[#allocation3 + $0x8] sm:$0xf] 0
        %401 = vst [vmem:[#allocation3 + $0xc] sm:$0x1] 0
        %402 = vst [vmem:[#allocation3 + $0x10] sm:$0xf] 0
        %403 = vst [vmem:[#allocation3 + $0x14] sm:$0x1] 0
        %404 = vst [vmem:[#allocation3 + $0x18] sm:$0xf] 0
        %405 = vst [vmem:[#allocation3 + $0x1c] sm:$0x1] 0
        %406 = vst [vmem:[#allocation3 + $0x20] sm:$0xf] 0
        %407 = vst [vmem:[#allocation3 + $0x24] sm:$0x1] 0
        %408 = vst [vmem:[#allocation3 + $0x28] sm:$0xf] 0
        %409 = vst [vmem:[#allocation3 + $0x2c] sm:$0x1] 0
        %410 = vst [vmem:[#allocation3 + $0x30] sm:$0xf] 0
        %411 = vst [vmem:[#allocation3 + $0x34] sm:$0x1] 0
        %412 = vst [vmem:[#allocation3 + $0x38] sm:$0xf] 0
        %413 = vst [vmem:[#allocation3 + $0x3c] sm:$0x1] 0
        %414 = vst [vmem:[#allocation3 + $0x40] sm:$0xf] 0
        %415 = vst [vmem:[#allocation3 + $0x44] sm:$0x1] 0
        %416 = vst [vmem:[#allocation3 + $0x48] sm:$0xf] 0
        %417 = vst [vmem:[#allocation3 + $0x4c] sm:$0x1] 0
        %v418 = vld [vmem:[%s371] sm:$0xf]
        %v419 = vld [vmem:[%s371 + $0x4] sm:$0xf]
        %v420 = vld [vmem:[%s371 + $0x8] sm:$0xf]
        %v421 = vld [vmem:[%s371 + $0xc] sm:$0xf]
        %v422 = vld [vmem:[%s371 + $0x10] sm:$0xf]
        %v423 = vld [vmem:[%s371 + $0x14] sm:$0xf]
        %v424 = vld [vmem:[%s371 + $0x18] sm:$0xf]
        %v425 = vld [vmem:[%s371 + $0x1c] sm:$0xf]
        %v426 = vld [vmem:[#allocation4] sm:$0xf]
        %v427 = vld [vmem:[#allocation4 + $0x4] sm:$0xf]
        %v428 = vld [vmem:[#allocation4 + $0x8] sm:$0xf]
        %v429 = vld [vmem:[#allocation4 + $0xc] sm:$0xf]
        %v430 = vld [vmem:[#allocation4 + $0x10] sm:$0xf]
        %v431 = vld [vmem:[#allocation4 + $0x14] sm:$0xf]
        %v432 = vld [vmem:[#allocation4 + $0x18] sm:$0xf]
        %v433 = vld [vmem:[#allocation4 + $0x1c] sm:$0xf]
        %v434 = vld [vmem:[#allocation4 + $0x20] sm:$0xf]
        %v435 = vld [vmem:[#allocation4 + $0x24] sm:$0xf]
        %v436 = vld [vmem:[#allocation4 + $0x28] sm:$0xf]
        %v437 = vld [vmem:[#allocation4 + $0x2c] sm:$0xf]
        %v438 = vld [vmem:[#allocation4 + $0x30] sm:$0xf]
        %v439 = vld [vmem:[#allocation4 + $0x34] sm:$0xf]
        %v440 = vld [vmem:[#allocation4 + $0x38] sm:$0xf]
        %v441 = vld [vmem:[#allocation4 + $0x3c] sm:$0xf]
        %v442 = vld [vmem:[%s2] sm:$0x1]
        %v444 = vlaneseq
        %v445 = vshrl.u32 %v444, 7
        %v446 = vsub.s32 0, %v445
        %v447 = vrot.slane %v442, %v446
        %v457 = vunpack.c.l.b16 %v418
        %v458 = vunpack.c.l.b16 %v419
        %v459 = vunpack.c.l.b16 %v420
        %v460 = vunpack.c.l.b16 %v421
        %v461 = vunpack.c.l.b16 %v422
        %v462 = vunpack.c.l.b16 %v423
        %v463 = vunpack.c.l.b16 %v424
        %v464 = vunpack.c.l.b16 %v425
        %v465 = vpack.c.b16 %v458, %v457
        %v466 = vpack.c.b16 %v460, %v459
        %v467 = vpack.c.b16 %v462, %v461
        %v468 = vpack.c.b16 %v464, %v463
        %v489 = vunpack.c.l.b16 %v426
        %v490 = vunpack.c.l.b16 %v427
        %v491 = vunpack.c.l.b16 %v428
        %v492 = vunpack.c.l.b16 %v429
        %v493 = vunpack.c.l.b16 %v430
        %v494 = vunpack.c.l.b16 %v431
        %v495 = vunpack.c.l.b16 %v432
        %v496 = vunpack.c.l.b16 %v433
        %v497 = vunpack.c.l.b16 %v434
        %v498 = vunpack.c.l.b16 %v435
        %v499 = vunpack.c.l.b16 %v436
        %v500 = vunpack.c.l.b16 %v437
        %v501 = vunpack.c.l.b16 %v438
        %v502 = vunpack.c.l.b16 %v439
        %v503 = vunpack.c.l.b16 %v440
        %v504 = vunpack.c.l.b16 %v441
        %v505 = vpack.c.b16 %v490, %v489
        %v506 = vpack.c.b16 %v492, %v491
        %v507 = vpack.c.b16 %v494, %v493
        %v508 = vpack.c.b16 %v496, %v495
        %v509 = vpack.c.b16 %v498, %v497
        %v510 = vpack.c.b16 %v500, %v499
        %v511 = vpack.c.b16 %v502, %v501
        %v512 = vpack.c.b16 %v504, %v503
        %521 = vmatprep.subr.bf16.mxu0 0
        %522 = vmatpush1.bf16.msra.mxu0 %v505
        %523 = vmatprep.subr.bf16.mxu0 0
        %524 = vmatpush1.bf16.msra.mxu0 %v506
        %525 = vmatprep.subr.bf16.mxu0 0
        %526 = vmatpush1.bf16.msra.mxu0 %v507
        %527 = vmatprep.subr.bf16.mxu0 0
        %528 = vmatpush1.bf16.msra.mxu0 %v508
        %529 = vmatprep.subr.bf16.mxu0 0
        %530 = vmatpush1.bf16.msra.mxu0 %v509
        %531 = vmatprep.subr.bf16.mxu0 0
        %532 = vmatpush1.bf16.msra.mxu0 %v510
        %533 = vmatprep.subr.bf16.mxu0 0
        %534 = vmatpush1.bf16.msra.mxu0 %v511
        %535 = vmatprep.subr.bf16.mxu0 0
        %536 = vmatpush1.bf16.msra.mxu0 %v512
        %537 = vmatprep.subr.bf16.mxu0 0
        %538 = vmatpush1.bf16.msra.mxu0 0
        %539 = vmatprep.subr.bf16.mxu0 0
        %540 = vmatpush1.bf16.msra.mxu0 0
        %541 = vmatprep.subr.bf16.mxu0 0
        %542 = vmatpush1.bf16.msra.mxu0 0
        %543 = vmatprep.subr.bf16.mxu0 0
        %544 = vmatpush1.bf16.msra.mxu0 0
        %545 = vmatprep.subr.bf16.mxu0 0
        %546 = vmatpush1.bf16.msra.mxu0 0
        %547 = vmatprep.subr.bf16.mxu0 0
        %548 = vmatpush1.bf16.msra.mxu0 0
        %549 = vmatprep.subr.bf16.mxu0 0
        %550 = vmatpush1.bf16.msra.mxu0 0
        %551 = vmatprep.subr.bf16.mxu0 0
        %552 = vmatpush1.bf16.msra.mxu0 0
        %553 = vmatprep.mubr.bf16.mxu0 0
        %554 = vmatmul.mubr.bf16.gmra.mrb[0].mxu0 %v465
        %v555 = vpop.f32.mrb[0].mxu0
        %v556 = vadd.f32 %v447, %v555
        %v557 = vpop.f32.mrb[0].mxu0
        %v558 = vpop.f32.mrb[0].mxu0
        %v559 = vadd.f32 %v447, %v558
        %v560 = vpop.f32.mrb[0].mxu0
        %561 = vmatprep.mubr.bf16.mxu0 0
        %562 = vmatmul.mubr.bf16.gmra.mrb[0].mxu0 %v466
        %v563 = vpop.f32.mrb[0].mxu0
        %v564 = vadd.f32 %v447, %v563
        %v565 = vpop.f32.mrb[0].mxu0
        %v566 = vpop.f32.mrb[0].mxu0
        %v567 = vadd.f32 %v447, %v566
        %v568 = vpop.f32.mrb[0].mxu0
        %569 = vmatprep.mubr.bf16.mxu0 0
        %570 = vmatmul.mubr.bf16.gmra.mrb[0].mxu0 %v467
        %v571 = vpop.f32.mrb[0].mxu0
        %v572 = vadd.f32 %v447, %v571
        %v573 = vpop.f32.mrb[0].mxu0
        %v574 = vpop.f32.mrb[0].mxu0
        %v575 = vadd.f32 %v447, %v574
        %v576 = vpop.f32.mrb[0].mxu0
        %577 = vmatprep.mubr.bf16.mxu0 0
        %578 = vmatmul.mubr.bf16.gmra.mrb[0].mxu0 %v468
        %v579 = vpop.f32.mrb[0].mxu0
        %v580 = vadd.f32 %v447, %v579
        %v581 = vpop.f32.mrb[0].mxu0
        %v582 = vpop.f32.mrb[0].mxu0
        %v583 = vadd.f32 %v447, %v582
        %v584 = vpop.f32.mrb[0].mxu0
        %585 = vdwg.mxu0
        %v586 = vmax.f32 %v556, 0.0
        %v587 = vmax.f32 %v559, 0.0
        %v588 = vmax.f32 %v564, 0.0
        %v589 = vmax.f32 %v567, 0.0
        %v590 = vmax.f32 %v572, 0.0
        %v591 = vmax.f32 %v575, 0.0
        %v592 = vmax.f32 %v580, 0.0
        %v593 = vmax.f32 %v583, 0.0
        %v594 = vpack.c.bf16 %v586, %v586
        %v595 = vpack.c.bf16 %v587, %v587
        %v596 = vpack.c.bf16 %v588, %v588
        %v597 = vpack.c.bf16 %v589, %v589
        %v598 = vpack.c.bf16 %v590, %v590
        %v599 = vpack.c.bf16 %v591, %v591
        %v600 = vpack.c.bf16 %v592, %v592
        %v601 = vpack.c.bf16 %v593, %v593
        %v610 = vunpack.c.l.b16 %v594
        %v611 = vunpack.c.l.b16 %v595
        %v612 = vunpack.c.l.b16 %v596
        %v613 = vunpack.c.l.b16 %v597
        %v614 = vunpack.c.l.b16 %v598
        %v615 = vunpack.c.l.b16 %v599
        %v616 = vunpack.c.l.b16 %v600
        %v617 = vunpack.c.l.b16 %v601
        %v618 = vpack.c.b16 %v610, %v610
        %v619 = vpack.c.b16 %v611, %v611
        %v620 = vpack.c.b16 %v612, %v612
        %v621 = vpack.c.b16 %v613, %v613
        %v622 = vpack.c.b16 %v614, %v614
        %v623 = vpack.c.b16 %v615, %v615
        %v624 = vpack.c.b16 %v616, %v616
        %v625 = vpack.c.b16 %v617, %v617
        %v627 = vshrl.u32 %v618, 16
        %v629 = vrot.slane %v627, 7
        %v630 = vshll.u32 %v618, 16
        %v632 = vor.u32 %v629, %v630
        %v633 = vrot.slane %v629, 4
        %v635 = vshrl.u32 %v619, 16
        %v637 = vrot.slane %v635, 7
        %v638 = vshll.u32 %v619, 16
        %v640 = vor.u32 %v637, %v638
        %v641 = vrot.slane %v637, 4
        %v643 = vshrl.u32 %v620, 16
        %v645 = vrot.slane %v643, 7
        %v646 = vshll.u32 %v620, 16
        %v648 = vor.u32 %v645, %v646
        %v649 = vrot.slane %v645, 4
        %v651 = vshrl.u32 %v621, 16
        %v653 = vrot.slane %v651, 7
        %v654 = vshll.u32 %v621, 16
        %v656 = vor.u32 %v653, %v654
        %v657 = vrot.slane %v653, 4
        %v659 = vshrl.u32 %v622, 16
        %v661 = vrot.slane %v659, 7
        %v662 = vshll.u32 %v622, 16
        %v664 = vor.u32 %v661, %v662
        %v665 = vrot.slane %v661, 4
        %v667 = vshrl.u32 %v623, 16
        %v669 = vrot.slane %v667, 7
        %v670 = vshll.u32 %v623, 16
        %v672 = vor.u32 %v669, %v670
        %v673 = vrot.slane %v669, 4
        %v675 = vshrl.u32 %v624, 16
        %v677 = vrot.slane %v675, 7
        %v678 = vshll.u32 %v624, 16
        %v680 = vor.u32 %v677, %v678
        %v681 = vrot.slane %v677, 4
        %v683 = vshrl.u32 %v625, 16
        %v685 = vrot.slane %v683, 7
        %v686 = vshll.u32 %v625, 16
        %v688 = vor.u32 %v685, %v686
        %v689 = vrot.slane %v685, 4
        %s706 = scalar_lea.vmem [#allocation2], 8
        %vm707 = vcmask 1043456
        %vm708 = vsmask.f32 7938
        %vm709 = vmand %vm707, %vm708
        %v710 = vld [vmem:[%s706] sm:$0xf]
        %v711 = vsel %vm709, %v632, %v710
        %712 = vst [vmem:[%s706] sm:$0xf] %v711
        %vm713 = vcmask 1040384
        %vm714 = vsmask.f32 256
        %vm715 = vmand %vm713, %vm714
        %v716 = vld [vmem:[%s706 + $0x4] sm:$0x1]
        %v717 = vsel %vm715, %v633, %v716
        %718 = vst [vmem:[%s706 + $0x4] sm:$0x1] %v717
        %v719 = vld [vmem:[%s706 + $0x8] sm:$0xf]
        %v720 = vsel %vm709, %v640, %v719
        %721 = vst [vmem:[%s706 + $0x8] sm:$0xf] %v720
        %v722 = vld [vmem:[%s706 + $0xc] sm:$0x1]
        %v723 = vsel %vm715, %v641, %v722
        %724 = vst [vmem:[%s706 + $0xc] sm:$0x1] %v723
        %v725 = vld [vmem:[%s706 + $0x10] sm:$0xf]
        %v726 = vsel %vm709, %v648, %v725
        %727 = vst [vmem:[%s706 + $0x10] sm:$0xf] %v726
        %v728 = vld [vmem:[%s706 + $0x14] sm:$0x1]
        %v729 = vsel %vm715, %v649, %v728
        %730 = vst [vmem:[%s706 + $0x14] sm:$0x1] %v729
        %v731 = vld [vmem:[%s706 + $0x18] sm:$0xf]
        %v732 = vsel %vm709, %v656, %v731
        %733 = vst [vmem:[%s706 + $0x18] sm:$0xf] %v732
        %v734 = vld [vmem:[%s706 + $0x1c] sm:$0x1]
        %v735 = vsel %vm715, %v657, %v734
        %736 = vst [vmem:[%s706 + $0x1c] sm:$0x1] %v735
        %v737 = vld [vmem:[%s706 + $0x20] sm:$0xf]
        %v738 = vsel %vm709, %v664, %v737
        %739 = vst [vmem:[%s706 + $0x20] sm:$0xf] %v738
        %v740 = vld [vmem:[%s706 + $0x24] sm:$0x1]
        %v741 = vsel %vm715, %v665, %v740
        %742 = vst [vmem:[%s706 + $0x24] sm:$0x1] %v741
        %v743 = vld [vmem:[%s706 + $0x28] sm:$0xf]
        %v744 = vsel %vm709, %v672, %v743
        %745 = vst [vmem:[%s706 + $0x28] sm:$0xf] %v744
        %v746 = vld [vmem:[%s706 + $0x2c] sm:$0x1]
        %v747 = vsel %vm715, %v673, %v746
        %748 = vst [vmem:[%s706 + $0x2c] sm:$0x1] %v747
        %v749 = vld [vmem:[%s706 + $0x30] sm:$0xf]
        %v750 = vsel %vm709, %v680, %v749
        %751 = vst [vmem:[%s706 + $0x30] sm:$0xf] %v750
        %v752 = vld [vmem:[%s706 + $0x34] sm:$0x1]
        %v753 = vsel %vm715, %v681, %v752
        %754 = vst [vmem:[%s706 + $0x34] sm:$0x1] %v753
        %v755 = vld [vmem:[%s706 + $0x38] sm:$0xf]
        %v756 = vsel %vm709, %v688, %v755
        %757 = vst [vmem:[%s706 + $0x38] sm:$0xf] %v756
        %v758 = vld [vmem:[%s706 + $0x3c] sm:$0x1]
        %v759 = vsel %vm715, %v689, %v758
        %760 = vst [vmem:[%s706 + $0x3c] sm:$0x1] %v759
        %v761 = vld [vmem:[%s4] sm:$0x1]
        %v763 = vlaneseq
        %v764 = vshrl.u32 %v763, 7
        %v765 = vsub.s32 0, %v764
        %v766 = vrot.slane %v761, %v765
        %v768 = vld [vmem:[#allocation2] sm:$0xf]
        %v769 = vld [vmem:[#allocation2 + $0x8] sm:$0xf]
        %v770 = vld [vmem:[#allocation2 + $0x10] sm:$0xf]
        %v771 = vld [vmem:[#allocation2 + $0x18] sm:$0xf]
        %v772 = vld [vmem:[#allocation2 + $0x20] sm:$0xf]
        %v773 = vld [vmem:[#allocation2 + $0x28] sm:$0xf]
        %v774 = vld [vmem:[#allocation2 + $0x30] sm:$0xf]
        %v775 = vld [vmem:[#allocation2 + $0x38] sm:$0xf]
        %v776 = vld [vmem:[#allocation6] sm:$0xf]
        %v777 = vld [vmem:[#allocation6 + $0x4] sm:$0xf]
        %v778 = vld [vmem:[#allocation6 + $0x8] sm:$0xf]
        %v779 = vld [vmem:[#allocation6 + $0xc] sm:$0xf]
        %v780 = vld [vmem:[#allocation6 + $0x10] sm:$0xf]
        %v781 = vld [vmem:[#allocation6 + $0x14] sm:$0xf]
        %v782 = vld [vmem:[#allocation6 + $0x18] sm:$0xf]
        %v783 = vld [vmem:[#allocation6 + $0x1c] sm:$0xf]
        %v784 = vld [vmem:[#allocation6 + $0x20] sm:$0xf]
        %v785 = vld [vmem:[#allocation6 + $0x24] sm:$0xf]
        %v786 = vld [vmem:[#allocation6 + $0x28] sm:$0xf]
        %v787 = vld [vmem:[#allocation6 + $0x2c] sm:$0xf]
        %v788 = vld [vmem:[#allocation6 + $0x30] sm:$0xf]
        %v789 = vld [vmem:[#allocation6 + $0x34] sm:$0xf]
        %v790 = vld [vmem:[#allocation6 + $0x38] sm:$0xf]
        %v791 = vld [vmem:[#allocation6 + $0x3c] sm:$0xf]
        %v800 = vunpack.c.l.b16 %v768
        %v801 = vunpack.c.l.b16 %v769
        %v802 = vunpack.c.l.b16 %v770
        %v803 = vunpack.c.l.b16 %v771
        %v804 = vunpack.c.l.b16 %v772
        %v805 = vunpack.c.l.b16 %v773
        %v806 = vunpack.c.l.b16 %v774
        %v807 = vunpack.c.l.b16 %v775
        %v808 = vpack.c.b16 %v801, %v800
        %v809 = vpack.c.b16 %v803, %v802
        %v810 = vpack.c.b16 %v805, %v804
        %v811 = vpack.c.b16 %v807, %v806
        %v832 = vunpack.c.l.b16 %v776
        %v833 = vunpack.c.l.b16 %v777
        %v834 = vunpack.c.l.b16 %v778
        %v835 = vunpack.c.l.b16 %v779
        %v836 = vunpack.c.l.b16 %v780
        %v837 = vunpack.c.l.b16 %v781
        %v838 = vunpack.c.l.b16 %v782
        %v839 = vunpack.c.l.b16 %v783
        %v840 = vunpack.c.l.b16 %v784
        %v841 = vunpack.c.l.b16 %v785
        %v842 = vunpack.c.l.b16 %v786
        %v843 = vunpack.c.l.b16 %v787
        %v844 = vunpack.c.l.b16 %v788
        %v845 = vunpack.c.l.b16 %v789
        %v846 = vunpack.c.l.b16 %v790
        %v847 = vunpack.c.l.b16 %v791
        %v848 = vpack.c.b16 %v833, %v832
        %v849 = vpack.c.b16 %v835, %v834
        %v850 = vpack.c.b16 %v837, %v836
        %v851 = vpack.c.b16 %v839, %v838
        %v852 = vpack.c.b16 %v841, %v840
        %v853 = vpack.c.b16 %v843, %v842
        %v854 = vpack.c.b16 %v845, %v844
        %v855 = vpack.c.b16 %v847, %v846
        %864 = vmatprep.subr.bf16.mxu0 0
        %865 = vmatpush1.bf16.msra.mxu0 %v848
        %866 = vmatprep.subr.bf16.mxu0 0
        %867 = vmatpush1.bf16.msra.mxu0 %v849
        %868 = vmatprep.subr.bf16.mxu0 0
        %869 = vmatpush1.bf16.msra.mxu0 %v850
        %870 = vmatprep.subr.bf16.mxu0 0
        %871 = vmatpush1.bf16.msra.mxu0 %v851
        %872 = vmatprep.subr.bf16.mxu0 0
        %873 = vmatpush1.bf16.msra.mxu0 %v852
        %874 = vmatprep.subr.bf16.mxu0 0
        %875 = vmatpush1.bf16.msra.mxu0 %v853
        %876 = vmatprep.subr.bf16.mxu0 0
        %877 = vmatpush1.bf16.msra.mxu0 %v854
        %878 = vmatprep.subr.bf16.mxu0 0
        %879 = vmatpush1.bf16.msra.mxu0 %v855
        %880 = vmatprep.subr.bf16.mxu0 0
        %881 = vmatpush1.bf16.msra.mxu0 0
        %882 = vmatprep.subr.bf16.mxu0 0
        %883 = vmatpush1.bf16.msra.mxu0 0
        %884 = vmatprep.subr.bf16.mxu0 0
        %885 = vmatpush1.bf16.msra.mxu0 0
        %886 = vmatprep.subr.bf16.mxu0 0
        %887 = vmatpush1.bf16.msra.mxu0 0
        %888 = vmatprep.subr.bf16.mxu0 0
        %889 = vmatpush1.bf16.msra.mxu0 0
        %890 = vmatprep.subr.bf16.mxu0 0
        %891 = vmatpush1.bf16.msra.mxu0 0
        %892 = vmatprep.subr.bf16.mxu0 0
        %893 = vmatpush1.bf16.msra.mxu0 0
        %894 = vmatprep.subr.bf16.mxu0 0
        %895 = vmatpush1.bf16.msra.mxu0 0
        %896 = vmatprep.mubr.bf16.mxu0 0
        %897 = vmatmul.mubr.bf16.gmra.mrb[0].mxu0 %v808
        %v898 = vpop.f32.mrb[0].mxu0
        %v899 = vadd.f32 0.0, %v898
        %v900 = vpop.f32.mrb[0].mxu0
        %v901 = vpop.f32.mrb[0].mxu0
        %v902 = vadd.f32 0.0, %v901
        %v903 = vpop.f32.mrb[0].mxu0
        %904 = vmatprep.mubr.bf16.mxu0 0
        %905 = vmatmul.mubr.bf16.gmra.mrb[0].mxu0 %v809
        %v906 = vpop.f32.mrb[0].mxu0
        %v907 = vadd.f32 0.0, %v906
        %v908 = vpop.f32.mrb[0].mxu0
        %v909 = vpop.f32.mrb[0].mxu0
        %v910 = vadd.f32 0.0, %v909
        %v911 = vpop.f32.mrb[0].mxu0
        %912 = vmatprep.mubr.bf16.mxu0 0
        %913 = vmatmul.mubr.bf16.gmra.mrb[0].mxu0 %v810
        %v914 = vpop.f32.mrb[0].mxu0
        %v915 = vadd.f32 0.0, %v914
        %v916 = vpop.f32.mrb[0].mxu0
        %v917 = vpop.f32.mrb[0].mxu0
        %v918 = vadd.f32 0.0, %v917
        %v919 = vpop.f32.mrb[0].mxu0
        %920 = vmatprep.mubr.bf16.mxu0 0
        %921 = vmatmul.mubr.bf16.gmra.mrb[0].mxu0 %v811
        %v922 = vpop.f32.mrb[0].mxu0
        %v923 = vadd.f32 0.0, %v922
        %v924 = vpop.f32.mrb[0].mxu0
        %v925 = vpop.f32.mrb[0].mxu0
        %v926 = vadd.f32 0.0, %v925
        %v927 = vpop.f32.mrb[0].mxu0
        %928 = vdwg.mxu0
        %v929 = vadd.f32 %v766, %v899
        %v930 = vadd.f32 %v766, %v902
        %v931 = vadd.f32 %v766, %v907
        %v932 = vadd.f32 %v766, %v910
        %v933 = vadd.f32 %v766, %v915
        %v934 = vadd.f32 %v766, %v918
        %v935 = vadd.f32 %v766, %v923
        %v936 = vadd.f32 %v766, %v926
        %v937 = vld [vmem:[#allocation2] sm:$0xf]
        %v938 = vld [vmem:[#allocation2 + $0x4] sm:$0x1]
        %v939 = vld [vmem:[#allocation2 + $0x8] sm:$0xf]
        %v940 = vld [vmem:[#allocation2 + $0xc] sm:$0x1]
        %v941 = vld [vmem:[#allocation2 + $0x10] sm:$0xf]
        %v942 = vld [vmem:[#allocation2 + $0x14] sm:$0x1]
        %v943 = vld [vmem:[#allocation2 + $0x18] sm:$0xf]
        %v944 = vld [vmem:[#allocation2 + $0x1c] sm:$0x1]
        %v945 = vld [vmem:[#allocation2 + $0x20] sm:$0xf]
        %v946 = vld [vmem:[#allocation2 + $0x24] sm:$0x1]
        %v947 = vld [vmem:[#allocation2 + $0x28] sm:$0xf]
        %v948 = vld [vmem:[#allocation2 + $0x2c] sm:$0x1]
        %v949 = vld [vmem:[#allocation2 + $0x30] sm:$0xf]
        %v950 = vld [vmem:[#allocation2 + $0x34] sm:$0x1]
        %v951 = vld [vmem:[#allocation2 + $0x38] sm:$0xf]
        %v952 = vld [vmem:[#allocation2 + $0x3c] sm:$0x1]
        %vm953 = vsmask.f32 3328
        %vm954 = vsmask.f32 7440
        %vm955 = vmor %vm953, %vm954
        %v957 = vshrl.u32 %v937, 16
        %v959 = vrot.slane %v957, 4
        %v960 = vshll.u32 %v937, 16
        %v962 = vrot.slane %v960, 5
        %v963 = vor.u32 %v959, %v962
        %v964 = vrot.slane %v963, 4
        %v966 = vshll.u32 %v938, 16
        %v968 = vrot.slane %v966, 5
        %v969 = vsel %vm955, %v964, %v968
        %v971 = vshrl.u32 %v939, 16
        %v973 = vrot.slane %v971, 4
        %v974 = vshll.u32 %v939, 16
        %v976 = vrot.slane %v974, 5
        %v977 = vor.u32 %v973, %v976
        %v978 = vrot.slane %v977, 4
        %v980 = vshll.u32 %v940, 16
        %v982 = vrot.slane %v980, 5
        %v983 = vsel %vm955, %v978, %v982
        %v985 = vshrl.u32 %v941, 16
        %v987 = vrot.slane %v985, 4
        %v988 = vshll.u32 %v941, 16
        %v990 = vrot.slane %v988, 5
        %v991 = vor.u32 %v987, %v990
        %v992 = vrot.slane %v991, 4
        %v994 = vshll.u32 %v942, 16
        %v996 = vrot.slane %v994, 5
        %v997 = vsel %vm955, %v992, %v996
        %v999 = vshrl.u32 %v943, 16
        %v1001 = vrot.slane %v999, 4
        %v1002 = vshll.u32 %v943, 16
        %v1004 = vrot.slane %v1002, 5
        %v1005 = vor.u32 %v1001, %v1004
        %v1006 = vrot.slane %v1005, 4
        %v1008 = vshll.u32 %v944, 16
        %v1010 = vrot.slane %v1008, 5
        %v1011 = vsel %vm955, %v1006, %v1010
        %v1013 = vshrl.u32 %v945, 16
        %v1015 = vrot.slane %v1013, 4
        %v1016 = vshll.u32 %v945, 16
        %v1018 = vrot.slane %v1016, 5
        %v1019 = vor.u32 %v1015, %v1018
        %v1020 = vrot.slane %v1019, 4
        %v1022 = vshll.u32 %v946, 16
        %v1024 = vrot.slane %v1022, 5
        %v1025 = vsel %vm955, %v1020, %v1024
        %v1027 = vshrl.u32 %v947, 16
        %v1029 = vrot.slane %v1027, 4
        %v1030 = vshll.u32 %v947, 16
        %v1032 = vrot.slane %v1030, 5
        %v1033 = vor.u32 %v1029, %v1032
        %v1034 = vrot.slane %v1033, 4
        %v1036 = vshll.u32 %v948, 16
        %v1038 = vrot.slane %v1036, 5
        %v1039 = vsel %vm955, %v1034, %v1038
        %v1041 = vshrl.u32 %v949, 16
        %v1043 = vrot.slane %v1041, 4
        %v1044 = vshll.u32 %v949, 16
        %v1046 = vrot.slane %v1044, 5
        %v1047 = vor.u32 %v1043, %v1046
        %v1048 = vrot.slane %v1047, 4
        %v1050 = vshll.u32 %v950, 16
        %v1052 = vrot.slane %v1050, 5
        %v1053 = vsel %vm955, %v1048, %v1052
        %v1055 = vshrl.u32 %v951, 16
        %v1057 = vrot.slane %v1055, 4
        %v1058 = vshll.u32 %v951, 16
        %v1060 = vrot.slane %v1058, 5
        %v1061 = vor.u32 %v1057, %v1060
        %v1062 = vrot.slane %v1061, 4
        %v1064 = vshll.u32 %v952, 16
        %v1066 = vrot.slane %v1064, 5
        %v1067 = vsel %vm955, %v1062, %v1066
        %s1068 = scalar_lea.vmem [#allocation6], 64
        %v1069 = vld [vmem:[%s1068] sm:$0xf]
        %v1070 = vld [vmem:[%s1068 + $0x4] sm:$0xf]
        %v1071 = vld [vmem:[%s1068 + $0x8] sm:$0xf]
        %v1072 = vld [vmem:[%s1068 + $0xc] sm:$0xf]
        %v1073 = vld [vmem:[%s1068 + $0x10] sm:$0xf]
        %v1074 = vld [vmem:[%s1068 + $0x14] sm:$0xf]
        %v1075 = vld [vmem:[%s1068 + $0x18] sm:$0xf]
        %v1076 = vld [vmem:[%s1068 + $0x1c] sm:$0xf]
        %v1077 = vld [vmem:[%s1068 + $0x20] sm:$0xf]
        %v1078 = vld [vmem:[%s1068 + $0x24] sm:$0xf]
        %v1079 = vld [vmem:[%s1068 + $0x28] sm:$0xf]
        %v1080 = vld [vmem:[%s1068 + $0x2c] sm:$0xf]
        %v1081 = vld [vmem:[%s1068 + $0x30] sm:$0xf]
        %v1082 = vld [vmem:[%s1068 + $0x34] sm:$0xf]
        %v1083 = vld [vmem:[%s1068 + $0x38] sm:$0xf]
        %v1084 = vld [vmem:[%s1068 + $0x3c] sm:$0xf]
        %v1085 = vunpack.c.l.b16 %v969
        %v1086 = vunpack.c.l.b16 %v983
        %v1087 = vunpack.c.l.b16 %v997
        %v1088 = vunpack.c.l.b16 %v1011
        %v1089 = vunpack.c.l.b16 %v1025
        %v1090 = vunpack.c.l.b16 %v1039
        %v1091 = vunpack.c.l.b16 %v1053
        %v1092 = vunpack.c.l.b16 %v1067
        %v1093 = vpack.c.b16 %v1086, %v1085
        %v1094 = vpack.c.b16 %v1088, %v1087
        %v1095 = vpack.c.b16 %v1090, %v1089
        %v1096 = vpack.c.b16 %v1092, %v1091
        %v1117 = vunpack.c.l.b16 %v1069
        %v1118 = vunpack.c.l.b16 %v1070
        %v1119 = vunpack.c.l.b16 %v1071
        %v1120 = vunpack.c.l.b16 %v1072
        %v1121 = vunpack.c.l.b16 %v1073
        %v1122 = vunpack.c.l.b16 %v1074
        %v1123 = vunpack.c.l.b16 %v1075
        %v1124 = vunpack.c.l.b16 %v1076
        %v1125 = vunpack.c.l.b16 %v1077
        %v1126 = vunpack.c.l.b16 %v1078
        %v1127 = vunpack.c.l.b16 %v1079
        %v1128 = vunpack.c.l.b16 %v1080
        %v1129 = vunpack.c.l.b16 %v1081
        %v1130 = vunpack.c.l.b16 %v1082
        %v1131 = vunpack.c.l.b16 %v1083
        %v1132 = vunpack.c.l.b16 %v1084
        %v1133 = vpack.c.b16 %v1118, %v1117
        %v1134 = vpack.c.b16 %v1120, %v1119
        %v1135 = vpack.c.b16 %v1122, %v1121
        %v1136 = vpack.c.b16 %v1124, %v1123
        %v1137 = vpack.c.b16 %v1126, %v1125
        %v1138 = vpack.c.b16 %v1128, %v1127
        %v1139 = vpack.c.b16 %v1130, %v1129
        %v1140 = vpack.c.b16 %v1132, %v1131
        %1149 = vmatprep.subr.bf16.mxu0 0
        %1150 = vmatpush1.bf16.msra.mxu0 %v1133
        %1151 = vmatprep.subr.bf16.mxu0 0
        %1152 = vmatpush1.bf16.msra.mxu0 %v1134
        %1153 = vmatprep.subr.bf16.mxu0 0
        %1154 = vmatpush1.bf16.msra.mxu0 %v1135
        %1155 = vmatprep.subr.bf16.mxu0 0
        %1156 = vmatpush1.bf16.msra.mxu0 %v1136
        %1157 = vmatprep.subr.bf16.mxu0 0
        %1158 = vmatpush1.bf16.msra.mxu0 %v1137
        %1159 = vmatprep.subr.bf16.mxu0 0
        %1160 = vmatpush1.bf16.msra.mxu0 %v1138
        %1161 = vmatprep.subr.bf16.mxu0 0
        %1162 = vmatpush1.bf16.msra.mxu0 %v1139
        %1163 = vmatprep.subr.bf16.mxu0 0
        %1164 = vmatpush1.bf16.msra.mxu0 %v1140
        %1165 = vmatprep.subr.bf16.mxu0 0
        %1166 = vmatpush1.bf16.msra.mxu0 0
        %1167 = vmatprep.subr.bf16.mxu0 0
        %1168 = vmatpush1.bf16.msra.mxu0 0
        %1169 = vmatprep.subr.bf16.mxu0 0
        %1170 = vmatpush1.bf16.msra.mxu0 0
        %1171 = vmatprep.subr.bf16.mxu0 0
        %1172 = vmatpush1.bf16.msra.mxu0 0
        %1173 = vmatprep.subr.bf16.mxu0 0
        %1174 = vmatpush1.bf16.msra.mxu0 0
        %1175 = vmatprep.subr.bf16.mxu0 0
        %1176 = vmatpush1.bf16.msra.mxu0 0
        %1177 = vmatprep.subr.bf16.mxu0 0
        %1178 = vmatpush1.bf16.msra.mxu0 0
        %1179 = vmatprep.subr.bf16.mxu0 0
        %1180 = vmatpush1.bf16.msra.mxu0 0
        %1181 = vmatprep.mubr.bf16.mxu0 0
        %1182 = vmatmul.mubr.bf16.gmra.mrb[0].mxu0 %v1093
        %v1183 = vpop.f32.mrb[0].mxu0
        %v1184 = vadd.f32 0.0, %v1183
        %v1185 = vpop.f32.mrb[0].mxu0
        %v1186 = vpop.f32.mrb[0].mxu0
        %v1187 = vadd.f32 0.0, %v1186
        %v1188 = vpop.f32.mrb[0].mxu0
        %1189 = vmatprep.mubr.bf16.mxu0 0
        %1190 = vmatmul.mubr.bf16.gmra.mrb[0].mxu0 %v1094
        %v1191 = vpop.f32.mrb[0].mxu0
        %v1192 = vadd.f32 0.0, %v1191
        %v1193 = vpop.f32.mrb[0].mxu0
        %v1194 = vpop.f32.mrb[0].mxu0
        %v1195 = vadd.f32 0.0, %v1194
        %v1196 = vpop.f32.mrb[0].mxu0
        %1197 = vmatprep.mubr.bf16.mxu0 0
        %1198 = vmatmul.mubr.bf16.gmra.mrb[0].mxu0 %v1095
        %v1199 = vpop.f32.mrb[0].mxu0
        %v1200 = vadd.f32 0.0, %v1199
        %v1201 = vpop.f32.mrb[0].mxu0
        %v1202 = vpop.f32.mrb[0].mxu0
        %v1203 = vadd.f32 0.0, %v1202
        %v1204 = vpop.f32.mrb[0].mxu0
        %1205 = vmatprep.mubr.bf16.mxu0 0
        %1206 = vmatmul.mubr.bf16.gmra.mrb[0].mxu0 %v1096
        %v1207 = vpop.f32.mrb[0].mxu0
        %v1208 = vadd.f32 0.0, %v1207
        %v1209 = vpop.f32.mrb[0].mxu0
        %v1210 = vpop.f32.mrb[0].mxu0
        %v1211 = vadd.f32 0.0, %v1210
        %v1212 = vpop.f32.mrb[0].mxu0
        %1213 = vdwg.mxu0
        %v1214 = vadd.f32 %v929, %v1184
        %v1215 = vadd.f32 %v930, %v1187
        %v1216 = vadd.f32 %v931, %v1192
        %v1217 = vadd.f32 %v932, %v1195
        %v1218 = vadd.f32 %v933, %v1200
        %v1219 = vadd.f32 %v934, %v1203
        %v1220 = vadd.f32 %v935, %v1208
        %v1221 = vadd.f32 %v936, %v1211
        %v1222 = vld [vmem:[#allocation2] sm:$0xe]
        %v1223 = vld [vmem:[#allocation2 + $0x8] sm:$0xe]
        %v1224 = vld [vmem:[#allocation2 + $0x10] sm:$0xe]
        %v1225 = vld [vmem:[#allocation2 + $0x18] sm:$0xe]
        %v1226 = vld [vmem:[#allocation2 + $0x20] sm:$0xe]
        %v1227 = vld [vmem:[#allocation2 + $0x28] sm:$0xe]
        %v1228 = vld [vmem:[#allocation2 + $0x30] sm:$0xe]
        %v1229 = vld [vmem:[#allocation2 + $0x38] sm:$0xe]
        %vm1246 = vcmask 1042432
        %vm1247 = vcmask 1046532
        %vm1248 = vmor %vm1246, %vm1247
        %v1249 = vrot.slane %v1222, 5
        %v1250 = vrot.slane %v1249, 4
        %v1251 = vrot.slane %v938, 5
        %v1252 = vsel %vm1248, %v1250, %v1251
        %v1253 = vrot.slane %v1223, 5
        %v1254 = vrot.slane %v1253, 4
        %v1255 = vrot.slane %v940, 5
        %v1256 = vsel %vm1248, %v1254, %v1255
        %v1257 = vrot.slane %v1224, 5
        %v1258 = vrot.slane %v1257, 4
        %v1259 = vrot.slane %v942, 5
        %v1260 = vsel %vm1248, %v1258, %v1259
        %v1261 = vrot.slane %v1225, 5
        %v1262 = vrot.slane %v1261, 4
        %v1263 = vrot.slane %v944, 5
        %v1264 = vsel %vm1248, %v1262, %v1263
        %v1265 = vrot.slane %v1226, 5
        %v1266 = vrot.slane %v1265, 4
        %v1267 = vrot.slane %v946, 5
        %v1268 = vsel %vm1248, %v1266, %v1267
        %v1269 = vrot.slane %v1227, 5
        %v1270 = vrot.slane %v1269, 4
        %v1271 = vrot.slane %v948, 5
        %v1272 = vsel %vm1248, %v1270, %v1271
        %v1273 = vrot.slane %v1228, 5
        %v1274 = vrot.slane %v1273, 4
        %v1275 = vrot.slane %v950, 5
        %v1276 = vsel %vm1248, %v1274, %v1275
        %v1277 = vrot.slane %v1229, 5
        %v1278 = vrot.slane %v1277, 4
        %v1279 = vrot.slane %v952, 5
        %v1280 = vsel %vm1248, %v1278, %v1279
        %s1281 = scalar_lea.vmem [#allocation6], 128
        %v1282 = vld [vmem:[%s1281] sm:$0xf]
        %v1283 = vld [vmem:[%s1281 + $0x4] sm:$0xf]
        %v1284 = vld [vmem:[%s1281 + $0x8] sm:$0xf]
        %v1285 = vld [vmem:[%s1281 + $0xc] sm:$0xf]
        %v1286 = vld [vmem:[%s1281 + $0x10] sm:$0xf]
        %v1287 = vld [vmem:[%s1281 + $0x14] sm:$0xf]
        %v1288 = vld [vmem:[%s1281 + $0x18] sm:$0xf]
        %v1289 = vld [vmem:[%s1281 + $0x1c] sm:$0xf]
        %v1290 = vld [vmem:[%s1281 + $0x20] sm:$0xf]
        %v1291 = vld [vmem:[%s1281 + $0x24] sm:$0xf]
        %v1292 = vld [vmem:[%s1281 + $0x28] sm:$0xf]
        %v1293 = vld [vmem:[%s1281 + $0x2c] sm:$0xf]
        %v1294 = vld [vmem:[%s1281 + $0x30] sm:$0xf]
        %v1295 = vld [vmem:[%s1281 + $0x34] sm:$0xf]
        %v1296 = vld [vmem:[%s1281 + $0x38] sm:$0xf]
        %v1297 = vld [vmem:[%s1281 + $0x3c] sm:$0xf]
        %v1298 = vunpack.c.l.b16 %v1252
        %v1299 = vunpack.c.l.b16 %v1256
        %v1300 = vunpack.c.l.b16 %v1260
        %v1301 = vunpack.c.l.b16 %v1264
        %v1302 = vunpack.c.l.b16 %v1268
        %v1303 = vunpack.c.l.b16 %v1272
        %v1304 = vunpack.c.l.b16 %v1276
        %v1305 = vunpack.c.l.b16 %v1280
        %v1306 = vpack.c.b16 %v1299, %v1298
        %v1307 = vpack.c.b16 %v1301, %v1300
        %v1308 = vpack.c.b16 %v1303, %v1302
        %v1309 = vpack.c.b16 %v1305, %v1304
        %v1330 = vunpack.c.l.b16 %v1282
        %v1331 = vunpack.c.l.b16 %v1283
        %v1332 = vunpack.c.l.b16 %v1284
        %v1333 = vunpack.c.l.b16 %v1285
        %v1334 = vunpack.c.l.b16 %v1286
        %v1335 = vunpack.c.l.b16 %v1287
        %v1336 = vunpack.c.l.b16 %v1288
        %v1337 = vunpack.c.l.b16 %v1289
        %v1338 = vunpack.c.l.b16 %v1290
        %v1339 = vunpack.c.l.b16 %v1291
        %v1340 = vunpack.c.l.b16 %v1292
        %v1341 = vunpack.c.l.b16 %v1293
        %v1342 = vunpack.c.l.b16 %v1294
        %v1343 = vunpack.c.l.b16 %v1295
        %v1344 = vunpack.c.l.b16 %v1296
        %v1345 = vunpack.c.l.b16 %v1297
        %v1346 = vpack.c.b16 %v1331, %v1330
        %v1347 = vpack.c.b16 %v1333, %v1332
        %v1348 = vpack.c.b16 %v1335, %v1334
        %v1349 = vpack.c.b16 %v1337, %v1336
        %v1350 = vpack.c.b16 %v1339, %v1338
        %v1351 = vpack.c.b16 %v1341, %v1340
        %v1352 = vpack.c.b16 %v1343, %v1342
        %v1353 = vpack.c.b16 %v1345, %v1344
        %1362 = vmatprep.subr.bf16.mxu0 0
        %1363 = vmatpush1.bf16.msra.mxu0 %v1346
        %1364 = vmatprep.subr.bf16.mxu0 0
        %1365 = vmatpush1.bf16.msra.mxu0 %v1347
        %1366 = vmatprep.subr.bf16.mxu0 0
        %1367 = vmatpush1.bf16.msra.mxu0 %v1348
        %1368 = vmatprep.subr.bf16.mxu0 0
        %1369 = vmatpush1.bf16.msra.mxu0 %v1349
        %1370 = vmatprep.subr.bf16.mxu0 0
        %1371 = vmatpush1.bf16.msra.mxu0 %v1350
        %1372 = vmatprep.subr.bf16.mxu0 0
        %1373 = vmatpush1.bf16.msra.mxu0 %v1351
        %1374 = vmatprep.subr.bf16.mxu0 0
        %1375 = vmatpush1.bf16.msra.mxu0 %v1352
        %1376 = vmatprep.subr.bf16.mxu0 0
        %1377 = vmatpush1.bf16.msra.mxu0 %v1353
        %1378 = vmatprep.subr.bf16.mxu0 0
        %1379 = vmatpush1.bf16.msra.mxu0 0
        %1380 = vmatprep.subr.bf16.mxu0 0
        %1381 = vmatpush1.bf16.msra.mxu0 0
        %1382 = vmatprep.subr.bf16.mxu0 0
        %1383 = vmatpush1.bf16.msra.mxu0 0
        %1384 = vmatprep.subr.bf16.mxu0 0
        %1385 = vmatpush1.bf16.msra.mxu0 0
        %1386 = vmatprep.subr.bf16.mxu0 0
        %1387 = vmatpush1.bf16.msra.mxu0 0
        %1388 = vmatprep.subr.bf16.mxu0 0
        %1389 = vmatpush1.bf16.msra.mxu0 0
        %1390 = vmatprep.subr.bf16.mxu0 0
        %1391 = vmatpush1.bf16.msra.mxu0 0
        %1392 = vmatprep.subr.bf16.mxu0 0
        %1393 = vmatpush1.bf16.msra.mxu0 0
        %1394 = vmatprep.mubr.bf16.mxu0 0
        %1395 = vmatmul.mubr.bf16.gmra.mrb[0].mxu0 %v1306
        %v1396 = vpop.f32.mrb[0].mxu0
        %v1397 = vadd.f32 0.0, %v1396
        %v1398 = vpop.f32.mrb[0].mxu0
        %v1399 = vpop.f32.mrb[0].mxu0
        %v1400 = vadd.f32 0.0, %v1399
        %v1401 = vpop.f32.mrb[0].mxu0
        %1402 = vmatprep.mubr.bf16.mxu0 0
        %1403 = vmatmul.mubr.bf16.gmra.mrb[0].mxu0 %v1307
        %v1404 = vpop.f32.mrb[0].mxu0
        %v1405 = vadd.f32 0.0, %v1404
        %v1406 = vpop.f32.mrb[0].mxu0
        %v1407 = vpop.f32.mrb[0].mxu0
        %v1408 = vadd.f32 0.0, %v1407
        %v1409 = vpop.f32.mrb[0].mxu0
        %1410 = vmatprep.mubr.bf16.mxu0 0
        %1411 = vmatmul.mubr.bf16.gmra.mrb[0].mxu0 %v1308
        %v1412 = vpop.f32.mrb[0].mxu0
        %v1413 = vadd.f32 0.0, %v1412
        %v1414 = vpop.f32.mrb[0].mxu0
        %v1415 = vpop.f32.mrb[0].mxu0
        %v1416 = vadd.f32 0.0, %v1415
        %v1417 = vpop.f32.mrb[0].mxu0
        %1418 = vmatprep.mubr.bf16.mxu0 0
        %1419 = vmatmul.mubr.bf16.gmra.mrb[0].mxu0 %v1309
        %v1420 = vpop.f32.mrb[0].mxu0
        %v1421 = vadd.f32 0.0, %v1420
        %v1422 = vpop.f32.mrb[0].mxu0
        %v1423 = vpop.f32.mrb[0].mxu0
        %v1424 = vadd.f32 0.0, %v1423
        %v1425 = vpop.f32.mrb[0].mxu0
        %1426 = vdwg.mxu0
        %v1427 = vadd.f32 %v1214, %v1397
        %v1428 = vadd.f32 %v1215, %v1400
        %v1429 = vadd.f32 %v1216, %v1405
        %v1430 = vadd.f32 %v1217, %v1408
        %v1431 = vadd.f32 %v1218, %v1413
        %v1432 = vadd.f32 %v1219, %v1416
        %v1433 = vadd.f32 %v1220, %v1421
        %v1434 = vadd.f32 %v1221, %v1424
        %v1435 = vld [vmem:[%s706] sm:$0xf]
        %v1436 = vld [vmem:[%s706 + $0x8] sm:$0xf]
        %v1437 = vld [vmem:[%s706 + $0x10] sm:$0xf]
        %v1438 = vld [vmem:[%s706 + $0x18] sm:$0xf]
        %v1439 = vld [vmem:[%s706 + $0x20] sm:$0xf]
        %v1440 = vld [vmem:[%s706 + $0x28] sm:$0xf]
        %v1441 = vld [vmem:[%s706 + $0x30] sm:$0xf]
        %v1442 = vld [vmem:[%s706 + $0x38] sm:$0xf]
        %s1443 = scalar_lea.vmem [#allocation6], 192
        %v1444 = vld [vmem:[%s1443] sm:$0xf]
        %v1445 = vld [vmem:[%s1443 + $0x4] sm:$0xf]
        %v1446 = vld [vmem:[%s1443 + $0x8] sm:$0xf]
        %v1447 = vld [vmem:[%s1443 + $0xc] sm:$0xf]
        %v1448 = vld [vmem:[%s1443 + $0x10] sm:$0xf]
        %v1449 = vld [vmem:[%s1443 + $0x14] sm:$0xf]
        %v1450 = vld [vmem:[%s1443 + $0x18] sm:$0xf]
        %v1451 = vld [vmem:[%s1443 + $0x1c] sm:$0xf]
        %v1452 = vld [vmem:[%s1443 + $0x20] sm:$0xf]
        %v1453 = vld [vmem:[%s1443 + $0x24] sm:$0xf]
        %v1454 = vld [vmem:[%s1443 + $0x28] sm:$0xf]
        %v1455 = vld [vmem:[%s1443 + $0x2c] sm:$0xf]
        %v1456 = vld [vmem:[%s1443 + $0x30] sm:$0xf]
        %v1457 = vld [vmem:[%s1443 + $0x34] sm:$0xf]
        %v1458 = vld [vmem:[%s1443 + $0x38] sm:$0xf]
        %v1459 = vld [vmem:[%s1443 + $0x3c] sm:$0xf]
        %v1468 = vunpack.c.l.b16 %v1435
        %v1469 = vunpack.c.l.b16 %v1436
        %v1470 = vunpack.c.l.b16 %v1437
        %v1471 = vunpack.c.l.b16 %v1438
        %v1472 = vunpack.c.l.b16 %v1439
        %v1473 = vunpack.c.l.b16 %v1440
        %v1474 = vunpack.c.l.b16 %v1441
        %v1475 = vunpack.c.l.b16 %v1442
        %v1476 = vpack.c.b16 %v1469, %v1468
        %v1477 = vpack.c.b16 %v1471, %v1470
        %v1478 = vpack.c.b16 %v1473, %v1472
        %v1479 = vpack.c.b16 %v1475, %v1474
        %v1500 = vunpack.c.l.b16 %v1444
        %v1501 = vunpack.c.l.b16 %v1445
        %v1502 = vunpack.c.l.b16 %v1446
        %v1503 = vunpack.c.l.b16 %v1447
        %v1504 = vunpack.c.l.b16 %v1448
        %v1505 = vunpack.c.l.b16 %v1449
        %v1506 = vunpack.c.l.b16 %v1450
        %v1507 = vunpack.c.l.b16 %v1451
        %v1508 = vunpack.c.l.b16 %v1452
        %v1509 = vunpack.c.l.b16 %v1453
        %v1510 = vunpack.c.l.b16 %v1454
        %v1511 = vunpack.c.l.b16 %v1455
        %v1512 = vunpack.c.l.b16 %v1456
        %v1513 = vunpack.c.l.b16 %v1457
        %v1514 = vunpack.c.l.b16 %v1458
        %v1515 = vunpack.c.l.b16 %v1459
        %v1516 = vpack.c.b16 %v1501, %v1500
        %v1517 = vpack.c.b16 %v1503, %v1502
        %v1518 = vpack.c.b16 %v1505, %v1504
        %v1519 = vpack.c.b16 %v1507, %v1506
        %v1520 = vpack.c.b16 %v1509, %v1508
        %v1521 = vpack.c.b16 %v1511, %v1510
        %v1522 = vpack.c.b16 %v1513, %v1512
        %v1523 = vpack.c.b16 %v1515, %v1514
        %1532 = vmatprep.subr.bf16.mxu0 0
        %1533 = vmatpush1.bf16.msra.mxu0 %v1516
        %1534 = vmatprep.subr.bf16.mxu0 0
        %1535 = vmatpush1.bf16.msra.mxu0 %v1517
        %1536 = vmatprep.subr.bf16.mxu0 0
        %1537 = vmatpush1.bf16.msra.mxu0 %v1518
        %1538 = vmatprep.subr.bf16.mxu0 0
        %1539 = vmatpush1.bf16.msra.mxu0 %v1519
        %1540 = vmatprep.subr.bf16.mxu0 0
        %1541 = vmatpush1.bf16.msra.mxu0 %v1520
        %1542 = vmatprep.subr.bf16.mxu0 0
        %1543 = vmatpush1.bf16.msra.mxu0 %v1521
        %1544 = vmatprep.subr.bf16.mxu0 0
        %1545 = vmatpush1.bf16.msra.mxu0 %v1522
        %1546 = vmatprep.subr.bf16.mxu0 0
        %1547 = vmatpush1.bf16.msra.mxu0 %v1523
        %1548 = vmatprep.subr.bf16.mxu0 0
        %1549 = vmatpush1.bf16.msra.mxu0 0
        %1550 = vmatprep.subr.bf16.mxu0 0
        %1551 = vmatpush1.bf16.msra.mxu0 0
        %1552 = vmatprep.subr.bf16.mxu0 0
        %1553 = vmatpush1.bf16.msra.mxu0 0
        %1554 = vmatprep.subr.bf16.mxu0 0
        %1555 = vmatpush1.bf16.msra.mxu0 0
        %1556 = vmatprep.subr.bf16.mxu0 0
        %1557 = vmatpush1.bf16.msra.mxu0 0
        %1558 = vmatprep.subr.bf16.mxu0 0
        %1559 = vmatpush1.bf16.msra.mxu0 0
        %1560 = vmatprep.subr.bf16.mxu0 0
        %1561 = vmatpush1.bf16.msra.mxu0 0
        %1562 = vmatprep.subr.bf16.mxu0 0
        %1563 = vmatpush1.bf16.msra.mxu0 0
        %1564 = vmatprep.mubr.bf16.mxu0 0
        %1565 = vmatmul.mubr.bf16.gmra.mrb[0].mxu0 %v1476
        %v1566 = vpop.f32.mrb[0].mxu0
        %v1567 = vadd.f32 0.0, %v1566
        %v1568 = vpop.f32.mrb[0].mxu0
        %v1569 = vpop.f32.mrb[0].mxu0
        %v1570 = vadd.f32 0.0, %v1569
        %v1571 = vpop.f32.mrb[0].mxu0
        %1572 = vmatprep.mubr.bf16.mxu0 0
        %1573 = vmatmul.mubr.bf16.gmra.mrb[0].mxu0 %v1477
        %v1574 = vpop.f32.mrb[0].mxu0
        %v1575 = vadd.f32 0.0, %v1574
        %v1576 = vpop.f32.mrb[0].mxu0
        %v1577 = vpop.f32.mrb[0].mxu0
        %v1578 = vadd.f32 0.0, %v1577
        %v1579 = vpop.f32.mrb[0].mxu0
        %1580 = vmatprep.mubr.bf16.mxu0 0
        %1581 = vmatmul.mubr.bf16.gmra.mrb[0].mxu0 %v1478
        %v1582 = vpop.f32.mrb[0].mxu0
        %v1583 = vadd.f32 0.0, %v1582
        %v1584 = vpop.f32.mrb[0].mxu0
        %v1585 = vpop.f32.mrb[0].mxu0
        %v1586 = vadd.f32 0.0, %v1585
        %v1587 = vpop.f32.mrb[0].mxu0
        %1588 = vmatprep.mubr.bf16.mxu0 0
        %1589 = vmatmul.mubr.bf16.gmra.mrb[0].mxu0 %v1479
        %v1590 = vpop.f32.mrb[0].mxu0
        %v1591 = vadd.f32 0.0, %v1590
        %v1592 = vpop.f32.mrb[0].mxu0
        %v1593 = vpop.f32.mrb[0].mxu0
        %v1594 = vadd.f32 0.0, %v1593
        %v1595 = vpop.f32.mrb[0].mxu0
        %1596 = vdwg.mxu0
        %v1597 = vadd.f32 %v1427, %v1567
        %v1598 = vadd.f32 %v1428, %v1570
        %v1599 = vadd.f32 %v1429, %v1575
        %v1600 = vadd.f32 %v1430, %v1578
        %v1601 = vadd.f32 %v1431, %v1583
        %v1602 = vadd.f32 %v1432, %v1586
        %v1603 = vadd.f32 %v1433, %v1591
        %v1604 = vadd.f32 %v1434, %v1594
        %v1605 = vld [vmem:[%s706] sm:$0xf]
        %v1606 = vld [vmem:[%s706 + $0x4] sm:$0x1]
        %v1607 = vld [vmem:[%s706 + $0x8] sm:$0xf]
        %v1608 = vld [vmem:[%s706 + $0xc] sm:$0x1]
        %v1609 = vld [vmem:[%s706 + $0x10] sm:$0xf]
        %v1610 = vld [vmem:[%s706 + $0x14] sm:$0x1]
        %v1611 = vld [vmem:[%s706 + $0x18] sm:$0xf]
        %v1612 = vld [vmem:[%s706 + $0x1c] sm:$0x1]
        %v1613 = vld [vmem:[%s706 + $0x20] sm:$0xf]
        %v1614 = vld [vmem:[%s706 + $0x24] sm:$0x1]
        %v1615 = vld [vmem:[%s706 + $0x28] sm:$0xf]
        %v1616 = vld [vmem:[%s706 + $0x2c] sm:$0x1]
        %v1617 = vld [vmem:[%s706 + $0x30] sm:$0xf]
        %v1618 = vld [vmem:[%s706 + $0x34] sm:$0x1]
        %v1619 = vld [vmem:[%s706 + $0x38] sm:$0xf]
        %v1620 = vld [vmem:[%s706 + $0x3c] sm:$0x1]
        %v1622 = vshrl.u32 %v1605, 16
        %v1624 = vrot.slane %v1622, 4
        %v1625 = vshll.u32 %v1605, 16
        %v1627 = vrot.slane %v1625, 5
        %v1628 = vor.u32 %v1624, %v1627
        %v1629 = vrot.slane %v1628, 4
        %v1631 = vshll.u32 %v1606, 16
        %v1633 = vrot.slane %v1631, 5
        %v1634 = vsel %vm955, %v1629, %v1633
        %v1636 = vshrl.u32 %v1607, 16
        %v1638 = vrot.slane %v1636, 4
        %v1639 = vshll.u32 %v1607, 16
        %v1641 = vrot.slane %v1639, 5
        %v1642 = vor.u32 %v1638, %v1641
        %v1643 = vrot.slane %v1642, 4
        %v1645 = vshll.u32 %v1608, 16
        %v1647 = vrot.slane %v1645, 5
        %v1648 = vsel %vm955, %v1643, %v1647
        %v1650 = vshrl.u32 %v1609, 16
        %v1652 = vrot.slane %v1650, 4
        %v1653 = vshll.u32 %v1609, 16
        %v1655 = vrot.slane %v1653, 5
        %v1656 = vor.u32 %v1652, %v1655
        %v1657 = vrot.slane %v1656, 4
        %v1659 = vshll.u32 %v1610, 16
        %v1661 = vrot.slane %v1659, 5
        %v1662 = vsel %vm955, %v1657, %v1661
        %v1664 = vshrl.u32 %v1611, 16
        %v1666 = vrot.slane %v1664, 4
        %v1667 = vshll.u32 %v1611, 16
        %v1669 = vrot.slane %v1667, 5
        %v1670 = vor.u32 %v1666, %v1669
        %v1671 = vrot.slane %v1670, 4
        %v1673 = vshll.u32 %v1612, 16
        %v1675 = vrot.slane %v1673, 5
        %v1676 = vsel %vm955, %v1671, %v1675
        %v1678 = vshrl.u32 %v1613, 16
        %v1680 = vrot.slane %v1678, 4
        %v1681 = vshll.u32 %v1613, 16
        %v1683 = vrot.slane %v1681, 5
        %v1684 = vor.u32 %v1680, %v1683
        %v1685 = vrot.slane %v1684, 4
        %v1687 = vshll.u32 %v1614, 16
        %v1689 = vrot.slane %v1687, 5
        %v1690 = vsel %vm955, %v1685, %v1689
        %v1692 = vshrl.u32 %v1615, 16
        %v1694 = vrot.slane %v1692, 4
        %v1695 = vshll.u32 %v1615, 16
        %v1697 = vrot.slane %v1695, 5
        %v1698 = vor.u32 %v1694, %v1697
        %v1699 = vrot.slane %v1698, 4
        %v1701 = vshll.u32 %v1616, 16
        %v1703 = vrot.slane %v1701, 5
        %v1704 = vsel %vm955, %v1699, %v1703
        %v1706 = vshrl.u32 %v1617, 16
        %v1708 = vrot.slane %v1706, 4
        %v1709 = vshll.u32 %v1617, 16
        %v1711 = vrot.slane %v1709, 5
        %v1712 = vor.u32 %v1708, %v1711
        %v1713 = vrot.slane %v1712, 4
        %v1715 = vshll.u32 %v1618, 16
        %v1717 = vrot.slane %v1715, 5
        %v1718 = vsel %vm955, %v1713, %v1717
        %v1720 = vshrl.u32 %v1619, 16
        %v1722 = vrot.slane %v1720, 4
        %v1723 = vshll.u32 %v1619, 16
        %v1725 = vrot.slane %v1723, 5
        %v1726 = vor.u32 %v1722, %v1725
        %v1727 = vrot.slane %v1726, 4
        %v1729 = vshll.u32 %v1620, 16
        %v1731 = vrot.slane %v1729, 5
        %v1732 = vsel %vm955, %v1727, %v1731
        %s1733 = scalar_lea.vmem [#allocation6], 256
        %v1734 = vld [vmem:[%s1733] sm:$0xf]
        %v1735 = vld [vmem:[%s1733 + $0x4] sm:$0xf]
        %v1736 = vld [vmem:[%s1733 + $0x8] sm:$0xf]
        %v1737 = vld [vmem:[%s1733 + $0xc] sm:$0xf]
        %v1738 = vld [vmem:[%s1733 + $0x10] sm:$0xf]
        %v1739 = vld [vmem:[%s1733 + $0x14] sm:$0xf]
        %v1740 = vld [vmem:[%s1733 + $0x18] sm:$0xf]
        %v1741 = vld [vmem:[%s1733 + $0x1c] sm:$0xf]
        %v1742 = vld [vmem:[%s1733 + $0x20] sm:$0xf]
        %v1743 = vld [vmem:[%s1733 + $0x24] sm:$0xf]
        %v1744 = vld [vmem:[%s1733 + $0x28] sm:$0xf]
        %v1745 = vld [vmem:[%s1733 + $0x2c] sm:$0xf]
        %v1746 = vld [vmem:[%s1733 + $0x30] sm:$0xf]
        %v1747 = vld [vmem:[%s1733 + $0x34] sm:$0xf]
        %v1748 = vld [vmem:[%s1733 + $0x38] sm:$0xf]
        %v1749 = vld [vmem:[%s1733 + $0x3c] sm:$0xf]
        %v1750 = vunpack.c.l.b16 %v1634
        %v1751 = vunpack.c.l.b16 %v1648
        %v1752 = vunpack.c.l.b16 %v1662
        %v1753 = vunpack.c.l.b16 %v1676
        %v1754 = vunpack.c.l.b16 %v1690
        %v1755 = vunpack.c.l.b16 %v1704
        %v1756 = vunpack.c.l.b16 %v1718
        %v1757 = vunpack.c.l.b16 %v1732
        %v1758 = vpack.c.b16 %v1751, %v1750
        %v1759 = vpack.c.b16 %v1753, %v1752
        %v1760 = vpack.c.b16 %v1755, %v1754
        %v1761 = vpack.c.b16 %v1757, %v1756
        %v1782 = vunpack.c.l.b16 %v1734
        %v1783 = vunpack.c.l.b16 %v1735
        %v1784 = vunpack.c.l.b16 %v1736
        %v1785 = vunpack.c.l.b16 %v1737
        %v1786 = vunpack.c.l.b16 %v1738
        %v1787 = vunpack.c.l.b16 %v1739
        %v1788 = vunpack.c.l.b16 %v1740
        %v1789 = vunpack.c.l.b16 %v1741
        %v1790 = vunpack.c.l.b16 %v1742
        %v1791 = vunpack.c.l.b16 %v1743
        %v1792 = vunpack.c.l.b16 %v1744
        %v1793 = vunpack.c.l.b16 %v1745
        %v1794 = vunpack.c.l.b16 %v1746
        %v1795 = vunpack.c.l.b16 %v1747
        %v1796 = vunpack.c.l.b16 %v1748
        %v1797 = vunpack.c.l.b16 %v1749
        %v1798 = vpack.c.b16 %v1783, %v1782
        %v1799 = vpack.c.b16 %v1785, %v1784
        %v1800 = vpack.c.b16 %v1787, %v1786
        %v1801 = vpack.c.b16 %v1789, %v1788
        %v1802 = vpack.c.b16 %v1791, %v1790
        %v1803 = vpack.c.b16 %v1793, %v1792
        %v1804 = vpack.c.b16 %v1795, %v1794
        %v1805 = vpack.c.b16 %v1797, %v1796
        %1814 = vmatprep.subr.bf16.mxu0 0
        %1815 = vmatpush1.bf16.msra.mxu0 %v1798
        %1816 = vmatprep.subr.bf16.mxu0 0
        %1817 = vmatpush1.bf16.msra.mxu0 %v1799
        %1818 = vmatprep.subr.bf16.mxu0 0
        %1819 = vmatpush1.bf16.msra.mxu0 %v1800
        %1820 = vmatprep.subr.bf16.mxu0 0
        %1821 = vmatpush1.bf16.msra.mxu0 %v1801
        %1822 = vmatprep.subr.bf16.mxu0 0
        %1823 = vmatpush1.bf16.msra.mxu0 %v1802
        %1824 = vmatprep.subr.bf16.mxu0 0
        %1825 = vmatpush1.bf16.msra.mxu0 %v1803
        %1826 = vmatprep.subr.bf16.mxu0 0
        %1827 = vmatpush1.bf16.msra.mxu0 %v1804
        %1828 = vmatprep.subr.bf16.mxu0 0
        %1829 = vmatpush1.bf16.msra.mxu0 %v1805
        %1830 = vmatprep.subr.bf16.mxu0 0
        %1831 = vmatpush1.bf16.msra.mxu0 0
        %1832 = vmatprep.subr.bf16.mxu0 0
        %1833 = vmatpush1.bf16.msra.mxu0 0
        %1834 = vmatprep.subr.bf16.mxu0 0
        %1835 = vmatpush1.bf16.msra.mxu0 0
        %1836 = vmatprep.subr.bf16.mxu0 0
        %1837 = vmatpush1.bf16.msra.mxu0 0
        %1838 = vmatprep.subr.bf16.mxu0 0
        %1839 = vmatpush1.bf16.msra.mxu0 0
        %1840 = vmatprep.subr.bf16.mxu0 0
        %1841 = vmatpush1.bf16.msra.mxu0 0
        %1842 = vmatprep.subr.bf16.mxu0 0
        %1843 = vmatpush1.bf16.msra.mxu0 0
        %1844 = vmatprep.subr.bf16.mxu0 0
        %1845 = vmatpush1.bf16.msra.mxu0 0
        %1846 = vmatprep.mubr.bf16.mxu0 0
        %1847 = vmatmul.mubr.bf16.gmra.mrb[0].mxu0 %v1758
        %v1848 = vpop.f32.mrb[0].mxu0
        %v1849 = vadd.f32 0.0, %v1848
        %v1850 = vpop.f32.mrb[0].mxu0
        %v1851 = vpop.f32.mrb[0].mxu0
        %v1852 = vadd.f32 0.0, %v1851
        %v1853 = vpop.f32.mrb[0].mxu0
        %1854 = vmatprep.mubr.bf16.mxu0 0
        %1855 = vmatmul.mubr.bf16.gmra.mrb[0].mxu0 %v1759
        %v1856 = vpop.f32.mrb[0].mxu0
        %v1857 = vadd.f32 0.0, %v1856
        %v1858 = vpop.f32.mrb[0].mxu0
        %v1859 = vpop.f32.mrb[0].mxu0
        %v1860 = vadd.f32 0.0, %v1859
        %v1861 = vpop.f32.mrb[0].mxu0
        %1862 = vmatprep.mubr.bf16.mxu0 0
        %1863 = vmatmul.mubr.bf16.gmra.mrb[0].mxu0 %v1760
        %v1864 = vpop.f32.mrb[0].mxu0
        %v1865 = vadd.f32 0.0, %v1864
        %v1866 = vpop.f32.mrb[0].mxu0
        %v1867 = vpop.f32.mrb[0].mxu0
        %v1868 = vadd.f32 0.0, %v1867
        %v1869 = vpop.f32.mrb[0].mxu0
        %1870 = vmatprep.mubr.bf16.mxu0 0
        %1871 = vmatmul.mubr.bf16.gmra.mrb[0].mxu0 %v1761
        %v1872 = vpop.f32.mrb[0].mxu0
        %v1873 = vadd.f32 0.0, %v1872
        %v1874 = vpop.f32.mrb[0].mxu0
        %v1875 = vpop.f32.mrb[0].mxu0
        %v1876 = vadd.f32 0.0, %v1875
        %v1877 = vpop.f32.mrb[0].mxu0
        %1878 = vdwg.mxu0
        %v1879 = vadd.f32 %v1597, %v1849
        %v1880 = vadd.f32 %v1598, %v1852
        %v1881 = vadd.f32 %v1599, %v1857
        %v1882 = vadd.f32 %v1600, %v1860
        %v1883 = vadd.f32 %v1601, %v1865
        %v1884 = vadd.f32 %v1602, %v1868
        %v1885 = vadd.f32 %v1603, %v1873
        %v1886 = vadd.f32 %v1604, %v1876
        %v1887 = vld [vmem:[%s706] sm:$0xe]
        %v1888 = vld [vmem:[%s706 + $0x8] sm:$0xe]
        %v1889 = vld [vmem:[%s706 + $0x10] sm:$0xe]
        %v1890 = vld [vmem:[%s706 + $0x18] sm:$0xe]
        %v1891 = vld [vmem:[%s706 + $0x20] sm:$0xe]
        %v1892 = vld [vmem:[%s706 + $0x28] sm:$0xe]
        %v1893 = vld [vmem:[%s706 + $0x30] sm:$0xe]
        %v1894 = vld [vmem:[%s706 + $0x38] sm:$0xe]
        %v1911 = vrot.slane %v1887, 5
        %v1912 = vrot.slane %v1911, 4
        %v1913 = vrot.slane %v1606, 5
        %v1914 = vsel %vm1248, %v1912, %v1913
        %v1915 = vrot.slane %v1888, 5
        %v1916 = vrot.slane %v1915, 4
        %v1917 = vrot.slane %v1608, 5
        %v1918 = vsel %vm1248, %v1916, %v1917
        %v1919 = vrot.slane %v1889, 5
        %v1920 = vrot.slane %v1919, 4
        %v1921 = vrot.slane %v1610, 5
        %v1922 = vsel %vm1248, %v1920, %v1921
        %v1923 = vrot.slane %v1890, 5
        %v1924 = vrot.slane %v1923, 4
        %v1925 = vrot.slane %v1612, 5
        %v1926 = vsel %vm1248, %v1924, %v1925
        %v1927 = vrot.slane %v1891, 5
        %v1928 = vrot.slane %v1927, 4
        %v1929 = vrot.slane %v1614, 5
        %v1930 = vsel %vm1248, %v1928, %v1929
        %v1931 = vrot.slane %v1892, 5
        %v1932 = vrot.slane %v1931, 4
        %v1933 = vrot.slane %v1616, 5
        %v1934 = vsel %vm1248, %v1932, %v1933
        %v1935 = vrot.slane %v1893, 5
        %v1936 = vrot.slane %v1935, 4
        %v1937 = vrot.slane %v1618, 5
        %v1938 = vsel %vm1248, %v1936, %v1937
        %v1939 = vrot.slane %v1894, 5
        %v1940 = vrot.slane %v1939, 4
        %v1941 = vrot.slane %v1620, 5
        %v1942 = vsel %vm1248, %v1940, %v1941
        %s1943 = scalar_lea.vmem [#allocation6], 320
        %v1944 = vld [vmem:[%s1943] sm:$0xf]
        %v1945 = vld [vmem:[%s1943 + $0x4] sm:$0xf]
        %v1946 = vld [vmem:[%s1943 + $0x8] sm:$0xf]
        %v1947 = vld [vmem:[%s1943 + $0xc] sm:$0xf]
        %v1948 = vld [vmem:[%s1943 + $0x10] sm:$0xf]
        %v1949 = vld [vmem:[%s1943 + $0x14] sm:$0xf]
        %v1950 = vld [vmem:[%s1943 + $0x18] sm:$0xf]
        %v1951 = vld [vmem:[%s1943 + $0x1c] sm:$0xf]
        %v1952 = vld [vmem:[%s1943 + $0x20] sm:$0xf]
        %v1953 = vld [vmem:[%s1943 + $0x24] sm:$0xf]
        %v1954 = vld [vmem:[%s1943 + $0x28] sm:$0xf]
        %v1955 = vld [vmem:[%s1943 + $0x2c] sm:$0xf]
        %v1956 = vld [vmem:[%s1943 + $0x30] sm:$0xf]
        %v1957 = vld [vmem:[%s1943 + $0x34] sm:$0xf]
        %v1958 = vld [vmem:[%s1943 + $0x38] sm:$0xf]
        %v1959 = vld [vmem:[%s1943 + $0x3c] sm:$0xf]
        %v1960 = vunpack.c.l.b16 %v1914
        %v1961 = vunpack.c.l.b16 %v1918
        %v1962 = vunpack.c.l.b16 %v1922
        %v1963 = vunpack.c.l.b16 %v1926
        %v1964 = vunpack.c.l.b16 %v1930
        %v1965 = vunpack.c.l.b16 %v1934
        %v1966 = vunpack.c.l.b16 %v1938
        %v1967 = vunpack.c.l.b16 %v1942
        %v1968 = vpack.c.b16 %v1961, %v1960
        %v1969 = vpack.c.b16 %v1963, %v1962
        %v1970 = vpack.c.b16 %v1965, %v1964
        %v1971 = vpack.c.b16 %v1967, %v1966
        %v1992 = vunpack.c.l.b16 %v1944
        %v1993 = vunpack.c.l.b16 %v1945
        %v1994 = vunpack.c.l.b16 %v1946
        %v1995 = vunpack.c.l.b16 %v1947
        %v1996 = vunpack.c.l.b16 %v1948
        %v1997 = vunpack.c.l.b16 %v1949
        %v1998 = vunpack.c.l.b16 %v1950
        %v1999 = vunpack.c.l.b16 %v1951
        %v2000 = vunpack.c.l.b16 %v1952
        %v2001 = vunpack.c.l.b16 %v1953
        %v2002 = vunpack.c.l.b16 %v1954
        %v2003 = vunpack.c.l.b16 %v1955
        %v2004 = vunpack.c.l.b16 %v1956
        %v2005 = vunpack.c.l.b16 %v1957
        %v2006 = vunpack.c.l.b16 %v1958
        %v2007 = vunpack.c.l.b16 %v1959
        %v2008 = vpack.c.b16 %v1993, %v1992
        %v2009 = vpack.c.b16 %v1995, %v1994
        %v2010 = vpack.c.b16 %v1997, %v1996
        %v2011 = vpack.c.b16 %v1999, %v1998
        %v2012 = vpack.c.b16 %v2001, %v2000
        %v2013 = vpack.c.b16 %v2003, %v2002
        %v2014 = vpack.c.b16 %v2005, %v2004
        %v2015 = vpack.c.b16 %v2007, %v2006
        %2024 = vmatprep.subr.bf16.mxu0 0
        %2025 = vmatpush1.bf16.msra.mxu0 %v2008
        %2026 = vmatprep.subr.bf16.mxu0 0
        %2027 = vmatpush1.bf16.msra.mxu0 %v2009
        %2028 = vmatprep.subr.bf16.mxu0 0
        %2029 = vmatpush1.bf16.msra.mxu0 %v2010
        %2030 = vmatprep.subr.bf16.mxu0 0
        %2031 = vmatpush1.bf16.msra.mxu0 %v2011
        %2032 = vmatprep.subr.bf16.mxu0 0
        %2033 = vmatpush1.bf16.msra.mxu0 %v2012
        %2034 = vmatprep.subr.bf16.mxu0 0
        %2035 = vmatpush1.bf16.msra.mxu0 %v2013
        %2036 = vmatprep.subr.bf16.mxu0 0
        %2037 = vmatpush1.bf16.msra.mxu0 %v2014
        %2038 = vmatprep.subr.bf16.mxu0 0
        %2039 = vmatpush1.bf16.msra.mxu0 %v2015
        %2040 = vmatprep.subr.bf16.mxu0 0
        %2041 = vmatpush1.bf16.msra.mxu0 0
        %2042 = vmatprep.subr.bf16.mxu0 0
        %2043 = vmatpush1.bf16.msra.mxu0 0
        %2044 = vmatprep.subr.bf16.mxu0 0
        %2045 = vmatpush1.bf16.msra.mxu0 0
        %2046 = vmatprep.subr.bf16.mxu0 0
        %2047 = vmatpush1.bf16.msra.mxu0 0
        %2048 = vmatprep.subr.bf16.mxu0 0
        %2049 = vmatpush1.bf16.msra.mxu0 0
        %2050 = vmatprep.subr.bf16.mxu0 0
        %2051 = vmatpush1.bf16.msra.mxu0 0
        %2052 = vmatprep.subr.bf16.mxu0 0
        %2053 = vmatpush1.bf16.msra.mxu0 0
        %2054 = vmatprep.subr.bf16.mxu0 0
        %2055 = vmatpush1.bf16.msra.mxu0 0
        %2056 = vmatprep.mubr.bf16.mxu0 0
        %2057 = vmatmul.mubr.bf16.gmra.mrb[0].mxu0 %v1968
        %v2058 = vpop.f32.mrb[0].mxu0
        %v2059 = vadd.f32 0.0, %v2058
        %v2060 = vpop.f32.mrb[0].mxu0
        %v2061 = vpop.f32.mrb[0].mxu0
        %v2062 = vadd.f32 0.0, %v2061
        %v2063 = vpop.f32.mrb[0].mxu0
        %2064 = vmatprep.mubr.bf16.mxu0 0
        %2065 = vmatmul.mubr.bf16.gmra.mrb[0].mxu0 %v1969
        %v2066 = vpop.f32.mrb[0].mxu0
        %v2067 = vadd.f32 0.0, %v2066
        %v2068 = vpop.f32.mrb[0].mxu0
        %v2069 = vpop.f32.mrb[0].mxu0
        %v2070 = vadd.f32 0.0, %v2069
        %v2071 = vpop.f32.mrb[0].mxu0
        %2072 = vmatprep.mubr.bf16.mxu0 0
        %2073 = vmatmul.mubr.bf16.gmra.mrb[0].mxu0 %v1970
        %v2074 = vpop.f32.mrb[0].mxu0
        %v2075 = vadd.f32 0.0, %v2074
        %v2076 = vpop.f32.mrb[0].mxu0
        %v2077 = vpop.f32.mrb[0].mxu0
        %v2078 = vadd.f32 0.0, %v2077
        %v2079 = vpop.f32.mrb[0].mxu0
        %2080 = vmatprep.mubr.bf16.mxu0 0
        %2081 = vmatmul.mubr.bf16.gmra.mrb[0].mxu0 %v1971
        %v2082 = vpop.f32.mrb[0].mxu0
        %v2083 = vadd.f32 0.0, %v2082
        %v2084 = vpop.f32.mrb[0].mxu0
        %v2085 = vpop.f32.mrb[0].mxu0
        %v2086 = vadd.f32 0.0, %v2085
        %v2087 = vpop.f32.mrb[0].mxu0
        %2088 = vdwg.mxu0
        %v2089 = vadd.f32 %v1879, %v2059
        %v2090 = vadd.f32 %v1880, %v2062
        %v2091 = vadd.f32 %v1881, %v2067
        %v2092 = vadd.f32 %v1882, %v2070
        %v2093 = vadd.f32 %v1883, %v2075
        %v2094 = vadd.f32 %v1884, %v2078
        %v2095 = vadd.f32 %v1885, %v2083
        %v2096 = vadd.f32 %v1886, %v2086
        %s2097 = scalar_lea.vmem [#allocation2], 16
        %v2098 = vld [vmem:[%s2097] sm:$0xf]
        %v2099 = vld [vmem:[%s2097 + $0x8] sm:$0xf]
        %v2100 = vld [vmem:[%s2097 + $0x10] sm:$0xf]
        %v2101 = vld [vmem:[%s2097 + $0x18] sm:$0xf]
        %v2102 = vld [vmem:[%s2097 + $0x20] sm:$0xf]
        %v2103 = vld [vmem:[%s2097 + $0x28] sm:$0xf]
        %v2104 = vld [vmem:[%s2097 + $0x30] sm:$0xf]
        %v2105 = vld [vmem:[%s2097 + $0x38] sm:$0xf]
        %s2106 = scalar_lea.vmem [#allocation6], 384
        %v2107 = vld [vmem:[%s2106] sm:$0xf]
        %v2108 = vld [vmem:[%s2106 + $0x4] sm:$0xf]
        %v2109 = vld [vmem:[%s2106 + $0x8] sm:$0xf]
        %v2110 = vld [vmem:[%s2106 + $0xc] sm:$0xf]
        %v2111 = vld [vmem:[%s2106 + $0x10] sm:$0xf]
        %v2112 = vld [vmem:[%s2106 + $0x14] sm:$0xf]
        %v2113 = vld [vmem:[%s2106 + $0x18] sm:$0xf]
        %v2114 = vld [vmem:[%s2106 + $0x1c] sm:$0xf]
        %v2115 = vld [vmem:[%s2106 + $0x20] sm:$0xf]
        %v2116 = vld [vmem:[%s2106 + $0x24] sm:$0xf]
        %v2117 = vld [vmem:[%s2106 + $0x28] sm:$0xf]
        %v2118 = vld [vmem:[%s2106 + $0x2c] sm:$0xf]
        %v2119 = vld [vmem:[%s2106 + $0x30] sm:$0xf]
        %v2120 = vld [vmem:[%s2106 + $0x34] sm:$0xf]
        %v2121 = vld [vmem:[%s2106 + $0x38] sm:$0xf]
        %v2122 = vld [vmem:[%s2106 + $0x3c] sm:$0xf]
        %v2131 = vunpack.c.l.b16 %v2098
        %v2132 = vunpack.c.l.b16 %v2099
        %v2133 = vunpack.c.l.b16 %v2100
        %v2134 = vunpack.c.l.b16 %v2101
        %v2135 = vunpack.c.l.b16 %v2102
        %v2136 = vunpack.c.l.b16 %v2103
        %v2137 = vunpack.c.l.b16 %v2104
        %v2138 = vunpack.c.l.b16 %v2105
        %v2139 = vpack.c.b16 %v2132, %v2131
        %v2140 = vpack.c.b16 %v2134, %v2133
        %v2141 = vpack.c.b16 %v2136, %v2135
        %v2142 = vpack.c.b16 %v2138, %v2137
        %v2163 = vunpack.c.l.b16 %v2107
        %v2164 = vunpack.c.l.b16 %v2108
        %v2165 = vunpack.c.l.b16 %v2109
        %v2166 = vunpack.c.l.b16 %v2110
        %v2167 = vunpack.c.l.b16 %v2111
        %v2168 = vunpack.c.l.b16 %v2112
        %v2169 = vunpack.c.l.b16 %v2113
        %v2170 = vunpack.c.l.b16 %v2114
        %v2171 = vunpack.c.l.b16 %v2115
        %v2172 = vunpack.c.l.b16 %v2116
        %v2173 = vunpack.c.l.b16 %v2117
        %v2174 = vunpack.c.l.b16 %v2118
        %v2175 = vunpack.c.l.b16 %v2119
        %v2176 = vunpack.c.l.b16 %v2120
        %v2177 = vunpack.c.l.b16 %v2121
        %v2178 = vunpack.c.l.b16 %v2122
        %v2179 = vpack.c.b16 %v2164, %v2163
        %v2180 = vpack.c.b16 %v2166, %v2165
        %v2181 = vpack.c.b16 %v2168, %v2167
        %v2182 = vpack.c.b16 %v2170, %v2169
        %v2183 = vpack.c.b16 %v2172, %v2171
        %v2184 = vpack.c.b16 %v2174, %v2173
        %v2185 = vpack.c.b16 %v2176, %v2175
        %v2186 = vpack.c.b16 %v2178, %v2177
        %2195 = vmatprep.subr.bf16.mxu0 0
        %2196 = vmatpush1.bf16.msra.mxu0 %v2179
        %2197 = vmatprep.subr.bf16.mxu0 0
        %2198 = vmatpush1.bf16.msra.mxu0 %v2180
        %2199 = vmatprep.subr.bf16.mxu0 0
        %2200 = vmatpush1.bf16.msra.mxu0 %v2181
        %2201 = vmatprep.subr.bf16.mxu0 0
        %2202 = vmatpush1.bf16.msra.mxu0 %v2182
        %2203 = vmatprep.subr.bf16.mxu0 0
        %2204 = vmatpush1.bf16.msra.mxu0 %v2183
        %2205 = vmatprep.subr.bf16.mxu0 0
        %2206 = vmatpush1.bf16.msra.mxu0 %v2184
        %2207 = vmatprep.subr.bf16.mxu0 0
        %2208 = vmatpush1.bf16.msra.mxu0 %v2185
        %2209 = vmatprep.subr.bf16.mxu0 0
        %2210 = vmatpush1.bf16.msra.mxu0 %v2186
        %2211 = vmatprep.subr.bf16.mxu0 0
        %2212 = vmatpush1.bf16.msra.mxu0 0
        %2213 = vmatprep.subr.bf16.mxu0 0
        %2214 = vmatpush1.bf16.msra.mxu0 0
        %2215 = vmatprep.subr.bf16.mxu0 0
        %2216 = vmatpush1.bf16.msra.mxu0 0
        %2217 = vmatprep.subr.bf16.mxu0 0
        %2218 = vmatpush1.bf16.msra.mxu0 0
        %2219 = vmatprep.subr.bf16.mxu0 0
        %2220 = vmatpush1.bf16.msra.mxu0 0
        %2221 = vmatprep.subr.bf16.mxu0 0
        %2222 = vmatpush1.bf16.msra.mxu0 0
        %2223 = vmatprep.subr.bf16.mxu0 0
        %2224 = vmatpush1.bf16.msra.mxu0 0
        %2225 = vmatprep.subr.bf16.mxu0 0
        %2226 = vmatpush1.bf16.msra.mxu0 0
        %2227 = vmatprep.mubr.bf16.mxu0 0
        %2228 = vmatmul.mubr.bf16.gmra.mrb[0].mxu0 %v2139
        %v2229 = vpop.f32.mrb[0].mxu0
        %v2230 = vadd.f32 0.0, %v2229
        %v2231 = vpop.f32.mrb[0].mxu0
        %v2232 = vpop.f32.mrb[0].mxu0
        %v2233 = vadd.f32 0.0, %v2232
        %v2234 = vpop.f32.mrb[0].mxu0
        %2235 = vmatprep.mubr.bf16.mxu0 0
        %2236 = vmatmul.mubr.bf16.gmra.mrb[0].mxu0 %v2140
        %v2237 = vpop.f32.mrb[0].mxu0
        %v2238 = vadd.f32 0.0, %v2237
        %v2239 = vpop.f32.mrb[0].mxu0
        %v2240 = vpop.f32.mrb[0].mxu0
        %v2241 = vadd.f32 0.0, %v2240
        %v2242 = vpop.f32.mrb[0].mxu0
        %2243 = vmatprep.mubr.bf16.mxu0 0
        %2244 = vmatmul.mubr.bf16.gmra.mrb[0].mxu0 %v2141
        %v2245 = vpop.f32.mrb[0].mxu0
        %v2246 = vadd.f32 0.0, %v2245
        %v2247 = vpop.f32.mrb[0].mxu0
        %v2248 = vpop.f32.mrb[0].mxu0
        %v2249 = vadd.f32 0.0, %v2248
        %v2250 = vpop.f32.mrb[0].mxu0
        %2251 = vmatprep.mubr.bf16.mxu0 0
        %2252 = vmatmul.mubr.bf16.gmra.mrb[0].mxu0 %v2142
        %v2253 = vpop.f32.mrb[0].mxu0
        %v2254 = vadd.f32 0.0, %v2253
        %v2255 = vpop.f32.mrb[0].mxu0
        %v2256 = vpop.f32.mrb[0].mxu0
        %v2257 = vadd.f32 0.0, %v2256
        %v2258 = vpop.f32.mrb[0].mxu0
        %2259 = vdwg.mxu0
        %v2260 = vadd.f32 %v2089, %v2230
        %v2261 = vadd.f32 %v2090, %v2233
        %v2262 = vadd.f32 %v2091, %v2238
        %v2263 = vadd.f32 %v2092, %v2241
        %v2264 = vadd.f32 %v2093, %v2246
        %v2265 = vadd.f32 %v2094, %v2249
        %v2266 = vadd.f32 %v2095, %v2254
        %v2267 = vadd.f32 %v2096, %v2257
        %v2268 = vld [vmem:[%s2097] sm:$0xf]
        %v2269 = vld [vmem:[%s2097 + $0x4] sm:$0x1]
        %v2270 = vld [vmem:[%s2097 + $0x8] sm:$0xf]
        %v2271 = vld [vmem:[%s2097 + $0xc] sm:$0x1]
        %v2272 = vld [vmem:[%s2097 + $0x10] sm:$0xf]
        %v2273 = vld [vmem:[%s2097 + $0x14] sm:$0x1]
        %v2274 = vld [vmem:[%s2097 + $0x18] sm:$0xf]
        %v2275 = vld [vmem:[%s2097 + $0x1c] sm:$0x1]
        %v2276 = vld [vmem:[%s2097 + $0x20] sm:$0xf]
        %v2277 = vld [vmem:[%s2097 + $0x24] sm:$0x1]
        %v2278 = vld [vmem:[%s2097 + $0x28] sm:$0xf]
        %v2279 = vld [vmem:[%s2097 + $0x2c] sm:$0x1]
        %v2280 = vld [vmem:[%s2097 + $0x30] sm:$0xf]
        %v2281 = vld [vmem:[%s2097 + $0x34] sm:$0x1]
        %v2282 = vld [vmem:[%s2097 + $0x38] sm:$0xf]
        %v2283 = vld [vmem:[%s2097 + $0x3c] sm:$0x1]
        %v2285 = vshrl.u32 %v2268, 16
        %v2287 = vrot.slane %v2285, 4
        %v2288 = vshll.u32 %v2268, 16
        %v2290 = vrot.slane %v2288, 5
        %v2291 = vor.u32 %v2287, %v2290
        %v2292 = vrot.slane %v2291, 4
        %v2294 = vshll.u32 %v2269, 16
        %v2296 = vrot.slane %v2294, 5
        %v2297 = vsel %vm955, %v2292, %v2296
        %v2299 = vshrl.u32 %v2270, 16
        %v2301 = vrot.slane %v2299, 4
        %v2302 = vshll.u32 %v2270, 16
        %v2304 = vrot.slane %v2302, 5
        %v2305 = vor.u32 %v2301, %v2304
        %v2306 = vrot.slane %v2305, 4
        %v2308 = vshll.u32 %v2271, 16
        %v2310 = vrot.slane %v2308, 5
        %v2311 = vsel %vm955, %v2306, %v2310
        %v2313 = vshrl.u32 %v2272, 16
        %v2315 = vrot.slane %v2313, 4
        %v2316 = vshll.u32 %v2272, 16
        %v2318 = vrot.slane %v2316, 5
        %v2319 = vor.u32 %v2315, %v2318
        %v2320 = vrot.slane %v2319, 4
        %v2322 = vshll.u32 %v2273, 16
        %v2324 = vrot.slane %v2322, 5
        %v2325 = vsel %vm955, %v2320, %v2324
        %v2327 = vshrl.u32 %v2274, 16
        %v2329 = vrot.slane %v2327, 4
        %v2330 = vshll.u32 %v2274, 16
        %v2332 = vrot.slane %v2330, 5
        %v2333 = vor.u32 %v2329, %v2332
        %v2334 = vrot.slane %v2333, 4
        %v2336 = vshll.u32 %v2275, 16
        %v2338 = vrot.slane %v2336, 5
        %v2339 = vsel %vm955, %v2334, %v2338
        %v2341 = vshrl.u32 %v2276, 16
        %v2343 = vrot.slane %v2341, 4
        %v2344 = vshll.u32 %v2276, 16
        %v2346 = vrot.slane %v2344, 5
        %v2347 = vor.u32 %v2343, %v2346
        %v2348 = vrot.slane %v2347, 4
        %v2350 = vshll.u32 %v2277, 16
        %v2352 = vrot.slane %v2350, 5
        %v2353 = vsel %vm955, %v2348, %v2352
        %v2355 = vshrl.u32 %v2278, 16
        %v2357 = vrot.slane %v2355, 4
        %v2358 = vshll.u32 %v2278, 16
        %v2360 = vrot.slane %v2358, 5
        %v2361 = vor.u32 %v2357, %v2360
        %v2362 = vrot.slane %v2361, 4
        %v2364 = vshll.u32 %v2279, 16
        %v2366 = vrot.slane %v2364, 5
        %v2367 = vsel %vm955, %v2362, %v2366
        %v2369 = vshrl.u32 %v2280, 16
        %v2371 = vrot.slane %v2369, 4
        %v2372 = vshll.u32 %v2280, 16
        %v2374 = vrot.slane %v2372, 5
        %v2375 = vor.u32 %v2371, %v2374
        %v2376 = vrot.slane %v2375, 4
        %v2378 = vshll.u32 %v2281, 16
        %v2380 = vrot.slane %v2378, 5
        %v2381 = vsel %vm955, %v2376, %v2380
        %v2383 = vshrl.u32 %v2282, 16
        %v2385 = vrot.slane %v2383, 4
        %v2386 = vshll.u32 %v2282, 16
        %v2388 = vrot.slane %v2386, 5
        %v2389 = vor.u32 %v2385, %v2388
        %v2390 = vrot.slane %v2389, 4
        %v2392 = vshll.u32 %v2283, 16
        %v2394 = vrot.slane %v2392, 5
        %v2395 = vsel %vm955, %v2390, %v2394
        %s2396 = scalar_lea.vmem [#allocation6], 448
        %v2397 = vld [vmem:[%s2396] sm:$0xf]
        %v2398 = vld [vmem:[%s2396 + $0x4] sm:$0xf]
        %v2399 = vld [vmem:[%s2396 + $0x8] sm:$0xf]
        %v2400 = vld [vmem:[%s2396 + $0xc] sm:$0xf]
        %v2401 = vld [vmem:[%s2396 + $0x10] sm:$0xf]
        %v2402 = vld [vmem:[%s2396 + $0x14] sm:$0xf]
        %v2403 = vld [vmem:[%s2396 + $0x18] sm:$0xf]
        %v2404 = vld [vmem:[%s2396 + $0x1c] sm:$0xf]
        %v2405 = vld [vmem:[%s2396 + $0x20] sm:$0xf]
        %v2406 = vld [vmem:[%s2396 + $0x24] sm:$0xf]
        %v2407 = vld [vmem:[%s2396 + $0x28] sm:$0xf]
        %v2408 = vld [vmem:[%s2396 + $0x2c] sm:$0xf]
        %v2409 = vld [vmem:[%s2396 + $0x30] sm:$0xf]
        %v2410 = vld [vmem:[%s2396 + $0x34] sm:$0xf]
        %v2411 = vld [vmem:[%s2396 + $0x38] sm:$0xf]
        %v2412 = vld [vmem:[%s2396 + $0x3c] sm:$0xf]
        %v2413 = vunpack.c.l.b16 %v2297
        %v2414 = vunpack.c.l.b16 %v2311
        %v2415 = vunpack.c.l.b16 %v2325
        %v2416 = vunpack.c.l.b16 %v2339
        %v2417 = vunpack.c.l.b16 %v2353
        %v2418 = vunpack.c.l.b16 %v2367
        %v2419 = vunpack.c.l.b16 %v2381
        %v2420 = vunpack.c.l.b16 %v2395
        %v2421 = vpack.c.b16 %v2414, %v2413
        %v2422 = vpack.c.b16 %v2416, %v2415
        %v2423 = vpack.c.b16 %v2418, %v2417
        %v2424 = vpack.c.b16 %v2420, %v2419
        %v2445 = vunpack.c.l.b16 %v2397
        %v2446 = vunpack.c.l.b16 %v2398
        %v2447 = vunpack.c.l.b16 %v2399
        %v2448 = vunpack.c.l.b16 %v2400
        %v2449 = vunpack.c.l.b16 %v2401
        %v2450 = vunpack.c.l.b16 %v2402
        %v2451 = vunpack.c.l.b16 %v2403
        %v2452 = vunpack.c.l.b16 %v2404
        %v2453 = vunpack.c.l.b16 %v2405
        %v2454 = vunpack.c.l.b16 %v2406
        %v2455 = vunpack.c.l.b16 %v2407
        %v2456 = vunpack.c.l.b16 %v2408
        %v2457 = vunpack.c.l.b16 %v2409
        %v2458 = vunpack.c.l.b16 %v2410
        %v2459 = vunpack.c.l.b16 %v2411
        %v2460 = vunpack.c.l.b16 %v2412
        %v2461 = vpack.c.b16 %v2446, %v2445
        %v2462 = vpack.c.b16 %v2448, %v2447
        %v2463 = vpack.c.b16 %v2450, %v2449
        %v2464 = vpack.c.b16 %v2452, %v2451
        %v2465 = vpack.c.b16 %v2454, %v2453
        %v2466 = vpack.c.b16 %v2456, %v2455
        %v2467 = vpack.c.b16 %v2458, %v2457
        %v2468 = vpack.c.b16 %v2460, %v2459
        %2477 = vmatprep.subr.bf16.mxu0 0
        %2478 = vmatpush1.bf16.msra.mxu0 %v2461
        %2479 = vmatprep.subr.bf16.mxu0 0
        %2480 = vmatpush1.bf16.msra.mxu0 %v2462
        %2481 = vmatprep.subr.bf16.mxu0 0
        %2482 = vmatpush1.bf16.msra.mxu0 %v2463
        %2483 = vmatprep.subr.bf16.mxu0 0
        %2484 = vmatpush1.bf16.msra.mxu0 %v2464
        %2485 = vmatprep.subr.bf16.mxu0 0
        %2486 = vmatpush1.bf16.msra.mxu0 %v2465
        %2487 = vmatprep.subr.bf16.mxu0 0
        %2488 = vmatpush1.bf16.msra.mxu0 %v2466
        %2489 = vmatprep.subr.bf16.mxu0 0
        %2490 = vmatpush1.bf16.msra.mxu0 %v2467
        %2491 = vmatprep.subr.bf16.mxu0 0
        %2492 = vmatpush1.bf16.msra.mxu0 %v2468
        %2493 = vmatprep.subr.bf16.mxu0 0
        %2494 = vmatpush1.bf16.msra.mxu0 0
        %2495 = vmatprep.subr.bf16.mxu0 0
        %2496 = vmatpush1.bf16.msra.mxu0 0
        %2497 = vmatprep.subr.bf16.mxu0 0
        %2498 = vmatpush1.bf16.msra.mxu0 0
        %2499 = vmatprep.subr.bf16.mxu0 0
        %2500 = vmatpush1.bf16.msra.mxu0 0
        %2501 = vmatprep.subr.bf16.mxu0 0
        %2502 = vmatpush1.bf16.msra.mxu0 0
        %2503 = vmatprep.subr.bf16.mxu0 0
        %2504 = vmatpush1.bf16.msra.mxu0 0
        %2505 = vmatprep.subr.bf16.mxu0 0
        %2506 = vmatpush1.bf16.msra.mxu0 0
        %2507 = vmatprep.subr.bf16.mxu0 0
        %2508 = vmatpush1.bf16.msra.mxu0 0
        %2509 = vmatprep.mubr.bf16.mxu0 0
        %2510 = vmatmul.mubr.bf16.gmra.mrb[0].mxu0 %v2421
        %v2511 = vpop.f32.mrb[0].mxu0
        %v2512 = vadd.f32 0.0, %v2511
        %v2513 = vpop.f32.mrb[0].mxu0
        %v2514 = vpop.f32.mrb[0].mxu0
        %v2515 = vadd.f32 0.0, %v2514
        %v2516 = vpop.f32.mrb[0].mxu0
        %2517 = vmatprep.mubr.bf16.mxu0 0
        %2518 = vmatmul.mubr.bf16.gmra.mrb[0].mxu0 %v2422
        %v2519 = vpop.f32.mrb[0].mxu0
        %v2520 = vadd.f32 0.0, %v2519
        %v2521 = vpop.f32.mrb[0].mxu0
        %v2522 = vpop.f32.mrb[0].mxu0
        %v2523 = vadd.f32 0.0, %v2522
        %v2524 = vpop.f32.mrb[0].mxu0
        %2525 = vmatprep.mubr.bf16.mxu0 0
        %2526 = vmatmul.mubr.bf16.gmra.mrb[0].mxu0 %v2423
        %v2527 = vpop.f32.mrb[0].mxu0
        %v2528 = vadd.f32 0.0, %v2527
        %v2529 = vpop.f32.mrb[0].mxu0
        %v2530 = vpop.f32.mrb[0].mxu0
        %v2531 = vadd.f32 0.0, %v2530
        %v2532 = vpop.f32.mrb[0].mxu0
        %2533 = vmatprep.mubr.bf16.mxu0 0
        %2534 = vmatmul.mubr.bf16.gmra.mrb[0].mxu0 %v2424
        %v2535 = vpop.f32.mrb[0].mxu0
        %v2536 = vadd.f32 0.0, %v2535
        %v2537 = vpop.f32.mrb[0].mxu0
        %v2538 = vpop.f32.mrb[0].mxu0
        %v2539 = vadd.f32 0.0, %v2538
        %v2540 = vpop.f32.mrb[0].mxu0
        %2541 = vdwg.mxu0
        %v2542 = vadd.f32 %v2260, %v2512
        %v2543 = vadd.f32 %v2261, %v2515
        %v2544 = vadd.f32 %v2262, %v2520
        %v2545 = vadd.f32 %v2263, %v2523
        %v2546 = vadd.f32 %v2264, %v2528
        %v2547 = vadd.f32 %v2265, %v2531
        %v2548 = vadd.f32 %v2266, %v2536
        %v2549 = vadd.f32 %v2267, %v2539
        %v2550 = vld [vmem:[%s2097] sm:$0xe]
        %v2551 = vld [vmem:[%s2097 + $0x8] sm:$0xe]
        %v2552 = vld [vmem:[%s2097 + $0x10] sm:$0xe]
        %v2553 = vld [vmem:[%s2097 + $0x18] sm:$0xe]
        %v2554 = vld [vmem:[%s2097 + $0x20] sm:$0xe]
        %v2555 = vld [vmem:[%s2097 + $0x28] sm:$0xe]
        %v2556 = vld [vmem:[%s2097 + $0x30] sm:$0xe]
        %v2557 = vld [vmem:[%s2097 + $0x38] sm:$0xe]
        %v2574 = vrot.slane %v2550, 5
        %v2575 = vrot.slane %v2574, 4
        %v2576 = vrot.slane %v2269, 5
        %v2577 = vsel %vm1248, %v2575, %v2576
        %v2578 = vrot.slane %v2551, 5
        %v2579 = vrot.slane %v2578, 4
        %v2580 = vrot.slane %v2271, 5
        %v2581 = vsel %vm1248, %v2579, %v2580
        %v2582 = vrot.slane %v2552, 5
        %v2583 = vrot.slane %v2582, 4
        %v2584 = vrot.slane %v2273, 5
        %v2585 = vsel %vm1248, %v2583, %v2584
        %v2586 = vrot.slane %v2553, 5
        %v2587 = vrot.slane %v2586, 4
        %v2588 = vrot.slane %v2275, 5
        %v2589 = vsel %vm1248, %v2587, %v2588
        %v2590 = vrot.slane %v2554, 5
        %v2591 = vrot.slane %v2590, 4
        %v2592 = vrot.slane %v2277, 5
        %v2593 = vsel %vm1248, %v2591, %v2592
        %v2594 = vrot.slane %v2555, 5
        %v2595 = vrot.slane %v2594, 4
        %v2596 = vrot.slane %v2279, 5
        %v2597 = vsel %vm1248, %v2595, %v2596
        %v2598 = vrot.slane %v2556, 5
        %v2599 = vrot.slane %v2598, 4
        %v2600 = vrot.slane %v2281, 5
        %v2601 = vsel %vm1248, %v2599, %v2600
        %v2602 = vrot.slane %v2557, 5
        %v2603 = vrot.slane %v2602, 4
        %v2604 = vrot.slane %v2283, 5
        %v2605 = vsel %vm1248, %v2603, %v2604
        %s2606 = scalar_lea.vmem [#allocation6], 512
        %v2607 = vld [vmem:[%s2606] sm:$0xf]
        %v2608 = vld [vmem:[%s2606 + $0x4] sm:$0xf]
        %v2609 = vld [vmem:[%s2606 + $0x8] sm:$0xf]
        %v2610 = vld [vmem:[%s2606 + $0xc] sm:$0xf]
        %v2611 = vld [vmem:[%s2606 + $0x10] sm:$0xf]
        %v2612 = vld [vmem:[%s2606 + $0x14] sm:$0xf]
        %v2613 = vld [vmem:[%s2606 + $0x18] sm:$0xf]
        %v2614 = vld [vmem:[%s2606 + $0x1c] sm:$0xf]
        %v2615 = vld [vmem:[%s2606 + $0x20] sm:$0xf]
        %v2616 = vld [vmem:[%s2606 + $0x24] sm:$0xf]
        %v2617 = vld [vmem:[%s2606 + $0x28] sm:$0xf]
        %v2618 = vld [vmem:[%s2606 + $0x2c] sm:$0xf]
        %v2619 = vld [vmem:[%s2606 + $0x30] sm:$0xf]
        %v2620 = vld [vmem:[%s2606 + $0x34] sm:$0xf]
        %v2621 = vld [vmem:[%s2606 + $0x38] sm:$0xf]
        %v2622 = vld [vmem:[%s2606 + $0x3c] sm:$0xf]
        %v2623 = vunpack.c.l.b16 %v2577
        %v2624 = vunpack.c.l.b16 %v2581
        %v2625 = vunpack.c.l.b16 %v2585
        %v2626 = vunpack.c.l.b16 %v2589
        %v2627 = vunpack.c.l.b16 %v2593
        %v2628 = vunpack.c.l.b16 %v2597
        %v2629 = vunpack.c.l.b16 %v2601
        %v2630 = vunpack.c.l.b16 %v2605
        %v2631 = vpack.c.b16 %v2624, %v2623
        %v2632 = vpack.c.b16 %v2626, %v2625
        %v2633 = vpack.c.b16 %v2628, %v2627
        %v2634 = vpack.c.b16 %v2630, %v2629
        %v2655 = vunpack.c.l.b16 %v2607
        %v2656 = vunpack.c.l.b16 %v2608
        %v2657 = vunpack.c.l.b16 %v2609
        %v2658 = vunpack.c.l.b16 %v2610
        %v2659 = vunpack.c.l.b16 %v2611
        %v2660 = vunpack.c.l.b16 %v2612
        %v2661 = vunpack.c.l.b16 %v2613
        %v2662 = vunpack.c.l.b16 %v2614
        %v2663 = vunpack.c.l.b16 %v2615
        %v2664 = vunpack.c.l.b16 %v2616
        %v2665 = vunpack.c.l.b16 %v2617
        %v2666 = vunpack.c.l.b16 %v2618
        %v2667 = vunpack.c.l.b16 %v2619
        %v2668 = vunpack.c.l.b16 %v2620
        %v2669 = vunpack.c.l.b16 %v2621
        %v2670 = vunpack.c.l.b16 %v2622
        %v2671 = vpack.c.b16 %v2656, %v2655
        %v2672 = vpack.c.b16 %v2658, %v2657
        %v2673 = vpack.c.b16 %v2660, %v2659
        %v2674 = vpack.c.b16 %v2662, %v2661
        %v2675 = vpack.c.b16 %v2664, %v2663
        %v2676 = vpack.c.b16 %v2666, %v2665
        %v2677 = vpack.c.b16 %v2668, %v2667
        %v2678 = vpack.c.b16 %v2670, %v2669
        %2687 = vmatprep.subr.bf16.mxu0 0
        %2688 = vmatpush1.bf16.msra.mxu0 %v2671
        %2689 = vmatprep.subr.bf16.mxu0 0
        %2690 = vmatpush1.bf16.msra.mxu0 %v2672
        %2691 = vmatprep.subr.bf16.mxu0 0
        %2692 = vmatpush1.bf16.msra.mxu0 %v2673
        %2693 = vmatprep.subr.bf16.mxu0 0
        %2694 = vmatpush1.bf16.msra.mxu0 %v2674
        %2695 = vmatprep.subr.bf16.mxu0 0
        %2696 = vmatpush1.bf16.msra.mxu0 %v2675
        %2697 = vmatprep.subr.bf16.mxu0 0
        %2698 = vmatpush1.bf16.msra.mxu0 %v2676
        %2699 = vmatprep.subr.bf16.mxu0 0
        %2700 = vmatpush1.bf16.msra.mxu0 %v2677
        %2701 = vmatprep.subr.bf16.mxu0 0
        %2702 = vmatpush1.bf16.msra.mxu0 %v2678
        %2703 = vmatprep.subr.bf16.mxu0 0
        %2704 = vmatpush1.bf16.msra.mxu0 0
        %2705 = vmatprep.subr.bf16.mxu0 0
        %2706 = vmatpush1.bf16.msra.mxu0 0
        %2707 = vmatprep.subr.bf16.mxu0 0
        %2708 = vmatpush1.bf16.msra.mxu0 0
        %2709 = vmatprep.subr.bf16.mxu0 0
        %2710 = vmatpush1.bf16.msra.mxu0 0
        %2711 = vmatprep.subr.bf16.mxu0 0
        %2712 = vmatpush1.bf16.msra.mxu0 0
        %2713 = vmatprep.subr.bf16.mxu0 0
        %2714 = vmatpush1.bf16.msra.mxu0 0
        %2715 = vmatprep.subr.bf16.mxu0 0
        %2716 = vmatpush1.bf16.msra.mxu0 0
        %2717 = vmatprep.subr.bf16.mxu0 0
        %2718 = vmatpush1.bf16.msra.mxu0 0
        %2719 = vmatprep.mubr.bf16.mxu0 0
        %2720 = vmatmul.mubr.bf16.gmra.mrb[0].mxu0 %v2631
        %v2721 = vpop.f32.mrb[0].mxu0
        %v2722 = vadd.f32 0.0, %v2721
        %v2723 = vpop.f32.mrb[0].mxu0
        %v2724 = vpop.f32.mrb[0].mxu0
        %v2725 = vadd.f32 0.0, %v2724
        %v2726 = vpop.f32.mrb[0].mxu0
        %2727 = vmatprep.mubr.bf16.mxu0 0
        %2728 = vmatmul.mubr.bf16.gmra.mrb[0].mxu0 %v2632
        %v2729 = vpop.f32.mrb[0].mxu0
        %v2730 = vadd.f32 0.0, %v2729
        %v2731 = vpop.f32.mrb[0].mxu0
        %v2732 = vpop.f32.mrb[0].mxu0
        %v2733 = vadd.f32 0.0, %v2732
        %v2734 = vpop.f32.mrb[0].mxu0
        %2735 = vmatprep.mubr.bf16.mxu0 0
        %2736 = vmatmul.mubr.bf16.gmra.mrb[0].mxu0 %v2633
        %v2737 = vpop.f32.mrb[0].mxu0
        %v2738 = vadd.f32 0.0, %v2737
        %v2739 = vpop.f32.mrb[0].mxu0
        %v2740 = vpop.f32.mrb[0].mxu0
        %v2741 = vadd.f32 0.0, %v2740
        %v2742 = vpop.f32.mrb[0].mxu0
        %2743 = vmatprep.mubr.bf16.mxu0 0
        %2744 = vmatmul.mubr.bf16.gmra.mrb[0].mxu0 %v2634
        %v2745 = vpop.f32.mrb[0].mxu0
        %v2746 = vadd.f32 0.0, %v2745
        %v2747 = vpop.f32.mrb[0].mxu0
        %v2748 = vpop.f32.mrb[0].mxu0
        %v2749 = vadd.f32 0.0, %v2748
        %v2750 = vpop.f32.mrb[0].mxu0
        %2751 = vdwg.mxu0
        %v2752 = vadd.f32 %v2542, %v2722
        %v2753 = vadd.f32 %v2543, %v2725
        %v2754 = vadd.f32 %v2544, %v2730
        %v2755 = vadd.f32 %v2545, %v2733
        %v2756 = vadd.f32 %v2546, %v2738
        %v2757 = vadd.f32 %v2547, %v2741
        %v2758 = vadd.f32 %v2548, %v2746
        %v2759 = vadd.f32 %v2549, %v2749
        %v2760 = vmax.f32 %v2752, 0.0
        %v2761 = vmax.f32 %v2753, 0.0
        %v2762 = vmax.f32 %v2754, 0.0
        %v2763 = vmax.f32 %v2755, 0.0
        %v2764 = vmax.f32 %v2756, 0.0
        %v2765 = vmax.f32 %v2757, 0.0
        %v2766 = vmax.f32 %v2758, 0.0
        %v2767 = vmax.f32 %v2759, 0.0
        %v2768 = vpack.c.bf16 %v2761, %v2760
        %v2769 = vpack.c.bf16 %v2763, %v2762
        %v2770 = vpack.c.bf16 %v2765, %v2764
        %v2771 = vpack.c.bf16 %v2767, %v2766
        %v2772 = vld [vmem:[%s5] sm:$0xf]
        %v2773 = vld [vmem:[%s5 + $0x4] sm:$0xf]
        %v2774 = vld [vmem:[%s5 + $0x8] sm:$0xf]
        %v2775 = vld [vmem:[%s5 + $0xc] sm:$0xf]
        %v2776 = vld [vmem:[%s5 + $0x10] sm:$0xf]
        %v2777 = vld [vmem:[%s5 + $0x14] sm:$0xf]
        %v2778 = vld [vmem:[%s5 + $0x18] sm:$0xf]
        %v2779 = vld [vmem:[%s5 + $0x1c] sm:$0xf]
        %v2780 = vld [vmem:[%s5 + $0x20] sm:$0xf]
        %v2781 = vld [vmem:[%s5 + $0x24] sm:$0xf]
        %v2782 = vld [vmem:[%s5 + $0x28] sm:$0xf]
        %v2783 = vld [vmem:[%s5 + $0x2c] sm:$0xf]
        %v2784 = vld [vmem:[%s5 + $0x30] sm:$0xf]
        %v2785 = vld [vmem:[%s5 + $0x34] sm:$0xf]
        %v2786 = vld [vmem:[%s5 + $0x38] sm:$0xf]
        %v2787 = vld [vmem:[%s5 + $0x3c] sm:$0xf]
        %v2788 = vld [vmem:[%s6] sm:$0x1]
        %v2790 = vlaneseq
        %v2791 = vshrl.u32 %v2790, 7
        %v2792 = vsub.s32 0, %v2791
        %v2793 = vrot.slane %v2788, %v2792
        %v2811 = vunpack.c.l.b16 %v2772
        %v2812 = vunpack.c.l.b16 %v2773
        %v2813 = vunpack.c.l.b16 %v2774
        %v2814 = vunpack.c.l.b16 %v2775
        %v2815 = vunpack.c.l.b16 %v2776
        %v2816 = vunpack.c.l.b16 %v2777
        %v2817 = vunpack.c.l.b16 %v2778
        %v2818 = vunpack.c.l.b16 %v2779
        %v2819 = vunpack.c.l.b16 %v2780
        %v2820 = vunpack.c.l.b16 %v2781
        %v2821 = vunpack.c.l.b16 %v2782
        %v2822 = vunpack.c.l.b16 %v2783
        %v2823 = vunpack.c.l.b16 %v2784
        %v2824 = vunpack.c.l.b16 %v2785
        %v2825 = vunpack.c.l.b16 %v2786
        %v2826 = vunpack.c.l.b16 %v2787
        %v2827 = vpack.c.b16 %v2812, %v2811
        %v2828 = vpack.c.b16 %v2814, %v2813
        %v2829 = vpack.c.b16 %v2816, %v2815
        %v2830 = vpack.c.b16 %v2818, %v2817
        %v2831 = vpack.c.b16 %v2820, %v2819
        %v2832 = vpack.c.b16 %v2822, %v2821
        %v2833 = vpack.c.b16 %v2824, %v2823
        %v2834 = vpack.c.b16 %v2826, %v2825
        %2843 = vmatprep.subr.bf16.mxu0 0
        %2844 = vmatpush1.bf16.msra.mxu0 %v2827
        %2845 = vmatprep.subr.bf16.mxu0 0
        %2846 = vmatpush1.bf16.msra.mxu0 %v2828
        %2847 = vmatprep.subr.bf16.mxu0 0
        %2848 = vmatpush1.bf16.msra.mxu0 %v2829
        %2849 = vmatprep.subr.bf16.mxu0 0
        %2850 = vmatpush1.bf16.msra.mxu0 %v2830
        %2851 = vmatprep.subr.bf16.mxu0 0
        %2852 = vmatpush1.bf16.msra.mxu0 %v2831
        %2853 = vmatprep.subr.bf16.mxu0 0
        %2854 = vmatpush1.bf16.msra.mxu0 %v2832
        %2855 = vmatprep.subr.bf16.mxu0 0
        %2856 = vmatpush1.bf16.msra.mxu0 %v2833
        %2857 = vmatprep.subr.bf16.mxu0 0
        %2858 = vmatpush1.bf16.msra.mxu0 %v2834
        %2859 = vmatprep.subr.bf16.mxu0 0
        %2860 = vmatpush1.bf16.msra.mxu0 0
        %2861 = vmatprep.subr.bf16.mxu0 0
        %2862 = vmatpush1.bf16.msra.mxu0 0
        %2863 = vmatprep.subr.bf16.mxu0 0
        %2864 = vmatpush1.bf16.msra.mxu0 0
        %2865 = vmatprep.subr.bf16.mxu0 0
        %2866 = vmatpush1.bf16.msra.mxu0 0
        %2867 = vmatprep.subr.bf16.mxu0 0
        %2868 = vmatpush1.bf16.msra.mxu0 0
        %2869 = vmatprep.subr.bf16.mxu0 0
        %2870 = vmatpush1.bf16.msra.mxu0 0
        %2871 = vmatprep.subr.bf16.mxu0 0
        %2872 = vmatpush1.bf16.msra.mxu0 0
        %2873 = vmatprep.subr.bf16.mxu0 0
        %2874 = vmatpush1.bf16.msra.mxu0 0
        %2875 = vmatprep.mubr.bf16.mxu0 0
        %2876 = vmatmul.mubr.bf16.gmra.mrb[0].mxu0 %v2768
        %v2877 = vpop.f32.mrb[0].mxu0
        %v2878 = vadd.f32 %v2793, %v2877
        %v2879 = vpop.f32.mrb[0].mxu0
        %v2880 = vpop.f32.mrb[0].mxu0
        %v2881 = vadd.f32 %v2793, %v2880
        %v2882 = vpop.f32.mrb[0].mxu0
        %2883 = vmatprep.mubr.bf16.mxu0 0
        %2884 = vmatmul.mubr.bf16.gmra.mrb[0].mxu0 %v2769
        %v2885 = vpop.f32.mrb[0].mxu0
        %v2886 = vadd.f32 %v2793, %v2885
        %v2887 = vpop.f32.mrb[0].mxu0
        %v2888 = vpop.f32.mrb[0].mxu0
        %v2889 = vadd.f32 %v2793, %v2888
        %v2890 = vpop.f32.mrb[0].mxu0
        %2891 = vmatprep.mubr.bf16.mxu0 0
        %2892 = vmatmul.mubr.bf16.gmra.mrb[0].mxu0 %v2770
        %v2893 = vpop.f32.mrb[0].mxu0
        %v2894 = vadd.f32 %v2793, %v2893
        %v2895 = vpop.f32.mrb[0].mxu0
        %v2896 = vpop.f32.mrb[0].mxu0
        %v2897 = vadd.f32 %v2793, %v2896
        %v2898 = vpop.f32.mrb[0].mxu0
        %2899 = vmatprep.mubr.bf16.mxu0 0
        %2900 = vmatmul.mubr.bf16.gmra.mrb[0].mxu0 %v2771
        %v2901 = vpop.f32.mrb[0].mxu0
        %v2902 = vadd.f32 %v2793, %v2901
        %v2903 = vpop.f32.mrb[0].mxu0
        %v2904 = vpop.f32.mrb[0].mxu0
        %v2905 = vadd.f32 %v2793, %v2904
        %v2906 = vpop.f32.mrb[0].mxu0
        %2907 = vdwg.mxu0
        %v2908 = vunpack.c.l.bf16 %v418
        %v2909 = vunpack.c.l.bf16 %v419
        %v2910 = vunpack.c.l.bf16 %v420
        %v2911 = vunpack.c.l.bf16 %v421
        %v2912 = vunpack.c.l.bf16 %v422
        %v2913 = vunpack.c.l.bf16 %v423
        %v2914 = vunpack.c.l.bf16 %v424
        %v2915 = vunpack.c.l.bf16 %v425
        %v2916 = vadd.f32 %v2878, %v2908
        %v2917 = vadd.f32 %v2881, %v2909
        %v2918 = vadd.f32 %v2886, %v2910
        %v2919 = vadd.f32 %v2889, %v2911
        %v2920 = vadd.f32 %v2894, %v2912
        %v2921 = vadd.f32 %v2897, %v2913
        %v2922 = vadd.f32 %v2902, %v2914
        %v2923 = vadd.f32 %v2905, %v2915
        %v2924 = vmax.f32 %v2916, 0.0
        %v2925 = vmax.f32 %v2917, 0.0
        %v2926 = vmax.f32 %v2918, 0.0
        %v2927 = vmax.f32 %v2919, 0.0
        %v2928 = vmax.f32 %v2920, 0.0
        %v2929 = vmax.f32 %v2921, 0.0
        %v2930 = vmax.f32 %v2922, 0.0
        %v2931 = vmax.f32 %v2923, 0.0
        %v2932 = vpack.c.bf16 %v2925, %v2924
        %v2933 = vpack.c.bf16 %v2927, %v2926
        %v2934 = vpack.c.bf16 %v2929, %v2928
        %v2935 = vpack.c.bf16 %v2931, %v2930
        %s2936 = scalar_lea.vmem [#allocation4], 64
        %v2937 = vld [vmem:[%s2936] sm:$0xf]
        %v2938 = vld [vmem:[%s2936 + $0x4] sm:$0xf]
        %v2939 = vld [vmem:[%s2936 + $0x8] sm:$0xf]
        %v2940 = vld [vmem:[%s2936 + $0xc] sm:$0xf]
        %v2941 = vld [vmem:[%s2936 + $0x10] sm:$0xf]
        %v2942 = vld [vmem:[%s2936 + $0x14] sm:$0xf]
        %v2943 = vld [vmem:[%s2936 + $0x18] sm:$0xf]
        %v2944 = vld [vmem:[%s2936 + $0x1c] sm:$0xf]
        %v2945 = vld [vmem:[%s2936 + $0x20] sm:$0xf]
        %v2946 = vld [vmem:[%s2936 + $0x24] sm:$0xf]
        %v2947 = vld [vmem:[%s2936 + $0x28] sm:$0xf]
        %v2948 = vld [vmem:[%s2936 + $0x2c] sm:$0xf]
        %v2949 = vld [vmem:[%s2936 + $0x30] sm:$0xf]
        %v2950 = vld [vmem:[%s2936 + $0x34] sm:$0xf]
        %v2951 = vld [vmem:[%s2936 + $0x38] sm:$0xf]
        %v2952 = vld [vmem:[%s2936 + $0x3c] sm:$0xf]
        %s2953 = scalar_lea.vmem %s2, 1
        %v2954 = vld [vmem:[%s2953] sm:$0x1]
        %v2956 = vlaneseq
        %v2957 = vshrl.u32 %v2956, 7
        %v2958 = vsub.s32 0, %v2957
        %v2959 = vrot.slane %v2954, %v2958
        %v2977 = vunpack.c.l.b16 %v2937
        %v2978 = vunpack.c.l.b16 %v2938
        %v2979 = vunpack.c.l.b16 %v2939
        %v2980 = vunpack.c.l.b16 %v2940
        %v2981 = vunpack.c.l.b16 %v2941
        %v2982 = vunpack.c.l.b16 %v2942
        %v2983 = vunpack.c.l.b16 %v2943
        %v2984 = vunpack.c.l.b16 %v2944
        %v2985 = vunpack.c.l.b16 %v2945
        %v2986 = vunpack.c.l.b16 %v2946
        %v2987 = vunpack.c.l.b16 %v2947
        %v2988 = vunpack.c.l.b16 %v2948
        %v2989 = vunpack.c.l.b16 %v2949
        %v2990 = vunpack.c.l.b16 %v2950
        %v2991 = vunpack.c.l.b16 %v2951
        %v2992 = vunpack.c.l.b16 %v2952
        %v2993 = vpack.c.b16 %v2978, %v2977
        %v2994 = vpack.c.b16 %v2980, %v2979
        %v2995 = vpack.c.b16 %v2982, %v2981
        %v2996 = vpack.c.b16 %v2984, %v2983
        %v2997 = vpack.c.b16 %v2986, %v2985
        %v2998 = vpack.c.b16 %v2988, %v2987
        %v2999 = vpack.c.b16 %v2990, %v2989
        %v3000 = vpack.c.b16 %v2992, %v2991
        %3009 = vmatprep.subr.bf16.mxu0 0
        %3010 = vmatpush1.bf16.msra.mxu0 %v2993
        %3011 = vmatprep.subr.bf16.mxu0 0
        %3012 = vmatpush1.bf16.msra.mxu0 %v2994
        %3013 = vmatprep.subr.bf16.mxu0 0
        %3014 = vmatpush1.bf16.msra.mxu0 %v2995
        %3015 = vmatprep.subr.bf16.mxu0 0
        %3016 = vmatpush1.bf16.msra.mxu0 %v2996
        %3017 = vmatprep.subr.bf16.mxu0 0
        %3018 = vmatpush1.bf16.msra.mxu0 %v2997
        %3019 = vmatprep.subr.bf16.mxu0 0
        %3020 = vmatpush1.bf16.msra.mxu0 %v2998
        %3021 = vmatprep.subr.bf16.mxu0 0
        %3022 = vmatpush1.bf16.msra.mxu0 %v2999
        %3023 = vmatprep.subr.bf16.mxu0 0
        %3024 = vmatpush1.bf16.msra.mxu0 %v3000
        %3025 = vmatprep.subr.bf16.mxu0 0
        %3026 = vmatpush1.bf16.msra.mxu0 0
        %3027 = vmatprep.subr.bf16.mxu0 0
        %3028 = vmatpush1.bf16.msra.mxu0 0
        %3029 = vmatprep.subr.bf16.mxu0 0
        %3030 = vmatpush1.bf16.msra.mxu0 0
        %3031 = vmatprep.subr.bf16.mxu0 0
        %3032 = vmatpush1.bf16.msra.mxu0 0
        %3033 = vmatprep.subr.bf16.mxu0 0
        %3034 = vmatpush1.bf16.msra.mxu0 0
        %3035 = vmatprep.subr.bf16.mxu0 0
        %3036 = vmatpush1.bf16.msra.mxu0 0
        %3037 = vmatprep.subr.bf16.mxu0 0
        %3038 = vmatpush1.bf16.msra.mxu0 0
        %3039 = vmatprep.subr.bf16.mxu0 0
        %3040 = vmatpush1.bf16.msra.mxu0 0
        %3041 = vmatprep.mubr.bf16.mxu0 0
        %3042 = vmatmul.mubr.bf16.gmra.mrb[0].mxu0 %v2932
        %v3043 = vpop.f32.mrb[0].mxu0
        %v3044 = vadd.f32 %v2959, %v3043
        %v3045 = vpop.f32.mrb[0].mxu0
        %v3046 = vpop.f32.mrb[0].mxu0
        %v3047 = vadd.f32 %v2959, %v3046
        %v3048 = vpop.f32.mrb[0].mxu0
        %3049 = vmatprep.mubr.bf16.mxu0 0
        %3050 = vmatmul.mubr.bf16.gmra.mrb[0].mxu0 %v2933
        %v3051 = vpop.f32.mrb[0].mxu0
        %v3052 = vadd.f32 %v2959, %v3051
        %v3053 = vpop.f32.mrb[0].mxu0
        %v3054 = vpop.f32.mrb[0].mxu0
        %v3055 = vadd.f32 %v2959, %v3054
        %v3056 = vpop.f32.mrb[0].mxu0
        %3057 = vmatprep.mubr.bf16.mxu0 0
        %3058 = vmatmul.mubr.bf16.gmra.mrb[0].mxu0 %v2934
        %v3059 = vpop.f32.mrb[0].mxu0
        %v3060 = vadd.f32 %v2959, %v3059
        %v3061 = vpop.f32.mrb[0].mxu0
        %v3062 = vpop.f32.mrb[0].mxu0
        %v3063 = vadd.f32 %v2959, %v3062
        %v3064 = vpop.f32.mrb[0].mxu0
        %3065 = vmatprep.mubr.bf16.mxu0 0
        %3066 = vmatmul.mubr.bf16.gmra.mrb[0].mxu0 %v2935
        %v3067 = vpop.f32.mrb[0].mxu0
        %v3068 = vadd.f32 %v2959, %v3067
        %v3069 = vpop.f32.mrb[0].mxu0
        %v3070 = vpop.f32.mrb[0].mxu0
        %v3071 = vadd.f32 %v2959, %v3070
        %v3072 = vpop.f32.mrb[0].mxu0
        %3073 = vdwg.mxu0
        %v3074 = vmax.f32 %v3044, 0.0
        %v3075 = vmax.f32 %v3047, 0.0
        %v3076 = vmax.f32 %v3052, 0.0
        %v3077 = vmax.f32 %v3055, 0.0
        %v3078 = vmax.f32 %v3060, 0.0
        %v3079 = vmax.f32 %v3063, 0.0
        %v3080 = vmax.f32 %v3068, 0.0
        %v3081 = vmax.f32 %v3071, 0.0
        %v3082 = vpack.c.bf16 %v3074, %v3074
        %v3083 = vpack.c.bf16 %v3075, %v3075
        %v3084 = vpack.c.bf16 %v3076, %v3076
        %v3085 = vpack.c.bf16 %v3077, %v3077
        %v3086 = vpack.c.bf16 %v3078, %v3078
        %v3087 = vpack.c.bf16 %v3079, %v3079
        %v3088 = vpack.c.bf16 %v3080, %v3080
        %v3089 = vpack.c.bf16 %v3081, %v3081
        %v3098 = vunpack.c.l.b16 %v3082
        %v3099 = vunpack.c.l.b16 %v3083
        %v3100 = vunpack.c.l.b16 %v3084
        %v3101 = vunpack.c.l.b16 %v3085
        %v3102 = vunpack.c.l.b16 %v3086
        %v3103 = vunpack.c.l.b16 %v3087
        %v3104 = vunpack.c.l.b16 %v3088
        %v3105 = vunpack.c.l.b16 %v3089
        %v3106 = vpack.c.b16 %v3098, %v3098
        %v3107 = vpack.c.b16 %v3099, %v3099
        %v3108 = vpack.c.b16 %v3100, %v3100
        %v3109 = vpack.c.b16 %v3101, %v3101
        %v3110 = vpack.c.b16 %v3102, %v3102
        %v3111 = vpack.c.b16 %v3103, %v3103
        %v3112 = vpack.c.b16 %v3104, %v3104
        %v3113 = vpack.c.b16 %v3105, %v3105
        %v3115 = vshrl.u32 %v3106, 16
        %v3117 = vrot.slane %v3115, 7
        %v3118 = vshll.u32 %v3106, 16
        %v3120 = vor.u32 %v3117, %v3118
        %v3121 = vrot.slane %v3117, 4
        %v3123 = vshrl.u32 %v3107, 16
        %v3125 = vrot.slane %v3123, 7
        %v3126 = vshll.u32 %v3107, 16
        %v3128 = vor.u32 %v3125, %v3126
        %v3129 = vrot.slane %v3125, 4
        %v3131 = vshrl.u32 %v3108, 16
        %v3133 = vrot.slane %v3131, 7
        %v3134 = vshll.u32 %v3108, 16
        %v3136 = vor.u32 %v3133, %v3134
        %v3137 = vrot.slane %v3133, 4
        %v3139 = vshrl.u32 %v3109, 16
        %v3141 = vrot.slane %v3139, 7
        %v3142 = vshll.u32 %v3109, 16
        %v3144 = vor.u32 %v3141, %v3142
        %v3145 = vrot.slane %v3141, 4
        %v3147 = vshrl.u32 %v3110, 16
        %v3149 = vrot.slane %v3147, 7
        %v3150 = vshll.u32 %v3110, 16
        %v3152 = vor.u32 %v3149, %v3150
        %v3153 = vrot.slane %v3149, 4
        %v3155 = vshrl.u32 %v3111, 16
        %v3157 = vrot.slane %v3155, 7
        %v3158 = vshll.u32 %v3111, 16
        %v3160 = vor.u32 %v3157, %v3158
        %v3161 = vrot.slane %v3157, 4
        %v3163 = vshrl.u32 %v3112, 16
        %v3165 = vrot.slane %v3163, 7
        %v3166 = vshll.u32 %v3112, 16
        %v3168 = vor.u32 %v3165, %v3166
        %v3169 = vrot.slane %v3165, 4
        %v3171 = vshrl.u32 %v3113, 16
        %v3173 = vrot.slane %v3171, 7
        %v3174 = vshll.u32 %v3113, 16
        %v3176 = vor.u32 %v3173, %v3174
        %v3177 = vrot.slane %v3173, 4
        %v3194 = vsel %vm709, %v3120, %v1605
        %3195 = vst [vmem:[%s706] sm:$0xf] %v3194
        %v3196 = vld [vmem:[%s706 + $0x4] sm:$0x1]
        %v3197 = vsel %vm715, %v3121, %v3196
        %3198 = vst [vmem:[%s706 + $0x4] sm:$0x1] %v3197
        %v3199 = vld [vmem:[%s706 + $0x8] sm:$0xf]
        %v3200 = vsel %vm709, %v3128, %v3199
        %3201 = vst [vmem:[%s706 + $0x8] sm:$0xf] %v3200
        %v3202 = vld [vmem:[%s706 + $0xc] sm:$0x1]
        %v3203 = vsel %vm715, %v3129, %v3202
        %3204 = vst [vmem:[%s706 + $0xc] sm:$0x1] %v3203
        %v3205 = vld [vmem:[%s706 + $0x10] sm:$0xf]
        %v3206 = vsel %vm709, %v3136, %v3205
        %3207 = vst [vmem:[%s706 + $0x10] sm:$0xf] %v3206
        %v3208 = vld [vmem:[%s706 + $0x14] sm:$0x1]
        %v3209 = vsel %vm715, %v3137, %v3208
        %3210 = vst [vmem:[%s706 + $0x14] sm:$0x1] %v3209
        %v3211 = vld [vmem:[%s706 + $0x18] sm:$0xf]
        %v3212 = vsel %vm709, %v3144, %v3211
        %3213 = vst [vmem:[%s706 + $0x18] sm:$0xf] %v3212
        %v3214 = vld [vmem:[%s706 + $0x1c] sm:$0x1]
        %v3215 = vsel %vm715, %v3145, %v3214
        %3216 = vst [vmem:[%s706 + $0x1c] sm:$0x1] %v3215
        %v3217 = vld [vmem:[%s706 + $0x20] sm:$0xf]
        %v3218 = vsel %vm709, %v3152, %v3217
        %3219 = vst [vmem:[%s706 + $0x20] sm:$0xf] %v3218
        %v3220 = vld [vmem:[%s706 + $0x24] sm:$0x1]
        %v3221 = vsel %vm715, %v3153, %v3220
        %3222 = vst [vmem:[%s706 + $0x24] sm:$0x1] %v3221
        %v3223 = vld [vmem:[%s706 + $0x28] sm:$0xf]
        %v3224 = vsel %vm709, %v3160, %v3223
        %3225 = vst [vmem:[%s706 + $0x28] sm:$0xf] %v3224
        %v3226 = vld [vmem:[%s706 + $0x2c] sm:$0x1]
        %v3227 = vsel %vm715, %v3161, %v3226
        %3228 = vst [vmem:[%s706 + $0x2c] sm:$0x1] %v3227
        %v3229 = vld [vmem:[%s706 + $0x30] sm:$0xf]
        %v3230 = vsel %vm709, %v3168, %v3229
        %3231 = vst [vmem:[%s706 + $0x30] sm:$0xf] %v3230
        %v3232 = vld [vmem:[%s706 + $0x34] sm:$0x1]
        %v3233 = vsel %vm715, %v3169, %v3232
        %3234 = vst [vmem:[%s706 + $0x34] sm:$0x1] %v3233
        %v3235 = vld [vmem:[%s706 + $0x38] sm:$0xf]
        %v3236 = vsel %vm709, %v3176, %v3235
        %3237 = vst [vmem:[%s706 + $0x38] sm:$0xf] %v3236
        %v3238 = vld [vmem:[%s706 + $0x3c] sm:$0x1]
        %v3239 = vsel %vm715, %v3177, %v3238
        %3240 = vst [vmem:[%s706 + $0x3c] sm:$0x1] %v3239
        %s3241 = scalar_lea.vmem %s4, 1
        %v3242 = vld [vmem:[%s3241] sm:$0x1]
        %v3244 = vlaneseq
        %v3245 = vshrl.u32 %v3244, 7
        %v3246 = vsub.s32 0, %v3245
        %v3247 = vrot.slane %v3242, %v3246
        %v3249 = vld [vmem:[#allocation2] sm:$0xf]
        %v3250 = vld [vmem:[#allocation2 + $0x8] sm:$0xf]
        %v3251 = vld [vmem:[#allocation2 + $0x10] sm:$0xf]
        %v3252 = vld [vmem:[#allocation2 + $0x18] sm:$0xf]
        %v3253 = vld [vmem:[#allocation2 + $0x20] sm:$0xf]
        %v3254 = vld [vmem:[#allocation2 + $0x28] sm:$0xf]
        %v3255 = vld [vmem:[#allocation2 + $0x30] sm:$0xf]
        %v3256 = vld [vmem:[#allocation2 + $0x38] sm:$0xf]
        %s3257 = scalar_lea.vmem [#allocation6], 576
        %v3258 = vld [vmem:[%s3257] sm:$0xf]
        %v3259 = vld [vmem:[%s3257 + $0x4] sm:$0xf]
        %v3260 = vld [vmem:[%s3257 + $0x8] sm:$0xf]
        %v3261 = vld [vmem:[%s3257 + $0xc] sm:$0xf]
        %v3262 = vld [vmem:[%s3257 + $0x10] sm:$0xf]
        %v3263 = vld [vmem:[%s3257 + $0x14] sm:$0xf]
        %v3264 = vld [vmem:[%s3257 + $0x18] sm:$0xf]
        %v3265 = vld [vmem:[%s3257 + $0x1c] sm:$0xf]
        %v3266 = vld [vmem:[%s3257 + $0x20] sm:$0xf]
        %v3267 = vld [vmem:[%s3257 + $0x24] sm:$0xf]
        %v3268 = vld [vmem:[%s3257 + $0x28] sm:$0xf]
        %v3269 = vld [vmem:[%s3257 + $0x2c] sm:$0xf]
        %v3270 = vld [vmem:[%s3257 + $0x30] sm:$0xf]
        %v3271 = vld [vmem:[%s3257 + $0x34] sm:$0xf]
        %v3272 = vld [vmem:[%s3257 + $0x38] sm:$0xf]
        %v3273 = vld [vmem:[%s3257 + $0x3c] sm:$0xf]
        %v3282 = vunpack.c.l.b16 %v3249
        %v3283 = vunpack.c.l.b16 %v3250
        %v3284 = vunpack.c.l.b16 %v3251
        %v3285 = vunpack.c.l.b16 %v3252
        %v3286 = vunpack.c.l.b16 %v3253
        %v3287 = vunpack.c.l.b16 %v3254
        %v3288 = vunpack.c.l.b16 %v3255
        %v3289 = vunpack.c.l.b16 %v3256
        %v3290 = vpack.c.b16 %v3283, %v3282
        %v3291 = vpack.c.b16 %v3285, %v3284
        %v3292 = vpack.c.b16 %v3287, %v3286
        %v3293 = vpack.c.b16 %v3289, %v3288
        %v3314 = vunpack.c.l.b16 %v3258
        %v3315 = vunpack.c.l.b16 %v3259
        %v3316 = vunpack.c.l.b16 %v3260
        %v3317 = vunpack.c.l.b16 %v3261
        %v3318 = vunpack.c.l.b16 %v3262
        %v3319 = vunpack.c.l.b16 %v3263
        %v3320 = vunpack.c.l.b16 %v3264
        %v3321 = vunpack.c.l.b16 %v3265
        %v3322 = vunpack.c.l.b16 %v3266
        %v3323 = vunpack.c.l.b16 %v3267
        %v3324 = vunpack.c.l.b16 %v3268
        %v3325 = vunpack.c.l.b16 %v3269
        %v3326 = vunpack.c.l.b16 %v3270
        %v3327 = vunpack.c.l.b16 %v3271
        %v3328 = vunpack.c.l.b16 %v3272
        %v3329 = vunpack.c.l.b16 %v3273
        %v3330 = vpack.c.b16 %v3315, %v3314
        %v3331 = vpack.c.b16 %v3317, %v3316
        %v3332 = vpack.c.b16 %v3319, %v3318
        %v3333 = vpack.c.b16 %v3321, %v3320
        %v3334 = vpack.c.b16 %v3323, %v3322
        %v3335 = vpack.c.b16 %v3325, %v3324
        %v3336 = vpack.c.b16 %v3327, %v3326
        %v3337 = vpack.c.b16 %v3329, %v3328
        %3346 = vmatprep.subr.bf16.mxu0 0
        %3347 = vmatpush1.bf16.msra.mxu0 %v3330
        %3348 = vmatprep.subr.bf16.mxu0 0
        %3349 = vmatpush1.bf16.msra.mxu0 %v3331
        %3350 = vmatprep.subr.bf16.mxu0 0
        %3351 = vmatpush1.bf16.msra.mxu0 %v3332
        %3352 = vmatprep.subr.bf16.mxu0 0
        %3353 = vmatpush1.bf16.msra.mxu0 %v3333
        %3354 = vmatprep.subr.bf16.mxu0 0
        %3355 = vmatpush1.bf16.msra.mxu0 %v3334
        %3356 = vmatprep.subr.bf16.mxu0 0
        %3357 = vmatpush1.bf16.msra.mxu0 %v3335
        %3358 = vmatprep.subr.bf16.mxu0 0
        %3359 = vmatpush1.bf16.msra.mxu0 %v3336
        %3360 = vmatprep.subr.bf16.mxu0 0
        %3361 = vmatpush1.bf16.msra.mxu0 %v3337
        %3362 = vmatprep.subr.bf16.mxu0 0
        %3363 = vmatpush1.bf16.msra.mxu0 0
        %3364 = vmatprep.subr.bf16.mxu0 0
        %3365 = vmatpush1.bf16.msra.mxu0 0
        %3366 = vmatprep.subr.bf16.mxu0 0
        %3367 = vmatpush1.bf16.msra.mxu0 0
        %3368 = vmatprep.subr.bf16.mxu0 0
        %3369 = vmatpush1.bf16.msra.mxu0 0
        %3370 = vmatprep.subr.bf16.mxu0 0
        %3371 = vmatpush1.bf16.msra.mxu0 0
        %3372 = vmatprep.subr.bf16.mxu0 0
        %3373 = vmatpush1.bf16.msra.mxu0 0
        %3374 = vmatprep.subr.bf16.mxu0 0
        %3375 = vmatpush1.bf16.msra.mxu0 0
        %3376 = vmatprep.subr.bf16.mxu0 0
        %3377 = vmatpush1.bf16.msra.mxu0 0
        %3378 = vmatprep.mubr.bf16.mxu0 0
        %3379 = vmatmul.mubr.bf16.gmra.mrb[0].mxu0 %v3290
        %v3380 = vpop.f32.mrb[0].mxu0
        %v3381 = vadd.f32 0.0, %v3380
        %v3382 = vpop.f32.mrb[0].mxu0
        %v3383 = vpop.f32.mrb[0].mxu0
        %v3384 = vadd.f32 0.0, %v3383
        %v3385 = vpop.f32.mrb[0].mxu0
        %3386 = vmatprep.mubr.bf16.mxu0 0
        %3387 = vmatmul.mubr.bf16.gmra.mrb[0].mxu0 %v3291
        %v3388 = vpop.f32.mrb[0].mxu0
        %v3389 = vadd.f32 0.0, %v3388
        %v3390 = vpop.f32.mrb[0].mxu0
        %v3391 = vpop.f32.mrb[0].mxu0
        %v3392 = vadd.f32 0.0, %v3391
        %v3393 = vpop.f32.mrb[0].mxu0
        %3394 = vmatprep.mubr.bf16.mxu0 0
        %3395 = vmatmul.mubr.bf16.gmra.mrb[0].mxu0 %v3292
        %v3396 = vpop.f32.mrb[0].mxu0
        %v3397 = vadd.f32 0.0, %v3396
        %v3398 = vpop.f32.mrb[0].mxu0
        %v3399 = vpop.f32.mrb[0].mxu0
        %v3400 = vadd.f32 0.0, %v3399
        %v3401 = vpop.f32.mrb[0].mxu0
        %3402 = vmatprep.mubr.bf16.mxu0 0
        %3403 = vmatmul.mubr.bf16.gmra.mrb[0].mxu0 %v3293
        %v3404 = vpop.f32.mrb[0].mxu0
        %v3405 = vadd.f32 0.0, %v3404
        %v3406 = vpop.f32.mrb[0].mxu0
        %v3407 = vpop.f32.mrb[0].mxu0
        %v3408 = vadd.f32 0.0, %v3407
        %v3409 = vpop.f32.mrb[0].mxu0
        %3410 = vdwg.mxu0
        %v3411 = vadd.f32 %v3247, %v3381
        %v3412 = vadd.f32 %v3247, %v3384
        %v3413 = vadd.f32 %v3247, %v3389
        %v3414 = vadd.f32 %v3247, %v3392
        %v3415 = vadd.f32 %v3247, %v3397
        %v3416 = vadd.f32 %v3247, %v3400
        %v3417 = vadd.f32 %v3247, %v3405
        %v3418 = vadd.f32 %v3247, %v3408
        %v3419 = vld [vmem:[#allocation2] sm:$0xf]
        %v3420 = vld [vmem:[#allocation2 + $0x4] sm:$0x1]
        %v3421 = vld [vmem:[#allocation2 + $0x8] sm:$0xf]
        %v3422 = vld [vmem:[#allocation2 + $0xc] sm:$0x1]
        %v3423 = vld [vmem:[#allocation2 + $0x10] sm:$0xf]
        %v3424 = vld [vmem:[#allocation2 + $0x14] sm:$0x1]
        %v3425 = vld [vmem:[#allocation2 + $0x18] sm:$0xf]
        %v3426 = vld [vmem:[#allocation2 + $0x1c] sm:$0x1]
        %v3427 = vld [vmem:[#allocation2 + $0x20] sm:$0xf]
        %v3428 = vld [vmem:[#allocation2 + $0x24] sm:$0x1]
        %v3429 = vld [vmem:[#allocation2 + $0x28] sm:$0xf]
        %v3430 = vld [vmem:[#allocation2 + $0x2c] sm:$0x1]
        %v3431 = vld [vmem:[#allocation2 + $0x30] sm:$0xf]
        %v3432 = vld [vmem:[#allocation2 + $0x34] sm:$0x1]
        %v3433 = vld [vmem:[#allocation2 + $0x38] sm:$0xf]
        %v3434 = vld [vmem:[#allocation2 + $0x3c] sm:$0x1]
        %v3436 = vshrl.u32 %v3419, 16
        %v3438 = vrot.slane %v3436, 4
        %v3439 = vshll.u32 %v3419, 16
        %v3441 = vrot.slane %v3439, 5
        %v3442 = vor.u32 %v3438, %v3441
        %v3443 = vrot.slane %v3442, 4
        %v3445 = vshll.u32 %v3420, 16
        %v3447 = vrot.slane %v3445, 5
        %v3448 = vsel %vm955, %v3443, %v3447
        %v3450 = vshrl.u32 %v3421, 16
        %v3452 = vrot.slane %v3450, 4
        %v3453 = vshll.u32 %v3421, 16
        %v3455 = vrot.slane %v3453, 5
        %v3456 = vor.u32 %v3452, %v3455
        %v3457 = vrot.slane %v3456, 4
        %v3459 = vshll.u32 %v3422, 16
        %v3461 = vrot.slane %v3459, 5
        %v3462 = vsel %vm955, %v3457, %v3461
        %v3464 = vshrl.u32 %v3423, 16
        %v3466 = vrot.slane %v3464, 4
        %v3467 = vshll.u32 %v3423, 16
        %v3469 = vrot.slane %v3467, 5
        %v3470 = vor.u32 %v3466, %v3469
        %v3471 = vrot.slane %v3470, 4
        %v3473 = vshll.u32 %v3424, 16
        %v3475 = vrot.slane %v3473, 5
        %v3476 = vsel %vm955, %v3471, %v3475
        %v3478 = vshrl.u32 %v3425, 16
        %v3480 = vrot.slane %v3478, 4
        %v3481 = vshll.u32 %v3425, 16
        %v3483 = vrot.slane %v3481, 5
        %v3484 = vor.u32 %v3480, %v3483
        %v3485 = vrot.slane %v3484, 4
        %v3487 = vshll.u32 %v3426, 16
        %v3489 = vrot.slane %v3487, 5
        %v3490 = vsel %vm955, %v3485, %v3489
        %v3492 = vshrl.u32 %v3427, 16
        %v3494 = vrot.slane %v3492, 4
        %v3495 = vshll.u32 %v3427, 16
        %v3497 = vrot.slane %v3495, 5
        %v3498 = vor.u32 %v3494, %v3497
        %v3499 = vrot.slane %v3498, 4
        %v3501 = vshll.u32 %v3428, 16
        %v3503 = vrot.slane %v3501, 5
        %v3504 = vsel %vm955, %v3499, %v3503
        %v3506 = vshrl.u32 %v3429, 16
        %v3508 = vrot.slane %v3506, 4
        %v3509 = vshll.u32 %v3429, 16
        %v3511 = vrot.slane %v3509, 5
        %v3512 = vor.u32 %v3508, %v3511
        %v3513 = vrot.slane %v3512, 4
        %v3515 = vshll.u32 %v3430, 16
        %v3517 = vrot.slane %v3515, 5
        %v3518 = vsel %vm955, %v3513, %v3517
        %v3520 = vshrl.u32 %v3431, 16
        %v3522 = vrot.slane %v3520, 4
        %v3523 = vshll.u32 %v3431, 16
        %v3525 = vrot.slane %v3523, 5
        %v3526 = vor.u32 %v3522, %v3525
        %v3527 = vrot.slane %v3526, 4
        %v3529 = vshll.u32 %v3432, 16
        %v3531 = vrot.slane %v3529, 5
        %v3532 = vsel %vm955, %v3527, %v3531
        %v3534 = vshrl.u32 %v3433, 16
        %v3536 = vrot.slane %v3534, 4
        %v3537 = vshll.u32 %v3433, 16
        %v3539 = vrot.slane %v3537, 5
        %v3540 = vor.u32 %v3536, %v3539
        %v3541 = vrot.slane %v3540, 4
        %v3543 = vshll.u32 %v3434, 16
        %v3545 = vrot.slane %v3543, 5
        %v3546 = vsel %vm955, %v3541, %v3545
        %s3547 = scalar_lea.vmem [#allocation6], 640
        %v3548 = vld [vmem:[%s3547] sm:$0xf]
        %v3549 = vld [vmem:[%s3547 + $0x4] sm:$0xf]
        %v3550 = vld [vmem:[%s3547 + $0x8] sm:$0xf]
        %v3551 = vld [vmem:[%s3547 + $0xc] sm:$0xf]
        %v3552 = vld [vmem:[%s3547 + $0x10] sm:$0xf]
        %v3553 = vld [vmem:[%s3547 + $0x14] sm:$0xf]
        %v3554 = vld [vmem:[%s3547 + $0x18] sm:$0xf]
        %v3555 = vld [vmem:[%s3547 + $0x1c] sm:$0xf]
        %v3556 = vld [vmem:[%s3547 + $0x20] sm:$0xf]
        %v3557 = vld [vmem:[%s3547 + $0x24] sm:$0xf]
        %v3558 = vld [vmem:[%s3547 + $0x28] sm:$0xf]
        %v3559 = vld [vmem:[%s3547 + $0x2c] sm:$0xf]
        %v3560 = vld [vmem:[%s3547 + $0x30] sm:$0xf]
        %v3561 = vld [vmem:[%s3547 + $0x34] sm:$0xf]
        %v3562 = vld [vmem:[%s3547 + $0x38] sm:$0xf]
        %v3563 = vld [vmem:[%s3547 + $0x3c] sm:$0xf]
        %v3564 = vunpack.c.l.b16 %v3448
        %v3565 = vunpack.c.l.b16 %v3462
        %v3566 = vunpack.c.l.b16 %v3476
        %v3567 = vunpack.c.l.b16 %v3490
        %v3568 = vunpack.c.l.b16 %v3504
        %v3569 = vunpack.c.l.b16 %v3518
        %v3570 = vunpack.c.l.b16 %v3532
        %v3571 = vunpack.c.l.b16 %v3546
        %v3572 = vpack.c.b16 %v3565, %v3564
        %v3573 = vpack.c.b16 %v3567, %v3566
        %v3574 = vpack.c.b16 %v3569, %v3568
        %v3575 = vpack.c.b16 %v3571, %v3570
        %v3596 = vunpack.c.l.b16 %v3548
        %v3597 = vunpack.c.l.b16 %v3549
        %v3598 = vunpack.c.l.b16 %v3550
        %v3599 = vunpack.c.l.b16 %v3551
        %v3600 = vunpack.c.l.b16 %v3552
        %v3601 = vunpack.c.l.b16 %v3553
        %v3602 = vunpack.c.l.b16 %v3554
        %v3603 = vunpack.c.l.b16 %v3555
        %v3604 = vunpack.c.l.b16 %v3556
        %v3605 = vunpack.c.l.b16 %v3557
        %v3606 = vunpack.c.l.b16 %v3558
        %v3607 = vunpack.c.l.b16 %v3559
        %v3608 = vunpack.c.l.b16 %v3560
        %v3609 = vunpack.c.l.b16 %v3561
        %v3610 = vunpack.c.l.b16 %v3562
        %v3611 = vunpack.c.l.b16 %v3563
        %v3612 = vpack.c.b16 %v3597, %v3596
        %v3613 = vpack.c.b16 %v3599, %v3598
        %v3614 = vpack.c.b16 %v3601, %v3600
        %v3615 = vpack.c.b16 %v3603, %v3602
        %v3616 = vpack.c.b16 %v3605, %v3604
        %v3617 = vpack.c.b16 %v3607, %v3606
        %v3618 = vpack.c.b16 %v3609, %v3608
        %v3619 = vpack.c.b16 %v3611, %v3610
        %3628 = vmatprep.subr.bf16.mxu0 0
        %3629 = vmatpush1.bf16.msra.mxu0 %v3612
        %3630 = vmatprep.subr.bf16.mxu0 0
        %3631 = vmatpush1.bf16.msra.mxu0 %v3613
        %3632 = vmatprep.subr.bf16.mxu0 0
        %3633 = vmatpush1.bf16.msra.mxu0 %v3614
        %3634 = vmatprep.subr.bf16.mxu0 0
        %3635 = vmatpush1.bf16.msra.mxu0 %v3615
        %3636 = vmatprep.subr.bf16.mxu0 0
        %3637 = vmatpush1.bf16.msra.mxu0 %v3616
        %3638 = vmatprep.subr.bf16.mxu0 0
        %3639 = vmatpush1.bf16.msra.mxu0 %v3617
        %3640 = vmatprep.subr.bf16.mxu0 0
        %3641 = vmatpush1.bf16.msra.mxu0 %v3618
        %3642 = vmatprep.subr.bf16.mxu0 0
        %3643 = vmatpush1.bf16.msra.mxu0 %v3619
        %3644 = vmatprep.subr.bf16.mxu0 0
        %3645 = vmatpush1.bf16.msra.mxu0 0
        %3646 = vmatprep.subr.bf16.mxu0 0
        %3647 = vmatpush1.bf16.msra.mxu0 0
        %3648 = vmatprep.subr.bf16.mxu0 0
        %3649 = vmatpush1.bf16.msra.mxu0 0
        %3650 = vmatprep.subr.bf16.mxu0 0
        %3651 = vmatpush1.bf16.msra.mxu0 0
        %3652 = vmatprep.subr.bf16.mxu0 0
        %3653 = vmatpush1.bf16.msra.mxu0 0
        %3654 = vmatprep.subr.bf16.mxu0 0
        %3655 = vmatpush1.bf16.msra.mxu0 0
        %3656 = vmatprep.subr.bf16.mxu0 0
        %3657 = vmatpush1.bf16.msra.mxu0 0
        %3658 = vmatprep.subr.bf16.mxu0 0
        %3659 = vmatpush1.bf16.msra.mxu0 0
        %3660 = vmatprep.mubr.bf16.mxu0 0
        %3661 = vmatmul.mubr.bf16.gmra.mrb[0].mxu0 %v3572
        %v3662 = vpop.f32.mrb[0].mxu0
        %v3663 = vadd.f32 0.0, %v3662
        %v3664 = vpop.f32.mrb[0].mxu0
        %v3665 = vpop.f32.mrb[0].mxu0
        %v3666 = vadd.f32 0.0, %v3665
        %v3667 = vpop.f32.mrb[0].mxu0
        %3668 = vmatprep.mubr.bf16.mxu0 0
        %3669 = vmatmul.mubr.bf16.gmra.mrb[0].mxu0 %v3573
        %v3670 = vpop.f32.mrb[0].mxu0
        %v3671 = vadd.f32 0.0, %v3670
        %v3672 = vpop.f32.mrb[0].mxu0
        %v3673 = vpop.f32.mrb[0].mxu0
        %v3674 = vadd.f32 0.0, %v3673
        %v3675 = vpop.f32.mrb[0].mxu0
        %3676 = vmatprep.mubr.bf16.mxu0 0
        %3677 = vmatmul.mubr.bf16.gmra.mrb[0].mxu0 %v3574
        %v3678 = vpop.f32.mrb[0].mxu0
        %v3679 = vadd.f32 0.0, %v3678
        %v3680 = vpop.f32.mrb[0].mxu0
        %v3681 = vpop.f32.mrb[0].mxu0
        %v3682 = vadd.f32 0.0, %v3681
        %v3683 = vpop.f32.mrb[0].mxu0
        %3684 = vmatprep.mubr.bf16.mxu0 0
        %3685 = vmatmul.mubr.bf16.gmra.mrb[0].mxu0 %v3575
        %v3686 = vpop.f32.mrb[0].mxu0
        %v3687 = vadd.f32 0.0, %v3686
        %v3688 = vpop.f32.mrb[0].mxu0
        %v3689 = vpop.f32.mrb[0].mxu0
        %v3690 = vadd.f32 0.0, %v3689
        %v3691 = vpop.f32.mrb[0].mxu0
        %3692 = vdwg.mxu0
        %v3693 = vadd.f32 %v3411, %v3663
        %v3694 = vadd.f32 %v3412, %v3666
        %v3695 = vadd.f32 %v3413, %v3671
        %v3696 = vadd.f32 %v3414, %v3674
        %v3697 = vadd.f32 %v3415, %v3679
        %v3698 = vadd.f32 %v3416, %v3682
        %v3699 = vadd.f32 %v3417, %v3687
        %v3700 = vadd.f32 %v3418, %v3690
        %v3701 = vld [vmem:[#allocation2] sm:$0xe]
        %v3702 = vld [vmem:[#allocation2 + $0x8] sm:$0xe]
        %v3703 = vld [vmem:[#allocation2 + $0x10] sm:$0xe]
        %v3704 = vld [vmem:[#allocation2 + $0x18] sm:$0xe]
        %v3705 = vld [vmem:[#allocation2 + $0x20] sm:$0xe]
        %v3706 = vld [vmem:[#allocation2 + $0x28] sm:$0xe]
        %v3707 = vld [vmem:[#allocation2 + $0x30] sm:$0xe]
        %v3708 = vld [vmem:[#allocation2 + $0x38] sm:$0xe]
        %v3725 = vrot.slane %v3701, 5
        %v3726 = vrot.slane %v3725, 4
        %v3727 = vrot.slane %v3420, 5
        %v3728 = vsel %vm1248, %v3726, %v3727
        %v3729 = vrot.slane %v3702, 5
        %v3730 = vrot.slane %v3729, 4
        %v3731 = vrot.slane %v3422, 5
        %v3732 = vsel %vm1248, %v3730, %v3731
        %v3733 = vrot.slane %v3703, 5
        %v3734 = vrot.slane %v3733, 4
        %v3735 = vrot.slane %v3424, 5
        %v3736 = vsel %vm1248, %v3734, %v3735
        %v3737 = vrot.slane %v3704, 5
        %v3738 = vrot.slane %v3737, 4
        %v3739 = vrot.slane %v3426, 5
        %v3740 = vsel %vm1248, %v3738, %v3739
        %v3741 = vrot.slane %v3705, 5
        %v3742 = vrot.slane %v3741, 4
        %v3743 = vrot.slane %v3428, 5
        %v3744 = vsel %vm1248, %v3742, %v3743
        %v3745 = vrot.slane %v3706, 5
        %v3746 = vrot.slane %v3745, 4
        %v3747 = vrot.slane %v3430, 5
        %v3748 = vsel %vm1248, %v3746, %v3747
        %v3749 = vrot.slane %v3707, 5
        %v3750 = vrot.slane %v3749, 4
        %v3751 = vrot.slane %v3432, 5
        %v3752 = vsel %vm1248, %v3750, %v3751
        %v3753 = vrot.slane %v3708, 5
        %v3754 = vrot.slane %v3753, 4
        %v3755 = vrot.slane %v3434, 5
        %v3756 = vsel %vm1248, %v3754, %v3755
        %s3757 = scalar_lea.vmem [#allocation6], 704
        %v3758 = vld [vmem:[%s3757] sm:$0xf]
        %v3759 = vld [vmem:[%s3757 + $0x4] sm:$0xf]
        %v3760 = vld [vmem:[%s3757 + $0x8] sm:$0xf]
        %v3761 = vld [vmem:[%s3757 + $0xc] sm:$0xf]
        %v3762 = vld [vmem:[%s3757 + $0x10] sm:$0xf]
        %v3763 = vld [vmem:[%s3757 + $0x14] sm:$0xf]
        %v3764 = vld [vmem:[%s3757 + $0x18] sm:$0xf]
        %v3765 = vld [vmem:[%s3757 + $0x1c] sm:$0xf]
        %v3766 = vld [vmem:[%s3757 + $0x20] sm:$0xf]
        %v3767 = vld [vmem:[%s3757 + $0x24] sm:$0xf]
        %v3768 = vld [vmem:[%s3757 + $0x28] sm:$0xf]
        %v3769 = vld [vmem:[%s3757 + $0x2c] sm:$0xf]
        %v3770 = vld [vmem:[%s3757 + $0x30] sm:$0xf]
        %v3771 = vld [vmem:[%s3757 + $0x34] sm:$0xf]
        %v3772 = vld [vmem:[%s3757 + $0x38] sm:$0xf]
        %v3773 = vld [vmem:[%s3757 + $0x3c] sm:$0xf]
        %v3774 = vunpack.c.l.b16 %v3728
        %v3775 = vunpack.c.l.b16 %v3732
        %v3776 = vunpack.c.l.b16 %v3736
        %v3777 = vunpack.c.l.b16 %v3740
        %v3778 = vunpack.c.l.b16 %v3744
        %v3779 = vunpack.c.l.b16 %v3748
        %v3780 = vunpack.c.l.b16 %v3752
        %v3781 = vunpack.c.l.b16 %v3756
        %v3782 = vpack.c.b16 %v3775, %v3774
        %v3783 = vpack.c.b16 %v3777, %v3776
        %v3784 = vpack.c.b16 %v3779, %v3778
        %v3785 = vpack.c.b16 %v3781, %v3780
        %v3806 = vunpack.c.l.b16 %v3758
        %v3807 = vunpack.c.l.b16 %v3759
        %v3808 = vunpack.c.l.b16 %v3760
        %v3809 = vunpack.c.l.b16 %v3761
        %v3810 = vunpack.c.l.b16 %v3762
        %v3811 = vunpack.c.l.b16 %v3763
        %v3812 = vunpack.c.l.b16 %v3764
        %v3813 = vunpack.c.l.b16 %v3765
        %v3814 = vunpack.c.l.b16 %v3766
        %v3815 = vunpack.c.l.b16 %v3767
        %v3816 = vunpack.c.l.b16 %v3768
        %v3817 = vunpack.c.l.b16 %v3769
        %v3818 = vunpack.c.l.b16 %v3770
        %v3819 = vunpack.c.l.b16 %v3771
        %v3820 = vunpack.c.l.b16 %v3772
        %v3821 = vunpack.c.l.b16 %v3773
        %v3822 = vpack.c.b16 %v3807, %v3806
        %v3823 = vpack.c.b16 %v3809, %v3808
        %v3824 = vpack.c.b16 %v3811, %v3810
        %v3825 = vpack.c.b16 %v3813, %v3812
        %v3826 = vpack.c.b16 %v3815, %v3814
        %v3827 = vpack.c.b16 %v3817, %v3816
        %v3828 = vpack.c.b16 %v3819, %v3818
        %v3829 = vpack.c.b16 %v3821, %v3820
        %3838 = vmatprep.subr.bf16.mxu0 0
        %3839 = vmatpush1.bf16.msra.mxu0 %v3822
        %3840 = vmatprep.subr.bf16.mxu0 0
        %3841 = vmatpush1.bf16.msra.mxu0 %v3823
        %3842 = vmatprep.subr.bf16.mxu0 0
        %3843 = vmatpush1.bf16.msra.mxu0 %v3824
        %3844 = vmatprep.subr.bf16.mxu0 0
        %3845 = vmatpush1.bf16.msra.mxu0 %v3825
        %3846 = vmatprep.subr.bf16.mxu0 0
        %3847 = vmatpush1.bf16.msra.mxu0 %v3826
        %3848 = vmatprep.subr.bf16.mxu0 0
        %3849 = vmatpush1.bf16.msra.mxu0 %v3827
        %3850 = vmatprep.subr.bf16.mxu0 0
        %3851 = vmatpush1.bf16.msra.mxu0 %v3828
        %3852 = vmatprep.subr.bf16.mxu0 0
        %3853 = vmatpush1.bf16.msra.mxu0 %v3829
        %3854 = vmatprep.subr.bf16.mxu0 0
        %3855 = vmatpush1.bf16.msra.mxu0 0
        %3856 = vmatprep.subr.bf16.mxu0 0
        %3857 = vmatpush1.bf16.msra.mxu0 0
        %3858 = vmatprep.subr.bf16.mxu0 0
        %3859 = vmatpush1.bf16.msra.mxu0 0
        %3860 = vmatprep.subr.bf16.mxu0 0
        %3861 = vmatpush1.bf16.msra.mxu0 0
        %3862 = vmatprep.subr.bf16.mxu0 0
        %3863 = vmatpush1.bf16.msra.mxu0 0
        %3864 = vmatprep.subr.bf16.mxu0 0
        %3865 = vmatpush1.bf16.msra.mxu0 0
        %3866 = vmatprep.subr.bf16.mxu0 0
        %3867 = vmatpush1.bf16.msra.mxu0 0
        %3868 = vmatprep.subr.bf16.mxu0 0
        %3869 = vmatpush1.bf16.msra.mxu0 0
        %3870 = vmatprep.mubr.bf16.mxu0 0
        %3871 = vmatmul.mubr.bf16.gmra.mrb[0].mxu0 %v3782
        %v3872 = vpop.f32.mrb[0].mxu0
        %v3873 = vadd.f32 0.0, %v3872
        %v3874 = vpop.f32.mrb[0].mxu0
        %v3875 = vpop.f32.mrb[0].mxu0
        %v3876 = vadd.f32 0.0, %v3875
        %v3877 = vpop.f32.mrb[0].mxu0
        %3878 = vmatprep.mubr.bf16.mxu0 0
        %3879 = vmatmul.mubr.bf16.gmra.mrb[0].mxu0 %v3783
        %v3880 = vpop.f32.mrb[0].mxu0
        %v3881 = vadd.f32 0.0, %v3880
        %v3882 = vpop.f32.mrb[0].mxu0
        %v3883 = vpop.f32.mrb[0].mxu0
        %v3884 = vadd.f32 0.0, %v3883
        %v3885 = vpop.f32.mrb[0].mxu0
        %3886 = vmatprep.mubr.bf16.mxu0 0
        %3887 = vmatmul.mubr.bf16.gmra.mrb[0].mxu0 %v3784
        %v3888 = vpop.f32.mrb[0].mxu0
        %v3889 = vadd.f32 0.0, %v3888
        %v3890 = vpop.f32.mrb[0].mxu0
        %v3891 = vpop.f32.mrb[0].mxu0
        %v3892 = vadd.f32 0.0, %v3891
        %v3893 = vpop.f32.mrb[0].mxu0
        %3894 = vmatprep.mubr.bf16.mxu0 0
        %3895 = vmatmul.mubr.bf16.gmra.mrb[0].mxu0 %v3785
        %v3896 = vpop.f32.mrb[0].mxu0
        %v3897 = vadd.f32 0.0, %v3896
        %v3898 = vpop.f32.mrb[0].mxu0
        %v3899 = vpop.f32.mrb[0].mxu0
        %v3900 = vadd.f32 0.0, %v3899
        %v3901 = vpop.f32.mrb[0].mxu0
        %3902 = vdwg.mxu0
        %v3903 = vadd.f32 %v3693, %v3873
        %v3904 = vadd.f32 %v3694, %v3876
        %v3905 = vadd.f32 %v3695, %v3881
        %v3906 = vadd.f32 %v3696, %v3884
        %v3907 = vadd.f32 %v3697, %v3889
        %v3908 = vadd.f32 %v3698, %v3892
        %v3909 = vadd.f32 %v3699, %v3897
        %v3910 = vadd.f32 %v3700, %v3900
        %v3911 = vld [vmem:[%s706] sm:$0xf]
        %v3912 = vld [vmem:[%s706 + $0x8] sm:$0xf]
        %v3913 = vld [vmem:[%s706 + $0x10] sm:$0xf]
        %v3914 = vld [vmem:[%s706 + $0x18] sm:$0xf]
        %v3915 = vld [vmem:[%s706 + $0x20] sm:$0xf]
        %v3916 = vld [vmem:[%s706 + $0x28] sm:$0xf]
        %v3917 = vld [vmem:[%s706 + $0x30] sm:$0xf]
        %v3918 = vld [vmem:[%s706 + $0x38] sm:$0xf]
        %s3919 = scalar_lea.vmem [#allocation6], 768
        %v3920 = vld [vmem:[%s3919] sm:$0xf]
        %v3921 = vld [vmem:[%s3919 + $0x4] sm:$0xf]
        %v3922 = vld [vmem:[%s3919 + $0x8] sm:$0xf]
        %v3923 = vld [vmem:[%s3919 + $0xc] sm:$0xf]
        %v3924 = vld [vmem:[%s3919 + $0x10] sm:$0xf]
        %v3925 = vld [vmem:[%s3919 + $0x14] sm:$0xf]
        %v3926 = vld [vmem:[%s3919 + $0x18] sm:$0xf]
        %v3927 = vld [vmem:[%s3919 + $0x1c] sm:$0xf]
        %v3928 = vld [vmem:[%s3919 + $0x20] sm:$0xf]
        %v3929 = vld [vmem:[%s3919 + $0x24] sm:$0xf]
        %v3930 = vld [vmem:[%s3919 + $0x28] sm:$0xf]
        %v3931 = vld [vmem:[%s3919 + $0x2c] sm:$0xf]
        %v3932 = vld [vmem:[%s3919 + $0x30] sm:$0xf]
        %v3933 = vld [vmem:[%s3919 + $0x34] sm:$0xf]
        %v3934 = vld [vmem:[%s3919 + $0x38] sm:$0xf]
        %v3935 = vld [vmem:[%s3919 + $0x3c] sm:$0xf]
        %v3944 = vunpack.c.l.b16 %v3911
        %v3945 = vunpack.c.l.b16 %v3912
        %v3946 = vunpack.c.l.b16 %v3913
        %v3947 = vunpack.c.l.b16 %v3914
        %v3948 = vunpack.c.l.b16 %v3915
        %v3949 = vunpack.c.l.b16 %v3916
        %v3950 = vunpack.c.l.b16 %v3917
        %v3951 = vunpack.c.l.b16 %v3918
        %v3952 = vpack.c.b16 %v3945, %v3944
        %v3953 = vpack.c.b16 %v3947, %v3946
        %v3954 = vpack.c.b16 %v3949, %v3948
        %v3955 = vpack.c.b16 %v3951, %v3950
        %v3976 = vunpack.c.l.b16 %v3920
        %v3977 = vunpack.c.l.b16 %v3921
        %v3978 = vunpack.c.l.b16 %v3922
        %v3979 = vunpack.c.l.b16 %v3923
        %v3980 = vunpack.c.l.b16 %v3924
        %v3981 = vunpack.c.l.b16 %v3925
        %v3982 = vunpack.c.l.b16 %v3926
        %v3983 = vunpack.c.l.b16 %v3927
        %v3984 = vunpack.c.l.b16 %v3928
        %v3985 = vunpack.c.l.b16 %v3929
        %v3986 = vunpack.c.l.b16 %v3930
        %v3987 = vunpack.c.l.b16 %v3931
        %v3988 = vunpack.c.l.b16 %v3932
        %v3989 = vunpack.c.l.b16 %v3933
        %v3990 = vunpack.c.l.b16 %v3934
        %v3991 = vunpack.c.l.b16 %v3935
        %v3992 = vpack.c.b16 %v3977, %v3976
        %v3993 = vpack.c.b16 %v3979, %v3978
        %v3994 = vpack.c.b16 %v3981, %v3980
        %v3995 = vpack.c.b16 %v3983, %v3982
        %v3996 = vpack.c.b16 %v3985, %v3984
        %v3997 = vpack.c.b16 %v3987, %v3986
        %v3998 = vpack.c.b16 %v3989, %v3988
        %v3999 = vpack.c.b16 %v3991, %v3990
        %4008 = vmatprep.subr.bf16.mxu0 0
        %4009 = vmatpush1.bf16.msra.mxu0 %v3992
        %4010 = vmatprep.subr.bf16.mxu0 0
        %4011 = vmatpush1.bf16.msra.mxu0 %v3993
        %4012 = vmatprep.subr.bf16.mxu0 0
        %4013 = vmatpush1.bf16.msra.mxu0 %v3994
        %4014 = vmatprep.subr.bf16.mxu0 0
        %4015 = vmatpush1.bf16.msra.mxu0 %v3995
        %4016 = vmatprep.subr.bf16.mxu0 0
        %4017 = vmatpush1.bf16.msra.mxu0 %v3996
        %4018 = vmatprep.subr.bf16.mxu0 0
        %4019 = vmatpush1.bf16.msra.mxu0 %v3997
        %4020 = vmatprep.subr.bf16.mxu0 0
        %4021 = vmatpush1.bf16.msra.mxu0 %v3998
        %4022 = vmatprep.subr.bf16.mxu0 0
        %4023 = vmatpush1.bf16.msra.mxu0 %v3999
        %4024 = vmatprep.subr.bf16.mxu0 0
        %4025 = vmatpush1.bf16.msra.mxu0 0
        %4026 = vmatprep.subr.bf16.mxu0 0
        %4027 = vmatpush1.bf16.msra.mxu0 0
        %4028 = vmatprep.subr.bf16.mxu0 0
        %4029 = vmatpush1.bf16.msra.mxu0 0
        %4030 = vmatprep.subr.bf16.mxu0 0
        %4031 = vmatpush1.bf16.msra.mxu0 0
        %4032 = vmatprep.subr.bf16.mxu0 0
        %4033 = vmatpush1.bf16.msra.mxu0 0
        %4034 = vmatprep.subr.bf16.mxu0 0
        %4035 = vmatpush1.bf16.msra.mxu0 0
        %4036 = vmatprep.subr.bf16.mxu0 0
        %4037 = vmatpush1.bf16.msra.mxu0 0
        %4038 = vmatprep.subr.bf16.mxu0 0
        %4039 = vmatpush1.bf16.msra.mxu0 0
        %4040 = vmatprep.mubr.bf16.mxu0 0
        %4041 = vmatmul.mubr.bf16.gmra.mrb[0].mxu0 %v3952
        %v4042 = vpop.f32.mrb[0].mxu0
        %v4043 = vadd.f32 0.0, %v4042
        %v4044 = vpop.f32.mrb[0].mxu0
        %v4045 = vpop.f32.mrb[0].mxu0
        %v4046 = vadd.f32 0.0, %v4045
        %v4047 = vpop.f32.mrb[0].mxu0
        %4048 = vmatprep.mubr.bf16.mxu0 0
        %4049 = vmatmul.mubr.bf16.gmra.mrb[0].mxu0 %v3953
        %v4050 = vpop.f32.mrb[0].mxu0
        %v4051 = vadd.f32 0.0, %v4050
        %v4052 = vpop.f32.mrb[0].mxu0
        %v4053 = vpop.f32.mrb[0].mxu0
        %v4054 = vadd.f32 0.0, %v4053
        %v4055 = vpop.f32.mrb[0].mxu0
        %4056 = vmatprep.mubr.bf16.mxu0 0
        %4057 = vmatmul.mubr.bf16.gmra.mrb[0].mxu0 %v3954
        %v4058 = vpop.f32.mrb[0].mxu0
        %v4059 = vadd.f32 0.0, %v4058
        %v4060 = vpop.f32.mrb[0].mxu0
        %v4061 = vpop.f32.mrb[0].mxu0
        %v4062 = vadd.f32 0.0, %v4061
        %v4063 = vpop.f32.mrb[0].mxu0
        %4064 = vmatprep.mubr.bf16.mxu0 0
        %4065 = vmatmul.mubr.bf16.gmra.mrb[0].mxu0 %v3955
        %v4066 = vpop.f32.mrb[0].mxu0
        %v4067 = vadd.f32 0.0, %v4066
        %v4068 = vpop.f32.mrb[0].mxu0
        %v4069 = vpop.f32.mrb[0].mxu0
        %v4070 = vadd.f32 0.0, %v4069
        %v4071 = vpop.f32.mrb[0].mxu0
        %4072 = vdwg.mxu0
        %v4073 = vadd.f32 %v3903, %v4043
        %v4074 = vadd.f32 %v3904, %v4046
        %v4075 = vadd.f32 %v3905, %v4051
        %v4076 = vadd.f32 %v3906, %v4054
        %v4077 = vadd.f32 %v3907, %v4059
        %v4078 = vadd.f32 %v3908, %v4062
        %v4079 = vadd.f32 %v3909, %v4067
        %v4080 = vadd.f32 %v3910, %v4070
        %v4081 = vld [vmem:[%s706] sm:$0xf]
        %v4082 = vld [vmem:[%s706 + $0x4] sm:$0x1]
        %v4083 = vld [vmem:[%s706 + $0x8] sm:$0xf]
        %v4084 = vld [vmem:[%s706 + $0xc] sm:$0x1]
        %v4085 = vld [vmem:[%s706 + $0x10] sm:$0xf]
        %v4086 = vld [vmem:[%s706 + $0x14] sm:$0x1]
        %v4087 = vld [vmem:[%s706 + $0x18] sm:$0xf]
        %v4088 = vld [vmem:[%s706 + $0x1c] sm:$0x1]
        %v4089 = vld [vmem:[%s706 + $0x20] sm:$0xf]
        %v4090 = vld [vmem:[%s706 + $0x24] sm:$0x1]
        %v4091 = vld [vmem:[%s706 + $0x28] sm:$0xf]
        %v4092 = vld [vmem:[%s706 + $0x2c] sm:$0x1]
        %v4093 = vld [vmem:[%s706 + $0x30] sm:$0xf]
        %v4094 = vld [vmem:[%s706 + $0x34] sm:$0x1]
        %v4095 = vld [vmem:[%s706 + $0x38] sm:$0xf]
        %v4096 = vld [vmem:[%s706 + $0x3c] sm:$0x1]
        %v4098 = vshrl.u32 %v4081, 16
        %v4100 = vrot.slane %v4098, 4
        %v4101 = vshll.u32 %v4081, 16
        %v4103 = vrot.slane %v4101, 5
        %v4104 = vor.u32 %v4100, %v4103
        %v4105 = vrot.slane %v4104, 4
        %v4107 = vshll.u32 %v4082, 16
        %v4109 = vrot.slane %v4107, 5
        %v4110 = vsel %vm955, %v4105, %v4109
        %v4112 = vshrl.u32 %v4083, 16
        %v4114 = vrot.slane %v4112, 4
        %v4115 = vshll.u32 %v4083, 16
        %v4117 = vrot.slane %v4115, 5
        %v4118 = vor.u32 %v4114, %v4117
        %v4119 = vrot.slane %v4118, 4
        %v4121 = vshll.u32 %v4084, 16
        %v4123 = vrot.slane %v4121, 5
        %v4124 = vsel %vm955, %v4119, %v4123
        %v4126 = vshrl.u32 %v4085, 16
        %v4128 = vrot.slane %v4126, 4
        %v4129 = vshll.u32 %v4085, 16
        %v4131 = vrot.slane %v4129, 5
        %v4132 = vor.u32 %v4128, %v4131
        %v4133 = vrot.slane %v4132, 4
        %v4135 = vshll.u32 %v4086, 16
        %v4137 = vrot.slane %v4135, 5
        %v4138 = vsel %vm955, %v4133, %v4137
        %v4140 = vshrl.u32 %v4087, 16
        %v4142 = vrot.slane %v4140, 4
        %v4143 = vshll.u32 %v4087, 16
        %v4145 = vrot.slane %v4143, 5
        %v4146 = vor.u32 %v4142, %v4145
        %v4147 = vrot.slane %v4146, 4
        %v4149 = vshll.u32 %v4088, 16
        %v4151 = vrot.slane %v4149, 5
        %v4152 = vsel %vm955, %v4147, %v4151
        %v4154 = vshrl.u32 %v4089, 16
        %v4156 = vrot.slane %v4154, 4
        %v4157 = vshll.u32 %v4089, 16
        %v4159 = vrot.slane %v4157, 5
        %v4160 = vor.u32 %v4156, %v4159
        %v4161 = vrot.slane %v4160, 4
        %v4163 = vshll.u32 %v4090, 16
        %v4165 = vrot.slane %v4163, 5
        %v4166 = vsel %vm955, %v4161, %v4165
        %v4168 = vshrl.u32 %v4091, 16
        %v4170 = vrot.slane %v4168, 4
        %v4171 = vshll.u32 %v4091, 16
        %v4173 = vrot.slane %v4171, 5
        %v4174 = vor.u32 %v4170, %v4173
        %v4175 = vrot.slane %v4174, 4
        %v4177 = vshll.u32 %v4092, 16
        %v4179 = vrot.slane %v4177, 5
        %v4180 = vsel %vm955, %v4175, %v4179
        %v4182 = vshrl.u32 %v4093, 16
        %v4184 = vrot.slane %v4182, 4
        %v4185 = vshll.u32 %v4093, 16
        %v4187 = vrot.slane %v4185, 5
        %v4188 = vor.u32 %v4184, %v4187
        %v4189 = vrot.slane %v4188, 4
        %v4191 = vshll.u32 %v4094, 16
        %v4193 = vrot.slane %v4191, 5
        %v4194 = vsel %vm955, %v4189, %v4193
        %v4196 = vshrl.u32 %v4095, 16
        %v4198 = vrot.slane %v4196, 4
        %v4199 = vshll.u32 %v4095, 16
        %v4201 = vrot.slane %v4199, 5
        %v4202 = vor.u32 %v4198, %v4201
        %v4203 = vrot.slane %v4202, 4
        %v4205 = vshll.u32 %v4096, 16
        %v4207 = vrot.slane %v4205, 5
        %v4208 = vsel %vm955, %v4203, %v4207
        %s4209 = scalar_lea.vmem [#allocation6], 832
        %v4210 = vld [vmem:[%s4209] sm:$0xf]
        %v4211 = vld [vmem:[%s4209 + $0x4] sm:$0xf]
        %v4212 = vld [vmem:[%s4209 + $0x8] sm:$0xf]
        %v4213 = vld [vmem:[%s4209 + $0xc] sm:$0xf]
        %v4214 = vld [vmem:[%s4209 + $0x10] sm:$0xf]
        %v4215 = vld [vmem:[%s4209 + $0x14] sm:$0xf]
        %v4216 = vld [vmem:[%s4209 + $0x18] sm:$0xf]
        %v4217 = vld [vmem:[%s4209 + $0x1c] sm:$0xf]
        %v4218 = vld [vmem:[%s4209 + $0x20] sm:$0xf]
        %v4219 = vld [vmem:[%s4209 + $0x24] sm:$0xf]
        %v4220 = vld [vmem:[%s4209 + $0x28] sm:$0xf]
        %v4221 = vld [vmem:[%s4209 + $0x2c] sm:$0xf]
        %v4222 = vld [vmem:[%s4209 + $0x30] sm:$0xf]
        %v4223 = vld [vmem:[%s4209 + $0x34] sm:$0xf]
        %v4224 = vld [vmem:[%s4209 + $0x38] sm:$0xf]
        %v4225 = vld [vmem:[%s4209 + $0x3c] sm:$0xf]
        %v4226 = vunpack.c.l.b16 %v4110
        %v4227 = vunpack.c.l.b16 %v4124
        %v4228 = vunpack.c.l.b16 %v4138
        %v4229 = vunpack.c.l.b16 %v4152
        %v4230 = vunpack.c.l.b16 %v4166
        %v4231 = vunpack.c.l.b16 %v4180
        %v4232 = vunpack.c.l.b16 %v4194
        %v4233 = vunpack.c.l.b16 %v4208
        %v4234 = vpack.c.b16 %v4227, %v4226
        %v4235 = vpack.c.b16 %v4229, %v4228
        %v4236 = vpack.c.b16 %v4231, %v4230
        %v4237 = vpack.c.b16 %v4233, %v4232
        %v4258 = vunpack.c.l.b16 %v4210
        %v4259 = vunpack.c.l.b16 %v4211
        %v4260 = vunpack.c.l.b16 %v4212
        %v4261 = vunpack.c.l.b16 %v4213
        %v4262 = vunpack.c.l.b16 %v4214
        %v4263 = vunpack.c.l.b16 %v4215
        %v4264 = vunpack.c.l.b16 %v4216
        %v4265 = vunpack.c.l.b16 %v4217
        %v4266 = vunpack.c.l.b16 %v4218
        %v4267 = vunpack.c.l.b16 %v4219
        %v4268 = vunpack.c.l.b16 %v4220
        %v4269 = vunpack.c.l.b16 %v4221
        %v4270 = vunpack.c.l.b16 %v4222
        %v4271 = vunpack.c.l.b16 %v4223
        %v4272 = vunpack.c.l.b16 %v4224
        %v4273 = vunpack.c.l.b16 %v4225
        %v4274 = vpack.c.b16 %v4259, %v4258
        %v4275 = vpack.c.b16 %v4261, %v4260
        %v4276 = vpack.c.b16 %v4263, %v4262
        %v4277 = vpack.c.b16 %v4265, %v4264
        %v4278 = vpack.c.b16 %v4267, %v4266
        %v4279 = vpack.c.b16 %v4269, %v4268
        %v4280 = vpack.c.b16 %v4271, %v4270
        %v4281 = vpack.c.b16 %v4273, %v4272
        %4290 = vmatprep.subr.bf16.mxu0 0
        %4291 = vmatpush1.bf16.msra.mxu0 %v4274
        %4292 = vmatprep.subr.bf16.mxu0 0
        %4293 = vmatpush1.bf16.msra.mxu0 %v4275
        %4294 = vmatprep.subr.bf16.mxu0 0
        %4295 = vmatpush1.bf16.msra.mxu0 %v4276
        %4296 = vmatprep.subr.bf16.mxu0 0
        %4297 = vmatpush1.bf16.msra.mxu0 %v4277
        %4298 = vmatprep.subr.bf16.mxu0 0
        %4299 = vmatpush1.bf16.msra.mxu0 %v4278
        %4300 = vmatprep.subr.bf16.mxu0 0
        %4301 = vmatpush1.bf16.msra.mxu0 %v4279
        %4302 = vmatprep.subr.bf16.mxu0 0
        %4303 = vmatpush1.bf16.msra.mxu0 %v4280
        %4304 = vmatprep.subr.bf16.mxu0 0
        %4305 = vmatpush1.bf16.msra.mxu0 %v4281
        %4306 = vmatprep.subr.bf16.mxu0 0
        %4307 = vmatpush1.bf16.msra.mxu0 0
        %4308 = vmatprep.subr.bf16.mxu0 0
        %4309 = vmatpush1.bf16.msra.mxu0 0
        %4310 = vmatprep.subr.bf16.mxu0 0
        %4311 = vmatpush1.bf16.msra.mxu0 0
        %4312 = vmatprep.subr.bf16.mxu0 0
        %4313 = vmatpush1.bf16.msra.mxu0 0
        %4314 = vmatprep.subr.bf16.mxu0 0
        %4315 = vmatpush1.bf16.msra.mxu0 0
        %4316 = vmatprep.subr.bf16.mxu0 0
        %4317 = vmatpush1.bf16.msra.mxu0 0
        %4318 = vmatprep.subr.bf16.mxu0 0
        %4319 = vmatpush1.bf16.msra.mxu0 0
        %4320 = vmatprep.subr.bf16.mxu0 0
        %4321 = vmatpush1.bf16.msra.mxu0 0
        %4322 = vmatprep.mubr.bf16.mxu0 0
        %4323 = vmatmul.mubr.bf16.gmra.mrb[0].mxu0 %v4234
        %v4324 = vpop.f32.mrb[0].mxu0
        %v4325 = vadd.f32 0.0, %v4324
        %v4326 = vpop.f32.mrb[0].mxu0
        %v4327 = vpop.f32.mrb[0].mxu0
        %v4328 = vadd.f32 0.0, %v4327
        %v4329 = vpop.f32.mrb[0].mxu0
        %4330 = vmatprep.mubr.bf16.mxu0 0
        %4331 = vmatmul.mubr.bf16.gmra.mrb[0].mxu0 %v4235
        %v4332 = vpop.f32.mrb[0].mxu0
        %v4333 = vadd.f32 0.0, %v4332
        %v4334 = vpop.f32.mrb[0].mxu0
        %v4335 = vpop.f32.mrb[0].mxu0
        %v4336 = vadd.f32 0.0, %v4335
        %v4337 = vpop.f32.mrb[0].mxu0
        %4338 = vmatprep.mubr.bf16.mxu0 0
        %4339 = vmatmul.mubr.bf16.gmra.mrb[0].mxu0 %v4236
        %v4340 = vpop.f32.mrb[0].mxu0
        %v4341 = vadd.f32 0.0, %v4340
        %v4342 = vpop.f32.mrb[0].mxu0
        %v4343 = vpop.f32.mrb[0].mxu0
        %v4344 = vadd.f32 0.0, %v4343
        %v4345 = vpop.f32.mrb[0].mxu0
        %4346 = vmatprep.mubr.bf16.mxu0 0
        %4347 = vmatmul.mubr.bf16.gmra.mrb[0].mxu0 %v4237
        %v4348 = vpop.f32.mrb[0].mxu0
        %v4349 = vadd.f32 0.0, %v4348
        %v4350 = vpop.f32.mrb[0].mxu0
        %v4351 = vpop.f32.mrb[0].mxu0
        %v4352 = vadd.f32 0.0, %v4351
        %v4353 = vpop.f32.mrb[0].mxu0
        %4354 = vdwg.mxu0
        %v4355 = vadd.f32 %v4073, %v4325
        %v4356 = vadd.f32 %v4074, %v4328
        %v4357 = vadd.f32 %v4075, %v4333
        %v4358 = vadd.f32 %v4076, %v4336
        %v4359 = vadd.f32 %v4077, %v4341
        %v4360 = vadd.f32 %v4078, %v4344
        %v4361 = vadd.f32 %v4079, %v4349
        %v4362 = vadd.f32 %v4080, %v4352
        %v4363 = vld [vmem:[%s706] sm:$0xe]
        %v4364 = vld [vmem:[%s706 + $0x8] sm:$0xe]
        %v4365 = vld [vmem:[%s706 + $0x10] sm:$0xe]
        %v4366 = vld [vmem:[%s706 + $0x18] sm:$0xe]
        %v4367 = vld [vmem:[%s706 + $0x20] sm:$0xe]
        %v4368 = vld [vmem:[%s706 + $0x28] sm:$0xe]
        %v4369 = vld [vmem:[%s706 + $0x30] sm:$0xe]
        %v4370 = vld [vmem:[%s706 + $0x38] sm:$0xe]
        %v4387 = vrot.slane %v4363, 5
        %v4388 = vrot.slane %v4387, 4
        %v4389 = vrot.slane %v4082, 5
        %v4390 = vsel %vm1248, %v4388, %v4389
        %v4391 = vrot.slane %v4364, 5
        %v4392 = vrot.slane %v4391, 4
        %v4393 = vrot.slane %v4084, 5
        %v4394 = vsel %vm1248, %v4392, %v4393
        %v4395 = vrot.slane %v4365, 5
        %v4396 = vrot.slane %v4395, 4
        %v4397 = vrot.slane %v4086, 5
        %v4398 = vsel %vm1248, %v4396, %v4397
        %v4399 = vrot.slane %v4366, 5
        %v4400 = vrot.slane %v4399, 4
        %v4401 = vrot.slane %v4088, 5
        %v4402 = vsel %vm1248, %v4400, %v4401
        %v4403 = vrot.slane %v4367, 5
        %v4404 = vrot.slane %v4403, 4
        %v4405 = vrot.slane %v4090, 5
        %v4406 = vsel %vm1248, %v4404, %v4405
        %v4407 = vrot.slane %v4368, 5
        %v4408 = vrot.slane %v4407, 4
        %v4409 = vrot.slane %v4092, 5
        %v4410 = vsel %vm1248, %v4408, %v4409
        %v4411 = vrot.slane %v4369, 5
        %v4412 = vrot.slane %v4411, 4
        %v4413 = vrot.slane %v4094, 5
        %v4414 = vsel %vm1248, %v4412, %v4413
        %v4415 = vrot.slane %v4370, 5
        %v4416 = vrot.slane %v4415, 4
        %v4417 = vrot.slane %v4096, 5
        %v4418 = vsel %vm1248, %v4416, %v4417
        %s4419 = scalar_lea.vmem [#allocation6], 896
        %v4420 = vld [vmem:[%s4419] sm:$0xf]
        %v4421 = vld [vmem:[%s4419 + $0x4] sm:$0xf]
        %v4422 = vld [vmem:[%s4419 + $0x8] sm:$0xf]
        %v4423 = vld [vmem:[%s4419 + $0xc] sm:$0xf]
        %v4424 = vld [vmem:[%s4419 + $0x10] sm:$0xf]
        %v4425 = vld [vmem:[%s4419 + $0x14] sm:$0xf]
        %v4426 = vld [vmem:[%s4419 + $0x18] sm:$0xf]
        %v4427 = vld [vmem:[%s4419 + $0x1c] sm:$0xf]
        %v4428 = vld [vmem:[%s4419 + $0x20] sm:$0xf]
        %v4429 = vld [vmem:[%s4419 + $0x24] sm:$0xf]
        %v4430 = vld [vmem:[%s4419 + $0x28] sm:$0xf]
        %v4431 = vld [vmem:[%s4419 + $0x2c] sm:$0xf]
        %v4432 = vld [vmem:[%s4419 + $0x30] sm:$0xf]
        %v4433 = vld [vmem:[%s4419 + $0x34] sm:$0xf]
        %v4434 = vld [vmem:[%s4419 + $0x38] sm:$0xf]
        %v4435 = vld [vmem:[%s4419 + $0x3c] sm:$0xf]
        %v4436 = vunpack.c.l.b16 %v4390
        %v4437 = vunpack.c.l.b16 %v4394
        %v4438 = vunpack.c.l.b16 %v4398
        %v4439 = vunpack.c.l.b16 %v4402
        %v4440 = vunpack.c.l.b16 %v4406
        %v4441 = vunpack.c.l.b16 %v4410
        %v4442 = vunpack.c.l.b16 %v4414
        %v4443 = vunpack.c.l.b16 %v4418
        %v4444 = vpack.c.b16 %v4437, %v4436
        %v4445 = vpack.c.b16 %v4439, %v4438
        %v4446 = vpack.c.b16 %v4441, %v4440
        %v4447 = vpack.c.b16 %v4443, %v4442
        %v4468 = vunpack.c.l.b16 %v4420
        %v4469 = vunpack.c.l.b16 %v4421
        %v4470 = vunpack.c.l.b16 %v4422
        %v4471 = vunpack.c.l.b16 %v4423
        %v4472 = vunpack.c.l.b16 %v4424
        %v4473 = vunpack.c.l.b16 %v4425
        %v4474 = vunpack.c.l.b16 %v4426
        %v4475 = vunpack.c.l.b16 %v4427
        %v4476 = vunpack.c.l.b16 %v4428
        %v4477 = vunpack.c.l.b16 %v4429
        %v4478 = vunpack.c.l.b16 %v4430
        %v4479 = vunpack.c.l.b16 %v4431
        %v4480 = vunpack.c.l.b16 %v4432
        %v4481 = vunpack.c.l.b16 %v4433
        %v4482 = vunpack.c.l.b16 %v4434
        %v4483 = vunpack.c.l.b16 %v4435
        %v4484 = vpack.c.b16 %v4469, %v4468
        %v4485 = vpack.c.b16 %v4471, %v4470
        %v4486 = vpack.c.b16 %v4473, %v4472
        %v4487 = vpack.c.b16 %v4475, %v4474
        %v4488 = vpack.c.b16 %v4477, %v4476
        %v4489 = vpack.c.b16 %v4479, %v4478
        %v4490 = vpack.c.b16 %v4481, %v4480
        %v4491 = vpack.c.b16 %v4483, %v4482
        %4500 = vmatprep.subr.bf16.mxu0 0
        %4501 = vmatpush1.bf16.msra.mxu0 %v4484
        %4502 = vmatprep.subr.bf16.mxu0 0
        %4503 = vmatpush1.bf16.msra.mxu0 %v4485
        %4504 = vmatprep.subr.bf16.mxu0 0
        %4505 = vmatpush1.bf16.msra.mxu0 %v4486
        %4506 = vmatprep.subr.bf16.mxu0 0
        %4507 = vmatpush1.bf16.msra.mxu0 %v4487
        %4508 = vmatprep.subr.bf16.mxu0 0
        %4509 = vmatpush1.bf16.msra.mxu0 %v4488
        %4510 = vmatprep.subr.bf16.mxu0 0
        %4511 = vmatpush1.bf16.msra.mxu0 %v4489
        %4512 = vmatprep.subr.bf16.mxu0 0
        %4513 = vmatpush1.bf16.msra.mxu0 %v4490
        %4514 = vmatprep.subr.bf16.mxu0 0
        %4515 = vmatpush1.bf16.msra.mxu0 %v4491
        %4516 = vmatprep.subr.bf16.mxu0 0
        %4517 = vmatpush1.bf16.msra.mxu0 0
        %4518 = vmatprep.subr.bf16.mxu0 0
        %4519 = vmatpush1.bf16.msra.mxu0 0
        %4520 = vmatprep.subr.bf16.mxu0 0
        %4521 = vmatpush1.bf16.msra.mxu0 0
        %4522 = vmatprep.subr.bf16.mxu0 0
        %4523 = vmatpush1.bf16.msra.mxu0 0
        %4524 = vmatprep.subr.bf16.mxu0 0
        %4525 = vmatpush1.bf16.msra.mxu0 0
        %4526 = vmatprep.subr.bf16.mxu0 0
        %4527 = vmatpush1.bf16.msra.mxu0 0
        %4528 = vmatprep.subr.bf16.mxu0 0
        %4529 = vmatpush1.bf16.msra.mxu0 0
        %4530 = vmatprep.subr.bf16.mxu0 0
        %4531 = vmatpush1.bf16.msra.mxu0 0
        %4532 = vmatprep.mubr.bf16.mxu0 0
        %4533 = vmatmul.mubr.bf16.gmra.mrb[0].mxu0 %v4444
        %v4534 = vpop.f32.mrb[0].mxu0
        %v4535 = vadd.f32 0.0, %v4534
        %v4536 = vpop.f32.mrb[0].mxu0
        %v4537 = vpop.f32.mrb[0].mxu0
        %v4538 = vadd.f32 0.0, %v4537
        %v4539 = vpop.f32.mrb[0].mxu0
        %4540 = vmatprep.mubr.bf16.mxu0 0
        %4541 = vmatmul.mubr.bf16.gmra.mrb[0].mxu0 %v4445
        %v4542 = vpop.f32.mrb[0].mxu0
        %v4543 = vadd.f32 0.0, %v4542
        %v4544 = vpop.f32.mrb[0].mxu0
        %v4545 = vpop.f32.mrb[0].mxu0
        %v4546 = vadd.f32 0.0, %v4545
        %v4547 = vpop.f32.mrb[0].mxu0
        %4548 = vmatprep.mubr.bf16.mxu0 0
        %4549 = vmatmul.mubr.bf16.gmra.mrb[0].mxu0 %v4446
        %v4550 = vpop.f32.mrb[0].mxu0
        %v4551 = vadd.f32 0.0, %v4550
        %v4552 = vpop.f32.mrb[0].mxu0
        %v4553 = vpop.f32.mrb[0].mxu0
        %v4554 = vadd.f32 0.0, %v4553
        %v4555 = vpop.f32.mrb[0].mxu0
        %4556 = vmatprep.mubr.bf16.mxu0 0
        %4557 = vmatmul.mubr.bf16.gmra.mrb[0].mxu0 %v4447
        %v4558 = vpop.f32.mrb[0].mxu0
        %v4559 = vadd.f32 0.0, %v4558
        %v4560 = vpop.f32.mrb[0].mxu0
        %v4561 = vpop.f32.mrb[0].mxu0
        %v4562 = vadd.f32 0.0, %v4561
        %v4563 = vpop.f32.mrb[0].mxu0
        %4564 = vdwg.mxu0
        %v4565 = vadd.f32 %v4355, %v4535
        %v4566 = vadd.f32 %v4356, %v4538
        %v4567 = vadd.f32 %v4357, %v4543
        %v4568 = vadd.f32 %v4358, %v4546
        %v4569 = vadd.f32 %v4359, %v4551
        %v4570 = vadd.f32 %v4360, %v4554
        %v4571 = vadd.f32 %v4361, %v4559
        %v4572 = vadd.f32 %v4362, %v4562
        %v4573 = vld [vmem:[%s2097] sm:$0xf]
        %v4574 = vld [vmem:[%s2097 + $0x8] sm:$0xf]
        %v4575 = vld [vmem:[%s2097 + $0x10] sm:$0xf]
        %v4576 = vld [vmem:[%s2097 + $0x18] sm:$0xf]
        %v4577 = vld [vmem:[%s2097 + $0x20] sm:$0xf]
        %v4578 = vld [vmem:[%s2097 + $0x28] sm:$0xf]
        %v4579 = vld [vmem:[%s2097 + $0x30] sm:$0xf]
        %v4580 = vld [vmem:[%s2097 + $0x38] sm:$0xf]
        %s4581 = scalar_lea.vmem [#allocation6], 960
        %v4582 = vld [vmem:[%s4581] sm:$0xf]
        %v4583 = vld [vmem:[%s4581 + $0x4] sm:$0xf]
        %v4584 = vld [vmem:[%s4581 + $0x8] sm:$0xf]
        %v4585 = vld [vmem:[%s4581 + $0xc] sm:$0xf]
        %v4586 = vld [vmem:[%s4581 + $0x10] sm:$0xf]
        %v4587 = vld [vmem:[%s4581 + $0x14] sm:$0xf]
        %v4588 = vld [vmem:[%s4581 + $0x18] sm:$0xf]
        %v4589 = vld [vmem:[%s4581 + $0x1c] sm:$0xf]
        %v4590 = vld [vmem:[%s4581 + $0x20] sm:$0xf]
        %v4591 = vld [vmem:[%s4581 + $0x24] sm:$0xf]
        %v4592 = vld [vmem:[%s4581 + $0x28] sm:$0xf]
        %v4593 = vld [vmem:[%s4581 + $0x2c] sm:$0xf]
        %v4594 = vld [vmem:[%s4581 + $0x30] sm:$0xf]
        %v4595 = vld [vmem:[%s4581 + $0x34] sm:$0xf]
        %v4596 = vld [vmem:[%s4581 + $0x38] sm:$0xf]
        %v4597 = vld [vmem:[%s4581 + $0x3c] sm:$0xf]
        %v4606 = vunpack.c.l.b16 %v4573
        %v4607 = vunpack.c.l.b16 %v4574
        %v4608 = vunpack.c.l.b16 %v4575
        %v4609 = vunpack.c.l.b16 %v4576
        %v4610 = vunpack.c.l.b16 %v4577
        %v4611 = vunpack.c.l.b16 %v4578
        %v4612 = vunpack.c.l.b16 %v4579
        %v4613 = vunpack.c.l.b16 %v4580
        %v4614 = vpack.c.b16 %v4607, %v4606
        %v4615 = vpack.c.b16 %v4609, %v4608
        %v4616 = vpack.c.b16 %v4611, %v4610
        %v4617 = vpack.c.b16 %v4613, %v4612
        %v4638 = vunpack.c.l.b16 %v4582
        %v4639 = vunpack.c.l.b16 %v4583
        %v4640 = vunpack.c.l.b16 %v4584
        %v4641 = vunpack.c.l.b16 %v4585
        %v4642 = vunpack.c.l.b16 %v4586
        %v4643 = vunpack.c.l.b16 %v4587
        %v4644 = vunpack.c.l.b16 %v4588
        %v4645 = vunpack.c.l.b16 %v4589
        %v4646 = vunpack.c.l.b16 %v4590
        %v4647 = vunpack.c.l.b16 %v4591
        %v4648 = vunpack.c.l.b16 %v4592
        %v4649 = vunpack.c.l.b16 %v4593
        %v4650 = vunpack.c.l.b16 %v4594
        %v4651 = vunpack.c.l.b16 %v4595
        %v4652 = vunpack.c.l.b16 %v4596
        %v4653 = vunpack.c.l.b16 %v4597
        %v4654 = vpack.c.b16 %v4639, %v4638
        %v4655 = vpack.c.b16 %v4641, %v4640
        %v4656 = vpack.c.b16 %v4643, %v4642
        %v4657 = vpack.c.b16 %v4645, %v4644
        %v4658 = vpack.c.b16 %v4647, %v4646
        %v4659 = vpack.c.b16 %v4649, %v4648
        %v4660 = vpack.c.b16 %v4651, %v4650
        %v4661 = vpack.c.b16 %v4653, %v4652
        %4670 = vmatprep.subr.bf16.mxu0 0
        %4671 = vmatpush1.bf16.msra.mxu0 %v4654
        %4672 = vmatprep.subr.bf16.mxu0 0
        %4673 = vmatpush1.bf16.msra.mxu0 %v4655
        %4674 = vmatprep.subr.bf16.mxu0 0
        %4675 = vmatpush1.bf16.msra.mxu0 %v4656
        %4676 = vmatprep.subr.bf16.mxu0 0
        %4677 = vmatpush1.bf16.msra.mxu0 %v4657
        %4678 = vmatprep.subr.bf16.mxu0 0
        %4679 = vmatpush1.bf16.msra.mxu0 %v4658
        %4680 = vmatprep.subr.bf16.mxu0 0
        %4681 = vmatpush1.bf16.msra.mxu0 %v4659
        %4682 = vmatprep.subr.bf16.mxu0 0
        %4683 = vmatpush1.bf16.msra.mxu0 %v4660
        %4684 = vmatprep.subr.bf16.mxu0 0
        %4685 = vmatpush1.bf16.msra.mxu0 %v4661
        %4686 = vmatprep.subr.bf16.mxu0 0
        %4687 = vmatpush1.bf16.msra.mxu0 0
        %4688 = vmatprep.subr.bf16.mxu0 0
        %4689 = vmatpush1.bf16.msra.mxu0 0
        %4690 = vmatprep.subr.bf16.mxu0 0
        %4691 = vmatpush1.bf16.msra.mxu0 0
        %4692 = vmatprep.subr.bf16.mxu0 0
        %4693 = vmatpush1.bf16.msra.mxu0 0
        %4694 = vmatprep.subr.bf16.mxu0 0
        %4695 = vmatpush1.bf16.msra.mxu0 0
        %4696 = vmatprep.subr.bf16.mxu0 0
        %4697 = vmatpush1.bf16.msra.mxu0 0
        %4698 = vmatprep.subr.bf16.mxu0 0
        %4699 = vmatpush1.bf16.msra.mxu0 0
        %4700 = vmatprep.subr.bf16.mxu0 0
        %4701 = vmatpush1.bf16.msra.mxu0 0
        %4702 = vmatprep.mubr.bf16.mxu0 0
        %4703 = vmatmul.mubr.bf16.gmra.mrb[0].mxu0 %v4614
        %v4704 = vpop.f32.mrb[0].mxu0
        %v4705 = vadd.f32 0.0, %v4704
        %v4706 = vpop.f32.mrb[0].mxu0
        %v4707 = vpop.f32.mrb[0].mxu0
        %v4708 = vadd.f32 0.0, %v4707
        %v4709 = vpop.f32.mrb[0].mxu0
        %4710 = vmatprep.mubr.bf16.mxu0 0
        %4711 = vmatmul.mubr.bf16.gmra.mrb[0].mxu0 %v4615
        %v4712 = vpop.f32.mrb[0].mxu0
        %v4713 = vadd.f32 0.0, %v4712
        %v4714 = vpop.f32.mrb[0].mxu0
        %v4715 = vpop.f32.mrb[0].mxu0
        %v4716 = vadd.f32 0.0, %v4715
        %v4717 = vpop.f32.mrb[0].mxu0
        %4718 = vmatprep.mubr.bf16.mxu0 0
        %4719 = vmatmul.mubr.bf16.gmra.mrb[0].mxu0 %v4616
        %v4720 = vpop.f32.mrb[0].mxu0
        %v4721 = vadd.f32 0.0, %v4720
        %v4722 = vpop.f32.mrb[0].mxu0
        %v4723 = vpop.f32.mrb[0].mxu0
        %v4724 = vadd.f32 0.0, %v4723
        %v4725 = vpop.f32.mrb[0].mxu0
        %4726 = vmatprep.mubr.bf16.mxu0 0
        %4727 = vmatmul.mubr.bf16.gmra.mrb[0].mxu0 %v4617
        %v4728 = vpop.f32.mrb[0].mxu0
        %v4729 = vadd.f32 0.0, %v4728
        %v4730 = vpop.f32.mrb[0].mxu0
        %v4731 = vpop.f32.mrb[0].mxu0
        %v4732 = vadd.f32 0.0, %v4731
        %v4733 = vpop.f32.mrb[0].mxu0
        %4734 = vdwg.mxu0
        %v4735 = vadd.f32 %v4565, %v4705
        %v4736 = vadd.f32 %v4566, %v4708
        %v4737 = vadd.f32 %v4567, %v4713
        %v4738 = vadd.f32 %v4568, %v4716
        %v4739 = vadd.f32 %v4569, %v4721
        %v4740 = vadd.f32 %v4570, %v4724
        %v4741 = vadd.f32 %v4571, %v4729
        %v4742 = vadd.f32 %v4572, %v4732
        %v4743 = vld [vmem:[%s2097] sm:$0xf]
        %v4744 = vld [vmem:[%s2097 + $0x4] sm:$0x1]
        %v4745 = vld [vmem:[%s2097 + $0x8] sm:$0xf]
        %v4746 = vld [vmem:[%s2097 + $0xc] sm:$0x1]
        %v4747 = vld [vmem:[%s2097 + $0x10] sm:$0xf]
        %v4748 = vld [vmem:[%s2097 + $0x14] sm:$0x1]
        %v4749 = vld [vmem:[%s2097 + $0x18] sm:$0xf]
        %v4750 = vld [vmem:[%s2097 + $0x1c] sm:$0x1]
        %v4751 = vld [vmem:[%s2097 + $0x20] sm:$0xf]
        %v4752 = vld [vmem:[%s2097 + $0x24] sm:$0x1]
        %v4753 = vld [vmem:[%s2097 + $0x28] sm:$0xf]
        %v4754 = vld [vmem:[%s2097 + $0x2c] sm:$0x1]
        %v4755 = vld [vmem:[%s2097 + $0x30] sm:$0xf]
        %v4756 = vld [vmem:[%s2097 + $0x34] sm:$0x1]
        %v4757 = vld [vmem:[%s2097 + $0x38] sm:$0xf]
        %v4758 = vld [vmem:[%s2097 + $0x3c] sm:$0x1]
        %v4760 = vshrl.u32 %v4743, 16
        %v4762 = vrot.slane %v4760, 4
        %v4763 = vshll.u32 %v4743, 16
        %v4765 = vrot.slane %v4763, 5
        %v4766 = vor.u32 %v4762, %v4765
        %v4767 = vrot.slane %v4766, 4
        %v4769 = vshll.u32 %v4744, 16
        %v4771 = vrot.slane %v4769, 5
        %v4772 = vsel %vm955, %v4767, %v4771
        %v4774 = vshrl.u32 %v4745, 16
        %v4776 = vrot.slane %v4774, 4
        %v4777 = vshll.u32 %v4745, 16
        %v4779 = vrot.slane %v4777, 5
        %v4780 = vor.u32 %v4776, %v4779
        %v4781 = vrot.slane %v4780, 4
        %v4783 = vshll.u32 %v4746, 16
        %v4785 = vrot.slane %v4783, 5
        %v4786 = vsel %vm955, %v4781, %v4785
        %v4788 = vshrl.u32 %v4747, 16
        %v4790 = vrot.slane %v4788, 4
        %v4791 = vshll.u32 %v4747, 16
        %v4793 = vrot.slane %v4791, 5
        %v4794 = vor.u32 %v4790, %v4793
        %v4795 = vrot.slane %v4794, 4
        %v4797 = vshll.u32 %v4748, 16
        %v4799 = vrot.slane %v4797, 5
        %v4800 = vsel %vm955, %v4795, %v4799
        %v4802 = vshrl.u32 %v4749, 16
        %v4804 = vrot.slane %v4802, 4
        %v4805 = vshll.u32 %v4749, 16
        %v4807 = vrot.slane %v4805, 5
        %v4808 = vor.u32 %v4804, %v4807
        %v4809 = vrot.slane %v4808, 4
        %v4811 = vshll.u32 %v4750, 16
        %v4813 = vrot.slane %v4811, 5
        %v4814 = vsel %vm955, %v4809, %v4813
        %v4816 = vshrl.u32 %v4751, 16
        %v4818 = vrot.slane %v4816, 4
        %v4819 = vshll.u32 %v4751, 16
        %v4821 = vrot.slane %v4819, 5
        %v4822 = vor.u32 %v4818, %v4821
        %v4823 = vrot.slane %v4822, 4
        %v4825 = vshll.u32 %v4752, 16
        %v4827 = vrot.slane %v4825, 5
        %v4828 = vsel %vm955, %v4823, %v4827
        %v4830 = vshrl.u32 %v4753, 16
        %v4832 = vrot.slane %v4830, 4
        %v4833 = vshll.u32 %v4753, 16
        %v4835 = vrot.slane %v4833, 5
        %v4836 = vor.u32 %v4832, %v4835
        %v4837 = vrot.slane %v4836, 4
        %v4839 = vshll.u32 %v4754, 16
        %v4841 = vrot.slane %v4839, 5
        %v4842 = vsel %vm955, %v4837, %v4841
        %v4844 = vshrl.u32 %v4755, 16
        %v4846 = vrot.slane %v4844, 4
        %v4847 = vshll.u32 %v4755, 16
        %v4849 = vrot.slane %v4847, 5
        %v4850 = vor.u32 %v4846, %v4849
        %v4851 = vrot.slane %v4850, 4
        %v4853 = vshll.u32 %v4756, 16
        %v4855 = vrot.slane %v4853, 5
        %v4856 = vsel %vm955, %v4851, %v4855
        %v4858 = vshrl.u32 %v4757, 16
        %v4860 = vrot.slane %v4858, 4
        %v4861 = vshll.u32 %v4757, 16
        %v4863 = vrot.slane %v4861, 5
        %v4864 = vor.u32 %v4860, %v4863
        %v4865 = vrot.slane %v4864, 4
        %v4867 = vshll.u32 %v4758, 16
        %v4869 = vrot.slane %v4867, 5
        %v4870 = vsel %vm955, %v4865, %v4869
        %s4871 = scalar_lea.vmem [#allocation6], 1024
        %v4872 = vld [vmem:[%s4871] sm:$0xf]
        %v4873 = vld [vmem:[%s4871 + $0x4] sm:$0xf]
        %v4874 = vld [vmem:[%s4871 + $0x8] sm:$0xf]
        %v4875 = vld [vmem:[%s4871 + $0xc] sm:$0xf]
        %v4876 = vld [vmem:[%s4871 + $0x10] sm:$0xf]
        %v4877 = vld [vmem:[%s4871 + $0x14] sm:$0xf]
        %v4878 = vld [vmem:[%s4871 + $0x18] sm:$0xf]
        %v4879 = vld [vmem:[%s4871 + $0x1c] sm:$0xf]
        %v4880 = vld [vmem:[%s4871 + $0x20] sm:$0xf]
        %v4881 = vld [vmem:[%s4871 + $0x24] sm:$0xf]
        %v4882 = vld [vmem:[%s4871 + $0x28] sm:$0xf]
        %v4883 = vld [vmem:[%s4871 + $0x2c] sm:$0xf]
        %v4884 = vld [vmem:[%s4871 + $0x30] sm:$0xf]
        %v4885 = vld [vmem:[%s4871 + $0x34] sm:$0xf]
        %v4886 = vld [vmem:[%s4871 + $0x38] sm:$0xf]
        %v4887 = vld [vmem:[%s4871 + $0x3c] sm:$0xf]
        %v4888 = vunpack.c.l.b16 %v4772
        %v4889 = vunpack.c.l.b16 %v4786
        %v4890 = vunpack.c.l.b16 %v4800
        %v4891 = vunpack.c.l.b16 %v4814
        %v4892 = vunpack.c.l.b16 %v4828
        %v4893 = vunpack.c.l.b16 %v4842
        %v4894 = vunpack.c.l.b16 %v4856
        %v4895 = vunpack.c.l.b16 %v4870
        %v4896 = vpack.c.b16 %v4889, %v4888
        %v4897 = vpack.c.b16 %v4891, %v4890
        %v4898 = vpack.c.b16 %v4893, %v4892
        %v4899 = vpack.c.b16 %v4895, %v4894
        %v4920 = vunpack.c.l.b16 %v4872
        %v4921 = vunpack.c.l.b16 %v4873
        %v4922 = vunpack.c.l.b16 %v4874
        %v4923 = vunpack.c.l.b16 %v4875
        %v4924 = vunpack.c.l.b16 %v4876
        %v4925 = vunpack.c.l.b16 %v4877
        %v4926 = vunpack.c.l.b16 %v4878
        %v4927 = vunpack.c.l.b16 %v4879
        %v4928 = vunpack.c.l.b16 %v4880
        %v4929 = vunpack.c.l.b16 %v4881
        %v4930 = vunpack.c.l.b16 %v4882
        %v4931 = vunpack.c.l.b16 %v4883
        %v4932 = vunpack.c.l.b16 %v4884
        %v4933 = vunpack.c.l.b16 %v4885
        %v4934 = vunpack.c.l.b16 %v4886
        %v4935 = vunpack.c.l.b16 %v4887
        %v4936 = vpack.c.b16 %v4921, %v4920
        %v4937 = vpack.c.b16 %v4923, %v4922
        %v4938 = vpack.c.b16 %v4925, %v4924
        %v4939 = vpack.c.b16 %v4927, %v4926
        %v4940 = vpack.c.b16 %v4929, %v4928
        %v4941 = vpack.c.b16 %v4931, %v4930
        %v4942 = vpack.c.b16 %v4933, %v4932
        %v4943 = vpack.c.b16 %v4935, %v4934
        %4952 = vmatprep.subr.bf16.mxu0 0
        %4953 = vmatpush1.bf16.msra.mxu0 %v4936
        %4954 = vmatprep.subr.bf16.mxu0 0
        %4955 = vmatpush1.bf16.msra.mxu0 %v4937
        %4956 = vmatprep.subr.bf16.mxu0 0
        %4957 = vmatpush1.bf16.msra.mxu0 %v4938
        %4958 = vmatprep.subr.bf16.mxu0 0
        %4959 = vmatpush1.bf16.msra.mxu0 %v4939
        %4960 = vmatprep.subr.bf16.mxu0 0
        %4961 = vmatpush1.bf16.msra.mxu0 %v4940
        %4962 = vmatprep.subr.bf16.mxu0 0
        %4963 = vmatpush1.bf16.msra.mxu0 %v4941
        %4964 = vmatprep.subr.bf16.mxu0 0
        %4965 = vmatpush1.bf16.msra.mxu0 %v4942
        %4966 = vmatprep.subr.bf16.mxu0 0
        %4967 = vmatpush1.bf16.msra.mxu0 %v4943
        %4968 = vmatprep.subr.bf16.mxu0 0
        %4969 = vmatpush1.bf16.msra.mxu0 0
        %4970 = vmatprep.subr.bf16.mxu0 0
        %4971 = vmatpush1.bf16.msra.mxu0 0
        %4972 = vmatprep.subr.bf16.mxu0 0
        %4973 = vmatpush1.bf16.msra.mxu0 0
        %4974 = vmatprep.subr.bf16.mxu0 0
        %4975 = vmatpush1.bf16.msra.mxu0 0
        %4976 = vmatprep.subr.bf16.mxu0 0
        %4977 = vmatpush1.bf16.msra.mxu0 0
        %4978 = vmatprep.subr.bf16.mxu0 0
        %4979 = vmatpush1.bf16.msra.mxu0 0
        %4980 = vmatprep.subr.bf16.mxu0 0
        %4981 = vmatpush1.bf16.msra.mxu0 0
        %4982 = vmatprep.subr.bf16.mxu0 0
        %4983 = vmatpush1.bf16.msra.mxu0 0
        %4984 = vmatprep.mubr.bf16.mxu0 0
        %4985 = vmatmul.mubr.bf16.gmra.mrb[0].mxu0 %v4896
        %v4986 = vpop.f32.mrb[0].mxu0
        %v4987 = vadd.f32 0.0, %v4986
        %v4988 = vpop.f32.mrb[0].mxu0
        %v4989 = vpop.f32.mrb[0].mxu0
        %v4990 = vadd.f32 0.0, %v4989
        %v4991 = vpop.f32.mrb[0].mxu0
        %4992 = vmatprep.mubr.bf16.mxu0 0
        %4993 = vmatmul.mubr.bf16.gmra.mrb[0].mxu0 %v4897
        %v4994 = vpop.f32.mrb[0].mxu0
        %v4995 = vadd.f32 0.0, %v4994
        %v4996 = vpop.f32.mrb[0].mxu0
        %v4997 = vpop.f32.mrb[0].mxu0
        %v4998 = vadd.f32 0.0, %v4997
        %v4999 = vpop.f32.mrb[0].mxu0
        %5000 = vmatprep.mubr.bf16.mxu0 0
        %5001 = vmatmul.mubr.bf16.gmra.mrb[0].mxu0 %v4898
        %v5002 = vpop.f32.mrb[0].mxu0
        %v5003 = vadd.f32 0.0, %v5002
        %v5004 = vpop.f32.mrb[0].mxu0
        %v5005 = vpop.f32.mrb[0].mxu0
        %v5006 = vadd.f32 0.0, %v5005
        %v5007 = vpop.f32.mrb[0].mxu0
        %5008 = vmatprep.mubr.bf16.mxu0 0
        %5009 = vmatmul.mubr.bf16.gmra.mrb[0].mxu0 %v4899
        %v5010 = vpop.f32.mrb[0].mxu0
        %v5011 = vadd.f32 0.0, %v5010
        %v5012 = vpop.f32.mrb[0].mxu0
        %v5013 = vpop.f32.mrb[0].mxu0
        %v5014 = vadd.f32 0.0, %v5013
        %v5015 = vpop.f32.mrb[0].mxu0
        %5016 = vdwg.mxu0
        %v5017 = vadd.f32 %v4735, %v4987
        %v5018 = vadd.f32 %v4736, %v4990
        %v5019 = vadd.f32 %v4737, %v4995
        %v5020 = vadd.f32 %v4738, %v4998
        %v5021 = vadd.f32 %v4739, %v5003
        %v5022 = vadd.f32 %v4740, %v5006
        %v5023 = vadd.f32 %v4741, %v5011
        %v5024 = vadd.f32 %v4742, %v5014
        %v5025 = vld [vmem:[%s2097] sm:$0xe]
        %v5026 = vld [vmem:[%s2097 + $0x8] sm:$0xe]
        %v5027 = vld [vmem:[%s2097 + $0x10] sm:$0xe]
        %v5028 = vld [vmem:[%s2097 + $0x18] sm:$0xe]
        %v5029 = vld [vmem:[%s2097 + $0x20] sm:$0xe]
        %v5030 = vld [vmem:[%s2097 + $0x28] sm:$0xe]
        %v5031 = vld [vmem:[%s2097 + $0x30] sm:$0xe]
        %v5032 = vld [vmem:[%s2097 + $0x38] sm:$0xe]
        %v5049 = vrot.slane %v5025, 5
        %v5050 = vrot.slane %v5049, 4
        %v5051 = vrot.slane %v4744, 5
        %v5052 = vsel %vm1248, %v5050, %v5051
        %v5053 = vrot.slane %v5026, 5
        %v5054 = vrot.slane %v5053, 4
        %v5055 = vrot.slane %v4746, 5
        %v5056 = vsel %vm1248, %v5054, %v5055
        %v5057 = vrot.slane %v5027, 5
        %v5058 = vrot.slane %v5057, 4
        %v5059 = vrot.slane %v4748, 5
        %v5060 = vsel %vm1248, %v5058, %v5059
        %v5061 = vrot.slane %v5028, 5
        %v5062 = vrot.slane %v5061, 4
        %v5063 = vrot.slane %v4750, 5
        %v5064 = vsel %vm1248, %v5062, %v5063
        %v5065 = vrot.slane %v5029, 5
        %v5066 = vrot.slane %v5065, 4
        %v5067 = vrot.slane %v4752, 5
        %v5068 = vsel %vm1248, %v5066, %v5067
        %v5069 = vrot.slane %v5030, 5
        %v5070 = vrot.slane %v5069, 4
        %v5071 = vrot.slane %v4754, 5
        %v5072 = vsel %vm1248, %v5070, %v5071
        %v5073 = vrot.slane %v5031, 5
        %v5074 = vrot.slane %v5073, 4
        %v5075 = vrot.slane %v4756, 5
        %v5076 = vsel %vm1248, %v5074, %v5075
        %v5077 = vrot.slane %v5032, 5
        %v5078 = vrot.slane %v5077, 4
        %v5079 = vrot.slane %v4758, 5
        %v5080 = vsel %vm1248, %v5078, %v5079
        %s5081 = scalar_lea.vmem [#allocation6], 1088
        %v5082 = vld [vmem:[%s5081] sm:$0xf]
        %v5083 = vld [vmem:[%s5081 + $0x4] sm:$0xf]
        %v5084 = vld [vmem:[%s5081 + $0x8] sm:$0xf]
        %v5085 = vld [vmem:[%s5081 + $0xc] sm:$0xf]
        %v5086 = vld [vmem:[%s5081 + $0x10] sm:$0xf]
        %v5087 = vld [vmem:[%s5081 + $0x14] sm:$0xf]
        %v5088 = vld [vmem:[%s5081 + $0x18] sm:$0xf]
        %v5089 = vld [vmem:[%s5081 + $0x1c] sm:$0xf]
        %v5090 = vld [vmem:[%s5081 + $0x20] sm:$0xf]
        %v5091 = vld [vmem:[%s5081 + $0x24] sm:$0xf]
        %v5092 = vld [vmem:[%s5081 + $0x28] sm:$0xf]
        %v5093 = vld [vmem:[%s5081 + $0x2c] sm:$0xf]
        %v5094 = vld [vmem:[%s5081 + $0x30] sm:$0xf]
        %v5095 = vld [vmem:[%s5081 + $0x34] sm:$0xf]
        %v5096 = vld [vmem:[%s5081 + $0x38] sm:$0xf]
        %v5097 = vld [vmem:[%s5081 + $0x3c] sm:$0xf]
        %v5098 = vunpack.c.l.b16 %v5052
        %v5099 = vunpack.c.l.b16 %v5056
        %v5100 = vunpack.c.l.b16 %v5060
        %v5101 = vunpack.c.l.b16 %v5064
        %v5102 = vunpack.c.l.b16 %v5068
        %v5103 = vunpack.c.l.b16 %v5072
        %v5104 = vunpack.c.l.b16 %v5076
        %v5105 = vunpack.c.l.b16 %v5080
        %v5106 = vpack.c.b16 %v5099, %v5098
        %v5107 = vpack.c.b16 %v5101, %v5100
        %v5108 = vpack.c.b16 %v5103, %v5102
        %v5109 = vpack.c.b16 %v5105, %v5104
        %v5130 = vunpack.c.l.b16 %v5082
        %v5131 = vunpack.c.l.b16 %v5083
        %v5132 = vunpack.c.l.b16 %v5084
        %v5133 = vunpack.c.l.b16 %v5085
        %v5134 = vunpack.c.l.b16 %v5086
        %v5135 = vunpack.c.l.b16 %v5087
        %v5136 = vunpack.c.l.b16 %v5088
        %v5137 = vunpack.c.l.b16 %v5089
        %v5138 = vunpack.c.l.b16 %v5090
        %v5139 = vunpack.c.l.b16 %v5091
        %v5140 = vunpack.c.l.b16 %v5092
        %v5141 = vunpack.c.l.b16 %v5093
        %v5142 = vunpack.c.l.b16 %v5094
        %v5143 = vunpack.c.l.b16 %v5095
        %v5144 = vunpack.c.l.b16 %v5096
        %v5145 = vunpack.c.l.b16 %v5097
        %v5146 = vpack.c.b16 %v5131, %v5130
        %v5147 = vpack.c.b16 %v5133, %v5132
        %v5148 = vpack.c.b16 %v5135, %v5134
        %v5149 = vpack.c.b16 %v5137, %v5136
        %v5150 = vpack.c.b16 %v5139, %v5138
        %v5151 = vpack.c.b16 %v5141, %v5140
        %v5152 = vpack.c.b16 %v5143, %v5142
        %v5153 = vpack.c.b16 %v5145, %v5144
        %5162 = vmatprep.subr.bf16.mxu0 0
        %5163 = vmatpush1.bf16.msra.mxu0 %v5146
        %5164 = vmatprep.subr.bf16.mxu0 0
        %5165 = vmatpush1.bf16.msra.mxu0 %v5147
        %5166 = vmatprep.subr.bf16.mxu0 0
        %5167 = vmatpush1.bf16.msra.mxu0 %v5148
        %5168 = vmatprep.subr.bf16.mxu0 0
        %5169 = vmatpush1.bf16.msra.mxu0 %v5149
        %5170 = vmatprep.subr.bf16.mxu0 0
        %5171 = vmatpush1.bf16.msra.mxu0 %v5150
        %5172 = vmatprep.subr.bf16.mxu0 0
        %5173 = vmatpush1.bf16.msra.mxu0 %v5151
        %5174 = vmatprep.subr.bf16.mxu0 0
        %5175 = vmatpush1.bf16.msra.mxu0 %v5152
        %5176 = vmatprep.subr.bf16.mxu0 0
        %5177 = vmatpush1.bf16.msra.mxu0 %v5153
        %5178 = vmatprep.subr.bf16.mxu0 0
        %5179 = vmatpush1.bf16.msra.mxu0 0
        %5180 = vmatprep.subr.bf16.mxu0 0
        %5181 = vmatpush1.bf16.msra.mxu0 0
        %5182 = vmatprep.subr.bf16.mxu0 0
        %5183 = vmatpush1.bf16.msra.mxu0 0
        %5184 = vmatprep.subr.bf16.mxu0 0
        %5185 = vmatpush1.bf16.msra.mxu0 0
        %5186 = vmatprep.subr.bf16.mxu0 0
        %5187 = vmatpush1.bf16.msra.mxu0 0
        %5188 = vmatprep.subr.bf16.mxu0 0
        %5189 = vmatpush1.bf16.msra.mxu0 0
        %5190 = vmatprep.subr.bf16.mxu0 0
        %5191 = vmatpush1.bf16.msra.mxu0 0
        %5192 = vmatprep.subr.bf16.mxu0 0
        %5193 = vmatpush1.bf16.msra.mxu0 0
        %5194 = vmatprep.mubr.bf16.mxu0 0
        %5195 = vmatmul.mubr.bf16.gmra.mrb[0].mxu0 %v5106
        %v5196 = vpop.f32.mrb[0].mxu0
        %v5197 = vadd.f32 0.0, %v5196
        %v5198 = vpop.f32.mrb[0].mxu0
        %v5199 = vpop.f32.mrb[0].mxu0
        %v5200 = vadd.f32 0.0, %v5199
        %v5201 = vpop.f32.mrb[0].mxu0
        %5202 = vmatprep.mubr.bf16.mxu0 0
        %5203 = vmatmul.mubr.bf16.gmra.mrb[0].mxu0 %v5107
        %v5204 = vpop.f32.mrb[0].mxu0
        %v5205 = vadd.f32 0.0, %v5204
        %v5206 = vpop.f32.mrb[0].mxu0
        %v5207 = vpop.f32.mrb[0].mxu0
        %v5208 = vadd.f32 0.0, %v5207
        %v5209 = vpop.f32.mrb[0].mxu0
        %5210 = vmatprep.mubr.bf16.mxu0 0
        %5211 = vmatmul.mubr.bf16.gmra.mrb[0].mxu0 %v5108
        %v5212 = vpop.f32.mrb[0].mxu0
        %v5213 = vadd.f32 0.0, %v5212
        %v5214 = vpop.f32.mrb[0].mxu0
        %v5215 = vpop.f32.mrb[0].mxu0
        %v5216 = vadd.f32 0.0, %v5215
        %v5217 = vpop.f32.mrb[0].mxu0
        %5218 = vmatprep.mubr.bf16.mxu0 0
        %5219 = vmatmul.mubr.bf16.gmra.mrb[0].mxu0 %v5109
        %v5220 = vpop.f32.mrb[0].mxu0
        %v5221 = vadd.f32 0.0, %v5220
        %v5222 = vpop.f32.mrb[0].mxu0
        %v5223 = vpop.f32.mrb[0].mxu0
        %v5224 = vadd.f32 0.0, %v5223
        %v5225 = vpop.f32.mrb[0].mxu0
        %5226 = vdwg.mxu0
        %v5227 = vadd.f32 %v5017, %v5197
        %v5228 = vadd.f32 %v5018, %v5200
        %v5229 = vadd.f32 %v5019, %v5205
        %v5230 = vadd.f32 %v5020, %v5208
        %v5231 = vadd.f32 %v5021, %v5213
        %v5232 = vadd.f32 %v5022, %v5216
        %v5233 = vadd.f32 %v5023, %v5221
        %v5234 = vadd.f32 %v5024, %v5224
        %v5235 = vmax.f32 %v5227, 0.0
        %v5236 = vmax.f32 %v5228, 0.0
        %v5237 = vmax.f32 %v5229, 0.0
        %v5238 = vmax.f32 %v5230, 0.0
        %v5239 = vmax.f32 %v5231, 0.0
        %v5240 = vmax.f32 %v5232, 0.0
        %v5241 = vmax.f32 %v5233, 0.0
        %v5242 = vmax.f32 %v5234, 0.0
        %v5243 = vpack.c.bf16 %v5236, %v5235
        %v5244 = vpack.c.bf16 %v5238, %v5237
        %v5245 = vpack.c.bf16 %v5240, %v5239
        %v5246 = vpack.c.bf16 %v5242, %v5241
        %s5247 = scalar_lea.vmem %s5, 64
        %v5248 = vld [vmem:[%s5247] sm:$0xf]
        %v5249 = vld [vmem:[%s5247 + $0x4] sm:$0xf]
        %v5250 = vld [vmem:[%s5247 + $0x8] sm:$0xf]
        %v5251 = vld [vmem:[%s5247 + $0xc] sm:$0xf]
        %v5252 = vld [vmem:[%s5247 + $0x10] sm:$0xf]
        %v5253 = vld [vmem:[%s5247 + $0x14] sm:$0xf]
        %v5254 = vld [vmem:[%s5247 + $0x18] sm:$0xf]
        %v5255 = vld [vmem:[%s5247 + $0x1c] sm:$0xf]
        %v5256 = vld [vmem:[%s5247 + $0x20] sm:$0xf]
        %v5257 = vld [vmem:[%s5247 + $0x24] sm:$0xf]
        %v5258 = vld [vmem:[%s5247 + $0x28] sm:$0xf]
        %v5259 = vld [vmem:[%s5247 + $0x2c] sm:$0xf]
        %v5260 = vld [vmem:[%s5247 + $0x30] sm:$0xf]
        %v5261 = vld [vmem:[%s5247 + $0x34] sm:$0xf]
        %v5262 = vld [vmem:[%s5247 + $0x38] sm:$0xf]
        %v5263 = vld [vmem:[%s5247 + $0x3c] sm:$0xf]
        %s5264 = scalar_lea.vmem %s6, 1
        %v5265 = vld [vmem:[%s5264] sm:$0x1]
        %v5267 = vlaneseq
        %v5268 = vshrl.u32 %v5267, 7
        %v5269 = vsub.s32 0, %v5268
        %v5270 = vrot.slane %v5265, %v5269
        %v5288 = vunpack.c.l.b16 %v5248
        %v5289 = vunpack.c.l.b16 %v5249
        %v5290 = vunpack.c.l.b16 %v5250
        %v5291 = vunpack.c.l.b16 %v5251
        %v5292 = vunpack.c.l.b16 %v5252
        %v5293 = vunpack.c.l.b16 %v5253
        %v5294 = vunpack.c.l.b16 %v5254
        %v5295 = vunpack.c.l.b16 %v5255
        %v5296 = vunpack.c.l.b16 %v5256
        %v5297 = vunpack.c.l.b16 %v5257
        %v5298 = vunpack.c.l.b16 %v5258
        %v5299 = vunpack.c.l.b16 %v5259
        %v5300 = vunpack.c.l.b16 %v5260
        %v5301 = vunpack.c.l.b16 %v5261
        %v5302 = vunpack.c.l.b16 %v5262
        %v5303 = vunpack.c.l.b16 %v5263
        %v5304 = vpack.c.b16 %v5289, %v5288
        %v5305 = vpack.c.b16 %v5291, %v5290
        %v5306 = vpack.c.b16 %v5293, %v5292
        %v5307 = vpack.c.b16 %v5295, %v5294
        %v5308 = vpack.c.b16 %v5297, %v5296
        %v5309 = vpack.c.b16 %v5299, %v5298
        %v5310 = vpack.c.b16 %v5301, %v5300
        %v5311 = vpack.c.b16 %v5303, %v5302
        %5320 = vmatprep.subr.bf16.mxu0 0
        %5321 = vmatpush1.bf16.msra.mxu0 %v5304
        %5322 = vmatprep.subr.bf16.mxu0 0
        %5323 = vmatpush1.bf16.msra.mxu0 %v5305
        %5324 = vmatprep.subr.bf16.mxu0 0
        %5325 = vmatpush1.bf16.msra.mxu0 %v5306
        %5326 = vmatprep.subr.bf16.mxu0 0
        %5327 = vmatpush1.bf16.msra.mxu0 %v5307
        %5328 = vmatprep.subr.bf16.mxu0 0
        %5329 = vmatpush1.bf16.msra.mxu0 %v5308
        %5330 = vmatprep.subr.bf16.mxu0 0
        %5331 = vmatpush1.bf16.msra.mxu0 %v5309
        %5332 = vmatprep.subr.bf16.mxu0 0
        %5333 = vmatpush1.bf16.msra.mxu0 %v5310
        %5334 = vmatprep.subr.bf16.mxu0 0
        %5335 = vmatpush1.bf16.msra.mxu0 %v5311
        %5336 = vmatprep.subr.bf16.mxu0 0
        %5337 = vmatpush1.bf16.msra.mxu0 0
        %5338 = vmatprep.subr.bf16.mxu0 0
        %5339 = vmatpush1.bf16.msra.mxu0 0
        %5340 = vmatprep.subr.bf16.mxu0 0
        %5341 = vmatpush1.bf16.msra.mxu0 0
        %5342 = vmatprep.subr.bf16.mxu0 0
        %5343 = vmatpush1.bf16.msra.mxu0 0
        %5344 = vmatprep.subr.bf16.mxu0 0
        %5345 = vmatpush1.bf16.msra.mxu0 0
        %5346 = vmatprep.subr.bf16.mxu0 0
        %5347 = vmatpush1.bf16.msra.mxu0 0
        %5348 = vmatprep.subr.bf16.mxu0 0
        %5349 = vmatpush1.bf16.msra.mxu0 0
        %5350 = vmatprep.subr.bf16.mxu0 0
        %5351 = vmatpush1.bf16.msra.mxu0 0
        %5352 = vmatprep.mubr.bf16.mxu0 0
        %5353 = vmatmul.mubr.bf16.gmra.mrb[0].mxu0 %v5243
        %v5354 = vpop.f32.mrb[0].mxu0
        %v5355 = vadd.f32 %v5270, %v5354
        %v5356 = vpop.f32.mrb[0].mxu0
        %v5357 = vpop.f32.mrb[0].mxu0
        %v5358 = vadd.f32 %v5270, %v5357
        %v5359 = vpop.f32.mrb[0].mxu0
        %5360 = vmatprep.mubr.bf16.mxu0 0
        %5361 = vmatmul.mubr.bf16.gmra.mrb[0].mxu0 %v5244
        %v5362 = vpop.f32.mrb[0].mxu0
        %v5363 = vadd.f32 %v5270, %v5362
        %v5364 = vpop.f32.mrb[0].mxu0
        %v5365 = vpop.f32.mrb[0].mxu0
        %v5366 = vadd.f32 %v5270, %v5365
        %v5367 = vpop.f32.mrb[0].mxu0
        %5368 = vmatprep.mubr.bf16.mxu0 0
        %5369 = vmatmul.mubr.bf16.gmra.mrb[0].mxu0 %v5245
        %v5370 = vpop.f32.mrb[0].mxu0
        %v5371 = vadd.f32 %v5270, %v5370
        %v5372 = vpop.f32.mrb[0].mxu0
        %v5373 = vpop.f32.mrb[0].mxu0
        %v5374 = vadd.f32 %v5270, %v5373
        %v5375 = vpop.f32.mrb[0].mxu0
        %5376 = vmatprep.mubr.bf16.mxu0 0
        %5377 = vmatmul.mubr.bf16.gmra.mrb[0].mxu0 %v5246
        %v5378 = vpop.f32.mrb[0].mxu0
        %v5379 = vadd.f32 %v5270, %v5378
        %v5380 = vpop.f32.mrb[0].mxu0
        %v5381 = vpop.f32.mrb[0].mxu0
        %v5382 = vadd.f32 %v5270, %v5381
        %v5383 = vpop.f32.mrb[0].mxu0
        %5384 = vdwg.mxu0
        %v5385 = vunpack.c.l.bf16 %v2932
        %v5386 = vunpack.c.h.bf16 %v2932
        %v5387 = vunpack.c.l.bf16 %v2933
        %v5388 = vunpack.c.h.bf16 %v2933
        %v5389 = vunpack.c.l.bf16 %v2934
        %v5390 = vunpack.c.h.bf16 %v2934
        %v5391 = vunpack.c.l.bf16 %v2935
        %v5392 = vunpack.c.h.bf16 %v2935
        %v5393 = vadd.f32 %v5355, %v5385
        %v5394 = vadd.f32 %v5358, %v5386
        %v5395 = vadd.f32 %v5363, %v5387
        %v5396 = vadd.f32 %v5366, %v5388
        %v5397 = vadd.f32 %v5371, %v5389
        %v5398 = vadd.f32 %v5374, %v5390
        %v5399 = vadd.f32 %v5379, %v5391
        %v5400 = vadd.f32 %v5382, %v5392
        %v5401 = vmax.f32 %v5393, 0.0
        %v5402 = vmax.f32 %v5394, 0.0
        %v5403 = vmax.f32 %v5395, 0.0
        %v5404 = vmax.f32 %v5396, 0.0
        %v5405 = vmax.f32 %v5397, 0.0
        %v5406 = vmax.f32 %v5398, 0.0
        %v5407 = vmax.f32 %v5399, 0.0
        %v5408 = vmax.f32 %v5400, 0.0
        %v5409 = vpack.c.bf16 %v5402, %v5401
        %v5410 = vpack.c.bf16 %v5404, %v5403
        %v5411 = vpack.c.bf16 %v5406, %v5405
        %v5412 = vpack.c.bf16 %v5408, %v5407
        %s5413 = scalar_lea.vmem [#allocation4], 128
        %v5414 = vld [vmem:[%s5413] sm:$0xf]
        %v5415 = vld [vmem:[%s5413 + $0x4] sm:$0xf]
        %v5416 = vld [vmem:[%s5413 + $0x8] sm:$0xf]
        %v5417 = vld [vmem:[%s5413 + $0xc] sm:$0xf]
        %v5418 = vld [vmem:[%s5413 + $0x10] sm:$0xf]
        %v5419 = vld [vmem:[%s5413 + $0x14] sm:$0xf]
        %v5420 = vld [vmem:[%s5413 + $0x18] sm:$0xf]
        %v5421 = vld [vmem:[%s5413 + $0x1c] sm:$0xf]
        %v5422 = vld [vmem:[%s5413 + $0x20] sm:$0xf]
        %v5423 = vld [vmem:[%s5413 + $0x24] sm:$0xf]
        %v5424 = vld [vmem:[%s5413 + $0x28] sm:$0xf]
        %v5425 = vld [vmem:[%s5413 + $0x2c] sm:$0xf]
        %v5426 = vld [vmem:[%s5413 + $0x30] sm:$0xf]
        %v5427 = vld [vmem:[%s5413 + $0x34] sm:$0xf]
        %v5428 = vld [vmem:[%s5413 + $0x38] sm:$0xf]
        %v5429 = vld [vmem:[%s5413 + $0x3c] sm:$0xf]
        %s5430 = scalar_lea.vmem %s2, 2
        %v5431 = vld [vmem:[%s5430] sm:$0x1]
        %v5433 = vlaneseq
        %v5434 = vshrl.u32 %v5433, 7
        %v5435 = vsub.s32 0, %v5434
        %v5436 = vrot.slane %v5431, %v5435
        %v5454 = vunpack.c.l.b16 %v5414
        %v5455 = vunpack.c.l.b16 %v5415
        %v5456 = vunpack.c.l.b16 %v5416
        %v5457 = vunpack.c.l.b16 %v5417
        %v5458 = vunpack.c.l.b16 %v5418
        %v5459 = vunpack.c.l.b16 %v5419
        %v5460 = vunpack.c.l.b16 %v5420
        %v5461 = vunpack.c.l.b16 %v5421
        %v5462 = vunpack.c.l.b16 %v5422
        %v5463 = vunpack.c.l.b16 %v5423
        %v5464 = vunpack.c.l.b16 %v5424
        %v5465 = vunpack.c.l.b16 %v5425
        %v5466 = vunpack.c.l.b16 %v5426
        %v5467 = vunpack.c.l.b16 %v5427
        %v5468 = vunpack.c.l.b16 %v5428
        %v5469 = vunpack.c.l.b16 %v5429
        %v5470 = vpack.c.b16 %v5455, %v5454
        %v5471 = vpack.c.b16 %v5457, %v5456
        %v5472 = vpack.c.b16 %v5459, %v5458
        %v5473 = vpack.c.b16 %v5461, %v5460
        %v5474 = vpack.c.b16 %v5463, %v5462
        %v5475 = vpack.c.b16 %v5465, %v5464
        %v5476 = vpack.c.b16 %v5467, %v5466
        %v5477 = vpack.c.b16 %v5469, %v5468
        %5486 = vmatprep.subr.bf16.mxu0 0
        %5487 = vmatpush1.bf16.msra.mxu0 %v5470
        %5488 = vmatprep.subr.bf16.mxu0 0
        %5489 = vmatpush1.bf16.msra.mxu0 %v5471
        %5490 = vmatprep.subr.bf16.mxu0 0
        %5491 = vmatpush1.bf16.msra.mxu0 %v5472
        %5492 = vmatprep.subr.bf16.mxu0 0
        %5493 = vmatpush1.bf16.msra.mxu0 %v5473
        %5494 = vmatprep.subr.bf16.mxu0 0
        %5495 = vmatpush1.bf16.msra.mxu0 %v5474
        %5496 = vmatprep.subr.bf16.mxu0 0
        %5497 = vmatpush1.bf16.msra.mxu0 %v5475
        %5498 = vmatprep.subr.bf16.mxu0 0
        %5499 = vmatpush1.bf16.msra.mxu0 %v5476
        %5500 = vmatprep.subr.bf16.mxu0 0
        %5501 = vmatpush1.bf16.msra.mxu0 %v5477
        %5502 = vmatprep.subr.bf16.mxu0 0
        %5503 = vmatpush1.bf16.msra.mxu0 0
        %5504 = vmatprep.subr.bf16.mxu0 0
        %5505 = vmatpush1.bf16.msra.mxu0 0
        %5506 = vmatprep.subr.bf16.mxu0 0
        %5507 = vmatpush1.bf16.msra.mxu0 0
        %5508 = vmatprep.subr.bf16.mxu0 0
        %5509 = vmatpush1.bf16.msra.mxu0 0
        %5510 = vmatprep.subr.bf16.mxu0 0
        %5511 = vmatpush1.bf16.msra.mxu0 0
        %5512 = vmatprep.subr.bf16.mxu0 0
        %5513 = vmatpush1.bf16.msra.mxu0 0
        %5514 = vmatprep.subr.bf16.mxu0 0
        %5515 = vmatpush1.bf16.msra.mxu0 0
        %5516 = vmatprep.subr.bf16.mxu0 0
        %5517 = vmatpush1.bf16.msra.mxu0 0
        %5518 = vmatprep.mubr.bf16.mxu0 0
        %5519 = vmatmul.mubr.bf16.gmra.mrb[0].mxu0 %v5409
        %v5520 = vpop.f32.mrb[0].mxu0
        %v5521 = vadd.f32 %v5436, %v5520
        %v5522 = vpop.f32.mrb[0].mxu0
        %v5523 = vpop.f32.mrb[0].mxu0
        %v5524 = vadd.f32 %v5436, %v5523
        %v5525 = vpop.f32.mrb[0].mxu0
        %5526 = vmatprep.mubr.bf16.mxu0 0
        %5527 = vmatmul.mubr.bf16.gmra.mrb[0].mxu0 %v5410
        %v5528 = vpop.f32.mrb[0].mxu0
        %v5529 = vadd.f32 %v5436, %v5528
        %v5530 = vpop.f32.mrb[0].mxu0
        %v5531 = vpop.f32.mrb[0].mxu0
        %v5532 = vadd.f32 %v5436, %v5531
        %v5533 = vpop.f32.mrb[0].mxu0
        %5534 = vmatprep.mubr.bf16.mxu0 0
        %5535 = vmatmul.mubr.bf16.gmra.mrb[0].mxu0 %v5411
        %v5536 = vpop.f32.mrb[0].mxu0
        %v5537 = vadd.f32 %v5436, %v5536
        %v5538 = vpop.f32.mrb[0].mxu0
        %v5539 = vpop.f32.mrb[0].mxu0
        %v5540 = vadd.f32 %v5436, %v5539
        %v5541 = vpop.f32.mrb[0].mxu0
        %5542 = vmatprep.mubr.bf16.mxu0 0
        %5543 = vmatmul.mubr.bf16.gmra.mrb[0].mxu0 %v5412
        %v5544 = vpop.f32.mrb[0].mxu0
        %v5545 = vadd.f32 %v5436, %v5544
        %v5546 = vpop.f32.mrb[0].mxu0
        %v5547 = vpop.f32.mrb[0].mxu0
        %v5548 = vadd.f32 %v5436, %v5547
        %v5549 = vpop.f32.mrb[0].mxu0
        %5550 = vdwg.mxu0
        %v5551 = vmax.f32 %v5521, 0.0
        %v5552 = vmax.f32 %v5524, 0.0
        %v5553 = vmax.f32 %v5529, 0.0
        %v5554 = vmax.f32 %v5532, 0.0
        %v5555 = vmax.f32 %v5537, 0.0
        %v5556 = vmax.f32 %v5540, 0.0
        %v5557 = vmax.f32 %v5545, 0.0
        %v5558 = vmax.f32 %v5548, 0.0
        %v5559 = vpack.c.bf16 %v5551, %v5551
        %v5560 = vpack.c.bf16 %v5552, %v5552
        %v5561 = vpack.c.bf16 %v5553, %v5553
        %v5562 = vpack.c.bf16 %v5554, %v5554
        %v5563 = vpack.c.bf16 %v5555, %v5555
        %v5564 = vpack.c.bf16 %v5556, %v5556
        %v5565 = vpack.c.bf16 %v5557, %v5557
        %v5566 = vpack.c.bf16 %v5558, %v5558
        %v5575 = vunpack.c.l.b16 %v5559
        %v5576 = vunpack.c.l.b16 %v5560
        %v5577 = vunpack.c.l.b16 %v5561
        %v5578 = vunpack.c.l.b16 %v5562
        %v5579 = vunpack.c.l.b16 %v5563
        %v5580 = vunpack.c.l.b16 %v5564
        %v5581 = vunpack.c.l.b16 %v5565
        %v5582 = vunpack.c.l.b16 %v5566
        %v5583 = vpack.c.b16 %v5575, %v5575
        %v5584 = vpack.c.b16 %v5576, %v5576
        %v5585 = vpack.c.b16 %v5577, %v5577
        %v5586 = vpack.c.b16 %v5578, %v5578
        %v5587 = vpack.c.b16 %v5579, %v5579
        %v5588 = vpack.c.b16 %v5580, %v5580
        %v5589 = vpack.c.b16 %v5581, %v5581
        %v5590 = vpack.c.b16 %v5582, %v5582
        %v5592 = vshrl.u32 %v5583, 16
        %v5594 = vrot.slane %v5592, 7
        %v5595 = vshll.u32 %v5583, 16
        %v5597 = vor.u32 %v5594, %v5595
        %v5598 = vrot.slane %v5594, 4
        %v5600 = vshrl.u32 %v5584, 16
        %v5602 = vrot.slane %v5600, 7
        %v5603 = vshll.u32 %v5584, 16
        %v5605 = vor.u32 %v5602, %v5603
        %v5606 = vrot.slane %v5602, 4
        %v5608 = vshrl.u32 %v5585, 16
        %v5610 = vrot.slane %v5608, 7
        %v5611 = vshll.u32 %v5585, 16
        %v5613 = vor.u32 %v5610, %v5611
        %v5614 = vrot.slane %v5610, 4
        %v5616 = vshrl.u32 %v5586, 16
        %v5618 = vrot.slane %v5616, 7
        %v5619 = vshll.u32 %v5586, 16
        %v5621 = vor.u32 %v5618, %v5619
        %v5622 = vrot.slane %v5618, 4
        %v5624 = vshrl.u32 %v5587, 16
        %v5626 = vrot.slane %v5624, 7
        %v5627 = vshll.u32 %v5587, 16
        %v5629 = vor.u32 %v5626, %v5627
        %v5630 = vrot.slane %v5626, 4
        %v5632 = vshrl.u32 %v5588, 16
        %v5634 = vrot.slane %v5632, 7
        %v5635 = vshll.u32 %v5588, 16
        %v5637 = vor.u32 %v5634, %v5635
        %v5638 = vrot.slane %v5634, 4
        %v5640 = vshrl.u32 %v5589, 16
        %v5642 = vrot.slane %v5640, 7
        %v5643 = vshll.u32 %v5589, 16
        %v5645 = vor.u32 %v5642, %v5643
        %v5646 = vrot.slane %v5642, 4
        %v5648 = vshrl.u32 %v5590, 16
        %v5650 = vrot.slane %v5648, 7
        %v5651 = vshll.u32 %v5590, 16
        %v5653 = vor.u32 %v5650, %v5651
        %v5654 = vrot.slane %v5650, 4
        %v5671 = vsel %vm709, %v5597, %v4081
        %5672 = vst [vmem:[%s706] sm:$0xf] %v5671
        %v5673 = vld [vmem:[%s706 + $0x4] sm:$0x1]
        %v5674 = vsel %vm715, %v5598, %v5673
        %5675 = vst [vmem:[%s706 + $0x4] sm:$0x1] %v5674
        %v5676 = vld [vmem:[%s706 + $0x8] sm:$0xf]
        %v5677 = vsel %vm709, %v5605, %v5676
        %5678 = vst [vmem:[%s706 + $0x8] sm:$0xf] %v5677
        %v5679 = vld [vmem:[%s706 + $0xc] sm:$0x1]
        %v5680 = vsel %vm715, %v5606, %v5679
        %5681 = vst [vmem:[%s706 + $0xc] sm:$0x1] %v5680
        %v5682 = vld [vmem:[%s706 + $0x10] sm:$0xf]
        %v5683 = vsel %vm709, %v5613, %v5682
        %5684 = vst [vmem:[%s706 + $0x10] sm:$0xf] %v5683
        %v5685 = vld [vmem:[%s706 + $0x14] sm:$0x1]
        %v5686 = vsel %vm715, %v5614, %v5685
        %5687 = vst [vmem:[%s706 + $0x14] sm:$0x1] %v5686
        %v5688 = vld [vmem:[%s706 + $0x18] sm:$0xf]
        %v5689 = vsel %vm709, %v5621, %v5688
        %5690 = vst [vmem:[%s706 + $0x18] sm:$0xf] %v5689
        %v5691 = vld [vmem:[%s706 + $0x1c] sm:$0x1]
        %v5692 = vsel %vm715, %v5622, %v5691
        %5693 = vst [vmem:[%s706 + $0x1c] sm:$0x1] %v5692
        %v5694 = vld [vmem:[%s706 + $0x20] sm:$0xf]
        %v5695 = vsel %vm709, %v5629, %v5694
        %5696 = vst [vmem:[%s706 + $0x20] sm:$0xf] %v5695
        %v5697 = vld [vmem:[%s706 + $0x24] sm:$0x1]
        %v5698 = vsel %vm715, %v5630, %v5697
        %5699 = vst [vmem:[%s706 + $0x24] sm:$0x1] %v5698
        %v5700 = vld [vmem:[%s706 + $0x28] sm:$0xf]
        %v5701 = vsel %vm709, %v5637, %v5700
        %5702 = vst [vmem:[%s706 + $0x28] sm:$0xf] %v5701
        %v5703 = vld [vmem:[%s706 + $0x2c] sm:$0x1]
        %v5704 = vsel %vm715, %v5638, %v5703
        %5705 = vst [vmem:[%s706 + $0x2c] sm:$0x1] %v5704
        %v5706 = vld [vmem:[%s706 + $0x30] sm:$0xf]
        %v5707 = vsel %vm709, %v5645, %v5706
        %5708 = vst [vmem:[%s706 + $0x30] sm:$0xf] %v5707
        %v5709 = vld [vmem:[%s706 + $0x34] sm:$0x1]
        %v5710 = vsel %vm715, %v5646, %v5709
        %5711 = vst [vmem:[%s706 + $0x34] sm:$0x1] %v5710
        %v5712 = vld [vmem:[%s706 + $0x38] sm:$0xf]
        %v5713 = vsel %vm709, %v5653, %v5712
        %5714 = vst [vmem:[%s706 + $0x38] sm:$0xf] %v5713
        %v5715 = vld [vmem:[%s706 + $0x3c] sm:$0x1]
        %v5716 = vsel %vm715, %v5654, %v5715
        %5717 = vst [vmem:[%s706 + $0x3c] sm:$0x1] %v5716
        %s5718 = scalar_lea.vmem %s4, 2
        %v5719 = vld [vmem:[%s5718] sm:$0x1]
        %v5721 = vlaneseq
        %v5722 = vshrl.u32 %v5721, 7
        %v5723 = vsub.s32 0, %v5722
        %v5724 = vrot.slane %v5719, %v5723
        %v5726 = vld [vmem:[#allocation2] sm:$0xf]
        %v5727 = vld [vmem:[#allocation2 + $0x8] sm:$0xf]
        %v5728 = vld [vmem:[#allocation2 + $0x10] sm:$0xf]
        %v5729 = vld [vmem:[#allocation2 + $0x18] sm:$0xf]
        %v5730 = vld [vmem:[#allocation2 + $0x20] sm:$0xf]
        %v5731 = vld [vmem:[#allocation2 + $0x28] sm:$0xf]
        %v5732 = vld [vmem:[#allocation2 + $0x30] sm:$0xf]
        %v5733 = vld [vmem:[#allocation2 + $0x38] sm:$0xf]
        %s5734 = scalar_lea.vmem [#allocation6], 1152
        %v5735 = vld [vmem:[%s5734] sm:$0xf]
        %v5736 = vld [vmem:[%s5734 + $0x4] sm:$0xf]
        %v5737 = vld [vmem:[%s5734 + $0x8] sm:$0xf]
        %v5738 = vld [vmem:[%s5734 + $0xc] sm:$0xf]
        %v5739 = vld [vmem:[%s5734 + $0x10] sm:$0xf]
        %v5740 = vld [vmem:[%s5734 + $0x14] sm:$0xf]
        %v5741 = vld [vmem:[%s5734 + $0x18] sm:$0xf]
        %v5742 = vld [vmem:[%s5734 + $0x1c] sm:$0xf]
        %v5743 = vld [vmem:[%s5734 + $0x20] sm:$0xf]
        %v5744 = vld [vmem:[%s5734 + $0x24] sm:$0xf]
        %v5745 = vld [vmem:[%s5734 + $0x28] sm:$0xf]
        %v5746 = vld [vmem:[%s5734 + $0x2c] sm:$0xf]
        %v5747 = vld [vmem:[%s5734 + $0x30] sm:$0xf]
        %v5748 = vld [vmem:[%s5734 + $0x34] sm:$0xf]
        %v5749 = vld [vmem:[%s5734 + $0x38] sm:$0xf]
        %v5750 = vld [vmem:[%s5734 + $0x3c] sm:$0xf]
        %v5759 = vunpack.c.l.b16 %v5726
        %v5760 = vunpack.c.l.b16 %v5727
        %v5761 = vunpack.c.l.b16 %v5728
        %v5762 = vunpack.c.l.b16 %v5729
        %v5763 = vunpack.c.l.b16 %v5730
        %v5764 = vunpack.c.l.b16 %v5731
        %v5765 = vunpack.c.l.b16 %v5732
        %v5766 = vunpack.c.l.b16 %v5733
        %v5767 = vpack.c.b16 %v5760, %v5759
        %v5768 = vpack.c.b16 %v5762, %v5761
        %v5769 = vpack.c.b16 %v5764, %v5763
        %v5770 = vpack.c.b16 %v5766, %v5765
        %v5791 = vunpack.c.l.b16 %v5735
        %v5792 = vunpack.c.l.b16 %v5736
        %v5793 = vunpack.c.l.b16 %v5737
        %v5794 = vunpack.c.l.b16 %v5738
        %v5795 = vunpack.c.l.b16 %v5739
        %v5796 = vunpack.c.l.b16 %v5740
        %v5797 = vunpack.c.l.b16 %v5741
        %v5798 = vunpack.c.l.b16 %v5742
        %v5799 = vunpack.c.l.b16 %v5743
        %v5800 = vunpack.c.l.b16 %v5744
        %v5801 = vunpack.c.l.b16 %v5745
        %v5802 = vunpack.c.l.b16 %v5746
        %v5803 = vunpack.c.l.b16 %v5747
        %v5804 = vunpack.c.l.b16 %v5748
        %v5805 = vunpack.c.l.b16 %v5749
        %v5806 = vunpack.c.l.b16 %v5750
        %v5807 = vpack.c.b16 %v5792, %v5791
        %v5808 = vpack.c.b16 %v5794, %v5793
        %v5809 = vpack.c.b16 %v5796, %v5795
        %v5810 = vpack.c.b16 %v5798, %v5797
        %v5811 = vpack.c.b16 %v5800, %v5799
        %v5812 = vpack.c.b16 %v5802, %v5801
        %v5813 = vpack.c.b16 %v5804, %v5803
        %v5814 = vpack.c.b16 %v5806, %v5805
        %5823 = vmatprep.subr.bf16.mxu0 0
        %5824 = vmatpush1.bf16.msra.mxu0 %v5807
        %5825 = vmatprep.subr.bf16.mxu0 0
        %5826 = vmatpush1.bf16.msra.mxu0 %v5808
        %5827 = vmatprep.subr.bf16.mxu0 0
        %5828 = vmatpush1.bf16.msra.mxu0 %v5809
        %5829 = vmatprep.subr.bf16.mxu0 0
        %5830 = vmatpush1.bf16.msra.mxu0 %v5810
        %5831 = vmatprep.subr.bf16.mxu0 0
        %5832 = vmatpush1.bf16.msra.mxu0 %v5811
        %5833 = vmatprep.subr.bf16.mxu0 0
        %5834 = vmatpush1.bf16.msra.mxu0 %v5812
        %5835 = vmatprep.subr.bf16.mxu0 0
        %5836 = vmatpush1.bf16.msra.mxu0 %v5813
        %5837 = vmatprep.subr.bf16.mxu0 0
        %5838 = vmatpush1.bf16.msra.mxu0 %v5814
        %5839 = vmatprep.subr.bf16.mxu0 0
        %5840 = vmatpush1.bf16.msra.mxu0 0
        %5841 = vmatprep.subr.bf16.mxu0 0
        %5842 = vmatpush1.bf16.msra.mxu0 0
        %5843 = vmatprep.subr.bf16.mxu0 0
        %5844 = vmatpush1.bf16.msra.mxu0 0
        %5845 = vmatprep.subr.bf16.mxu0 0
        %5846 = vmatpush1.bf16.msra.mxu0 0
        %5847 = vmatprep.subr.bf16.mxu0 0
        %5848 = vmatpush1.bf16.msra.mxu0 0
        %5849 = vmatprep.subr.bf16.mxu0 0
        %5850 = vmatpush1.bf16.msra.mxu0 0
        %5851 = vmatprep.subr.bf16.mxu0 0
        %5852 = vmatpush1.bf16.msra.mxu0 0
        %5853 = vmatprep.subr.bf16.mxu0 0
        %5854 = vmatpush1.bf16.msra.mxu0 0
        %5855 = vmatprep.mubr.bf16.mxu0 0
        %5856 = vmatmul.mubr.bf16.gmra.mrb[0].mxu0 %v5767
        %v5857 = vpop.f32.mrb[0].mxu0
        %v5858 = vadd.f32 0.0, %v5857
        %v5859 = vpop.f32.mrb[0].mxu0
        %v5860 = vpop.f32.mrb[0].mxu0
        %v5861 = vadd.f32 0.0, %v5860
        %v5862 = vpop.f32.mrb[0].mxu0
        %5863 = vmatprep.mubr.bf16.mxu0 0
        %5864 = vmatmul.mubr.bf16.gmra.mrb[0].mxu0 %v5768
        %v5865 = vpop.f32.mrb[0].mxu0
        %v5866 = vadd.f32 0.0, %v5865
        %v5867 = vpop.f32.mrb[0].mxu0
        %v5868 = vpop.f32.mrb[0].mxu0
        %v5869 = vadd.f32 0.0, %v5868
        %v5870 = vpop.f32.mrb[0].mxu0
        %5871 = vmatprep.mubr.bf16.mxu0 0
        %5872 = vmatmul.mubr.bf16.gmra.mrb[0].mxu0 %v5769
        %v5873 = vpop.f32.mrb[0].mxu0
        %v5874 = vadd.f32 0.0, %v5873
        %v5875 = vpop.f32.mrb[0].mxu0
        %v5876 = vpop.f32.mrb[0].mxu0
        %v5877 = vadd.f32 0.0, %v5876
        %v5878 = vpop.f32.mrb[0].mxu0
        %5879 = vmatprep.mubr.bf16.mxu0 0
        %5880 = vmatmul.mubr.bf16.gmra.mrb[0].mxu0 %v5770
        %v5881 = vpop.f32.mrb[0].mxu0
        %v5882 = vadd.f32 0.0, %v5881
        %v5883 = vpop.f32.mrb[0].mxu0
        %v5884 = vpop.f32.mrb[0].mxu0
        %v5885 = vadd.f32 0.0, %v5884
        %v5886 = vpop.f32.mrb[0].mxu0
        %5887 = vdwg.mxu0
        %v5888 = vadd.f32 %v5724, %v5858
        %v5889 = vadd.f32 %v5724, %v5861
        %v5890 = vadd.f32 %v5724, %v5866
        %v5891 = vadd.f32 %v5724, %v5869
        %v5892 = vadd.f32 %v5724, %v5874
        %v5893 = vadd.f32 %v5724, %v5877
        %v5894 = vadd.f32 %v5724, %v5882
        %v5895 = vadd.f32 %v5724, %v5885
        %v5896 = vld [vmem:[#allocation2] sm:$0xf]
        %v5897 = vld [vmem:[#allocation2 + $0x4] sm:$0x1]
        %v5898 = vld [vmem:[#allocation2 + $0x8] sm:$0xf]
        %v5899 = vld [vmem:[#allocation2 + $0xc] sm:$0x1]
        %v5900 = vld [vmem:[#allocation2 + $0x10] sm:$0xf]
        %v5901 = vld [vmem:[#allocation2 + $0x14] sm:$0x1]
        %v5902 = vld [vmem:[#allocation2 + $0x18] sm:$0xf]
        %v5903 = vld [vmem:[#allocation2 + $0x1c] sm:$0x1]
        %v5904 = vld [vmem:[#allocation2 + $0x20] sm:$0xf]
        %v5905 = vld [vmem:[#allocation2 + $0x24] sm:$0x1]
        %v5906 = vld [vmem:[#allocation2 + $0x28] sm:$0xf]
        %v5907 = vld [vmem:[#allocation2 + $0x2c] sm:$0x1]
        %v5908 = vld [vmem:[#allocation2 + $0x30] sm:$0xf]
        %v5909 = vld [vmem:[#allocation2 + $0x34] sm:$0x1]
        %v5910 = vld [vmem:[#allocation2 + $0x38] sm:$0xf]
        %v5911 = vld [vmem:[#allocation2 + $0x3c] sm:$0x1]
        %v5913 = vshrl.u32 %v5896, 16
        %v5915 = vrot.slane %v5913, 4
        %v5916 = vshll.u32 %v5896, 16
        %v5918 = vrot.slane %v5916, 5
        %v5919 = vor.u32 %v5915, %v5918
        %v5920 = vrot.slane %v5919, 4
        %v5922 = vshll.u32 %v5897, 16
        %v5924 = vrot.slane %v5922, 5
        %v5925 = vsel %vm955, %v5920, %v5924
        %v5927 = vshrl.u32 %v5898, 16
        %v5929 = vrot.slane %v5927, 4
        %v5930 = vshll.u32 %v5898, 16
        %v5932 = vrot.slane %v5930, 5
        %v5933 = vor.u32 %v5929, %v5932
        %v5934 = vrot.slane %v5933, 4
        %v5936 = vshll.u32 %v5899, 16
        %v5938 = vrot.slane %v5936, 5
        %v5939 = vsel %vm955, %v5934, %v5938
        %v5941 = vshrl.u32 %v5900, 16
        %v5943 = vrot.slane %v5941, 4
        %v5944 = vshll.u32 %v5900, 16
        %v5946 = vrot.slane %v5944, 5
        %v5947 = vor.u32 %v5943, %v5946
        %v5948 = vrot.slane %v5947, 4
        %v5950 = vshll.u32 %v5901, 16
        %v5952 = vrot.slane %v5950, 5
        %v5953 = vsel %vm955, %v5948, %v5952
        %v5955 = vshrl.u32 %v5902, 16
        %v5957 = vrot.slane %v5955, 4
        %v5958 = vshll.u32 %v5902, 16
        %v5960 = vrot.slane %v5958, 5
        %v5961 = vor.u32 %v5957, %v5960
        %v5962 = vrot.slane %v5961, 4
        %v5964 = vshll.u32 %v5903, 16
        %v5966 = vrot.slane %v5964, 5
        %v5967 = vsel %vm955, %v5962, %v5966
        %v5969 = vshrl.u32 %v5904, 16
        %v5971 = vrot.slane %v5969, 4
        %v5972 = vshll.u32 %v5904, 16
        %v5974 = vrot.slane %v5972, 5
        %v5975 = vor.u32 %v5971, %v5974
        %v5976 = vrot.slane %v5975, 4
        %v5978 = vshll.u32 %v5905, 16
        %v5980 = vrot.slane %v5978, 5
        %v5981 = vsel %vm955, %v5976, %v5980
        %v5983 = vshrl.u32 %v5906, 16
        %v5985 = vrot.slane %v5983, 4
        %v5986 = vshll.u32 %v5906, 16
        %v5988 = vrot.slane %v5986, 5
        %v5989 = vor.u32 %v5985, %v5988
        %v5990 = vrot.slane %v5989, 4
        %v5992 = vshll.u32 %v5907, 16
        %v5994 = vrot.slane %v5992, 5
        %v5995 = vsel %vm955, %v5990, %v5994
        %v5997 = vshrl.u32 %v5908, 16
        %v5999 = vrot.slane %v5997, 4
        %v6000 = vshll.u32 %v5908, 16
        %v6002 = vrot.slane %v6000, 5
        %v6003 = vor.u32 %v5999, %v6002
        %v6004 = vrot.slane %v6003, 4
        %v6006 = vshll.u32 %v5909, 16
        %v6008 = vrot.slane %v6006, 5
        %v6009 = vsel %vm955, %v6004, %v6008
        %v6011 = vshrl.u32 %v5910, 16
        %v6013 = vrot.slane %v6011, 4
        %v6014 = vshll.u32 %v5910, 16
        %v6016 = vrot.slane %v6014, 5
        %v6017 = vor.u32 %v6013, %v6016
        %v6018 = vrot.slane %v6017, 4
        %v6020 = vshll.u32 %v5911, 16
        %v6022 = vrot.slane %v6020, 5
        %v6023 = vsel %vm955, %v6018, %v6022
        %s6024 = scalar_lea.vmem [#allocation6], 1216
        %v6025 = vld [vmem:[%s6024] sm:$0xf]
        %v6026 = vld [vmem:[%s6024 + $0x4] sm:$0xf]
        %v6027 = vld [vmem:[%s6024 + $0x8] sm:$0xf]
        %v6028 = vld [vmem:[%s6024 + $0xc] sm:$0xf]
        %v6029 = vld [vmem:[%s6024 + $0x10] sm:$0xf]
        %v6030 = vld [vmem:[%s6024 + $0x14] sm:$0xf]
        %v6031 = vld [vmem:[%s6024 + $0x18] sm:$0xf]
        %v6032 = vld [vmem:[%s6024 + $0x1c] sm:$0xf]
        %v6033 = vld [vmem:[%s6024 + $0x20] sm:$0xf]
        %v6034 = vld [vmem:[%s6024 + $0x24] sm:$0xf]
        %v6035 = vld [vmem:[%s6024 + $0x28] sm:$0xf]
        %v6036 = vld [vmem:[%s6024 + $0x2c] sm:$0xf]
        %v6037 = vld [vmem:[%s6024 + $0x30] sm:$0xf]
        %v6038 = vld [vmem:[%s6024 + $0x34] sm:$0xf]
        %v6039 = vld [vmem:[%s6024 + $0x38] sm:$0xf]
        %v6040 = vld [vmem:[%s6024 + $0x3c] sm:$0xf]
        %v6041 = vunpack.c.l.b16 %v5925
        %v6042 = vunpack.c.l.b16 %v5939
        %v6043 = vunpack.c.l.b16 %v5953
        %v6044 = vunpack.c.l.b16 %v5967
        %v6045 = vunpack.c.l.b16 %v5981
        %v6046 = vunpack.c.l.b16 %v5995
        %v6047 = vunpack.c.l.b16 %v6009
        %v6048 = vunpack.c.l.b16 %v6023
        %v6049 = vpack.c.b16 %v6042, %v6041
        %v6050 = vpack.c.b16 %v6044, %v6043
        %v6051 = vpack.c.b16 %v6046, %v6045
        %v6052 = vpack.c.b16 %v6048, %v6047
        %v6073 = vunpack.c.l.b16 %v6025
        %v6074 = vunpack.c.l.b16 %v6026
        %v6075 = vunpack.c.l.b16 %v6027
        %v6076 = vunpack.c.l.b16 %v6028
        %v6077 = vunpack.c.l.b16 %v6029
        %v6078 = vunpack.c.l.b16 %v6030
        %v6079 = vunpack.c.l.b16 %v6031
        %v6080 = vunpack.c.l.b16 %v6032
        %v6081 = vunpack.c.l.b16 %v6033
        %v6082 = vunpack.c.l.b16 %v6034
        %v6083 = vunpack.c.l.b16 %v6035
        %v6084 = vunpack.c.l.b16 %v6036
        %v6085 = vunpack.c.l.b16 %v6037
        %v6086 = vunpack.c.l.b16 %v6038
        %v6087 = vunpack.c.l.b16 %v6039
        %v6088 = vunpack.c.l.b16 %v6040
        %v6089 = vpack.c.b16 %v6074, %v6073
        %v6090 = vpack.c.b16 %v6076, %v6075
        %v6091 = vpack.c.b16 %v6078, %v6077
        %v6092 = vpack.c.b16 %v6080, %v6079
        %v6093 = vpack.c.b16 %v6082, %v6081
        %v6094 = vpack.c.b16 %v6084, %v6083
        %v6095 = vpack.c.b16 %v6086, %v6085
        %v6096 = vpack.c.b16 %v6088, %v6087
        %6105 = vmatprep.subr.bf16.mxu0 0
        %6106 = vmatpush1.bf16.msra.mxu0 %v6089
        %6107 = vmatprep.subr.bf16.mxu0 0
        %6108 = vmatpush1.bf16.msra.mxu0 %v6090
        %6109 = vmatprep.subr.bf16.mxu0 0
        %6110 = vmatpush1.bf16.msra.mxu0 %v6091
        %6111 = vmatprep.subr.bf16.mxu0 0
        %6112 = vmatpush1.bf16.msra.mxu0 %v6092
        %6113 = vmatprep.subr.bf16.mxu0 0
        %6114 = vmatpush1.bf16.msra.mxu0 %v6093
        %6115 = vmatprep.subr.bf16.mxu0 0
        %6116 = vmatpush1.bf16.msra.mxu0 %v6094
        %6117 = vmatprep.subr.bf16.mxu0 0
        %6118 = vmatpush1.bf16.msra.mxu0 %v6095
        %6119 = vmatprep.subr.bf16.mxu0 0
        %6120 = vmatpush1.bf16.msra.mxu0 %v6096
        %6121 = vmatprep.subr.bf16.mxu0 0
        %6122 = vmatpush1.bf16.msra.mxu0 0
        %6123 = vmatprep.subr.bf16.mxu0 0
        %6124 = vmatpush1.bf16.msra.mxu0 0
        %6125 = vmatprep.subr.bf16.mxu0 0
        %6126 = vmatpush1.bf16.msra.mxu0 0
        %6127 = vmatprep.subr.bf16.mxu0 0
        %6128 = vmatpush1.bf16.msra.mxu0 0
        %6129 = vmatprep.subr.bf16.mxu0 0
        %6130 = vmatpush1.bf16.msra.mxu0 0
        %6131 = vmatprep.subr.bf16.mxu0 0
        %6132 = vmatpush1.bf16.msra.mxu0 0
        %6133 = vmatprep.subr.bf16.mxu0 0
        %6134 = vmatpush1.bf16.msra.mxu0 0
        %6135 = vmatprep.subr.bf16.mxu0 0
        %6136 = vmatpush1.bf16.msra.mxu0 0
        %6137 = vmatprep.mubr.bf16.mxu0 0
        %6138 = vmatmul.mubr.bf16.gmra.mrb[0].mxu0 %v6049
        %v6139 = vpop.f32.mrb[0].mxu0
        %v6140 = vadd.f32 0.0, %v6139
        %v6141 = vpop.f32.mrb[0].mxu0
        %v6142 = vpop.f32.mrb[0].mxu0
        %v6143 = vadd.f32 0.0, %v6142
        %v6144 = vpop.f32.mrb[0].mxu0
        %6145 = vmatprep.mubr.bf16.mxu0 0
        %6146 = vmatmul.mubr.bf16.gmra.mrb[0].mxu0 %v6050
        %v6147 = vpop.f32.mrb[0].mxu0
        %v6148 = vadd.f32 0.0, %v6147
        %v6149 = vpop.f32.mrb[0].mxu0
        %v6150 = vpop.f32.mrb[0].mxu0
        %v6151 = vadd.f32 0.0, %v6150
        %v6152 = vpop.f32.mrb[0].mxu0
        %6153 = vmatprep.mubr.bf16.mxu0 0
        %6154 = vmatmul.mubr.bf16.gmra.mrb[0].mxu0 %v6051
        %v6155 = vpop.f32.mrb[0].mxu0
        %v6156 = vadd.f32 0.0, %v6155
        %v6157 = vpop.f32.mrb[0].mxu0
        %v6158 = vpop.f32.mrb[0].mxu0
        %v6159 = vadd.f32 0.0, %v6158
        %v6160 = vpop.f32.mrb[0].mxu0
        %6161 = vmatprep.mubr.bf16.mxu0 0
        %6162 = vmatmul.mubr.bf16.gmra.mrb[0].mxu0 %v6052
        %v6163 = vpop.f32.mrb[0].mxu0
        %v6164 = vadd.f32 0.0, %v6163
        %v6165 = vpop.f32.mrb[0].mxu0
        %v6166 = vpop.f32.mrb[0].mxu0
        %v6167 = vadd.f32 0.0, %v6166
        %v6168 = vpop.f32.mrb[0].mxu0
        %6169 = vdwg.mxu0
        %v6170 = vadd.f32 %v5888, %v6140
        %v6171 = vadd.f32 %v5889, %v6143
        %v6172 = vadd.f32 %v5890, %v6148
        %v6173 = vadd.f32 %v5891, %v6151
        %v6174 = vadd.f32 %v5892, %v6156
        %v6175 = vadd.f32 %v5893, %v6159
        %v6176 = vadd.f32 %v5894, %v6164
        %v6177 = vadd.f32 %v5895, %v6167
        %v6178 = vld [vmem:[#allocation2] sm:$0xe]
        %v6179 = vld [vmem:[#allocation2 + $0x8] sm:$0xe]
        %v6180 = vld [vmem:[#allocation2 + $0x10] sm:$0xe]
        %v6181 = vld [vmem:[#allocation2 + $0x18] sm:$0xe]
        %v6182 = vld [vmem:[#allocation2 + $0x20] sm:$0xe]
        %v6183 = vld [vmem:[#allocation2 + $0x28] sm:$0xe]
        %v6184 = vld [vmem:[#allocation2 + $0x30] sm:$0xe]
        %v6185 = vld [vmem:[#allocation2 + $0x38] sm:$0xe]
        %v6202 = vrot.slane %v6178, 5
        %v6203 = vrot.slane %v6202, 4
        %v6204 = vrot.slane %v5897, 5
        %v6205 = vsel %vm1248, %v6203, %v6204
        %v6206 = vrot.slane %v6179, 5
        %v6207 = vrot.slane %v6206, 4
        %v6208 = vrot.slane %v5899, 5
        %v6209 = vsel %vm1248, %v6207, %v6208
        %v6210 = vrot.slane %v6180, 5
        %v6211 = vrot.slane %v6210, 4
        %v6212 = vrot.slane %v5901, 5
        %v6213 = vsel %vm1248, %v6211, %v6212
        %v6214 = vrot.slane %v6181, 5
        %v6215 = vrot.slane %v6214, 4
        %v6216 = vrot.slane %v5903, 5
        %v6217 = vsel %vm1248, %v6215, %v6216
        %v6218 = vrot.slane %v6182, 5
        %v6219 = vrot.slane %v6218, 4
        %v6220 = vrot.slane %v5905, 5
        %v6221 = vsel %vm1248, %v6219, %v6220
        %v6222 = vrot.slane %v6183, 5
        %v6223 = vrot.slane %v6222, 4
        %v6224 = vrot.slane %v5907, 5
        %v6225 = vsel %vm1248, %v6223, %v6224
        %v6226 = vrot.slane %v6184, 5
        %v6227 = vrot.slane %v6226, 4
        %v6228 = vrot.slane %v5909, 5
        %v6229 = vsel %vm1248, %v6227, %v6228
        %v6230 = vrot.slane %v6185, 5
        %v6231 = vrot.slane %v6230, 4
        %v6232 = vrot.slane %v5911, 5
        %v6233 = vsel %vm1248, %v6231, %v6232
        %s6234 = scalar_lea.vmem [#allocation6], 1280
        %v6235 = vld [vmem:[%s6234] sm:$0xf]
        %v6236 = vld [vmem:[%s6234 + $0x4] sm:$0xf]
        %v6237 = vld [vmem:[%s6234 + $0x8] sm:$0xf]
        %v6238 = vld [vmem:[%s6234 + $0xc] sm:$0xf]
        %v6239 = vld [vmem:[%s6234 + $0x10] sm:$0xf]
        %v6240 = vld [vmem:[%s6234 + $0x14] sm:$0xf]
        %v6241 = vld [vmem:[%s6234 + $0x18] sm:$0xf]
        %v6242 = vld [vmem:[%s6234 + $0x1c] sm:$0xf]
        %v6243 = vld [vmem:[%s6234 + $0x20] sm:$0xf]
        %v6244 = vld [vmem:[%s6234 + $0x24] sm:$0xf]
        %v6245 = vld [vmem:[%s6234 + $0x28] sm:$0xf]
        %v6246 = vld [vmem:[%s6234 + $0x2c] sm:$0xf]
        %v6247 = vld [vmem:[%s6234 + $0x30] sm:$0xf]
        %v6248 = vld [vmem:[%s6234 + $0x34] sm:$0xf]
        %v6249 = vld [vmem:[%s6234 + $0x38] sm:$0xf]
        %v6250 = vld [vmem:[%s6234 + $0x3c] sm:$0xf]
        %v6251 = vunpack.c.l.b16 %v6205
        %v6252 = vunpack.c.l.b16 %v6209
        %v6253 = vunpack.c.l.b16 %v6213
        %v6254 = vunpack.c.l.b16 %v6217
        %v6255 = vunpack.c.l.b16 %v6221
        %v6256 = vunpack.c.l.b16 %v6225
        %v6257 = vunpack.c.l.b16 %v6229
        %v6258 = vunpack.c.l.b16 %v6233
        %v6259 = vpack.c.b16 %v6252, %v6251
        %v6260 = vpack.c.b16 %v6254, %v6253
        %v6261 = vpack.c.b16 %v6256, %v6255
        %v6262 = vpack.c.b16 %v6258, %v6257
        %v6283 = vunpack.c.l.b16 %v6235
        %v6284 = vunpack.c.l.b16 %v6236
        %v6285 = vunpack.c.l.b16 %v6237
        %v6286 = vunpack.c.l.b16 %v6238
        %v6287 = vunpack.c.l.b16 %v6239
        %v6288 = vunpack.c.l.b16 %v6240
        %v6289 = vunpack.c.l.b16 %v6241
        %v6290 = vunpack.c.l.b16 %v6242
        %v6291 = vunpack.c.l.b16 %v6243
        %v6292 = vunpack.c.l.b16 %v6244
        %v6293 = vunpack.c.l.b16 %v6245
        %v6294 = vunpack.c.l.b16 %v6246
        %v6295 = vunpack.c.l.b16 %v6247
        %v6296 = vunpack.c.l.b16 %v6248
        %v6297 = vunpack.c.l.b16 %v6249
        %v6298 = vunpack.c.l.b16 %v6250
        %v6299 = vpack.c.b16 %v6284, %v6283
        %v6300 = vpack.c.b16 %v6286, %v6285
        %v6301 = vpack.c.b16 %v6288, %v6287
        %v6302 = vpack.c.b16 %v6290, %v6289
        %v6303 = vpack.c.b16 %v6292, %v6291
        %v6304 = vpack.c.b16 %v6294, %v6293
        %v6305 = vpack.c.b16 %v6296, %v6295
        %v6306 = vpack.c.b16 %v6298, %v6297
        %6315 = vmatprep.subr.bf16.mxu0 0
        %6316 = vmatpush1.bf16.msra.mxu0 %v6299
        %6317 = vmatprep.subr.bf16.mxu0 0
        %6318 = vmatpush1.bf16.msra.mxu0 %v6300
        %6319 = vmatprep.subr.bf16.mxu0 0
        %6320 = vmatpush1.bf16.msra.mxu0 %v6301
        %6321 = vmatprep.subr.bf16.mxu0 0
        %6322 = vmatpush1.bf16.msra.mxu0 %v6302
        %6323 = vmatprep.subr.bf16.mxu0 0
        %6324 = vmatpush1.bf16.msra.mxu0 %v6303
        %6325 = vmatprep.subr.bf16.mxu0 0
        %6326 = vmatpush1.bf16.msra.mxu0 %v6304
        %6327 = vmatprep.subr.bf16.mxu0 0
        %6328 = vmatpush1.bf16.msra.mxu0 %v6305
        %6329 = vmatprep.subr.bf16.mxu0 0
        %6330 = vmatpush1.bf16.msra.mxu0 %v6306
        %6331 = vmatprep.subr.bf16.mxu0 0
        %6332 = vmatpush1.bf16.msra.mxu0 0
        %6333 = vmatprep.subr.bf16.mxu0 0
        %6334 = vmatpush1.bf16.msra.mxu0 0
        %6335 = vmatprep.subr.bf16.mxu0 0
        %6336 = vmatpush1.bf16.msra.mxu0 0
        %6337 = vmatprep.subr.bf16.mxu0 0
        %6338 = vmatpush1.bf16.msra.mxu0 0
        %6339 = vmatprep.subr.bf16.mxu0 0
        %6340 = vmatpush1.bf16.msra.mxu0 0
        %6341 = vmatprep.subr.bf16.mxu0 0
        %6342 = vmatpush1.bf16.msra.mxu0 0
        %6343 = vmatprep.subr.bf16.mxu0 0
        %6344 = vmatpush1.bf16.msra.mxu0 0
        %6345 = vmatprep.subr.bf16.mxu0 0
        %6346 = vmatpush1.bf16.msra.mxu0 0
        %6347 = vmatprep.mubr.bf16.mxu0 0
        %6348 = vmatmul.mubr.bf16.gmra.mrb[0].mxu0 %v6259
        %v6349 = vpop.f32.mrb[0].mxu0
        %v6350 = vadd.f32 0.0, %v6349
        %v6351 = vpop.f32.mrb[0].mxu0
        %v6352 = vpop.f32.mrb[0].mxu0
        %v6353 = vadd.f32 0.0, %v6352
        %v6354 = vpop.f32.mrb[0].mxu0
        %6355 = vmatprep.mubr.bf16.mxu0 0
        %6356 = vmatmul.mubr.bf16.gmra.mrb[0].mxu0 %v6260
        %v6357 = vpop.f32.mrb[0].mxu0
        %v6358 = vadd.f32 0.0, %v6357
        %v6359 = vpop.f32.mrb[0].mxu0
        %v6360 = vpop.f32.mrb[0].mxu0
        %v6361 = vadd.f32 0.0, %v6360
        %v6362 = vpop.f32.mrb[0].mxu0
        %6363 = vmatprep.mubr.bf16.mxu0 0
        %6364 = vmatmul.mubr.bf16.gmra.mrb[0].mxu0 %v6261
        %v6365 = vpop.f32.mrb[0].mxu0
        %v6366 = vadd.f32 0.0, %v6365
        %v6367 = vpop.f32.mrb[0].mxu0
        %v6368 = vpop.f32.mrb[0].mxu0
        %v6369 = vadd.f32 0.0, %v6368
        %v6370 = vpop.f32.mrb[0].mxu0
        %6371 = vmatprep.mubr.bf16.mxu0 0
        %6372 = vmatmul.mubr.bf16.gmra.mrb[0].mxu0 %v6262
        %v6373 = vpop.f32.mrb[0].mxu0
        %v6374 = vadd.f32 0.0, %v6373
        %v6375 = vpop.f32.mrb[0].mxu0
        %v6376 = vpop.f32.mrb[0].mxu0
        %v6377 = vadd.f32 0.0, %v6376
        %v6378 = vpop.f32.mrb[0].mxu0
        %6379 = vdwg.mxu0
        %v6380 = vadd.f32 %v6170, %v6350
        %v6381 = vadd.f32 %v6171, %v6353
        %v6382 = vadd.f32 %v6172, %v6358
        %v6383 = vadd.f32 %v6173, %v6361
        %v6384 = vadd.f32 %v6174, %v6366
        %v6385 = vadd.f32 %v6175, %v6369
        %v6386 = vadd.f32 %v6176, %v6374
        %v6387 = vadd.f32 %v6177, %v6377
        %v6388 = vld [vmem:[%s706] sm:$0xf]
        %v6389 = vld [vmem:[%s706 + $0x8] sm:$0xf]
        %v6390 = vld [vmem:[%s706 + $0x10] sm:$0xf]
        %v6391 = vld [vmem:[%s706 + $0x18] sm:$0xf]
        %v6392 = vld [vmem:[%s706 + $0x20] sm:$0xf]
        %v6393 = vld [vmem:[%s706 + $0x28] sm:$0xf]
        %v6394 = vld [vmem:[%s706 + $0x30] sm:$0xf]
        %v6395 = vld [vmem:[%s706 + $0x38] sm:$0xf]
        %s6396 = scalar_lea.vmem [#allocation6], 1344
        %v6397 = vld [vmem:[%s6396] sm:$0xf]
        %v6398 = vld [vmem:[%s6396 + $0x4] sm:$0xf]
        %v6399 = vld [vmem:[%s6396 + $0x8] sm:$0xf]
        %v6400 = vld [vmem:[%s6396 + $0xc] sm:$0xf]
        %v6401 = vld [vmem:[%s6396 + $0x10] sm:$0xf]
        %v6402 = vld [vmem:[%s6396 + $0x14] sm:$0xf]
        %v6403 = vld [vmem:[%s6396 + $0x18] sm:$0xf]
        %v6404 = vld [vmem:[%s6396 + $0x1c] sm:$0xf]
        %v6405 = vld [vmem:[%s6396 + $0x20] sm:$0xf]
        %v6406 = vld [vmem:[%s6396 + $0x24] sm:$0xf]
        %v6407 = vld [vmem:[%s6396 + $0x28] sm:$0xf]
        %v6408 = vld [vmem:[%s6396 + $0x2c] sm:$0xf]
        %v6409 = vld [vmem:[%s6396 + $0x30] sm:$0xf]
        %v6410 = vld [vmem:[%s6396 + $0x34] sm:$0xf]
        %v6411 = vld [vmem:[%s6396 + $0x38] sm:$0xf]
        %v6412 = vld [vmem:[%s6396 + $0x3c] sm:$0xf]
        %v6421 = vunpack.c.l.b16 %v6388
        %v6422 = vunpack.c.l.b16 %v6389
        %v6423 = vunpack.c.l.b16 %v6390
        %v6424 = vunpack.c.l.b16 %v6391
        %v6425 = vunpack.c.l.b16 %v6392
        %v6426 = vunpack.c.l.b16 %v6393
        %v6427 = vunpack.c.l.b16 %v6394
        %v6428 = vunpack.c.l.b16 %v6395
        %v6429 = vpack.c.b16 %v6422, %v6421
        %v6430 = vpack.c.b16 %v6424, %v6423
        %v6431 = vpack.c.b16 %v6426, %v6425
        %v6432 = vpack.c.b16 %v6428, %v6427
        %v6453 = vunpack.c.l.b16 %v6397
        %v6454 = vunpack.c.l.b16 %v6398
        %v6455 = vunpack.c.l.b16 %v6399
        %v6456 = vunpack.c.l.b16 %v6400
        %v6457 = vunpack.c.l.b16 %v6401
        %v6458 = vunpack.c.l.b16 %v6402
        %v6459 = vunpack.c.l.b16 %v6403
        %v6460 = vunpack.c.l.b16 %v6404
        %v6461 = vunpack.c.l.b16 %v6405
        %v6462 = vunpack.c.l.b16 %v6406
        %v6463 = vunpack.c.l.b16 %v6407
        %v6464 = vunpack.c.l.b16 %v6408
        %v6465 = vunpack.c.l.b16 %v6409
        %v6466 = vunpack.c.l.b16 %v6410
        %v6467 = vunpack.c.l.b16 %v6411
        %v6468 = vunpack.c.l.b16 %v6412
        %v6469 = vpack.c.b16 %v6454, %v6453
        %v6470 = vpack.c.b16 %v6456, %v6455
        %v6471 = vpack.c.b16 %v6458, %v6457
        %v6472 = vpack.c.b16 %v6460, %v6459
        %v6473 = vpack.c.b16 %v6462, %v6461
        %v6474 = vpack.c.b16 %v6464, %v6463
        %v6475 = vpack.c.b16 %v6466, %v6465
        %v6476 = vpack.c.b16 %v6468, %v6467
        %6485 = vmatprep.subr.bf16.mxu0 0
        %6486 = vmatpush1.bf16.msra.mxu0 %v6469
        %6487 = vmatprep.subr.bf16.mxu0 0
        %6488 = vmatpush1.bf16.msra.mxu0 %v6470
        %6489 = vmatprep.subr.bf16.mxu0 0
        %6490 = vmatpush1.bf16.msra.mxu0 %v6471
        %6491 = vmatprep.subr.bf16.mxu0 0
        %6492 = vmatpush1.bf16.msra.mxu0 %v6472
        %6493 = vmatprep.subr.bf16.mxu0 0
        %6494 = vmatpush1.bf16.msra.mxu0 %v6473
        %6495 = vmatprep.subr.bf16.mxu0 0
        %6496 = vmatpush1.bf16.msra.mxu0 %v6474
        %6497 = vmatprep.subr.bf16.mxu0 0
        %6498 = vmatpush1.bf16.msra.mxu0 %v6475
        %6499 = vmatprep.subr.bf16.mxu0 0
        %6500 = vmatpush1.bf16.msra.mxu0 %v6476
        %6501 = vmatprep.subr.bf16.mxu0 0
        %6502 = vmatpush1.bf16.msra.mxu0 0
        %6503 = vmatprep.subr.bf16.mxu0 0
        %6504 = vmatpush1.bf16.msra.mxu0 0
        %6505 = vmatprep.subr.bf16.mxu0 0
        %6506 = vmatpush1.bf16.msra.mxu0 0
        %6507 = vmatprep.subr.bf16.mxu0 0
        %6508 = vmatpush1.bf16.msra.mxu0 0
        %6509 = vmatprep.subr.bf16.mxu0 0
        %6510 = vmatpush1.bf16.msra.mxu0 0
        %6511 = vmatprep.subr.bf16.mxu0 0
        %6512 = vmatpush1.bf16.msra.mxu0 0
        %6513 = vmatprep.subr.bf16.mxu0 0
        %6514 = vmatpush1.bf16.msra.mxu0 0
        %6515 = vmatprep.subr.bf16.mxu0 0
        %6516 = vmatpush1.bf16.msra.mxu0 0
        %6517 = vmatprep.mubr.bf16.mxu0 0
        %6518 = vmatmul.mubr.bf16.gmra.mrb[0].mxu0 %v6429
        %v6519 = vpop.f32.mrb[0].mxu0
        %v6520 = vadd.f32 0.0, %v6519
        %v6521 = vpop.f32.mrb[0].mxu0
        %v6522 = vpop.f32.mrb[0].mxu0
        %v6523 = vadd.f32 0.0, %v6522
        %v6524 = vpop.f32.mrb[0].mxu0
        %6525 = vmatprep.mubr.bf16.mxu0 0
        %6526 = vmatmul.mubr.bf16.gmra.mrb[0].mxu0 %v6430
        %v6527 = vpop.f32.mrb[0].mxu0
        %v6528 = vadd.f32 0.0, %v6527
        %v6529 = vpop.f32.mrb[0].mxu0
        %v6530 = vpop.f32.mrb[0].mxu0
        %v6531 = vadd.f32 0.0, %v6530
        %v6532 = vpop.f32.mrb[0].mxu0
        %6533 = vmatprep.mubr.bf16.mxu0 0
        %6534 = vmatmul.mubr.bf16.gmra.mrb[0].mxu0 %v6431
        %v6535 = vpop.f32.mrb[0].mxu0
        %v6536 = vadd.f32 0.0, %v6535
        %v6537 = vpop.f32.mrb[0].mxu0
        %v6538 = vpop.f32.mrb[0].mxu0
        %v6539 = vadd.f32 0.0, %v6538
        %v6540 = vpop.f32.mrb[0].mxu0
        %6541 = vmatprep.mubr.bf16.mxu0 0
        %6542 = vmatmul.mubr.bf16.gmra.mrb[0].mxu0 %v6432
        %v6543 = vpop.f32.mrb[0].mxu0
        %v6544 = vadd.f32 0.0, %v6543
        %v6545 = vpop.f32.mrb[0].mxu0
        %v6546 = vpop.f32.mrb[0].mxu0
        %v6547 = vadd.f32 0.0, %v6546
        %v6548 = vpop.f32.mrb[0].mxu0
        %6549 = vdwg.mxu0
        %v6550 = vadd.f32 %v6380, %v6520
        %v6551 = vadd.f32 %v6381, %v6523
        %v6552 = vadd.f32 %v6382, %v6528
        %v6553 = vadd.f32 %v6383, %v6531
        %v6554 = vadd.f32 %v6384, %v6536
        %v6555 = vadd.f32 %v6385, %v6539
        %v6556 = vadd.f32 %v6386, %v6544
        %v6557 = vadd.f32 %v6387, %v6547
        %v6558 = vld [vmem:[%s706] sm:$0xf]
        %v6559 = vld [vmem:[%s706 + $0x4] sm:$0x1]
        %v6560 = vld [vmem:[%s706 + $0x8] sm:$0xf]
        %v6561 = vld [vmem:[%s706 + $0xc] sm:$0x1]
        %v6562 = vld [vmem:[%s706 + $0x10] sm:$0xf]
        %v6563 = vld [vmem:[%s706 + $0x14] sm:$0x1]
        %v6564 = vld [vmem:[%s706 + $0x18] sm:$0xf]
        %v6565 = vld [vmem:[%s706 + $0x1c] sm:$0x1]
        %v6566 = vld [vmem:[%s706 + $0x20] sm:$0xf]
        %v6567 = vld [vmem:[%s706 + $0x24] sm:$0x1]
        %v6568 = vld [vmem:[%s706 + $0x28] sm:$0xf]
        %v6569 = vld [vmem:[%s706 + $0x2c] sm:$0x1]
        %v6570 = vld [vmem:[%s706 + $0x30] sm:$0xf]
        %v6571 = vld [vmem:[%s706 + $0x34] sm:$0x1]
        %v6572 = vld [vmem:[%s706 + $0x38] sm:$0xf]
        %v6573 = vld [vmem:[%s706 + $0x3c] sm:$0x1]
        %v6575 = vshrl.u32 %v6558, 16
        %v6577 = vrot.slane %v6575, 4
        %v6578 = vshll.u32 %v6558, 16
        %v6580 = vrot.slane %v6578, 5
        %v6581 = vor.u32 %v6577, %v6580
        %v6582 = vrot.slane %v6581, 4
        %v6584 = vshll.u32 %v6559, 16
        %v6586 = vrot.slane %v6584, 5
        %v6587 = vsel %vm955, %v6582, %v6586
        %v6589 = vshrl.u32 %v6560, 16
        %v6591 = vrot.slane %v6589, 4
        %v6592 = vshll.u32 %v6560, 16
        %v6594 = vrot.slane %v6592, 5
        %v6595 = vor.u32 %v6591, %v6594
        %v6596 = vrot.slane %v6595, 4
        %v6598 = vshll.u32 %v6561, 16
        %v6600 = vrot.slane %v6598, 5
        %v6601 = vsel %vm955, %v6596, %v6600
        %v6603 = vshrl.u32 %v6562, 16
        %v6605 = vrot.slane %v6603, 4
        %v6606 = vshll.u32 %v6562, 16
        %v6608 = vrot.slane %v6606, 5
        %v6609 = vor.u32 %v6605, %v6608
        %v6610 = vrot.slane %v6609, 4
        %v6612 = vshll.u32 %v6563, 16
        %v6614 = vrot.slane %v6612, 5
        %v6615 = vsel %vm955, %v6610, %v6614
        %v6617 = vshrl.u32 %v6564, 16
        %v6619 = vrot.slane %v6617, 4
        %v6620 = vshll.u32 %v6564, 16
        %v6622 = vrot.slane %v6620, 5
        %v6623 = vor.u32 %v6619, %v6622
        %v6624 = vrot.slane %v6623, 4
        %v6626 = vshll.u32 %v6565, 16
        %v6628 = vrot.slane %v6626, 5
        %v6629 = vsel %vm955, %v6624, %v6628
        %v6631 = vshrl.u32 %v6566, 16
        %v6633 = vrot.slane %v6631, 4
        %v6634 = vshll.u32 %v6566, 16
        %v6636 = vrot.slane %v6634, 5
        %v6637 = vor.u32 %v6633, %v6636
        %v6638 = vrot.slane %v6637, 4
        %v6640 = vshll.u32 %v6567, 16
        %v6642 = vrot.slane %v6640, 5
        %v6643 = vsel %vm955, %v6638, %v6642
        %v6645 = vshrl.u32 %v6568, 16
        %v6647 = vrot.slane %v6645, 4
        %v6648 = vshll.u32 %v6568, 16
        %v6650 = vrot.slane %v6648, 5
        %v6651 = vor.u32 %v6647, %v6650
        %v6652 = vrot.slane %v6651, 4
        %v6654 = vshll.u32 %v6569, 16
        %v6656 = vrot.slane %v6654, 5
        %v6657 = vsel %vm955, %v6652, %v6656
        %v6659 = vshrl.u32 %v6570, 16
        %v6661 = vrot.slane %v6659, 4
        %v6662 = vshll.u32 %v6570, 16
        %v6664 = vrot.slane %v6662, 5
        %v6665 = vor.u32 %v6661, %v6664
        %v6666 = vrot.slane %v6665, 4
        %v6668 = vshll.u32 %v6571, 16
        %v6670 = vrot.slane %v6668, 5
        %v6671 = vsel %vm955, %v6666, %v6670
        %v6673 = vshrl.u32 %v6572, 16
        %v6675 = vrot.slane %v6673, 4
        %v6676 = vshll.u32 %v6572, 16
        %v6678 = vrot.slane %v6676, 5
        %v6679 = vor.u32 %v6675, %v6678
        %v6680 = vrot.slane %v6679, 4
        %v6682 = vshll.u32 %v6573, 16
        %v6684 = vrot.slane %v6682, 5
        %v6685 = vsel %vm955, %v6680, %v6684
        %s6686 = scalar_lea.vmem [#allocation6], 1408
        %v6687 = vld [vmem:[%s6686] sm:$0xf]
        %v6688 = vld [vmem:[%s6686 + $0x4] sm:$0xf]
        %v6689 = vld [vmem:[%s6686 + $0x8] sm:$0xf]
        %v6690 = vld [vmem:[%s6686 + $0xc] sm:$0xf]
        %v6691 = vld [vmem:[%s6686 + $0x10] sm:$0xf]
        %v6692 = vld [vmem:[%s6686 + $0x14] sm:$0xf]
        %v6693 = vld [vmem:[%s6686 + $0x18] sm:$0xf]
        %v6694 = vld [vmem:[%s6686 + $0x1c] sm:$0xf]
        %v6695 = vld [vmem:[%s6686 + $0x20] sm:$0xf]
        %v6696 = vld [vmem:[%s6686 + $0x24] sm:$0xf]
        %v6697 = vld [vmem:[%s6686 + $0x28] sm:$0xf]
        %v6698 = vld [vmem:[%s6686 + $0x2c] sm:$0xf]
        %v6699 = vld [vmem:[%s6686 + $0x30] sm:$0xf]
        %v6700 = vld [vmem:[%s6686 + $0x34] sm:$0xf]
        %v6701 = vld [vmem:[%s6686 + $0x38] sm:$0xf]
        %v6702 = vld [vmem:[%s6686 + $0x3c] sm:$0xf]
        %v6703 = vunpack.c.l.b16 %v6587
        %v6704 = vunpack.c.l.b16 %v6601
        %v6705 = vunpack.c.l.b16 %v6615
        %v6706 = vunpack.c.l.b16 %v6629
        %v6707 = vunpack.c.l.b16 %v6643
        %v6708 = vunpack.c.l.b16 %v6657
        %v6709 = vunpack.c.l.b16 %v6671
        %v6710 = vunpack.c.l.b16 %v6685
        %v6711 = vpack.c.b16 %v6704, %v6703
        %v6712 = vpack.c.b16 %v6706, %v6705
        %v6713 = vpack.c.b16 %v6708, %v6707
        %v6714 = vpack.c.b16 %v6710, %v6709
        %v6735 = vunpack.c.l.b16 %v6687
        %v6736 = vunpack.c.l.b16 %v6688
        %v6737 = vunpack.c.l.b16 %v6689
        %v6738 = vunpack.c.l.b16 %v6690
        %v6739 = vunpack.c.l.b16 %v6691
        %v6740 = vunpack.c.l.b16 %v6692
        %v6741 = vunpack.c.l.b16 %v6693
        %v6742 = vunpack.c.l.b16 %v6694
        %v6743 = vunpack.c.l.b16 %v6695
        %v6744 = vunpack.c.l.b16 %v6696
        %v6745 = vunpack.c.l.b16 %v6697
        %v6746 = vunpack.c.l.b16 %v6698
        %v6747 = vunpack.c.l.b16 %v6699
        %v6748 = vunpack.c.l.b16 %v6700
        %v6749 = vunpack.c.l.b16 %v6701
        %v6750 = vunpack.c.l.b16 %v6702
        %v6751 = vpack.c.b16 %v6736, %v6735
        %v6752 = vpack.c.b16 %v6738, %v6737
        %v6753 = vpack.c.b16 %v6740, %v6739
        %v6754 = vpack.c.b16 %v6742, %v6741
        %v6755 = vpack.c.b16 %v6744, %v6743
        %v6756 = vpack.c.b16 %v6746, %v6745
        %v6757 = vpack.c.b16 %v6748, %v6747
        %v6758 = vpack.c.b16 %v6750, %v6749
        %6767 = vmatprep.subr.bf16.mxu0 0
        %6768 = vmatpush1.bf16.msra.mxu0 %v6751
        %6769 = vmatprep.subr.bf16.mxu0 0
        %6770 = vmatpush1.bf16.msra.mxu0 %v6752
        %6771 = vmatprep.subr.bf16.mxu0 0
        %6772 = vmatpush1.bf16.msra.mxu0 %v6753
        %6773 = vmatprep.subr.bf16.mxu0 0
        %6774 = vmatpush1.bf16.msra.mxu0 %v6754
        %6775 = vmatprep.subr.bf16.mxu0 0
        %6776 = vmatpush1.bf16.msra.mxu0 %v6755
        %6777 = vmatprep.subr.bf16.mxu0 0
        %6778 = vmatpush1.bf16.msra.mxu0 %v6756
        %6779 = vmatprep.subr.bf16.mxu0 0
        %6780 = vmatpush1.bf16.msra.mxu0 %v6757
        %6781 = vmatprep.subr.bf16.mxu0 0
        %6782 = vmatpush1.bf16.msra.mxu0 %v6758
        %6783 = vmatprep.subr.bf16.mxu0 0
        %6784 = vmatpush1.bf16.msra.mxu0 0
        %6785 = vmatprep.subr.bf16.mxu0 0
        %6786 = vmatpush1.bf16.msra.mxu0 0
        %6787 = vmatprep.subr.bf16.mxu0 0
        %6788 = vmatpush1.bf16.msra.mxu0 0
        %6789 = vmatprep.subr.bf16.mxu0 0
        %6790 = vmatpush1.bf16.msra.mxu0 0
        %6791 = vmatprep.subr.bf16.mxu0 0
        %6792 = vmatpush1.bf16.msra.mxu0 0
        %6793 = vmatprep.subr.bf16.mxu0 0
        %6794 = vmatpush1.bf16.msra.mxu0 0
        %6795 = vmatprep.subr.bf16.mxu0 0
        %6796 = vmatpush1.bf16.msra.mxu0 0
        %6797 = vmatprep.subr.bf16.mxu0 0
        %6798 = vmatpush1.bf16.msra.mxu0 0
        %6799 = vmatprep.mubr.bf16.mxu0 0
        %6800 = vmatmul.mubr.bf16.gmra.mrb[0].mxu0 %v6711
        %v6801 = vpop.f32.mrb[0].mxu0
        %v6802 = vadd.f32 0.0, %v6801
        %v6803 = vpop.f32.mrb[0].mxu0
        %v6804 = vpop.f32.mrb[0].mxu0
        %v6805 = vadd.f32 0.0, %v6804
        %v6806 = vpop.f32.mrb[0].mxu0
        %6807 = vmatprep.mubr.bf16.mxu0 0
        %6808 = vmatmul.mubr.bf16.gmra.mrb[0].mxu0 %v6712
        %v6809 = vpop.f32.mrb[0].mxu0
        %v6810 = vadd.f32 0.0, %v6809
        %v6811 = vpop.f32.mrb[0].mxu0
        %v6812 = vpop.f32.mrb[0].mxu0
        %v6813 = vadd.f32 0.0, %v6812
        %v6814 = vpop.f32.mrb[0].mxu0
        %6815 = vmatprep.mubr.bf16.mxu0 0
        %6816 = vmatmul.mubr.bf16.gmra.mrb[0].mxu0 %v6713
        %v6817 = vpop.f32.mrb[0].mxu0
        %v6818 = vadd.f32 0.0, %v6817
        %v6819 = vpop.f32.mrb[0].mxu0
        %v6820 = vpop.f32.mrb[0].mxu0
        %v6821 = vadd.f32 0.0, %v6820
        %v6822 = vpop.f32.mrb[0].mxu0
        %6823 = vmatprep.mubr.bf16.mxu0 0
        %6824 = vmatmul.mubr.bf16.gmra.mrb[0].mxu0 %v6714
        %v6825 = vpop.f32.mrb[0].mxu0
        %v6826 = vadd.f32 0.0, %v6825
        %v6827 = vpop.f32.mrb[0].mxu0
        %v6828 = vpop.f32.mrb[0].mxu0
        %v6829 = vadd.f32 0.0, %v6828
        %v6830 = vpop.f32.mrb[0].mxu0
        %6831 = vdwg.mxu0
        %v6832 = vadd.f32 %v6550, %v6802
        %v6833 = vadd.f32 %v6551, %v6805
        %v6834 = vadd.f32 %v6552, %v6810
        %v6835 = vadd.f32 %v6553, %v6813
        %v6836 = vadd.f32 %v6554, %v6818
        %v6837 = vadd.f32 %v6555, %v6821
        %v6838 = vadd.f32 %v6556, %v6826
        %v6839 = vadd.f32 %v6557, %v6829
        %v6840 = vld [vmem:[%s706] sm:$0xe]
        %v6841 = vld [vmem:[%s706 + $0x8] sm:$0xe]
        %v6842 = vld [vmem:[%s706 + $0x10] sm:$0xe]
        %v6843 = vld [vmem:[%s706 + $0x18] sm:$0xe]
        %v6844 = vld [vmem:[%s706 + $0x20] sm:$0xe]
        %v6845 = vld [vmem:[%s706 + $0x28] sm:$0xe]
        %v6846 = vld [vmem:[%s706 + $0x30] sm:$0xe]
        %v6847 = vld [vmem:[%s706 + $0x38] sm:$0xe]
        %v6864 = vrot.slane %v6840, 5
        %v6865 = vrot.slane %v6864, 4
        %v6866 = vrot.slane %v6559, 5
        %v6867 = vsel %vm1248, %v6865, %v6866
        %v6868 = vrot.slane %v6841, 5
        %v6869 = vrot.slane %v6868, 4
        %v6870 = vrot.slane %v6561, 5
        %v6871 = vsel %vm1248, %v6869, %v6870
        %v6872 = vrot.slane %v6842, 5
        %v6873 = vrot.slane %v6872, 4
        %v6874 = vrot.slane %v6563, 5
        %v6875 = vsel %vm1248, %v6873, %v6874
        %v6876 = vrot.slane %v6843, 5
        %v6877 = vrot.slane %v6876, 4
        %v6878 = vrot.slane %v6565, 5
        %v6879 = vsel %vm1248, %v6877, %v6878
        %v6880 = vrot.slane %v6844, 5
        %v6881 = vrot.slane %v6880, 4
        %v6882 = vrot.slane %v6567, 5
        %v6883 = vsel %vm1248, %v6881, %v6882
        %v6884 = vrot.slane %v6845, 5
        %v6885 = vrot.slane %v6884, 4
        %v6886 = vrot.slane %v6569, 5
        %v6887 = vsel %vm1248, %v6885, %v6886
        %v6888 = vrot.slane %v6846, 5
        %v6889 = vrot.slane %v6888, 4
        %v6890 = vrot.slane %v6571, 5
        %v6891 = vsel %vm1248, %v6889, %v6890
        %v6892 = vrot.slane %v6847, 5
        %v6893 = vrot.slane %v6892, 4
        %v6894 = vrot.slane %v6573, 5
        %v6895 = vsel %vm1248, %v6893, %v6894
        %s6896 = scalar_lea.vmem [#allocation6], 1472
        %v6897 = vld [vmem:[%s6896] sm:$0xf]
        %v6898 = vld [vmem:[%s6896 + $0x4] sm:$0xf]
        %v6899 = vld [vmem:[%s6896 + $0x8] sm:$0xf]
        %v6900 = vld [vmem:[%s6896 + $0xc] sm:$0xf]
        %v6901 = vld [vmem:[%s6896 + $0x10] sm:$0xf]
        %v6902 = vld [vmem:[%s6896 + $0x14] sm:$0xf]
        %v6903 = vld [vmem:[%s6896 + $0x18] sm:$0xf]
        %v6904 = vld [vmem:[%s6896 + $0x1c] sm:$0xf]
        %v6905 = vld [vmem:[%s6896 + $0x20] sm:$0xf]
        %v6906 = vld [vmem:[%s6896 + $0x24] sm:$0xf]
        %v6907 = vld [vmem:[%s6896 + $0x28] sm:$0xf]
        %v6908 = vld [vmem:[%s6896 + $0x2c] sm:$0xf]
        %v6909 = vld [vmem:[%s6896 + $0x30] sm:$0xf]
        %v6910 = vld [vmem:[%s6896 + $0x34] sm:$0xf]
        %v6911 = vld [vmem:[%s6896 + $0x38] sm:$0xf]
        %v6912 = vld [vmem:[%s6896 + $0x3c] sm:$0xf]
        %v6913 = vunpack.c.l.b16 %v6867
        %v6914 = vunpack.c.l.b16 %v6871
        %v6915 = vunpack.c.l.b16 %v6875
        %v6916 = vunpack.c.l.b16 %v6879
        %v6917 = vunpack.c.l.b16 %v6883
        %v6918 = vunpack.c.l.b16 %v6887
        %v6919 = vunpack.c.l.b16 %v6891
        %v6920 = vunpack.c.l.b16 %v6895
        %v6921 = vpack.c.b16 %v6914, %v6913
        %v6922 = vpack.c.b16 %v6916, %v6915
        %v6923 = vpack.c.b16 %v6918, %v6917
        %v6924 = vpack.c.b16 %v6920, %v6919
        %v6945 = vunpack.c.l.b16 %v6897
        %v6946 = vunpack.c.l.b16 %v6898
        %v6947 = vunpack.c.l.b16 %v6899
        %v6948 = vunpack.c.l.b16 %v6900
        %v6949 = vunpack.c.l.b16 %v6901
        %v6950 = vunpack.c.l.b16 %v6902
        %v6951 = vunpack.c.l.b16 %v6903
        %v6952 = vunpack.c.l.b16 %v6904
        %v6953 = vunpack.c.l.b16 %v6905
        %v6954 = vunpack.c.l.b16 %v6906
        %v6955 = vunpack.c.l.b16 %v6907
        %v6956 = vunpack.c.l.b16 %v6908
        %v6957 = vunpack.c.l.b16 %v6909
        %v6958 = vunpack.c.l.b16 %v6910
        %v6959 = vunpack.c.l.b16 %v6911
        %v6960 = vunpack.c.l.b16 %v6912
        %v6961 = vpack.c.b16 %v6946, %v6945
        %v6962 = vpack.c.b16 %v6948, %v6947
        %v6963 = vpack.c.b16 %v6950, %v6949
        %v6964 = vpack.c.b16 %v6952, %v6951
        %v6965 = vpack.c.b16 %v6954, %v6953
        %v6966 = vpack.c.b16 %v6956, %v6955
        %v6967 = vpack.c.b16 %v6958, %v6957
        %v6968 = vpack.c.b16 %v6960, %v6959
        %6977 = vmatprep.subr.bf16.mxu0 0
        %6978 = vmatpush1.bf16.msra.mxu0 %v6961
        %6979 = vmatprep.subr.bf16.mxu0 0
        %6980 = vmatpush1.bf16.msra.mxu0 %v6962
        %6981 = vmatprep.subr.bf16.mxu0 0
        %6982 = vmatpush1.bf16.msra.mxu0 %v6963
        %6983 = vmatprep.subr.bf16.mxu0 0
        %6984 = vmatpush1.bf16.msra.mxu0 %v6964
        %6985 = vmatprep.subr.bf16.mxu0 0
        %6986 = vmatpush1.bf16.msra.mxu0 %v6965
        %6987 = vmatprep.subr.bf16.mxu0 0
        %6988 = vmatpush1.bf16.msra.mxu0 %v6966
        %6989 = vmatprep.subr.bf16.mxu0 0
        %6990 = vmatpush1.bf16.msra.mxu0 %v6967
        %6991 = vmatprep.subr.bf16.mxu0 0
        %6992 = vmatpush1.bf16.msra.mxu0 %v6968
        %6993 = vmatprep.subr.bf16.mxu0 0
        %6994 = vmatpush1.bf16.msra.mxu0 0
        %6995 = vmatprep.subr.bf16.mxu0 0
        %6996 = vmatpush1.bf16.msra.mxu0 0
        %6997 = vmatprep.subr.bf16.mxu0 0
        %6998 = vmatpush1.bf16.msra.mxu0 0
        %6999 = vmatprep.subr.bf16.mxu0 0
        %7000 = vmatpush1.bf16.msra.mxu0 0
        %7001 = vmatprep.subr.bf16.mxu0 0
        %7002 = vmatpush1.bf16.msra.mxu0 0
        %7003 = vmatprep.subr.bf16.mxu0 0
        %7004 = vmatpush1.bf16.msra.mxu0 0
        %7005 = vmatprep.subr.bf16.mxu0 0
        %7006 = vmatpush1.bf16.msra.mxu0 0
        %7007 = vmatprep.subr.bf16.mxu0 0
        %7008 = vmatpush1.bf16.msra.mxu0 0
        %7009 = vmatprep.mubr.bf16.mxu0 0
        %7010 = vmatmul.mubr.bf16.gmra.mrb[0].mxu0 %v6921
        %v7011 = vpop.f32.mrb[0].mxu0
        %v7012 = vadd.f32 0.0, %v7011
        %v7013 = vpop.f32.mrb[0].mxu0
        %v7014 = vpop.f32.mrb[0].mxu0
        %v7015 = vadd.f32 0.0, %v7014
        %v7016 = vpop.f32.mrb[0].mxu0
        %7017 = vmatprep.mubr.bf16.mxu0 0
        %7018 = vmatmul.mubr.bf16.gmra.mrb[0].mxu0 %v6922
        %v7019 = vpop.f32.mrb[0].mxu0
        %v7020 = vadd.f32 0.0, %v7019
        %v7021 = vpop.f32.mrb[0].mxu0
        %v7022 = vpop.f32.mrb[0].mxu0
        %v7023 = vadd.f32 0.0, %v7022
        %v7024 = vpop.f32.mrb[0].mxu0
        %7025 = vmatprep.mubr.bf16.mxu0 0
        %7026 = vmatmul.mubr.bf16.gmra.mrb[0].mxu0 %v6923
        %v7027 = vpop.f32.mrb[0].mxu0
        %v7028 = vadd.f32 0.0, %v7027
        %v7029 = vpop.f32.mrb[0].mxu0
        %v7030 = vpop.f32.mrb[0].mxu0
        %v7031 = vadd.f32 0.0, %v7030
        %v7032 = vpop.f32.mrb[0].mxu0
        %7033 = vmatprep.mubr.bf16.mxu0 0
        %7034 = vmatmul.mubr.bf16.gmra.mrb[0].mxu0 %v6924
        %v7035 = vpop.f32.mrb[0].mxu0
        %v7036 = vadd.f32 0.0, %v7035
        %v7037 = vpop.f32.mrb[0].mxu0
        %v7038 = vpop.f32.mrb[0].mxu0
        %v7039 = vadd.f32 0.0, %v7038
        %v7040 = vpop.f32.mrb[0].mxu0
        %7041 = vdwg.mxu0
        %v7042 = vadd.f32 %v6832, %v7012
        %v7043 = vadd.f32 %v6833, %v7015
        %v7044 = vadd.f32 %v6834, %v7020
        %v7045 = vadd.f32 %v6835, %v7023
        %v7046 = vadd.f32 %v6836, %v7028
        %v7047 = vadd.f32 %v6837, %v7031
        %v7048 = vadd.f32 %v6838, %v7036
        %v7049 = vadd.f32 %v6839, %v7039
        %v7050 = vld [vmem:[%s2097] sm:$0xf]
        %v7051 = vld [vmem:[%s2097 + $0x8] sm:$0xf]
        %v7052 = vld [vmem:[%s2097 + $0x10] sm:$0xf]
        %v7053 = vld [vmem:[%s2097 + $0x18] sm:$0xf]
        %v7054 = vld [vmem:[%s2097 + $0x20] sm:$0xf]
        %v7055 = vld [vmem:[%s2097 + $0x28] sm:$0xf]
        %v7056 = vld [vmem:[%s2097 + $0x30] sm:$0xf]
        %v7057 = vld [vmem:[%s2097 + $0x38] sm:$0xf]
        %s7058 = scalar_lea.vmem [#allocation6], 1536
        %v7059 = vld [vmem:[%s7058] sm:$0xf]
        %v7060 = vld [vmem:[%s7058 + $0x4] sm:$0xf]
        %v7061 = vld [vmem:[%s7058 + $0x8] sm:$0xf]
        %v7062 = vld [vmem:[%s7058 + $0xc] sm:$0xf]
        %v7063 = vld [vmem:[%s7058 + $0x10] sm:$0xf]
        %v7064 = vld [vmem:[%s7058 + $0x14] sm:$0xf]
        %v7065 = vld [vmem:[%s7058 + $0x18] sm:$0xf]
        %v7066 = vld [vmem:[%s7058 + $0x1c] sm:$0xf]
        %v7067 = vld [vmem:[%s7058 + $0x20] sm:$0xf]
        %v7068 = vld [vmem:[%s7058 + $0x24] sm:$0xf]
        %v7069 = vld [vmem:[%s7058 + $0x28] sm:$0xf]
        %v7070 = vld [vmem:[%s7058 + $0x2c] sm:$0xf]
        %v7071 = vld [vmem:[%s7058 + $0x30] sm:$0xf]
        %v7072 = vld [vmem:[%s7058 + $0x34] sm:$0xf]
        %v7073 = vld [vmem:[%s7058 + $0x38] sm:$0xf]
        %v7074 = vld [vmem:[%s7058 + $0x3c] sm:$0xf]
        %v7083 = vunpack.c.l.b16 %v7050
        %v7084 = vunpack.c.l.b16 %v7051
        %v7085 = vunpack.c.l.b16 %v7052
        %v7086 = vunpack.c.l.b16 %v7053
        %v7087 = vunpack.c.l.b16 %v7054
        %v7088 = vunpack.c.l.b16 %v7055
        %v7089 = vunpack.c.l.b16 %v7056
        %v7090 = vunpack.c.l.b16 %v7057
        %v7091 = vpack.c.b16 %v7084, %v7083
        %v7092 = vpack.c.b16 %v7086, %v7085
        %v7093 = vpack.c.b16 %v7088, %v7087
        %v7094 = vpack.c.b16 %v7090, %v7089
        %v7115 = vunpack.c.l.b16 %v7059
        %v7116 = vunpack.c.l.b16 %v7060
        %v7117 = vunpack.c.l.b16 %v7061
        %v7118 = vunpack.c.l.b16 %v7062
        %v7119 = vunpack.c.l.b16 %v7063
        %v7120 = vunpack.c.l.b16 %v7064
        %v7121 = vunpack.c.l.b16 %v7065
        %v7122 = vunpack.c.l.b16 %v7066
        %v7123 = vunpack.c.l.b16 %v7067
        %v7124 = vunpack.c.l.b16 %v7068
        %v7125 = vunpack.c.l.b16 %v7069
        %v7126 = vunpack.c.l.b16 %v7070
        %v7127 = vunpack.c.l.b16 %v7071
        %v7128 = vunpack.c.l.b16 %v7072
        %v7129 = vunpack.c.l.b16 %v7073
        %v7130 = vunpack.c.l.b16 %v7074
        %v7131 = vpack.c.b16 %v7116, %v7115
        %v7132 = vpack.c.b16 %v7118, %v7117
        %v7133 = vpack.c.b16 %v7120, %v7119
        %v7134 = vpack.c.b16 %v7122, %v7121
        %v7135 = vpack.c.b16 %v7124, %v7123
        %v7136 = vpack.c.b16 %v7126, %v7125
        %v7137 = vpack.c.b16 %v7128, %v7127
        %v7138 = vpack.c.b16 %v7130, %v7129
        %7147 = vmatprep.subr.bf16.mxu0 0
        %7148 = vmatpush1.bf16.msra.mxu0 %v7131
        %7149 = vmatprep.subr.bf16.mxu0 0
        %7150 = vmatpush1.bf16.msra.mxu0 %v7132
        %7151 = vmatprep.subr.bf16.mxu0 0
        %7152 = vmatpush1.bf16.msra.mxu0 %v7133
        %7153 = vmatprep.subr.bf16.mxu0 0
        %7154 = vmatpush1.bf16.msra.mxu0 %v7134
        %7155 = vmatprep.subr.bf16.mxu0 0
        %7156 = vmatpush1.bf16.msra.mxu0 %v7135
        %7157 = vmatprep.subr.bf16.mxu0 0
        %7158 = vmatpush1.bf16.msra.mxu0 %v7136
        %7159 = vmatprep.subr.bf16.mxu0 0
        %7160 = vmatpush1.bf16.msra.mxu0 %v7137
        %7161 = vmatprep.subr.bf16.mxu0 0
        %7162 = vmatpush1.bf16.msra.mxu0 %v7138
        %7163 = vmatprep.subr.bf16.mxu0 0
        %7164 = vmatpush1.bf16.msra.mxu0 0
        %7165 = vmatprep.subr.bf16.mxu0 0
        %7166 = vmatpush1.bf16.msra.mxu0 0
        %7167 = vmatprep.subr.bf16.mxu0 0
        %7168 = vmatpush1.bf16.msra.mxu0 0
        %7169 = vmatprep.subr.bf16.mxu0 0
        %7170 = vmatpush1.bf16.msra.mxu0 0
        %7171 = vmatprep.subr.bf16.mxu0 0
        %7172 = vmatpush1.bf16.msra.mxu0 0
        %7173 = vmatprep.subr.bf16.mxu0 0
        %7174 = vmatpush1.bf16.msra.mxu0 0
        %7175 = vmatprep.subr.bf16.mxu0 0
        %7176 = vmatpush1.bf16.msra.mxu0 0
        %7177 = vmatprep.subr.bf16.mxu0 0
        %7178 = vmatpush1.bf16.msra.mxu0 0
        %7179 = vmatprep.mubr.bf16.mxu0 0
        %7180 = vmatmul.mubr.bf16.gmra.mrb[0].mxu0 %v7091
        %v7181 = vpop.f32.mrb[0].mxu0
        %v7182 = vadd.f32 0.0, %v7181
        %v7183 = vpop.f32.mrb[0].mxu0
        %v7184 = vpop.f32.mrb[0].mxu0
        %v7185 = vadd.f32 0.0, %v7184
        %v7186 = vpop.f32.mrb[0].mxu0
        %7187 = vmatprep.mubr.bf16.mxu0 0
        %7188 = vmatmul.mubr.bf16.gmra.mrb[0].mxu0 %v7092
        %v7189 = vpop.f32.mrb[0].mxu0
        %v7190 = vadd.f32 0.0, %v7189
        %v7191 = vpop.f32.mrb[0].mxu0
        %v7192 = vpop.f32.mrb[0].mxu0
        %v7193 = vadd.f32 0.0, %v7192
        %v7194 = vpop.f32.mrb[0].mxu0
        %7195 = vmatprep.mubr.bf16.mxu0 0
        %7196 = vmatmul.mubr.bf16.gmra.mrb[0].mxu0 %v7093
        %v7197 = vpop.f32.mrb[0].mxu0
        %v7198 = vadd.f32 0.0, %v7197
        %v7199 = vpop.f32.mrb[0].mxu0
        %v7200 = vpop.f32.mrb[0].mxu0
        %v7201 = vadd.f32 0.0, %v7200
        %v7202 = vpop.f32.mrb[0].mxu0
        %7203 = vmatprep.mubr.bf16.mxu0 0
        %7204 = vmatmul.mubr.bf16.gmra.mrb[0].mxu0 %v7094
        %v7205 = vpop.f32.mrb[0].mxu0
        %v7206 = vadd.f32 0.0, %v7205
        %v7207 = vpop.f32.mrb[0].mxu0
        %v7208 = vpop.f32.mrb[0].mxu0
        %v7209 = vadd.f32 0.0, %v7208
        %v7210 = vpop.f32.mrb[0].mxu0
        %7211 = vdwg.mxu0
        %v7212 = vadd.f32 %v7042, %v7182
        %v7213 = vadd.f32 %v7043, %v7185
        %v7214 = vadd.f32 %v7044, %v7190
        %v7215 = vadd.f32 %v7045, %v7193
        %v7216 = vadd.f32 %v7046, %v7198
        %v7217 = vadd.f32 %v7047, %v7201
        %v7218 = vadd.f32 %v7048, %v7206
        %v7219 = vadd.f32 %v7049, %v7209
        %v7220 = vld [vmem:[%s2097] sm:$0xf]
        %v7221 = vld [vmem:[%s2097 + $0x4] sm:$0x1]
        %v7222 = vld [vmem:[%s2097 + $0x8] sm:$0xf]
        %v7223 = vld [vmem:[%s2097 + $0xc] sm:$0x1]
        %v7224 = vld [vmem:[%s2097 + $0x10] sm:$0xf]
        %v7225 = vld [vmem:[%s2097 + $0x14] sm:$0x1]
        %v7226 = vld [vmem:[%s2097 + $0x18] sm:$0xf]
        %v7227 = vld [vmem:[%s2097 + $0x1c] sm:$0x1]
        %v7228 = vld [vmem:[%s2097 + $0x20] sm:$0xf]
        %v7229 = vld [vmem:[%s2097 + $0x24] sm:$0x1]
        %v7230 = vld [vmem:[%s2097 + $0x28] sm:$0xf]
        %v7231 = vld [vmem:[%s2097 + $0x2c] sm:$0x1]
        %v7232 = vld [vmem:[%s2097 + $0x30] sm:$0xf]
        %v7233 = vld [vmem:[%s2097 + $0x34] sm:$0x1]
        %v7234 = vld [vmem:[%s2097 + $0x38] sm:$0xf]
        %v7235 = vld [vmem:[%s2097 + $0x3c] sm:$0x1]
        %v7237 = vshrl.u32 %v7220, 16
        %v7239 = vrot.slane %v7237, 4
        %v7240 = vshll.u32 %v7220, 16
        %v7242 = vrot.slane %v7240, 5
        %v7243 = vor.u32 %v7239, %v7242
        %v7244 = vrot.slane %v7243, 4
        %v7246 = vshll.u32 %v7221, 16
        %v7248 = vrot.slane %v7246, 5
        %v7249 = vsel %vm955, %v7244, %v7248
        %v7251 = vshrl.u32 %v7222, 16
        %v7253 = vrot.slane %v7251, 4
        %v7254 = vshll.u32 %v7222, 16
        %v7256 = vrot.slane %v7254, 5
        %v7257 = vor.u32 %v7253, %v7256
        %v7258 = vrot.slane %v7257, 4
        %v7260 = vshll.u32 %v7223, 16
        %v7262 = vrot.slane %v7260, 5
        %v7263 = vsel %vm955, %v7258, %v7262
        %v7265 = vshrl.u32 %v7224, 16
        %v7267 = vrot.slane %v7265, 4
        %v7268 = vshll.u32 %v7224, 16
        %v7270 = vrot.slane %v7268, 5
        %v7271 = vor.u32 %v7267, %v7270
        %v7272 = vrot.slane %v7271, 4
        %v7274 = vshll.u32 %v7225, 16
        %v7276 = vrot.slane %v7274, 5
        %v7277 = vsel %vm955, %v7272, %v7276
        %v7279 = vshrl.u32 %v7226, 16
        %v7281 = vrot.slane %v7279, 4
        %v7282 = vshll.u32 %v7226, 16
        %v7284 = vrot.slane %v7282, 5
        %v7285 = vor.u32 %v7281, %v7284
        %v7286 = vrot.slane %v7285, 4
        %v7288 = vshll.u32 %v7227, 16
        %v7290 = vrot.slane %v7288, 5
        %v7291 = vsel %vm955, %v7286, %v7290
        %v7293 = vshrl.u32 %v7228, 16
        %v7295 = vrot.slane %v7293, 4
        %v7296 = vshll.u32 %v7228, 16
        %v7298 = vrot.slane %v7296, 5
        %v7299 = vor.u32 %v7295, %v7298
        %v7300 = vrot.slane %v7299, 4
        %v7302 = vshll.u32 %v7229, 16
        %v7304 = vrot.slane %v7302, 5
        %v7305 = vsel %vm955, %v7300, %v7304
        %v7307 = vshrl.u32 %v7230, 16
        %v7309 = vrot.slane %v7307, 4
        %v7310 = vshll.u32 %v7230, 16
        %v7312 = vrot.slane %v7310, 5
        %v7313 = vor.u32 %v7309, %v7312
        %v7314 = vrot.slane %v7313, 4
        %v7316 = vshll.u32 %v7231, 16
        %v7318 = vrot.slane %v7316, 5
        %v7319 = vsel %vm955, %v7314, %v7318
        %v7321 = vshrl.u32 %v7232, 16
        %v7323 = vrot.slane %v7321, 4
        %v7324 = vshll.u32 %v7232, 16
        %v7326 = vrot.slane %v7324, 5
        %v7327 = vor.u32 %v7323, %v7326
        %v7328 = vrot.slane %v7327, 4
        %v7330 = vshll.u32 %v7233, 16
        %v7332 = vrot.slane %v7330, 5
        %v7333 = vsel %vm955, %v7328, %v7332
        %v7335 = vshrl.u32 %v7234, 16
        %v7337 = vrot.slane %v7335, 4
        %v7338 = vshll.u32 %v7234, 16
        %v7340 = vrot.slane %v7338, 5
        %v7341 = vor.u32 %v7337, %v7340
        %v7342 = vrot.slane %v7341, 4
        %v7344 = vshll.u32 %v7235, 16
        %v7346 = vrot.slane %v7344, 5
        %v7347 = vsel %vm955, %v7342, %v7346
        %s7348 = scalar_lea.vmem [#allocation6], 1600
        %v7349 = vld [vmem:[%s7348] sm:$0xf]
        %v7350 = vld [vmem:[%s7348 + $0x4] sm:$0xf]
        %v7351 = vld [vmem:[%s7348 + $0x8] sm:$0xf]
        %v7352 = vld [vmem:[%s7348 + $0xc] sm:$0xf]
        %v7353 = vld [vmem:[%s7348 + $0x10] sm:$0xf]
        %v7354 = vld [vmem:[%s7348 + $0x14] sm:$0xf]
        %v7355 = vld [vmem:[%s7348 + $0x18] sm:$0xf]
        %v7356 = vld [vmem:[%s7348 + $0x1c] sm:$0xf]
        %v7357 = vld [vmem:[%s7348 + $0x20] sm:$0xf]
        %v7358 = vld [vmem:[%s7348 + $0x24] sm:$0xf]
        %v7359 = vld [vmem:[%s7348 + $0x28] sm:$0xf]
        %v7360 = vld [vmem:[%s7348 + $0x2c] sm:$0xf]
        %v7361 = vld [vmem:[%s7348 + $0x30] sm:$0xf]
        %v7362 = vld [vmem:[%s7348 + $0x34] sm:$0xf]
        %v7363 = vld [vmem:[%s7348 + $0x38] sm:$0xf]
        %v7364 = vld [vmem:[%s7348 + $0x3c] sm:$0xf]
        %v7365 = vunpack.c.l.b16 %v7249
        %v7366 = vunpack.c.l.b16 %v7263
        %v7367 = vunpack.c.l.b16 %v7277
        %v7368 = vunpack.c.l.b16 %v7291
        %v7369 = vunpack.c.l.b16 %v7305
        %v7370 = vunpack.c.l.b16 %v7319
        %v7371 = vunpack.c.l.b16 %v7333
        %v7372 = vunpack.c.l.b16 %v7347
        %v7373 = vpack.c.b16 %v7366, %v7365
        %v7374 = vpack.c.b16 %v7368, %v7367
        %v7375 = vpack.c.b16 %v7370, %v7369
        %v7376 = vpack.c.b16 %v7372, %v7371
        %v7397 = vunpack.c.l.b16 %v7349
        %v7398 = vunpack.c.l.b16 %v7350
        %v7399 = vunpack.c.l.b16 %v7351
        %v7400 = vunpack.c.l.b16 %v7352
        %v7401 = vunpack.c.l.b16 %v7353
        %v7402 = vunpack.c.l.b16 %v7354
        %v7403 = vunpack.c.l.b16 %v7355
        %v7404 = vunpack.c.l.b16 %v7356
        %v7405 = vunpack.c.l.b16 %v7357
        %v7406 = vunpack.c.l.b16 %v7358
        %v7407 = vunpack.c.l.b16 %v7359
        %v7408 = vunpack.c.l.b16 %v7360
        %v7409 = vunpack.c.l.b16 %v7361
        %v7410 = vunpack.c.l.b16 %v7362
        %v7411 = vunpack.c.l.b16 %v7363
        %v7412 = vunpack.c.l.b16 %v7364
        %v7413 = vpack.c.b16 %v7398, %v7397
        %v7414 = vpack.c.b16 %v7400, %v7399
        %v7415 = vpack.c.b16 %v7402, %v7401
        %v7416 = vpack.c.b16 %v7404, %v7403
        %v7417 = vpack.c.b16 %v7406, %v7405
        %v7418 = vpack.c.b16 %v7408, %v7407
        %v7419 = vpack.c.b16 %v7410, %v7409
        %v7420 = vpack.c.b16 %v7412, %v7411
        %7429 = vmatprep.subr.bf16.mxu0 0
        %7430 = vmatpush1.bf16.msra.mxu0 %v7413
        %7431 = vmatprep.subr.bf16.mxu0 0
        %7432 = vmatpush1.bf16.msra.mxu0 %v7414
        %7433 = vmatprep.subr.bf16.mxu0 0
        %7434 = vmatpush1.bf16.msra.mxu0 %v7415
        %7435 = vmatprep.subr.bf16.mxu0 0
        %7436 = vmatpush1.bf16.msra.mxu0 %v7416
        %7437 = vmatprep.subr.bf16.mxu0 0
        %7438 = vmatpush1.bf16.msra.mxu0 %v7417
        %7439 = vmatprep.subr.bf16.mxu0 0
        %7440 = vmatpush1.bf16.msra.mxu0 %v7418
        %7441 = vmatprep.subr.bf16.mxu0 0
        %7442 = vmatpush1.bf16.msra.mxu0 %v7419
        %7443 = vmatprep.subr.bf16.mxu0 0
        %7444 = vmatpush1.bf16.msra.mxu0 %v7420
        %7445 = vmatprep.subr.bf16.mxu0 0
        %7446 = vmatpush1.bf16.msra.mxu0 0
        %7447 = vmatprep.subr.bf16.mxu0 0
        %7448 = vmatpush1.bf16.msra.mxu0 0
        %7449 = vmatprep.subr.bf16.mxu0 0
        %7450 = vmatpush1.bf16.msra.mxu0 0
        %7451 = vmatprep.subr.bf16.mxu0 0
        %7452 = vmatpush1.bf16.msra.mxu0 0
        %7453 = vmatprep.subr.bf16.mxu0 0
        %7454 = vmatpush1.bf16.msra.mxu0 0
        %7455 = vmatprep.subr.bf16.mxu0 0
        %7456 = vmatpush1.bf16.msra.mxu0 0
        %7457 = vmatprep.subr.bf16.mxu0 0
        %7458 = vmatpush1.bf16.msra.mxu0 0
        %7459 = vmatprep.subr.bf16.mxu0 0
        %7460 = vmatpush1.bf16.msra.mxu0 0
        %7461 = vmatprep.mubr.bf16.mxu0 0
        %7462 = vmatmul.mubr.bf16.gmra.mrb[0].mxu0 %v7373
        %v7463 = vpop.f32.mrb[0].mxu0
        %v7464 = vadd.f32 0.0, %v7463
        %v7465 = vpop.f32.mrb[0].mxu0
        %v7466 = vpop.f32.mrb[0].mxu0
        %v7467 = vadd.f32 0.0, %v7466
        %v7468 = vpop.f32.mrb[0].mxu0
        %7469 = vmatprep.mubr.bf16.mxu0 0
        %7470 = vmatmul.mubr.bf16.gmra.mrb[0].mxu0 %v7374
        %v7471 = vpop.f32.mrb[0].mxu0
        %v7472 = vadd.f32 0.0, %v7471
        %v7473 = vpop.f32.mrb[0].mxu0
        %v7474 = vpop.f32.mrb[0].mxu0
        %v7475 = vadd.f32 0.0, %v7474
        %v7476 = vpop.f32.mrb[0].mxu0
        %7477 = vmatprep.mubr.bf16.mxu0 0
        %7478 = vmatmul.mubr.bf16.gmra.mrb[0].mxu0 %v7375
        %v7479 = vpop.f32.mrb[0].mxu0
        %v7480 = vadd.f32 0.0, %v7479
        %v7481 = vpop.f32.mrb[0].mxu0
        %v7482 = vpop.f32.mrb[0].mxu0
        %v7483 = vadd.f32 0.0, %v7482
        %v7484 = vpop.f32.mrb[0].mxu0
        %7485 = vmatprep.mubr.bf16.mxu0 0
        %7486 = vmatmul.mubr.bf16.gmra.mrb[0].mxu0 %v7376
        %v7487 = vpop.f32.mrb[0].mxu0
        %v7488 = vadd.f32 0.0, %v7487
        %v7489 = vpop.f32.mrb[0].mxu0
        %v7490 = vpop.f32.mrb[0].mxu0
        %v7491 = vadd.f32 0.0, %v7490
        %v7492 = vpop.f32.mrb[0].mxu0
        %7493 = vdwg.mxu0
        %v7494 = vadd.f32 %v7212, %v7464
        %v7495 = vadd.f32 %v7213, %v7467
        %v7496 = vadd.f32 %v7214, %v7472
        %v7497 = vadd.f32 %v7215, %v7475
        %v7498 = vadd.f32 %v7216, %v7480
        %v7499 = vadd.f32 %v7217, %v7483
        %v7500 = vadd.f32 %v7218, %v7488
        %v7501 = vadd.f32 %v7219, %v7491
        %v7502 = vld [vmem:[%s2097] sm:$0xe]
        %v7503 = vld [vmem:[%s2097 + $0x8] sm:$0xe]
        %v7504 = vld [vmem:[%s2097 + $0x10] sm:$0xe]
        %v7505 = vld [vmem:[%s2097 + $0x18] sm:$0xe]
        %v7506 = vld [vmem:[%s2097 + $0x20] sm:$0xe]
        %v7507 = vld [vmem:[%s2097 + $0x28] sm:$0xe]
        %v7508 = vld [vmem:[%s2097 + $0x30] sm:$0xe]
        %v7509 = vld [vmem:[%s2097 + $0x38] sm:$0xe]
        %v7526 = vrot.slane %v7502, 5
        %v7527 = vrot.slane %v7526, 4
        %v7528 = vrot.slane %v7221, 5
        %v7529 = vsel %vm1248, %v7527, %v7528
        %v7530 = vrot.slane %v7503, 5
        %v7531 = vrot.slane %v7530, 4
        %v7532 = vrot.slane %v7223, 5
        %v7533 = vsel %vm1248, %v7531, %v7532
        %v7534 = vrot.slane %v7504, 5
        %v7535 = vrot.slane %v7534, 4
        %v7536 = vrot.slane %v7225, 5
        %v7537 = vsel %vm1248, %v7535, %v7536
        %v7538 = vrot.slane %v7505, 5
        %v7539 = vrot.slane %v7538, 4
        %v7540 = vrot.slane %v7227, 5
        %v7541 = vsel %vm1248, %v7539, %v7540
        %v7542 = vrot.slane %v7506, 5
        %v7543 = vrot.slane %v7542, 4
        %v7544 = vrot.slane %v7229, 5
        %v7545 = vsel %vm1248, %v7543, %v7544
        %v7546 = vrot.slane %v7507, 5
        %v7547 = vrot.slane %v7546, 4
        %v7548 = vrot.slane %v7231, 5
        %v7549 = vsel %vm1248, %v7547, %v7548
        %v7550 = vrot.slane %v7508, 5
        %v7551 = vrot.slane %v7550, 4
        %v7552 = vrot.slane %v7233, 5
        %v7553 = vsel %vm1248, %v7551, %v7552
        %v7554 = vrot.slane %v7509, 5
        %v7555 = vrot.slane %v7554, 4
        %v7556 = vrot.slane %v7235, 5
        %v7557 = vsel %vm1248, %v7555, %v7556
        %s7558 = scalar_lea.vmem [#allocation6], 1664
        %v7559 = vld [vmem:[%s7558] sm:$0xf]
        %v7560 = vld [vmem:[%s7558 + $0x4] sm:$0xf]
        %v7561 = vld [vmem:[%s7558 + $0x8] sm:$0xf]
        %v7562 = vld [vmem:[%s7558 + $0xc] sm:$0xf]
        %v7563 = vld [vmem:[%s7558 + $0x10] sm:$0xf]
        %v7564 = vld [vmem:[%s7558 + $0x14] sm:$0xf]
        %v7565 = vld [vmem:[%s7558 + $0x18] sm:$0xf]
        %v7566 = vld [vmem:[%s7558 + $0x1c] sm:$0xf]
        %v7567 = vld [vmem:[%s7558 + $0x20] sm:$0xf]
        %v7568 = vld [vmem:[%s7558 + $0x24] sm:$0xf]
        %v7569 = vld [vmem:[%s7558 + $0x28] sm:$0xf]
        %v7570 = vld [vmem:[%s7558 + $0x2c] sm:$0xf]
        %v7571 = vld [vmem:[%s7558 + $0x30] sm:$0xf]
        %v7572 = vld [vmem:[%s7558 + $0x34] sm:$0xf]
        %v7573 = vld [vmem:[%s7558 + $0x38] sm:$0xf]
        %v7574 = vld [vmem:[%s7558 + $0x3c] sm:$0xf]
        %v7575 = vunpack.c.l.b16 %v7529
        %v7576 = vunpack.c.l.b16 %v7533
        %v7577 = vunpack.c.l.b16 %v7537
        %v7578 = vunpack.c.l.b16 %v7541
        %v7579 = vunpack.c.l.b16 %v7545
        %v7580 = vunpack.c.l.b16 %v7549
        %v7581 = vunpack.c.l.b16 %v7553
        %v7582 = vunpack.c.l.b16 %v7557
        %v7583 = vpack.c.b16 %v7576, %v7575
        %v7584 = vpack.c.b16 %v7578, %v7577
        %v7585 = vpack.c.b16 %v7580, %v7579
        %v7586 = vpack.c.b16 %v7582, %v7581
        %v7607 = vunpack.c.l.b16 %v7559
        %v7608 = vunpack.c.l.b16 %v7560
        %v7609 = vunpack.c.l.b16 %v7561
        %v7610 = vunpack.c.l.b16 %v7562
        %v7611 = vunpack.c.l.b16 %v7563
        %v7612 = vunpack.c.l.b16 %v7564
        %v7613 = vunpack.c.l.b16 %v7565
        %v7614 = vunpack.c.l.b16 %v7566
        %v7615 = vunpack.c.l.b16 %v7567
        %v7616 = vunpack.c.l.b16 %v7568
        %v7617 = vunpack.c.l.b16 %v7569
        %v7618 = vunpack.c.l.b16 %v7570
        %v7619 = vunpack.c.l.b16 %v7571
        %v7620 = vunpack.c.l.b16 %v7572
        %v7621 = vunpack.c.l.b16 %v7573
        %v7622 = vunpack.c.l.b16 %v7574
        %v7623 = vpack.c.b16 %v7608, %v7607
        %v7624 = vpack.c.b16 %v7610, %v7609
        %v7625 = vpack.c.b16 %v7612, %v7611
        %v7626 = vpack.c.b16 %v7614, %v7613
        %v7627 = vpack.c.b16 %v7616, %v7615
        %v7628 = vpack.c.b16 %v7618, %v7617
        %v7629 = vpack.c.b16 %v7620, %v7619
        %v7630 = vpack.c.b16 %v7622, %v7621
        %7639 = vmatprep.subr.bf16.mxu0 0
        %7640 = vmatpush1.bf16.msra.mxu0 %v7623
        %7641 = vmatprep.subr.bf16.mxu0 0
        %7642 = vmatpush1.bf16.msra.mxu0 %v7624
        %7643 = vmatprep.subr.bf16.mxu0 0
        %7644 = vmatpush1.bf16.msra.mxu0 %v7625
        %7645 = vmatprep.subr.bf16.mxu0 0
        %7646 = vmatpush1.bf16.msra.mxu0 %v7626
        %7647 = vmatprep.subr.bf16.mxu0 0
        %7648 = vmatpush1.bf16.msra.mxu0 %v7627
        %7649 = vmatprep.subr.bf16.mxu0 0
        %7650 = vmatpush1.bf16.msra.mxu0 %v7628
        %7651 = vmatprep.subr.bf16.mxu0 0
        %7652 = vmatpush1.bf16.msra.mxu0 %v7629
        %7653 = vmatprep.subr.bf16.mxu0 0
        %7654 = vmatpush1.bf16.msra.mxu0 %v7630
        %7655 = vmatprep.subr.bf16.mxu0 0
        %7656 = vmatpush1.bf16.msra.mxu0 0
        %7657 = vmatprep.subr.bf16.mxu0 0
        %7658 = vmatpush1.bf16.msra.mxu0 0
        %7659 = vmatprep.subr.bf16.mxu0 0
        %7660 = vmatpush1.bf16.msra.mxu0 0
        %7661 = vmatprep.subr.bf16.mxu0 0
        %7662 = vmatpush1.bf16.msra.mxu0 0
        %7663 = vmatprep.subr.bf16.mxu0 0
        %7664 = vmatpush1.bf16.msra.mxu0 0
        %7665 = vmatprep.subr.bf16.mxu0 0
        %7666 = vmatpush1.bf16.msra.mxu0 0
        %7667 = vmatprep.subr.bf16.mxu0 0
        %7668 = vmatpush1.bf16.msra.mxu0 0
        %7669 = vmatprep.subr.bf16.mxu0 0
        %7670 = vmatpush1.bf16.msra.mxu0 0
        %7671 = vmatprep.mubr.bf16.mxu0 0
        %7672 = vmatmul.mubr.bf16.gmra.mrb[0].mxu0 %v7583
        %v7673 = vpop.f32.mrb[0].mxu0
        %v7674 = vadd.f32 0.0, %v7673
        %v7675 = vpop.f32.mrb[0].mxu0
        %v7676 = vpop.f32.mrb[0].mxu0
        %v7677 = vadd.f32 0.0, %v7676
        %v7678 = vpop.f32.mrb[0].mxu0
        %7679 = vmatprep.mubr.bf16.mxu0 0
        %7680 = vmatmul.mubr.bf16.gmra.mrb[0].mxu0 %v7584
        %v7681 = vpop.f32.mrb[0].mxu0
        %v7682 = vadd.f32 0.0, %v7681
        %v7683 = vpop.f32.mrb[0].mxu0
        %v7684 = vpop.f32.mrb[0].mxu0
        %v7685 = vadd.f32 0.0, %v7684
        %v7686 = vpop.f32.mrb[0].mxu0
        %7687 = vmatprep.mubr.bf16.mxu0 0
        %7688 = vmatmul.mubr.bf16.gmra.mrb[0].mxu0 %v7585
        %v7689 = vpop.f32.mrb[0].mxu0
        %v7690 = vadd.f32 0.0, %v7689
        %v7691 = vpop.f32.mrb[0].mxu0
        %v7692 = vpop.f32.mrb[0].mxu0
        %v7693 = vadd.f32 0.0, %v7692
        %v7694 = vpop.f32.mrb[0].mxu0
        %7695 = vmatprep.mubr.bf16.mxu0 0
        %7696 = vmatmul.mubr.bf16.gmra.mrb[0].mxu0 %v7586
        %v7697 = vpop.f32.mrb[0].mxu0
        %v7698 = vadd.f32 0.0, %v7697
        %v7699 = vpop.f32.mrb[0].mxu0
        %v7700 = vpop.f32.mrb[0].mxu0
        %v7701 = vadd.f32 0.0, %v7700
        %v7702 = vpop.f32.mrb[0].mxu0
        %7703 = vdwg.mxu0
        %v7704 = vadd.f32 %v7494, %v7674
        %v7705 = vadd.f32 %v7495, %v7677
        %v7706 = vadd.f32 %v7496, %v7682
        %v7707 = vadd.f32 %v7497, %v7685
        %v7708 = vadd.f32 %v7498, %v7690
        %v7709 = vadd.f32 %v7499, %v7693
        %v7710 = vadd.f32 %v7500, %v7698
        %v7711 = vadd.f32 %v7501, %v7701
        %v7712 = vmax.f32 %v7704, 0.0
        %v7713 = vmax.f32 %v7705, 0.0
        %v7714 = vmax.f32 %v7706, 0.0
        %v7715 = vmax.f32 %v7707, 0.0
        %v7716 = vmax.f32 %v7708, 0.0
        %v7717 = vmax.f32 %v7709, 0.0
        %v7718 = vmax.f32 %v7710, 0.0
        %v7719 = vmax.f32 %v7711, 0.0
        %v7720 = vpack.c.bf16 %v7713, %v7712
        %v7721 = vpack.c.bf16 %v7715, %v7714
        %v7722 = vpack.c.bf16 %v7717, %v7716
        %v7723 = vpack.c.bf16 %v7719, %v7718
        %s7724 = scalar_lea.vmem %s5, 128
        %v7725 = vld [vmem:[%s7724] sm:$0xf]
        %v7726 = vld [vmem:[%s7724 + $0x4] sm:$0xf]
        %v7727 = vld [vmem:[%s7724 + $0x8] sm:$0xf]
        %v7728 = vld [vmem:[%s7724 + $0xc] sm:$0xf]
        %v7729 = vld [vmem:[%s7724 + $0x10] sm:$0xf]
        %v7730 = vld [vmem:[%s7724 + $0x14] sm:$0xf]
        %v7731 = vld [vmem:[%s7724 + $0x18] sm:$0xf]
        %v7732 = vld [vmem:[%s7724 + $0x1c] sm:$0xf]
        %v7733 = vld [vmem:[%s7724 + $0x20] sm:$0xf]
        %v7734 = vld [vmem:[%s7724 + $0x24] sm:$0xf]
        %v7735 = vld [vmem:[%s7724 + $0x28] sm:$0xf]
        %v7736 = vld [vmem:[%s7724 + $0x2c] sm:$0xf]
        %v7737 = vld [vmem:[%s7724 + $0x30] sm:$0xf]
        %v7738 = vld [vmem:[%s7724 + $0x34] sm:$0xf]
        %v7739 = vld [vmem:[%s7724 + $0x38] sm:$0xf]
        %v7740 = vld [vmem:[%s7724 + $0x3c] sm:$0xf]
        %s7741 = scalar_lea.vmem %s6, 2
        %v7742 = vld [vmem:[%s7741] sm:$0x1]
        %v7744 = vlaneseq
        %v7745 = vshrl.u32 %v7744, 7
        %v7746 = vsub.s32 0, %v7745
        %v7747 = vrot.slane %v7742, %v7746
        %v7765 = vunpack.c.l.b16 %v7725
        %v7766 = vunpack.c.l.b16 %v7726
        %v7767 = vunpack.c.l.b16 %v7727
        %v7768 = vunpack.c.l.b16 %v7728
        %v7769 = vunpack.c.l.b16 %v7729
        %v7770 = vunpack.c.l.b16 %v7730
        %v7771 = vunpack.c.l.b16 %v7731
        %v7772 = vunpack.c.l.b16 %v7732
        %v7773 = vunpack.c.l.b16 %v7733
        %v7774 = vunpack.c.l.b16 %v7734
        %v7775 = vunpack.c.l.b16 %v7735
        %v7776 = vunpack.c.l.b16 %v7736
        %v7777 = vunpack.c.l.b16 %v7737
        %v7778 = vunpack.c.l.b16 %v7738
        %v7779 = vunpack.c.l.b16 %v7739
        %v7780 = vunpack.c.l.b16 %v7740
        %v7781 = vpack.c.b16 %v7766, %v7765
        %v7782 = vpack.c.b16 %v7768, %v7767
        %v7783 = vpack.c.b16 %v7770, %v7769
        %v7784 = vpack.c.b16 %v7772, %v7771
        %v7785 = vpack.c.b16 %v7774, %v7773
        %v7786 = vpack.c.b16 %v7776, %v7775
        %v7787 = vpack.c.b16 %v7778, %v7777
        %v7788 = vpack.c.b16 %v7780, %v7779
        %7797 = vmatprep.subr.bf16.mxu0 0
        %7798 = vmatpush1.bf16.msra.mxu0 %v7781
        %7799 = vmatprep.subr.bf16.mxu0 0
        %7800 = vmatpush1.bf16.msra.mxu0 %v7782
        %7801 = vmatprep.subr.bf16.mxu0 0
        %7802 = vmatpush1.bf16.msra.mxu0 %v7783
        %7803 = vmatprep.subr.bf16.mxu0 0
        %7804 = vmatpush1.bf16.msra.mxu0 %v7784
        %7805 = vmatprep.subr.bf16.mxu0 0
        %7806 = vmatpush1.bf16.msra.mxu0 %v7785
        %7807 = vmatprep.subr.bf16.mxu0 0
        %7808 = vmatpush1.bf16.msra.mxu0 %v7786
        %7809 = vmatprep.subr.bf16.mxu0 0
        %7810 = vmatpush1.bf16.msra.mxu0 %v7787
        %7811 = vmatprep.subr.bf16.mxu0 0
        %7812 = vmatpush1.bf16.msra.mxu0 %v7788
        %7813 = vmatprep.subr.bf16.mxu0 0
        %7814 = vmatpush1.bf16.msra.mxu0 0
        %7815 = vmatprep.subr.bf16.mxu0 0
        %7816 = vmatpush1.bf16.msra.mxu0 0
        %7817 = vmatprep.subr.bf16.mxu0 0
        %7818 = vmatpush1.bf16.msra.mxu0 0
        %7819 = vmatprep.subr.bf16.mxu0 0
        %7820 = vmatpush1.bf16.msra.mxu0 0
        %7821 = vmatprep.subr.bf16.mxu0 0
        %7822 = vmatpush1.bf16.msra.mxu0 0
        %7823 = vmatprep.subr.bf16.mxu0 0
        %7824 = vmatpush1.bf16.msra.mxu0 0
        %7825 = vmatprep.subr.bf16.mxu0 0
        %7826 = vmatpush1.bf16.msra.mxu0 0
        %7827 = vmatprep.subr.bf16.mxu0 0
        %7828 = vmatpush1.bf16.msra.mxu0 0
        %7829 = vmatprep.mubr.bf16.mxu0 0
        %7830 = vmatmul.mubr.bf16.gmra.mrb[0].mxu0 %v7720
        %v7831 = vpop.f32.mrb[0].mxu0
        %v7832 = vadd.f32 %v7747, %v7831
        %v7833 = vpop.f32.mrb[0].mxu0
        %v7834 = vpop.f32.mrb[0].mxu0
        %v7835 = vadd.f32 %v7747, %v7834
        %v7836 = vpop.f32.mrb[0].mxu0
        %7837 = vmatprep.mubr.bf16.mxu0 0
        %7838 = vmatmul.mubr.bf16.gmra.mrb[0].mxu0 %v7721
        %v7839 = vpop.f32.mrb[0].mxu0
        %v7840 = vadd.f32 %v7747, %v7839
        %v7841 = vpop.f32.mrb[0].mxu0
        %v7842 = vpop.f32.mrb[0].mxu0
        %v7843 = vadd.f32 %v7747, %v7842
        %v7844 = vpop.f32.mrb[0].mxu0
        %7845 = vmatprep.mubr.bf16.mxu0 0
        %7846 = vmatmul.mubr.bf16.gmra.mrb[0].mxu0 %v7722
        %v7847 = vpop.f32.mrb[0].mxu0
        %v7848 = vadd.f32 %v7747, %v7847
        %v7849 = vpop.f32.mrb[0].mxu0
        %v7850 = vpop.f32.mrb[0].mxu0
        %v7851 = vadd.f32 %v7747, %v7850
        %v7852 = vpop.f32.mrb[0].mxu0
        %7853 = vmatprep.mubr.bf16.mxu0 0
        %7854 = vmatmul.mubr.bf16.gmra.mrb[0].mxu0 %v7723
        %v7855 = vpop.f32.mrb[0].mxu0
        %v7856 = vadd.f32 %v7747, %v7855
        %v7857 = vpop.f32.mrb[0].mxu0
        %v7858 = vpop.f32.mrb[0].mxu0
        %v7859 = vadd.f32 %v7747, %v7858
        %v7860 = vpop.f32.mrb[0].mxu0
        %7861 = vdwg.mxu0
        %v7862 = vunpack.c.l.bf16 %v5409
        %v7863 = vunpack.c.h.bf16 %v5409
        %v7864 = vunpack.c.l.bf16 %v5410
        %v7865 = vunpack.c.h.bf16 %v5410
        %v7866 = vunpack.c.l.bf16 %v5411
        %v7867 = vunpack.c.h.bf16 %v5411
        %v7868 = vunpack.c.l.bf16 %v5412
        %v7869 = vunpack.c.h.bf16 %v5412
        %v7870 = vadd.f32 %v7832, %v7862
        %v7871 = vadd.f32 %v7835, %v7863
        %v7872 = vadd.f32 %v7840, %v7864
        %v7873 = vadd.f32 %v7843, %v7865
        %v7874 = vadd.f32 %v7848, %v7866
        %v7875 = vadd.f32 %v7851, %v7867
        %v7876 = vadd.f32 %v7856, %v7868
        %v7877 = vadd.f32 %v7859, %v7869
        %v7878 = vmax.f32 %v7870, 0.0
        %v7879 = vmax.f32 %v7871, 0.0
        %v7880 = vmax.f32 %v7872, 0.0
        %v7881 = vmax.f32 %v7873, 0.0
        %v7882 = vmax.f32 %v7874, 0.0
        %v7883 = vmax.f32 %v7875, 0.0
        %v7884 = vmax.f32 %v7876, 0.0
        %v7885 = vmax.f32 %v7877, 0.0
        %v7886 = vpack.c.bf16 %v7879, %v7878
        %v7887 = vpack.c.bf16 %v7881, %v7880
        %v7888 = vpack.c.bf16 %v7883, %v7882
        %v7889 = vpack.c.bf16 %v7885, %v7884
        %v7894 = vunpack.c.l.b16 %v7886
        %v7895 = vunpack.c.h.b16 %v7886
        %v7896 = vunpack.c.l.b16 %v7887
        %v7897 = vunpack.c.h.b16 %v7887
        %v7898 = vunpack.c.l.b16 %v7888
        %v7899 = vunpack.c.h.b16 %v7888
        %v7900 = vunpack.c.l.b16 %v7889
        %v7901 = vunpack.c.h.b16 %v7889
        %v7902 = vpack.c.b16 %v7894, %v7894
        %v7903 = vpack.c.b16 %v7895, %v7895
        %v7904 = vpack.c.b16 %v7896, %v7896
        %v7905 = vpack.c.b16 %v7897, %v7897
        %v7906 = vpack.c.b16 %v7898, %v7898
        %v7907 = vpack.c.b16 %v7899, %v7899
        %v7908 = vpack.c.b16 %v7900, %v7900
        %v7909 = vpack.c.b16 %v7901, %v7901
        %v7911 = vshrl.u32 %v7902, 16
        %v7913 = vrot.slane %v7911, 7
        %v7914 = vshll.u32 %v7902, 16
        %v7916 = vor.u32 %v7913, %v7914
        %v7917 = vrot.slane %v7913, 4
        %v7919 = vshrl.u32 %v7903, 16
        %v7921 = vrot.slane %v7919, 7
        %v7922 = vshll.u32 %v7903, 16
        %v7924 = vor.u32 %v7921, %v7922
        %v7925 = vrot.slane %v7921, 4
        %v7927 = vshrl.u32 %v7904, 16
        %v7929 = vrot.slane %v7927, 7
        %v7930 = vshll.u32 %v7904, 16
        %v7932 = vor.u32 %v7929, %v7930
        %v7933 = vrot.slane %v7929, 4
        %v7935 = vshrl.u32 %v7905, 16
        %v7937 = vrot.slane %v7935, 7
        %v7938 = vshll.u32 %v7905, 16
        %v7940 = vor.u32 %v7937, %v7938
        %v7941 = vrot.slane %v7937, 4
        %v7943 = vshrl.u32 %v7906, 16
        %v7945 = vrot.slane %v7943, 7
        %v7946 = vshll.u32 %v7906, 16
        %v7948 = vor.u32 %v7945, %v7946
        %v7949 = vrot.slane %v7945, 4
        %v7951 = vshrl.u32 %v7907, 16
        %v7953 = vrot.slane %v7951, 7
        %v7954 = vshll.u32 %v7907, 16
        %v7956 = vor.u32 %v7953, %v7954
        %v7957 = vrot.slane %v7953, 4
        %v7959 = vshrl.u32 %v7908, 16
        %v7961 = vrot.slane %v7959, 7
        %v7962 = vshll.u32 %v7908, 16
        %v7964 = vor.u32 %v7961, %v7962
        %v7965 = vrot.slane %v7961, 4
        %v7967 = vshrl.u32 %v7909, 16
        %v7969 = vrot.slane %v7967, 7
        %v7970 = vshll.u32 %v7909, 16
        %v7972 = vor.u32 %v7969, %v7970
        %v7973 = vrot.slane %v7969, 4
        %s7990 = scalar_lea.vmem [#allocation3], 8
        %v7991 = vld [vmem:[%s7990] sm:$0xf]
        %v7992 = vsel %vm709, %v7916, %v7991
        %7993 = vst [vmem:[%s7990] sm:$0xf] %v7992
        %v7994 = vld [vmem:[%s7990 + $0x4] sm:$0x1]
        %v7995 = vsel %vm715, %v7917, %v7994
        %7996 = vst [vmem:[%s7990 + $0x4] sm:$0x1] %v7995
        %v7997 = vld [vmem:[%s7990 + $0x8] sm:$0xf]
        %v7998 = vsel %vm709, %v7924, %v7997
        %7999 = vst [vmem:[%s7990 + $0x8] sm:$0xf] %v7998
        %v8000 = vld [vmem:[%s7990 + $0xc] sm:$0x1]
        %v8001 = vsel %vm715, %v7925, %v8000
        %8002 = vst [vmem:[%s7990 + $0xc] sm:$0x1] %v8001
        %v8003 = vld [vmem:[%s7990 + $0x10] sm:$0xf]
        %v8004 = vsel %vm709, %v7932, %v8003
        %8005 = vst [vmem:[%s7990 + $0x10] sm:$0xf] %v8004
        %v8006 = vld [vmem:[%s7990 + $0x14] sm:$0x1]
        %v8007 = vsel %vm715, %v7933, %v8006
        %8008 = vst [vmem:[%s7990 + $0x14] sm:$0x1] %v8007
        %v8009 = vld [vmem:[%s7990 + $0x18] sm:$0xf]
        %v8010 = vsel %vm709, %v7940, %v8009
        %8011 = vst [vmem:[%s7990 + $0x18] sm:$0xf] %v8010
        %v8012 = vld [vmem:[%s7990 + $0x1c] sm:$0x1]
        %v8013 = vsel %vm715, %v7941, %v8012
        %8014 = vst [vmem:[%s7990 + $0x1c] sm:$0x1] %v8013
        %v8015 = vld [vmem:[%s7990 + $0x20] sm:$0xf]
        %v8016 = vsel %vm709, %v7948, %v8015
        %8017 = vst [vmem:[%s7990 + $0x20] sm:$0xf] %v8016
        %v8018 = vld [vmem:[%s7990 + $0x24] sm:$0x1]
        %v8019 = vsel %vm715, %v7949, %v8018
        %8020 = vst [vmem:[%s7990 + $0x24] sm:$0x1] %v8019
        %v8021 = vld [vmem:[%s7990 + $0x28] sm:$0xf]
        %v8022 = vsel %vm709, %v7956, %v8021
        %8023 = vst [vmem:[%s7990 + $0x28] sm:$0xf] %v8022
        %v8024 = vld [vmem:[%s7990 + $0x2c] sm:$0x1]
        %v8025 = vsel %vm715, %v7957, %v8024
        %8026 = vst [vmem:[%s7990 + $0x2c] sm:$0x1] %v8025
        %v8027 = vld [vmem:[%s7990 + $0x30] sm:$0xf]
        %v8028 = vsel %vm709, %v7964, %v8027
        %8029 = vst [vmem:[%s7990 + $0x30] sm:$0xf] %v8028
        %v8030 = vld [vmem:[%s7990 + $0x34] sm:$0x1]
        %v8031 = vsel %vm715, %v7965, %v8030
        %8032 = vst [vmem:[%s7990 + $0x34] sm:$0x1] %v8031
        %v8033 = vld [vmem:[%s7990 + $0x38] sm:$0xf]
        %v8034 = vsel %vm709, %v7972, %v8033
        %8035 = vst [vmem:[%s7990 + $0x38] sm:$0xf] %v8034
        %v8036 = vld [vmem:[%s7990 + $0x3c] sm:$0x1]
        %v8037 = vsel %vm715, %v7973, %v8036
        %8038 = vst [vmem:[%s7990 + $0x3c] sm:$0x1] %v8037
        %v8039 = vld [vmem:[%s8] sm:$0x1]
        %v8041 = vlaneseq
        %v8042 = vshrl.u32 %v8041, 7
        %v8043 = vsub.s32 0, %v8042
        %v8044 = vrot.slane %v8039, %v8043
        %v8046 = vld [vmem:[#allocation3] sm:$0xf]
        %v8047 = vld [vmem:[#allocation3 + $0x8] sm:$0xf]
        %v8048 = vld [vmem:[#allocation3 + $0x10] sm:$0xf]
        %v8049 = vld [vmem:[#allocation3 + $0x18] sm:$0xf]
        %v8050 = vld [vmem:[#allocation3 + $0x20] sm:$0xf]
        %v8051 = vld [vmem:[#allocation3 + $0x28] sm:$0xf]
        %v8052 = vld [vmem:[#allocation3 + $0x30] sm:$0xf]
        %v8053 = vld [vmem:[#allocation3 + $0x38] sm:$0xf]
        %v8054 = vld [vmem:[#allocation8] sm:$0xf]
        %v8055 = vld [vmem:[#allocation8 + $0x4] sm:$0xf]
        %v8056 = vld [vmem:[#allocation8 + $0x8] sm:$0xf]
        %v8057 = vld [vmem:[#allocation8 + $0xc] sm:$0xf]
        %v8058 = vld [vmem:[#allocation8 + $0x10] sm:$0xf]
        %v8059 = vld [vmem:[#allocation8 + $0x14] sm:$0xf]
        %v8060 = vld [vmem:[#allocation8 + $0x18] sm:$0xf]
        %v8061 = vld [vmem:[#allocation8 + $0x1c] sm:$0xf]
        %v8062 = vld [vmem:[#allocation8 + $0x20] sm:$0xf]
        %v8063 = vld [vmem:[#allocation8 + $0x24] sm:$0xf]
        %v8064 = vld [vmem:[#allocation8 + $0x28] sm:$0xf]
        %v8065 = vld [vmem:[#allocation8 + $0x2c] sm:$0xf]
        %v8066 = vld [vmem:[#allocation8 + $0x30] sm:$0xf]
        %v8067 = vld [vmem:[#allocation8 + $0x34] sm:$0xf]
        %v8068 = vld [vmem:[#allocation8 + $0x38] sm:$0xf]
        %v8069 = vld [vmem:[#allocation8 + $0x3c] sm:$0xf]
        %v8078 = vunpack.c.l.b16 %v8046
        %v8079 = vunpack.c.l.b16 %v8047
        %v8080 = vunpack.c.l.b16 %v8048
        %v8081 = vunpack.c.l.b16 %v8049
        %v8082 = vunpack.c.l.b16 %v8050
        %v8083 = vunpack.c.l.b16 %v8051
        %v8084 = vunpack.c.l.b16 %v8052
        %v8085 = vunpack.c.l.b16 %v8053
        %v8086 = vpack.c.b16 %v8079, %v8078
        %v8087 = vpack.c.b16 %v8081, %v8080
        %v8088 = vpack.c.b16 %v8083, %v8082
        %v8089 = vpack.c.b16 %v8085, %v8084
        %v8110 = vunpack.c.l.b16 %v8054
        %v8111 = vunpack.c.l.b16 %v8055
        %v8112 = vunpack.c.l.b16 %v8056
        %v8113 = vunpack.c.l.b16 %v8057
        %v8114 = vunpack.c.l.b16 %v8058
        %v8115 = vunpack.c.l.b16 %v8059
        %v8116 = vunpack.c.l.b16 %v8060
        %v8117 = vunpack.c.l.b16 %v8061
        %v8118 = vunpack.c.l.b16 %v8062
        %v8119 = vunpack.c.l.b16 %v8063
        %v8120 = vunpack.c.l.b16 %v8064
        %v8121 = vunpack.c.l.b16 %v8065
        %v8122 = vunpack.c.l.b16 %v8066
        %v8123 = vunpack.c.l.b16 %v8067
        %v8124 = vunpack.c.l.b16 %v8068
        %v8125 = vunpack.c.l.b16 %v8069
        %v8126 = vpack.c.b16 %v8111, %v8110
        %v8127 = vpack.c.b16 %v8113, %v8112
        %v8128 = vpack.c.b16 %v8115, %v8114
        %v8129 = vpack.c.b16 %v8117, %v8116
        %v8130 = vpack.c.b16 %v8119, %v8118
        %v8131 = vpack.c.b16 %v8121, %v8120
        %v8132 = vpack.c.b16 %v8123, %v8122
        %v8133 = vpack.c.b16 %v8125, %v8124
        %8142 = vmatprep.subr.bf16.mxu0 0
        %8143 = vmatpush1.bf16.msra.mxu0 %v8126
        %8144 = vmatprep.subr.bf16.mxu0 0
        %8145 = vmatpush1.bf16.msra.mxu0 %v8127
        %8146 = vmatprep.subr.bf16.mxu0 0
        %8147 = vmatpush1.bf16.msra.mxu0 %v8128
        %8148 = vmatprep.subr.bf16.mxu0 0
        %8149 = vmatpush1.bf16.msra.mxu0 %v8129
        %8150 = vmatprep.subr.bf16.mxu0 0
        %8151 = vmatpush1.bf16.msra.mxu0 %v8130
        %8152 = vmatprep.subr.bf16.mxu0 0
        %8153 = vmatpush1.bf16.msra.mxu0 %v8131
        %8154 = vmatprep.subr.bf16.mxu0 0
        %8155 = vmatpush1.bf16.msra.mxu0 %v8132
        %8156 = vmatprep.subr.bf16.mxu0 0
        %8157 = vmatpush1.bf16.msra.mxu0 %v8133
        %8158 = vmatprep.subr.bf16.mxu0 0
        %8159 = vmatpush1.bf16.msra.mxu0 0
        %8160 = vmatprep.subr.bf16.mxu0 0
        %8161 = vmatpush1.bf16.msra.mxu0 0
        %8162 = vmatprep.subr.bf16.mxu0 0
        %8163 = vmatpush1.bf16.msra.mxu0 0
        %8164 = vmatprep.subr.bf16.mxu0 0
        %8165 = vmatpush1.bf16.msra.mxu0 0
        %8166 = vmatprep.subr.bf16.mxu0 0
        %8167 = vmatpush1.bf16.msra.mxu0 0
        %8168 = vmatprep.subr.bf16.mxu0 0
        %8169 = vmatpush1.bf16.msra.mxu0 0
        %8170 = vmatprep.subr.bf16.mxu0 0
        %8171 = vmatpush1.bf16.msra.mxu0 0
        %8172 = vmatprep.subr.bf16.mxu0 0
        %8173 = vmatpush1.bf16.msra.mxu0 0
        %8174 = vmatprep.mubr.bf16.mxu0 0
        %8175 = vmatmul.mubr.bf16.gmra.mrb[0].mxu0 %v8086
        %v8176 = vpop.f32.mrb[0].mxu0
        %v8177 = vadd.f32 0.0, %v8176
        %v8178 = vpop.f32.mrb[0].mxu0
        %v8179 = vpop.f32.mrb[0].mxu0
        %v8180 = vadd.f32 0.0, %v8179
        %v8181 = vpop.f32.mrb[0].mxu0
        %8182 = vmatprep.mubr.bf16.mxu0 0
        %8183 = vmatmul.mubr.bf16.gmra.mrb[0].mxu0 %v8087
        %v8184 = vpop.f32.mrb[0].mxu0
        %v8185 = vadd.f32 0.0, %v8184
        %v8186 = vpop.f32.mrb[0].mxu0
        %v8187 = vpop.f32.mrb[0].mxu0
        %v8188 = vadd.f32 0.0, %v8187
        %v8189 = vpop.f32.mrb[0].mxu0
        %8190 = vmatprep.mubr.bf16.mxu0 0
        %8191 = vmatmul.mubr.bf16.gmra.mrb[0].mxu0 %v8088
        %v8192 = vpop.f32.mrb[0].mxu0
        %v8193 = vadd.f32 0.0, %v8192
        %v8194 = vpop.f32.mrb[0].mxu0
        %v8195 = vpop.f32.mrb[0].mxu0
        %v8196 = vadd.f32 0.0, %v8195
        %v8197 = vpop.f32.mrb[0].mxu0
        %8198 = vmatprep.mubr.bf16.mxu0 0
        %8199 = vmatmul.mubr.bf16.gmra.mrb[0].mxu0 %v8089
        %v8200 = vpop.f32.mrb[0].mxu0
        %v8201 = vadd.f32 0.0, %v8200
        %v8202 = vpop.f32.mrb[0].mxu0
        %v8203 = vpop.f32.mrb[0].mxu0
        %v8204 = vadd.f32 0.0, %v8203
        %v8205 = vpop.f32.mrb[0].mxu0
        %8206 = vdwg.mxu0
        %v8207 = vadd.f32 %v8044, %v8177
        %v8208 = vadd.f32 %v8044, %v8180
        %v8209 = vadd.f32 %v8044, %v8185
        %v8210 = vadd.f32 %v8044, %v8188
        %v8211 = vadd.f32 %v8044, %v8193
        %v8212 = vadd.f32 %v8044, %v8196
        %v8213 = vadd.f32 %v8044, %v8201
        %v8214 = vadd.f32 %v8044, %v8204
        %v8215 = vld [vmem:[#allocation3] sm:$0xf]
        %v8216 = vld [vmem:[#allocation3 + $0x4] sm:$0x1]
        %v8217 = vld [vmem:[#allocation3 + $0x8] sm:$0xf]
        %v8218 = vld [vmem:[#allocation3 + $0xc] sm:$0x1]
        %v8219 = vld [vmem:[#allocation3 + $0x10] sm:$0xf]
        %v8220 = vld [vmem:[#allocation3 + $0x14] sm:$0x1]
        %v8221 = vld [vmem:[#allocation3 + $0x18] sm:$0xf]
        %v8222 = vld [vmem:[#allocation3 + $0x1c] sm:$0x1]
        %v8223 = vld [vmem:[#allocation3 + $0x20] sm:$0xf]
        %v8224 = vld [vmem:[#allocation3 + $0x24] sm:$0x1]
        %v8225 = vld [vmem:[#allocation3 + $0x28] sm:$0xf]
        %v8226 = vld [vmem:[#allocation3 + $0x2c] sm:$0x1]
        %v8227 = vld [vmem:[#allocation3 + $0x30] sm:$0xf]
        %v8228 = vld [vmem:[#allocation3 + $0x34] sm:$0x1]
        %v8229 = vld [vmem:[#allocation3 + $0x38] sm:$0xf]
        %v8230 = vld [vmem:[#allocation3 + $0x3c] sm:$0x1]
        %v8232 = vshrl.u32 %v8215, 16
        %v8234 = vrot.slane %v8232, 4
        %v8235 = vshll.u32 %v8215, 16
        %v8237 = vrot.slane %v8235, 5
        %v8238 = vor.u32 %v8234, %v8237
        %v8239 = vrot.slane %v8238, 4
        %v8241 = vshll.u32 %v8216, 16
        %v8243 = vrot.slane %v8241, 5
        %v8244 = vsel %vm955, %v8239, %v8243
        %v8246 = vshrl.u32 %v8217, 16
        %v8248 = vrot.slane %v8246, 4
        %v8249 = vshll.u32 %v8217, 16
        %v8251 = vrot.slane %v8249, 5
        %v8252 = vor.u32 %v8248, %v8251
        %v8253 = vrot.slane %v8252, 4
        %v8255 = vshll.u32 %v8218, 16
        %v8257 = vrot.slane %v8255, 5
        %v8258 = vsel %vm955, %v8253, %v8257
        %v8260 = vshrl.u32 %v8219, 16
        %v8262 = vrot.slane %v8260, 4
        %v8263 = vshll.u32 %v8219, 16
        %v8265 = vrot.slane %v8263, 5
        %v8266 = vor.u32 %v8262, %v8265
        %v8267 = vrot.slane %v8266, 4
        %v8269 = vshll.u32 %v8220, 16
        %v8271 = vrot.slane %v8269, 5
        %v8272 = vsel %vm955, %v8267, %v8271
        %v8274 = vshrl.u32 %v8221, 16
        %v8276 = vrot.slane %v8274, 4
        %v8277 = vshll.u32 %v8221, 16
        %v8279 = vrot.slane %v8277, 5
        %v8280 = vor.u32 %v8276, %v8279
        %v8281 = vrot.slane %v8280, 4
        %v8283 = vshll.u32 %v8222, 16
        %v8285 = vrot.slane %v8283, 5
        %v8286 = vsel %vm955, %v8281, %v8285
        %v8288 = vshrl.u32 %v8223, 16
        %v8290 = vrot.slane %v8288, 4
        %v8291 = vshll.u32 %v8223, 16
        %v8293 = vrot.slane %v8291, 5
        %v8294 = vor.u32 %v8290, %v8293
        %v8295 = vrot.slane %v8294, 4
        %v8297 = vshll.u32 %v8224, 16
        %v8299 = vrot.slane %v8297, 5
        %v8300 = vsel %vm955, %v8295, %v8299
        %v8302 = vshrl.u32 %v8225, 16
        %v8304 = vrot.slane %v8302, 4
        %v8305 = vshll.u32 %v8225, 16
        %v8307 = vrot.slane %v8305, 5
        %v8308 = vor.u32 %v8304, %v8307
        %v8309 = vrot.slane %v8308, 4
        %v8311 = vshll.u32 %v8226, 16
        %v8313 = vrot.slane %v8311, 5
        %v8314 = vsel %vm955, %v8309, %v8313
        %v8316 = vshrl.u32 %v8227, 16
        %v8318 = vrot.slane %v8316, 4
        %v8319 = vshll.u32 %v8227, 16
        %v8321 = vrot.slane %v8319, 5
        %v8322 = vor.u32 %v8318, %v8321
        %v8323 = vrot.slane %v8322, 4
        %v8325 = vshll.u32 %v8228, 16
        %v8327 = vrot.slane %v8325, 5
        %v8328 = vsel %vm955, %v8323, %v8327
        %v8330 = vshrl.u32 %v8229, 16
        %v8332 = vrot.slane %v8330, 4
        %v8333 = vshll.u32 %v8229, 16
        %v8335 = vrot.slane %v8333, 5
        %v8336 = vor.u32 %v8332, %v8335
        %v8337 = vrot.slane %v8336, 4
        %v8339 = vshll.u32 %v8230, 16
        %v8341 = vrot.slane %v8339, 5
        %v8342 = vsel %vm955, %v8337, %v8341
        %s8343 = scalar_lea.vmem [#allocation8], 64
        %v8344 = vld [vmem:[%s8343] sm:$0xf]
        %v8345 = vld [vmem:[%s8343 + $0x4] sm:$0xf]
        %v8346 = vld [vmem:[%s8343 + $0x8] sm:$0xf]
        %v8347 = vld [vmem:[%s8343 + $0xc] sm:$0xf]
        %v8348 = vld [vmem:[%s8343 + $0x10] sm:$0xf]
        %v8349 = vld [vmem:[%s8343 + $0x14] sm:$0xf]
        %v8350 = vld [vmem:[%s8343 + $0x18] sm:$0xf]
        %v8351 = vld [vmem:[%s8343 + $0x1c] sm:$0xf]
        %v8352 = vld [vmem:[%s8343 + $0x20] sm:$0xf]
        %v8353 = vld [vmem:[%s8343 + $0x24] sm:$0xf]
        %v8354 = vld [vmem:[%s8343 + $0x28] sm:$0xf]
        %v8355 = vld [vmem:[%s8343 + $0x2c] sm:$0xf]
        %v8356 = vld [vmem:[%s8343 + $0x30] sm:$0xf]
        %v8357 = vld [vmem:[%s8343 + $0x34] sm:$0xf]
        %v8358 = vld [vmem:[%s8343 + $0x38] sm:$0xf]
        %v8359 = vld [vmem:[%s8343 + $0x3c] sm:$0xf]
        %v8360 = vunpack.c.l.b16 %v8244
        %v8361 = vunpack.c.l.b16 %v8258
        %v8362 = vunpack.c.l.b16 %v8272
        %v8363 = vunpack.c.l.b16 %v8286
        %v8364 = vunpack.c.l.b16 %v8300
        %v8365 = vunpack.c.l.b16 %v8314
        %v8366 = vunpack.c.l.b16 %v8328
        %v8367 = vunpack.c.l.b16 %v8342
        %v8368 = vpack.c.b16 %v8361, %v8360
        %v8369 = vpack.c.b16 %v8363, %v8362
        %v8370 = vpack.c.b16 %v8365, %v8364
        %v8371 = vpack.c.b16 %v8367, %v8366
        %v8392 = vunpack.c.l.b16 %v8344
        %v8393 = vunpack.c.l.b16 %v8345
        %v8394 = vunpack.c.l.b16 %v8346
        %v8395 = vunpack.c.l.b16 %v8347
        %v8396 = vunpack.c.l.b16 %v8348
        %v8397 = vunpack.c.l.b16 %v8349
        %v8398 = vunpack.c.l.b16 %v8350
        %v8399 = vunpack.c.l.b16 %v8351
        %v8400 = vunpack.c.l.b16 %v8352
        %v8401 = vunpack.c.l.b16 %v8353
        %v8402 = vunpack.c.l.b16 %v8354
        %v8403 = vunpack.c.l.b16 %v8355
        %v8404 = vunpack.c.l.b16 %v8356
        %v8405 = vunpack.c.l.b16 %v8357
        %v8406 = vunpack.c.l.b16 %v8358
        %v8407 = vunpack.c.l.b16 %v8359
        %v8408 = vpack.c.b16 %v8393, %v8392
        %v8409 = vpack.c.b16 %v8395, %v8394
        %v8410 = vpack.c.b16 %v8397, %v8396
        %v8411 = vpack.c.b16 %v8399, %v8398
        %v8412 = vpack.c.b16 %v8401, %v8400
        %v8413 = vpack.c.b16 %v8403, %v8402
        %v8414 = vpack.c.b16 %v8405, %v8404
        %v8415 = vpack.c.b16 %v8407, %v8406
        %8424 = vmatprep.subr.bf16.mxu0 0
        %8425 = vmatpush1.bf16.msra.mxu0 %v8408
        %8426 = vmatprep.subr.bf16.mxu0 0
        %8427 = vmatpush1.bf16.msra.mxu0 %v8409
        %8428 = vmatprep.subr.bf16.mxu0 0
        %8429 = vmatpush1.bf16.msra.mxu0 %v8410
        %8430 = vmatprep.subr.bf16.mxu0 0
        %8431 = vmatpush1.bf16.msra.mxu0 %v8411
        %8432 = vmatprep.subr.bf16.mxu0 0
        %8433 = vmatpush1.bf16.msra.mxu0 %v8412
        %8434 = vmatprep.subr.bf16.mxu0 0
        %8435 = vmatpush1.bf16.msra.mxu0 %v8413
        %8436 = vmatprep.subr.bf16.mxu0 0
        %8437 = vmatpush1.bf16.msra.mxu0 %v8414
        %8438 = vmatprep.subr.bf16.mxu0 0
        %8439 = vmatpush1.bf16.msra.mxu0 %v8415
        %8440 = vmatprep.subr.bf16.mxu0 0
        %8441 = vmatpush1.bf16.msra.mxu0 0
        %8442 = vmatprep.subr.bf16.mxu0 0
        %8443 = vmatpush1.bf16.msra.mxu0 0
        %8444 = vmatprep.subr.bf16.mxu0 0
        %8445 = vmatpush1.bf16.msra.mxu0 0
        %8446 = vmatprep.subr.bf16.mxu0 0
        %8447 = vmatpush1.bf16.msra.mxu0 0
        %8448 = vmatprep.subr.bf16.mxu0 0
        %8449 = vmatpush1.bf16.msra.mxu0 0
        %8450 = vmatprep.subr.bf16.mxu0 0
        %8451 = vmatpush1.bf16.msra.mxu0 0
        %8452 = vmatprep.subr.bf16.mxu0 0
        %8453 = vmatpush1.bf16.msra.mxu0 0
        %8454 = vmatprep.subr.bf16.mxu0 0
        %8455 = vmatpush1.bf16.msra.mxu0 0
        %8456 = vmatprep.mubr.bf16.mxu0 0
        %8457 = vmatmul.mubr.bf16.gmra.mrb[0].mxu0 %v8368
        %v8458 = vpop.f32.mrb[0].mxu0
        %v8459 = vadd.f32 0.0, %v8458
        %v8460 = vpop.f32.mrb[0].mxu0
        %v8461 = vpop.f32.mrb[0].mxu0
        %v8462 = vadd.f32 0.0, %v8461
        %v8463 = vpop.f32.mrb[0].mxu0
        %8464 = vmatprep.mubr.bf16.mxu0 0
        %8465 = vmatmul.mubr.bf16.gmra.mrb[0].mxu0 %v8369
        %v8466 = vpop.f32.mrb[0].mxu0
        %v8467 = vadd.f32 0.0, %v8466
        %v8468 = vpop.f32.mrb[0].mxu0
        %v8469 = vpop.f32.mrb[0].mxu0
        %v8470 = vadd.f32 0.0, %v8469
        %v8471 = vpop.f32.mrb[0].mxu0
        %8472 = vmatprep.mubr.bf16.mxu0 0
        %8473 = vmatmul.mubr.bf16.gmra.mrb[0].mxu0 %v8370
        %v8474 = vpop.f32.mrb[0].mxu0
        %v8475 = vadd.f32 0.0, %v8474
        %v8476 = vpop.f32.mrb[0].mxu0
        %v8477 = vpop.f32.mrb[0].mxu0
        %v8478 = vadd.f32 0.0, %v8477
        %v8479 = vpop.f32.mrb[0].mxu0
        %8480 = vmatprep.mubr.bf16.mxu0 0
        %8481 = vmatmul.mubr.bf16.gmra.mrb[0].mxu0 %v8371
        %v8482 = vpop.f32.mrb[0].mxu0
        %v8483 = vadd.f32 0.0, %v8482
        %v8484 = vpop.f32.mrb[0].mxu0
        %v8485 = vpop.f32.mrb[0].mxu0
        %v8486 = vadd.f32 0.0, %v8485
        %v8487 = vpop.f32.mrb[0].mxu0
        %8488 = vdwg.mxu0
        %v8489 = vadd.f32 %v8207, %v8459
        %v8490 = vadd.f32 %v8208, %v8462
        %v8491 = vadd.f32 %v8209, %v8467
        %v8492 = vadd.f32 %v8210, %v8470
        %v8493 = vadd.f32 %v8211, %v8475
        %v8494 = vadd.f32 %v8212, %v8478
        %v8495 = vadd.f32 %v8213, %v8483
        %v8496 = vadd.f32 %v8214, %v8486
        %v8497 = vld [vmem:[#allocation3] sm:$0xe]
        %v8498 = vld [vmem:[#allocation3 + $0x8] sm:$0xe]
        %v8499 = vld [vmem:[#allocation3 + $0x10] sm:$0xe]
        %v8500 = vld [vmem:[#allocation3 + $0x18] sm:$0xe]
        %v8501 = vld [vmem:[#allocation3 + $0x20] sm:$0xe]
        %v8502 = vld [vmem:[#allocation3 + $0x28] sm:$0xe]
        %v8503 = vld [vmem:[#allocation3 + $0x30] sm:$0xe]
        %v8504 = vld [vmem:[#allocation3 + $0x38] sm:$0xe]
        %v8521 = vrot.slane %v8497, 5
        %v8522 = vrot.slane %v8521, 4
        %v8523 = vrot.slane %v8216, 5
        %v8524 = vsel %vm1248, %v8522, %v8523
        %v8525 = vrot.slane %v8498, 5
        %v8526 = vrot.slane %v8525, 4
        %v8527 = vrot.slane %v8218, 5
        %v8528 = vsel %vm1248, %v8526, %v8527
        %v8529 = vrot.slane %v8499, 5
        %v8530 = vrot.slane %v8529, 4
        %v8531 = vrot.slane %v8220, 5
        %v8532 = vsel %vm1248, %v8530, %v8531
        %v8533 = vrot.slane %v8500, 5
        %v8534 = vrot.slane %v8533, 4
        %v8535 = vrot.slane %v8222, 5
        %v8536 = vsel %vm1248, %v8534, %v8535
        %v8537 = vrot.slane %v8501, 5
        %v8538 = vrot.slane %v8537, 4
        %v8539 = vrot.slane %v8224, 5
        %v8540 = vsel %vm1248, %v8538, %v8539
        %v8541 = vrot.slane %v8502, 5
        %v8542 = vrot.slane %v8541, 4
        %v8543 = vrot.slane %v8226, 5
        %v8544 = vsel %vm1248, %v8542, %v8543
        %v8545 = vrot.slane %v8503, 5
        %v8546 = vrot.slane %v8545, 4
        %v8547 = vrot.slane %v8228, 5
        %v8548 = vsel %vm1248, %v8546, %v8547
        %v8549 = vrot.slane %v8504, 5
        %v8550 = vrot.slane %v8549, 4
        %v8551 = vrot.slane %v8230, 5
        %v8552 = vsel %vm1248, %v8550, %v8551
        %s8553 = scalar_lea.vmem [#allocation8], 128
        %v8554 = vld [vmem:[%s8553] sm:$0xf]
        %v8555 = vld [vmem:[%s8553 + $0x4] sm:$0xf]
        %v8556 = vld [vmem:[%s8553 + $0x8] sm:$0xf]
        %v8557 = vld [vmem:[%s8553 + $0xc] sm:$0xf]
        %v8558 = vld [vmem:[%s8553 + $0x10] sm:$0xf]
        %v8559 = vld [vmem:[%s8553 + $0x14] sm:$0xf]
        %v8560 = vld [vmem:[%s8553 + $0x18] sm:$0xf]
        %v8561 = vld [vmem:[%s8553 + $0x1c] sm:$0xf]
        %v8562 = vld [vmem:[%s8553 + $0x20] sm:$0xf]
        %v8563 = vld [vmem:[%s8553 + $0x24] sm:$0xf]
        %v8564 = vld [vmem:[%s8553 + $0x28] sm:$0xf]
        %v8565 = vld [vmem:[%s8553 + $0x2c] sm:$0xf]
        %v8566 = vld [vmem:[%s8553 + $0x30] sm:$0xf]
        %v8567 = vld [vmem:[%s8553 + $0x34] sm:$0xf]
        %v8568 = vld [vmem:[%s8553 + $0x38] sm:$0xf]
        %v8569 = vld [vmem:[%s8553 + $0x3c] sm:$0xf]
        %v8570 = vunpack.c.l.b16 %v8524
        %v8571 = vunpack.c.l.b16 %v8528
        %v8572 = vunpack.c.l.b16 %v8532
        %v8573 = vunpack.c.l.b16 %v8536
        %v8574 = vunpack.c.l.b16 %v8540
        %v8575 = vunpack.c.l.b16 %v8544
        %v8576 = vunpack.c.l.b16 %v8548
        %v8577 = vunpack.c.l.b16 %v8552
        %v8578 = vpack.c.b16 %v8571, %v8570
        %v8579 = vpack.c.b16 %v8573, %v8572
        %v8580 = vpack.c.b16 %v8575, %v8574
        %v8581 = vpack.c.b16 %v8577, %v8576
        %v8602 = vunpack.c.l.b16 %v8554
        %v8603 = vunpack.c.l.b16 %v8555
        %v8604 = vunpack.c.l.b16 %v8556
        %v8605 = vunpack.c.l.b16 %v8557
        %v8606 = vunpack.c.l.b16 %v8558
        %v8607 = vunpack.c.l.b16 %v8559
        %v8608 = vunpack.c.l.b16 %v8560
        %v8609 = vunpack.c.l.b16 %v8561
        %v8610 = vunpack.c.l.b16 %v8562
        %v8611 = vunpack.c.l.b16 %v8563
        %v8612 = vunpack.c.l.b16 %v8564
        %v8613 = vunpack.c.l.b16 %v8565
        %v8614 = vunpack.c.l.b16 %v8566
        %v8615 = vunpack.c.l.b16 %v8567
        %v8616 = vunpack.c.l.b16 %v8568
        %v8617 = vunpack.c.l.b16 %v8569
        %v8618 = vpack.c.b16 %v8603, %v8602
        %v8619 = vpack.c.b16 %v8605, %v8604
        %v8620 = vpack.c.b16 %v8607, %v8606
        %v8621 = vpack.c.b16 %v8609, %v8608
        %v8622 = vpack.c.b16 %v8611, %v8610
        %v8623 = vpack.c.b16 %v8613, %v8612
        %v8624 = vpack.c.b16 %v8615, %v8614
        %v8625 = vpack.c.b16 %v8617, %v8616
        %8634 = vmatprep.subr.bf16.mxu0 0
        %8635 = vmatpush1.bf16.msra.mxu0 %v8618
        %8636 = vmatprep.subr.bf16.mxu0 0
        %8637 = vmatpush1.bf16.msra.mxu0 %v8619
        %8638 = vmatprep.subr.bf16.mxu0 0
        %8639 = vmatpush1.bf16.msra.mxu0 %v8620
        %8640 = vmatprep.subr.bf16.mxu0 0
        %8641 = vmatpush1.bf16.msra.mxu0 %v8621
        %8642 = vmatprep.subr.bf16.mxu0 0
        %8643 = vmatpush1.bf16.msra.mxu0 %v8622
        %8644 = vmatprep.subr.bf16.mxu0 0
        %8645 = vmatpush1.bf16.msra.mxu0 %v8623
        %8646 = vmatprep.subr.bf16.mxu0 0
        %8647 = vmatpush1.bf16.msra.mxu0 %v8624
        %8648 = vmatprep.subr.bf16.mxu0 0
        %8649 = vmatpush1.bf16.msra.mxu0 %v8625
        %8650 = vmatprep.subr.bf16.mxu0 0
        %8651 = vmatpush1.bf16.msra.mxu0 0
        %8652 = vmatprep.subr.bf16.mxu0 0
        %8653 = vmatpush1.bf16.msra.mxu0 0
        %8654 = vmatprep.subr.bf16.mxu0 0
        %8655 = vmatpush1.bf16.msra.mxu0 0
        %8656 = vmatprep.subr.bf16.mxu0 0
        %8657 = vmatpush1.bf16.msra.mxu0 0
        %8658 = vmatprep.subr.bf16.mxu0 0
        %8659 = vmatpush1.bf16.msra.mxu0 0
        %8660 = vmatprep.subr.bf16.mxu0 0
        %8661 = vmatpush1.bf16.msra.mxu0 0
        %8662 = vmatprep.subr.bf16.mxu0 0
        %8663 = vmatpush1.bf16.msra.mxu0 0
        %8664 = vmatprep.subr.bf16.mxu0 0
        %8665 = vmatpush1.bf16.msra.mxu0 0
        %8666 = vmatprep.mubr.bf16.mxu0 0
        %8667 = vmatmul.mubr.bf16.gmra.mrb[0].mxu0 %v8578
        %v8668 = vpop.f32.mrb[0].mxu0
        %v8669 = vadd.f32 0.0, %v8668
        %v8670 = vpop.f32.mrb[0].mxu0
        %v8671 = vpop.f32.mrb[0].mxu0
        %v8672 = vadd.f32 0.0, %v8671
        %v8673 = vpop.f32.mrb[0].mxu0
        %8674 = vmatprep.mubr.bf16.mxu0 0
        %8675 = vmatmul.mubr.bf16.gmra.mrb[0].mxu0 %v8579
        %v8676 = vpop.f32.mrb[0].mxu0
        %v8677 = vadd.f32 0.0, %v8676
        %v8678 = vpop.f32.mrb[0].mxu0
        %v8679 = vpop.f32.mrb[0].mxu0
        %v8680 = vadd.f32 0.0, %v8679
        %v8681 = vpop.f32.mrb[0].mxu0
        %8682 = vmatprep.mubr.bf16.mxu0 0
        %8683 = vmatmul.mubr.bf16.gmra.mrb[0].mxu0 %v8580
        %v8684 = vpop.f32.mrb[0].mxu0
        %v8685 = vadd.f32 0.0, %v8684
        %v8686 = vpop.f32.mrb[0].mxu0
        %v8687 = vpop.f32.mrb[0].mxu0
        %v8688 = vadd.f32 0.0, %v8687
        %v8689 = vpop.f32.mrb[0].mxu0
        %8690 = vmatprep.mubr.bf16.mxu0 0
        %8691 = vmatmul.mubr.bf16.gmra.mrb[0].mxu0 %v8581
        %v8692 = vpop.f32.mrb[0].mxu0
        %v8693 = vadd.f32 0.0, %v8692
        %v8694 = vpop.f32.mrb[0].mxu0
        %v8695 = vpop.f32.mrb[0].mxu0
        %v8696 = vadd.f32 0.0, %v8695
        %v8697 = vpop.f32.mrb[0].mxu0
        %8698 = vdwg.mxu0
        %v8699 = vadd.f32 %v8489, %v8669
        %v8700 = vadd.f32 %v8490, %v8672
        %v8701 = vadd.f32 %v8491, %v8677
        %v8702 = vadd.f32 %v8492, %v8680
        %v8703 = vadd.f32 %v8493, %v8685
        %v8704 = vadd.f32 %v8494, %v8688
        %v8705 = vadd.f32 %v8495, %v8693
        %v8706 = vadd.f32 %v8496, %v8696
        %v8707 = vld [vmem:[%s7990] sm:$0xf]
        %v8708 = vld [vmem:[%s7990 + $0x8] sm:$0xf]
        %v8709 = vld [vmem:[%s7990 + $0x10] sm:$0xf]
        %v8710 = vld [vmem:[%s7990 + $0x18] sm:$0xf]
        %v8711 = vld [vmem:[%s7990 + $0x20] sm:$0xf]
        %v8712 = vld [vmem:[%s7990 + $0x28] sm:$0xf]
        %v8713 = vld [vmem:[%s7990 + $0x30] sm:$0xf]
        %v8714 = vld [vmem:[%s7990 + $0x38] sm:$0xf]
        %s8715 = scalar_lea.vmem [#allocation8], 192
        %v8716 = vld [vmem:[%s8715] sm:$0xf]
        %v8717 = vld [vmem:[%s8715 + $0x4] sm:$0xf]
        %v8718 = vld [vmem:[%s8715 + $0x8] sm:$0xf]
        %v8719 = vld [vmem:[%s8715 + $0xc] sm:$0xf]
        %v8720 = vld [vmem:[%s8715 + $0x10] sm:$0xf]
        %v8721 = vld [vmem:[%s8715 + $0x14] sm:$0xf]
        %v8722 = vld [vmem:[%s8715 + $0x18] sm:$0xf]
        %v8723 = vld [vmem:[%s8715 + $0x1c] sm:$0xf]
        %v8724 = vld [vmem:[%s8715 + $0x20] sm:$0xf]
        %v8725 = vld [vmem:[%s8715 + $0x24] sm:$0xf]
        %v8726 = vld [vmem:[%s8715 + $0x28] sm:$0xf]
        %v8727 = vld [vmem:[%s8715 + $0x2c] sm:$0xf]
        %v8728 = vld [vmem:[%s8715 + $0x30] sm:$0xf]
        %v8729 = vld [vmem:[%s8715 + $0x34] sm:$0xf]
        %v8730 = vld [vmem:[%s8715 + $0x38] sm:$0xf]
        %v8731 = vld [vmem:[%s8715 + $0x3c] sm:$0xf]
        %v8740 = vunpack.c.l.b16 %v8707
        %v8741 = vunpack.c.l.b16 %v8708
        %v8742 = vunpack.c.l.b16 %v8709
        %v8743 = vunpack.c.l.b16 %v8710
        %v8744 = vunpack.c.l.b16 %v8711
        %v8745 = vunpack.c.l.b16 %v8712
        %v8746 = vunpack.c.l.b16 %v8713
        %v8747 = vunpack.c.l.b16 %v8714
        %v8748 = vpack.c.b16 %v8741, %v8740
        %v8749 = vpack.c.b16 %v8743, %v8742
        %v8750 = vpack.c.b16 %v8745, %v8744
        %v8751 = vpack.c.b16 %v8747, %v8746
        %v8772 = vunpack.c.l.b16 %v8716
        %v8773 = vunpack.c.l.b16 %v8717
        %v8774 = vunpack.c.l.b16 %v8718
        %v8775 = vunpack.c.l.b16 %v8719
        %v8776 = vunpack.c.l.b16 %v8720
        %v8777 = vunpack.c.l.b16 %v8721
        %v8778 = vunpack.c.l.b16 %v8722
        %v8779 = vunpack.c.l.b16 %v8723
        %v8780 = vunpack.c.l.b16 %v8724
        %v8781 = vunpack.c.l.b16 %v8725
        %v8782 = vunpack.c.l.b16 %v8726
        %v8783 = vunpack.c.l.b16 %v8727
        %v8784 = vunpack.c.l.b16 %v8728
        %v8785 = vunpack.c.l.b16 %v8729
        %v8786 = vunpack.c.l.b16 %v8730
        %v8787 = vunpack.c.l.b16 %v8731
        %v8788 = vpack.c.b16 %v8773, %v8772
        %v8789 = vpack.c.b16 %v8775, %v8774
        %v8790 = vpack.c.b16 %v8777, %v8776
        %v8791 = vpack.c.b16 %v8779, %v8778
        %v8792 = vpack.c.b16 %v8781, %v8780
        %v8793 = vpack.c.b16 %v8783, %v8782
        %v8794 = vpack.c.b16 %v8785, %v8784
        %v8795 = vpack.c.b16 %v8787, %v8786
        %8804 = vmatprep.subr.bf16.mxu0 0
        %8805 = vmatpush1.bf16.msra.mxu0 %v8788
        %8806 = vmatprep.subr.bf16.mxu0 0
        %8807 = vmatpush1.bf16.msra.mxu0 %v8789
        %8808 = vmatprep.subr.bf16.mxu0 0
        %8809 = vmatpush1.bf16.msra.mxu0 %v8790
        %8810 = vmatprep.subr.bf16.mxu0 0
        %8811 = vmatpush1.bf16.msra.mxu0 %v8791
        %8812 = vmatprep.subr.bf16.mxu0 0
        %8813 = vmatpush1.bf16.msra.mxu0 %v8792
        %8814 = vmatprep.subr.bf16.mxu0 0
        %8815 = vmatpush1.bf16.msra.mxu0 %v8793
        %8816 = vmatprep.subr.bf16.mxu0 0
        %8817 = vmatpush1.bf16.msra.mxu0 %v8794
        %8818 = vmatprep.subr.bf16.mxu0 0
        %8819 = vmatpush1.bf16.msra.mxu0 %v8795
        %8820 = vmatprep.subr.bf16.mxu0 0
        %8821 = vmatpush1.bf16.msra.mxu0 0
        %8822 = vmatprep.subr.bf16.mxu0 0
        %8823 = vmatpush1.bf16.msra.mxu0 0
        %8824 = vmatprep.subr.bf16.mxu0 0
        %8825 = vmatpush1.bf16.msra.mxu0 0
        %8826 = vmatprep.subr.bf16.mxu0 0
        %8827 = vmatpush1.bf16.msra.mxu0 0
        %8828 = vmatprep.subr.bf16.mxu0 0
        %8829 = vmatpush1.bf16.msra.mxu0 0
        %8830 = vmatprep.subr.bf16.mxu0 0
        %8831 = vmatpush1.bf16.msra.mxu0 0
        %8832 = vmatprep.subr.bf16.mxu0 0
        %8833 = vmatpush1.bf16.msra.mxu0 0
        %8834 = vmatprep.subr.bf16.mxu0 0
        %8835 = vmatpush1.bf16.msra.mxu0 0
        %8836 = vmatprep.mubr.bf16.mxu0 0
        %8837 = vmatmul.mubr.bf16.gmra.mrb[0].mxu0 %v8748
        %v8838 = vpop.f32.mrb[0].mxu0
        %v8839 = vadd.f32 0.0, %v8838
        %v8840 = vpop.f32.mrb[0].mxu0
        %v8841 = vpop.f32.mrb[0].mxu0
        %v8842 = vadd.f32 0.0, %v8841
        %v8843 = vpop.f32.mrb[0].mxu0
        %8844 = vmatprep.mubr.bf16.mxu0 0
        %8845 = vmatmul.mubr.bf16.gmra.mrb[0].mxu0 %v8749
        %v8846 = vpop.f32.mrb[0].mxu0
        %v8847 = vadd.f32 0.0, %v8846
        %v8848 = vpop.f32.mrb[0].mxu0
        %v8849 = vpop.f32.mrb[0].mxu0
        %v8850 = vadd.f32 0.0, %v8849
        %v8851 = vpop.f32.mrb[0].mxu0
        %8852 = vmatprep.mubr.bf16.mxu0 0
        %8853 = vmatmul.mubr.bf16.gmra.mrb[0].mxu0 %v8750
        %v8854 = vpop.f32.mrb[0].mxu0
        %v8855 = vadd.f32 0.0, %v8854
        %v8856 = vpop.f32.mrb[0].mxu0
        %v8857 = vpop.f32.mrb[0].mxu0
        %v8858 = vadd.f32 0.0, %v8857
        %v8859 = vpop.f32.mrb[0].mxu0
        %8860 = vmatprep.mubr.bf16.mxu0 0
        %8861 = vmatmul.mubr.bf16.gmra.mrb[0].mxu0 %v8751
        %v8862 = vpop.f32.mrb[0].mxu0
        %v8863 = vadd.f32 0.0, %v8862
        %v8864 = vpop.f32.mrb[0].mxu0
        %v8865 = vpop.f32.mrb[0].mxu0
        %v8866 = vadd.f32 0.0, %v8865
        %v8867 = vpop.f32.mrb[0].mxu0
        %8868 = vdwg.mxu0
        %v8869 = vadd.f32 %v8699, %v8839
        %v8870 = vadd.f32 %v8700, %v8842
        %v8871 = vadd.f32 %v8701, %v8847
        %v8872 = vadd.f32 %v8702, %v8850
        %v8873 = vadd.f32 %v8703, %v8855
        %v8874 = vadd.f32 %v8704, %v8858
        %v8875 = vadd.f32 %v8705, %v8863
        %v8876 = vadd.f32 %v8706, %v8866
        %v8877 = vld [vmem:[%s7990] sm:$0xf]
        %v8878 = vld [vmem:[%s7990 + $0x4] sm:$0x1]
        %v8879 = vld [vmem:[%s7990 + $0x8] sm:$0xf]
        %v8880 = vld [vmem:[%s7990 + $0xc] sm:$0x1]
        %v8881 = vld [vmem:[%s7990 + $0x10] sm:$0xf]
        %v8882 = vld [vmem:[%s7990 + $0x14] sm:$0x1]
        %v8883 = vld [vmem:[%s7990 + $0x18] sm:$0xf]
        %v8884 = vld [vmem:[%s7990 + $0x1c] sm:$0x1]
        %v8885 = vld [vmem:[%s7990 + $0x20] sm:$0xf]
        %v8886 = vld [vmem:[%s7990 + $0x24] sm:$0x1]
        %v8887 = vld [vmem:[%s7990 + $0x28] sm:$0xf]
        %v8888 = vld [vmem:[%s7990 + $0x2c] sm:$0x1]
        %v8889 = vld [vmem:[%s7990 + $0x30] sm:$0xf]
        %v8890 = vld [vmem:[%s7990 + $0x34] sm:$0x1]
        %v8891 = vld [vmem:[%s7990 + $0x38] sm:$0xf]
        %v8892 = vld [vmem:[%s7990 + $0x3c] sm:$0x1]
        %v8894 = vshrl.u32 %v8877, 16
        %v8896 = vrot.slane %v8894, 4
        %v8897 = vshll.u32 %v8877, 16
        %v8899 = vrot.slane %v8897, 5
        %v8900 = vor.u32 %v8896, %v8899
        %v8901 = vrot.slane %v8900, 4
        %v8903 = vshll.u32 %v8878, 16
        %v8905 = vrot.slane %v8903, 5
        %v8906 = vsel %vm955, %v8901, %v8905
        %v8908 = vshrl.u32 %v8879, 16
        %v8910 = vrot.slane %v8908, 4
        %v8911 = vshll.u32 %v8879, 16
        %v8913 = vrot.slane %v8911, 5
        %v8914 = vor.u32 %v8910, %v8913
        %v8915 = vrot.slane %v8914, 4
        %v8917 = vshll.u32 %v8880, 16
        %v8919 = vrot.slane %v8917, 5
        %v8920 = vsel %vm955, %v8915, %v8919
        %v8922 = vshrl.u32 %v8881, 16
        %v8924 = vrot.slane %v8922, 4
        %v8925 = vshll.u32 %v8881, 16
        %v8927 = vrot.slane %v8925, 5
        %v8928 = vor.u32 %v8924, %v8927
        %v8929 = vrot.slane %v8928, 4
        %v8931 = vshll.u32 %v8882, 16
        %v8933 = vrot.slane %v8931, 5
        %v8934 = vsel %vm955, %v8929, %v8933
        %v8936 = vshrl.u32 %v8883, 16
        %v8938 = vrot.slane %v8936, 4
        %v8939 = vshll.u32 %v8883, 16
        %v8941 = vrot.slane %v8939, 5
        %v8942 = vor.u32 %v8938, %v8941
        %v8943 = vrot.slane %v8942, 4
        %v8945 = vshll.u32 %v8884, 16
        %v8947 = vrot.slane %v8945, 5
        %v8948 = vsel %vm955, %v8943, %v8947
        %v8950 = vshrl.u32 %v8885, 16
        %v8952 = vrot.slane %v8950, 4
        %v8953 = vshll.u32 %v8885, 16
        %v8955 = vrot.slane %v8953, 5
        %v8956 = vor.u32 %v8952, %v8955
        %v8957 = vrot.slane %v8956, 4
        %v8959 = vshll.u32 %v8886, 16
        %v8961 = vrot.slane %v8959, 5
        %v8962 = vsel %vm955, %v8957, %v8961
        %v8964 = vshrl.u32 %v8887, 16
        %v8966 = vrot.slane %v8964, 4
        %v8967 = vshll.u32 %v8887, 16
        %v8969 = vrot.slane %v8967, 5
        %v8970 = vor.u32 %v8966, %v8969
        %v8971 = vrot.slane %v8970, 4
        %v8973 = vshll.u32 %v8888, 16
        %v8975 = vrot.slane %v8973, 5
        %v8976 = vsel %vm955, %v8971, %v8975
        %v8978 = vshrl.u32 %v8889, 16
        %v8980 = vrot.slane %v8978, 4
        %v8981 = vshll.u32 %v8889, 16
        %v8983 = vrot.slane %v8981, 5
        %v8984 = vor.u32 %v8980, %v8983
        %v8985 = vrot.slane %v8984, 4
        %v8987 = vshll.u32 %v8890, 16
        %v8989 = vrot.slane %v8987, 5
        %v8990 = vsel %vm955, %v8985, %v8989
        %v8992 = vshrl.u32 %v8891, 16
        %v8994 = vrot.slane %v8992, 4
        %v8995 = vshll.u32 %v8891, 16
        %v8997 = vrot.slane %v8995, 5
        %v8998 = vor.u32 %v8994, %v8997
        %v8999 = vrot.slane %v8998, 4
        %v9001 = vshll.u32 %v8892, 16
        %v9003 = vrot.slane %v9001, 5
        %v9004 = vsel %vm955, %v8999, %v9003
        %s9005 = scalar_lea.vmem [#allocation8], 256
        %v9006 = vld [vmem:[%s9005] sm:$0xf]
        %v9007 = vld [vmem:[%s9005 + $0x4] sm:$0xf]
        %v9008 = vld [vmem:[%s9005 + $0x8] sm:$0xf]
        %v9009 = vld [vmem:[%s9005 + $0xc] sm:$0xf]
        %v9010 = vld [vmem:[%s9005 + $0x10] sm:$0xf]
        %v9011 = vld [vmem:[%s9005 + $0x14] sm:$0xf]
        %v9012 = vld [vmem:[%s9005 + $0x18] sm:$0xf]
        %v9013 = vld [vmem:[%s9005 + $0x1c] sm:$0xf]
        %v9014 = vld [vmem:[%s9005 + $0x20] sm:$0xf]
        %v9015 = vld [vmem:[%s9005 + $0x24] sm:$0xf]
        %v9016 = vld [vmem:[%s9005 + $0x28] sm:$0xf]
        %v9017 = vld [vmem:[%s9005 + $0x2c] sm:$0xf]
        %v9018 = vld [vmem:[%s9005 + $0x30] sm:$0xf]
        %v9019 = vld [vmem:[%s9005 + $0x34] sm:$0xf]
        %v9020 = vld [vmem:[%s9005 + $0x38] sm:$0xf]
        %v9021 = vld [vmem:[%s9005 + $0x3c] sm:$0xf]
        %v9022 = vunpack.c.l.b16 %v8906
        %v9023 = vunpack.c.l.b16 %v8920
        %v9024 = vunpack.c.l.b16 %v8934
        %v9025 = vunpack.c.l.b16 %v8948
        %v9026 = vunpack.c.l.b16 %v8962
        %v9027 = vunpack.c.l.b16 %v8976
        %v9028 = vunpack.c.l.b16 %v8990
        %v9029 = vunpack.c.l.b16 %v9004
        %v9030 = vpack.c.b16 %v9023, %v9022
        %v9031 = vpack.c.b16 %v9025, %v9024
        %v9032 = vpack.c.b16 %v9027, %v9026
        %v9033 = vpack.c.b16 %v9029, %v9028
        %v9054 = vunpack.c.l.b16 %v9006
        %v9055 = vunpack.c.l.b16 %v9007
        %v9056 = vunpack.c.l.b16 %v9008
        %v9057 = vunpack.c.l.b16 %v9009
        %v9058 = vunpack.c.l.b16 %v9010
        %v9059 = vunpack.c.l.b16 %v9011
        %v9060 = vunpack.c.l.b16 %v9012
        %v9061 = vunpack.c.l.b16 %v9013
        %v9062 = vunpack.c.l.b16 %v9014
        %v9063 = vunpack.c.l.b16 %v9015
        %v9064 = vunpack.c.l.b16 %v9016
        %v9065 = vunpack.c.l.b16 %v9017
        %v9066 = vunpack.c.l.b16 %v9018
        %v9067 = vunpack.c.l.b16 %v9019
        %v9068 = vunpack.c.l.b16 %v9020
        %v9069 = vunpack.c.l.b16 %v9021
        %v9070 = vpack.c.b16 %v9055, %v9054
        %v9071 = vpack.c.b16 %v9057, %v9056
        %v9072 = vpack.c.b16 %v9059, %v9058
        %v9073 = vpack.c.b16 %v9061, %v9060
        %v9074 = vpack.c.b16 %v9063, %v9062
        %v9075 = vpack.c.b16 %v9065, %v9064
        %v9076 = vpack.c.b16 %v9067, %v9066
        %v9077 = vpack.c.b16 %v9069, %v9068
        %9086 = vmatprep.subr.bf16.mxu0 0
        %9087 = vmatpush1.bf16.msra.mxu0 %v9070
        %9088 = vmatprep.subr.bf16.mxu0 0
        %9089 = vmatpush1.bf16.msra.mxu0 %v9071
        %9090 = vmatprep.subr.bf16.mxu0 0
        %9091 = vmatpush1.bf16.msra.mxu0 %v9072
        %9092 = vmatprep.subr.bf16.mxu0 0
        %9093 = vmatpush1.bf16.msra.mxu0 %v9073
        %9094 = vmatprep.subr.bf16.mxu0 0
        %9095 = vmatpush1.bf16.msra.mxu0 %v9074
        %9096 = vmatprep.subr.bf16.mxu0 0
        %9097 = vmatpush1.bf16.msra.mxu0 %v9075
        %9098 = vmatprep.subr.bf16.mxu0 0
        %9099 = vmatpush1.bf16.msra.mxu0 %v9076
        %9100 = vmatprep.subr.bf16.mxu0 0
        %9101 = vmatpush1.bf16.msra.mxu0 %v9077
        %9102 = vmatprep.subr.bf16.mxu0 0
        %9103 = vmatpush1.bf16.msra.mxu0 0
        %9104 = vmatprep.subr.bf16.mxu0 0
        %9105 = vmatpush1.bf16.msra.mxu0 0
        %9106 = vmatprep.subr.bf16.mxu0 0
        %9107 = vmatpush1.bf16.msra.mxu0 0
        %9108 = vmatprep.subr.bf16.mxu0 0
        %9109 = vmatpush1.bf16.msra.mxu0 0
        %9110 = vmatprep.subr.bf16.mxu0 0
        %9111 = vmatpush1.bf16.msra.mxu0 0
        %9112 = vmatprep.subr.bf16.mxu0 0
        %9113 = vmatpush1.bf16.msra.mxu0 0
        %9114 = vmatprep.subr.bf16.mxu0 0
        %9115 = vmatpush1.bf16.msra.mxu0 0
        %9116 = vmatprep.subr.bf16.mxu0 0
        %9117 = vmatpush1.bf16.msra.mxu0 0
        %9118 = vmatprep.mubr.bf16.mxu0 0
        %9119 = vmatmul.mubr.bf16.gmra.mrb[0].mxu0 %v9030
        %v9120 = vpop.f32.mrb[0].mxu0
        %v9121 = vadd.f32 0.0, %v9120
        %v9122 = vpop.f32.mrb[0].mxu0
        %v9123 = vpop.f32.mrb[0].mxu0
        %v9124 = vadd.f32 0.0, %v9123
        %v9125 = vpop.f32.mrb[0].mxu0
        %9126 = vmatprep.mubr.bf16.mxu0 0
        %9127 = vmatmul.mubr.bf16.gmra.mrb[0].mxu0 %v9031
        %v9128 = vpop.f32.mrb[0].mxu0
        %v9129 = vadd.f32 0.0, %v9128
        %v9130 = vpop.f32.mrb[0].mxu0
        %v9131 = vpop.f32.mrb[0].mxu0
        %v9132 = vadd.f32 0.0, %v9131
        %v9133 = vpop.f32.mrb[0].mxu0
        %9134 = vmatprep.mubr.bf16.mxu0 0
        %9135 = vmatmul.mubr.bf16.gmra.mrb[0].mxu0 %v9032
        %v9136 = vpop.f32.mrb[0].mxu0
        %v9137 = vadd.f32 0.0, %v9136
        %v9138 = vpop.f32.mrb[0].mxu0
        %v9139 = vpop.f32.mrb[0].mxu0
        %v9140 = vadd.f32 0.0, %v9139
        %v9141 = vpop.f32.mrb[0].mxu0
        %9142 = vmatprep.mubr.bf16.mxu0 0
        %9143 = vmatmul.mubr.bf16.gmra.mrb[0].mxu0 %v9033
        %v9144 = vpop.f32.mrb[0].mxu0
        %v9145 = vadd.f32 0.0, %v9144
        %v9146 = vpop.f32.mrb[0].mxu0
        %v9147 = vpop.f32.mrb[0].mxu0
        %v9148 = vadd.f32 0.0, %v9147
        %v9149 = vpop.f32.mrb[0].mxu0
        %9150 = vdwg.mxu0
        %v9151 = vadd.f32 %v8869, %v9121
        %v9152 = vadd.f32 %v8870, %v9124
        %v9153 = vadd.f32 %v8871, %v9129
        %v9154 = vadd.f32 %v8872, %v9132
        %v9155 = vadd.f32 %v8873, %v9137
        %v9156 = vadd.f32 %v8874, %v9140
        %v9157 = vadd.f32 %v8875, %v9145
        %v9158 = vadd.f32 %v8876, %v9148
        %v9159 = vld [vmem:[%s7990] sm:$0xe]
        %v9160 = vld [vmem:[%s7990 + $0x8] sm:$0xe]
        %v9161 = vld [vmem:[%s7990 + $0x10] sm:$0xe]
        %v9162 = vld [vmem:[%s7990 + $0x18] sm:$0xe]
        %v9163 = vld [vmem:[%s7990 + $0x20] sm:$0xe]
        %v9164 = vld [vmem:[%s7990 + $0x28] sm:$0xe]
        %v9165 = vld [vmem:[%s7990 + $0x30] sm:$0xe]
        %v9166 = vld [vmem:[%s7990 + $0x38] sm:$0xe]
        %v9183 = vrot.slane %v9159, 5
        %v9184 = vrot.slane %v9183, 4
        %v9185 = vrot.slane %v8878, 5
        %v9186 = vsel %vm1248, %v9184, %v9185
        %v9187 = vrot.slane %v9160, 5
        %v9188 = vrot.slane %v9187, 4
        %v9189 = vrot.slane %v8880, 5
        %v9190 = vsel %vm1248, %v9188, %v9189
        %v9191 = vrot.slane %v9161, 5
        %v9192 = vrot.slane %v9191, 4
        %v9193 = vrot.slane %v8882, 5
        %v9194 = vsel %vm1248, %v9192, %v9193
        %v9195 = vrot.slane %v9162, 5
        %v9196 = vrot.slane %v9195, 4
        %v9197 = vrot.slane %v8884, 5
        %v9198 = vsel %vm1248, %v9196, %v9197
        %v9199 = vrot.slane %v9163, 5
        %v9200 = vrot.slane %v9199, 4
        %v9201 = vrot.slane %v8886, 5
        %v9202 = vsel %vm1248, %v9200, %v9201
        %v9203 = vrot.slane %v9164, 5
        %v9204 = vrot.slane %v9203, 4
        %v9205 = vrot.slane %v8888, 5
        %v9206 = vsel %vm1248, %v9204, %v9205
        %v9207 = vrot.slane %v9165, 5
        %v9208 = vrot.slane %v9207, 4
        %v9209 = vrot.slane %v8890, 5
        %v9210 = vsel %vm1248, %v9208, %v9209
        %v9211 = vrot.slane %v9166, 5
        %v9212 = vrot.slane %v9211, 4
        %v9213 = vrot.slane %v8892, 5
        %v9214 = vsel %vm1248, %v9212, %v9213
        %s9215 = scalar_lea.vmem [#allocation8], 320
        %v9216 = vld [vmem:[%s9215] sm:$0xf]
        %v9217 = vld [vmem:[%s9215 + $0x4] sm:$0xf]
        %v9218 = vld [vmem:[%s9215 + $0x8] sm:$0xf]
        %v9219 = vld [vmem:[%s9215 + $0xc] sm:$0xf]
        %v9220 = vld [vmem:[%s9215 + $0x10] sm:$0xf]
        %v9221 = vld [vmem:[%s9215 + $0x14] sm:$0xf]
        %v9222 = vld [vmem:[%s9215 + $0x18] sm:$0xf]
        %v9223 = vld [vmem:[%s9215 + $0x1c] sm:$0xf]
        %v9224 = vld [vmem:[%s9215 + $0x20] sm:$0xf]
        %v9225 = vld [vmem:[%s9215 + $0x24] sm:$0xf]
        %v9226 = vld [vmem:[%s9215 + $0x28] sm:$0xf]
        %v9227 = vld [vmem:[%s9215 + $0x2c] sm:$0xf]
        %v9228 = vld [vmem:[%s9215 + $0x30] sm:$0xf]
        %v9229 = vld [vmem:[%s9215 + $0x34] sm:$0xf]
        %v9230 = vld [vmem:[%s9215 + $0x38] sm:$0xf]
        %v9231 = vld [vmem:[%s9215 + $0x3c] sm:$0xf]
        %v9232 = vunpack.c.l.b16 %v9186
        %v9233 = vunpack.c.l.b16 %v9190
        %v9234 = vunpack.c.l.b16 %v9194
        %v9235 = vunpack.c.l.b16 %v9198
        %v9236 = vunpack.c.l.b16 %v9202
        %v9237 = vunpack.c.l.b16 %v9206
        %v9238 = vunpack.c.l.b16 %v9210
        %v9239 = vunpack.c.l.b16 %v9214
        %v9240 = vpack.c.b16 %v9233, %v9232
        %v9241 = vpack.c.b16 %v9235, %v9234
        %v9242 = vpack.c.b16 %v9237, %v9236
        %v9243 = vpack.c.b16 %v9239, %v9238
        %v9264 = vunpack.c.l.b16 %v9216
        %v9265 = vunpack.c.l.b16 %v9217
        %v9266 = vunpack.c.l.b16 %v9218
        %v9267 = vunpack.c.l.b16 %v9219
        %v9268 = vunpack.c.l.b16 %v9220
        %v9269 = vunpack.c.l.b16 %v9221
        %v9270 = vunpack.c.l.b16 %v9222
        %v9271 = vunpack.c.l.b16 %v9223
        %v9272 = vunpack.c.l.b16 %v9224
        %v9273 = vunpack.c.l.b16 %v9225
        %v9274 = vunpack.c.l.b16 %v9226
        %v9275 = vunpack.c.l.b16 %v9227
        %v9276 = vunpack.c.l.b16 %v9228
        %v9277 = vunpack.c.l.b16 %v9229
        %v9278 = vunpack.c.l.b16 %v9230
        %v9279 = vunpack.c.l.b16 %v9231
        %v9280 = vpack.c.b16 %v9265, %v9264
        %v9281 = vpack.c.b16 %v9267, %v9266
        %v9282 = vpack.c.b16 %v9269, %v9268
        %v9283 = vpack.c.b16 %v9271, %v9270
        %v9284 = vpack.c.b16 %v9273, %v9272
        %v9285 = vpack.c.b16 %v9275, %v9274
        %v9286 = vpack.c.b16 %v9277, %v9276
        %v9287 = vpack.c.b16 %v9279, %v9278
        %9296 = vmatprep.subr.bf16.mxu0 0
        %9297 = vmatpush1.bf16.msra.mxu0 %v9280
        %9298 = vmatprep.subr.bf16.mxu0 0
        %9299 = vmatpush1.bf16.msra.mxu0 %v9281
        %9300 = vmatprep.subr.bf16.mxu0 0
        %9301 = vmatpush1.bf16.msra.mxu0 %v9282
        %9302 = vmatprep.subr.bf16.mxu0 0
        %9303 = vmatpush1.bf16.msra.mxu0 %v9283
        %9304 = vmatprep.subr.bf16.mxu0 0
        %9305 = vmatpush1.bf16.msra.mxu0 %v9284
        %9306 = vmatprep.subr.bf16.mxu0 0
        %9307 = vmatpush1.bf16.msra.mxu0 %v9285
        %9308 = vmatprep.subr.bf16.mxu0 0
        %9309 = vmatpush1.bf16.msra.mxu0 %v9286
        %9310 = vmatprep.subr.bf16.mxu0 0
        %9311 = vmatpush1.bf16.msra.mxu0 %v9287
        %9312 = vmatprep.subr.bf16.mxu0 0
        %9313 = vmatpush1.bf16.msra.mxu0 0
        %9314 = vmatprep.subr.bf16.mxu0 0
        %9315 = vmatpush1.bf16.msra.mxu0 0
        %9316 = vmatprep.subr.bf16.mxu0 0
        %9317 = vmatpush1.bf16.msra.mxu0 0
        %9318 = vmatprep.subr.bf16.mxu0 0
        %9319 = vmatpush1.bf16.msra.mxu0 0
        %9320 = vmatprep.subr.bf16.mxu0 0
        %9321 = vmatpush1.bf16.msra.mxu0 0
        %9322 = vmatprep.subr.bf16.mxu0 0
        %9323 = vmatpush1.bf16.msra.mxu0 0
        %9324 = vmatprep.subr.bf16.mxu0 0
        %9325 = vmatpush1.bf16.msra.mxu0 0
        %9326 = vmatprep.subr.bf16.mxu0 0
        %9327 = vmatpush1.bf16.msra.mxu0 0
        %9328 = vmatprep.mubr.bf16.mxu0 0
        %9329 = vmatmul.mubr.bf16.gmra.mrb[0].mxu0 %v9240
        %v9330 = vpop.f32.mrb[0].mxu0
        %v9331 = vadd.f32 0.0, %v9330
        %v9332 = vpop.f32.mrb[0].mxu0
        %v9333 = vpop.f32.mrb[0].mxu0
        %v9334 = vadd.f32 0.0, %v9333
        %v9335 = vpop.f32.mrb[0].mxu0
        %9336 = vmatprep.mubr.bf16.mxu0 0
        %9337 = vmatmul.mubr.bf16.gmra.mrb[0].mxu0 %v9241
        %v9338 = vpop.f32.mrb[0].mxu0
        %v9339 = vadd.f32 0.0, %v9338
        %v9340 = vpop.f32.mrb[0].mxu0
        %v9341 = vpop.f32.mrb[0].mxu0
        %v9342 = vadd.f32 0.0, %v9341
        %v9343 = vpop.f32.mrb[0].mxu0
        %9344 = vmatprep.mubr.bf16.mxu0 0
        %9345 = vmatmul.mubr.bf16.gmra.mrb[0].mxu0 %v9242
        %v9346 = vpop.f32.mrb[0].mxu0
        %v9347 = vadd.f32 0.0, %v9346
        %v9348 = vpop.f32.mrb[0].mxu0
        %v9349 = vpop.f32.mrb[0].mxu0
        %v9350 = vadd.f32 0.0, %v9349
        %v9351 = vpop.f32.mrb[0].mxu0
        %9352 = vmatprep.mubr.bf16.mxu0 0
        %9353 = vmatmul.mubr.bf16.gmra.mrb[0].mxu0 %v9243
        %v9354 = vpop.f32.mrb[0].mxu0
        %v9355 = vadd.f32 0.0, %v9354
        %v9356 = vpop.f32.mrb[0].mxu0
        %v9357 = vpop.f32.mrb[0].mxu0
        %v9358 = vadd.f32 0.0, %v9357
        %v9359 = vpop.f32.mrb[0].mxu0
        %9360 = vdwg.mxu0
        %v9361 = vadd.f32 %v9151, %v9331
        %v9362 = vadd.f32 %v9152, %v9334
        %v9363 = vadd.f32 %v9153, %v9339
        %v9364 = vadd.f32 %v9154, %v9342
        %v9365 = vadd.f32 %v9155, %v9347
        %v9366 = vadd.f32 %v9156, %v9350
        %v9367 = vadd.f32 %v9157, %v9355
        %v9368 = vadd.f32 %v9158, %v9358
        %s9369 = scalar_lea.vmem [#allocation3], 16
        %v9370 = vld [vmem:[%s9369] sm:$0xf]
        %v9371 = vld [vmem:[%s9369 + $0x8] sm:$0xf]
        %v9372 = vld [vmem:[%s9369 + $0x10] sm:$0xf]
        %v9373 = vld [vmem:[%s9369 + $0x18] sm:$0xf]
        %v9374 = vld [vmem:[%s9369 + $0x20] sm:$0xf]
        %v9375 = vld [vmem:[%s9369 + $0x28] sm:$0xf]
        %v9376 = vld [vmem:[%s9369 + $0x30] sm:$0xf]
        %v9377 = vld [vmem:[%s9369 + $0x38] sm:$0xf]
        %s9378 = scalar_lea.vmem [#allocation8], 384
        %v9379 = vld [vmem:[%s9378] sm:$0xf]
        %v9380 = vld [vmem:[%s9378 + $0x4] sm:$0xf]
        %v9381 = vld [vmem:[%s9378 + $0x8] sm:$0xf]
        %v9382 = vld [vmem:[%s9378 + $0xc] sm:$0xf]
        %v9383 = vld [vmem:[%s9378 + $0x10] sm:$0xf]
        %v9384 = vld [vmem:[%s9378 + $0x14] sm:$0xf]
        %v9385 = vld [vmem:[%s9378 + $0x18] sm:$0xf]
        %v9386 = vld [vmem:[%s9378 + $0x1c] sm:$0xf]
        %v9387 = vld [vmem:[%s9378 + $0x20] sm:$0xf]
        %v9388 = vld [vmem:[%s9378 + $0x24] sm:$0xf]
        %v9389 = vld [vmem:[%s9378 + $0x28] sm:$0xf]
        %v9390 = vld [vmem:[%s9378 + $0x2c] sm:$0xf]
        %v9391 = vld [vmem:[%s9378 + $0x30] sm:$0xf]
        %v9392 = vld [vmem:[%s9378 + $0x34] sm:$0xf]
        %v9393 = vld [vmem:[%s9378 + $0x38] sm:$0xf]
        %v9394 = vld [vmem:[%s9378 + $0x3c] sm:$0xf]
        %v9403 = vunpack.c.l.b16 %v9370
        %v9404 = vunpack.c.l.b16 %v9371
        %v9405 = vunpack.c.l.b16 %v9372
        %v9406 = vunpack.c.l.b16 %v9373
        %v9407 = vunpack.c.l.b16 %v9374
        %v9408 = vunpack.c.l.b16 %v9375
        %v9409 = vunpack.c.l.b16 %v9376
        %v9410 = vunpack.c.l.b16 %v9377
        %v9411 = vpack.c.b16 %v9404, %v9403
        %v9412 = vpack.c.b16 %v9406, %v9405
        %v9413 = vpack.c.b16 %v9408, %v9407
        %v9414 = vpack.c.b16 %v9410, %v9409
        %v9435 = vunpack.c.l.b16 %v9379
        %v9436 = vunpack.c.l.b16 %v9380
        %v9437 = vunpack.c.l.b16 %v9381
        %v9438 = vunpack.c.l.b16 %v9382
        %v9439 = vunpack.c.l.b16 %v9383
        %v9440 = vunpack.c.l.b16 %v9384
        %v9441 = vunpack.c.l.b16 %v9385
        %v9442 = vunpack.c.l.b16 %v9386
        %v9443 = vunpack.c.l.b16 %v9387
        %v9444 = vunpack.c.l.b16 %v9388
        %v9445 = vunpack.c.l.b16 %v9389
        %v9446 = vunpack.c.l.b16 %v9390
        %v9447 = vunpack.c.l.b16 %v9391
        %v9448 = vunpack.c.l.b16 %v9392
        %v9449 = vunpack.c.l.b16 %v9393
        %v9450 = vunpack.c.l.b16 %v9394
        %v9451 = vpack.c.b16 %v9436, %v9435
        %v9452 = vpack.c.b16 %v9438, %v9437
        %v9453 = vpack.c.b16 %v9440, %v9439
        %v9454 = vpack.c.b16 %v9442, %v9441
        %v9455 = vpack.c.b16 %v9444, %v9443
        %v9456 = vpack.c.b16 %v9446, %v9445
        %v9457 = vpack.c.b16 %v9448, %v9447
        %v9458 = vpack.c.b16 %v9450, %v9449
        %9467 = vmatprep.subr.bf16.mxu0 0
        %9468 = vmatpush1.bf16.msra.mxu0 %v9451
        %9469 = vmatprep.subr.bf16.mxu0 0
        %9470 = vmatpush1.bf16.msra.mxu0 %v9452
        %9471 = vmatprep.subr.bf16.mxu0 0
        %9472 = vmatpush1.bf16.msra.mxu0 %v9453
        %9473 = vmatprep.subr.bf16.mxu0 0
        %9474 = vmatpush1.bf16.msra.mxu0 %v9454
        %9475 = vmatprep.subr.bf16.mxu0 0
        %9476 = vmatpush1.bf16.msra.mxu0 %v9455
        %9477 = vmatprep.subr.bf16.mxu0 0
        %9478 = vmatpush1.bf16.msra.mxu0 %v9456
        %9479 = vmatprep.subr.bf16.mxu0 0
        %9480 = vmatpush1.bf16.msra.mxu0 %v9457
        %9481 = vmatprep.subr.bf16.mxu0 0
        %9482 = vmatpush1.bf16.msra.mxu0 %v9458
        %9483 = vmatprep.subr.bf16.mxu0 0
        %9484 = vmatpush1.bf16.msra.mxu0 0
        %9485 = vmatprep.subr.bf16.mxu0 0
        %9486 = vmatpush1.bf16.msra.mxu0 0
        %9487 = vmatprep.subr.bf16.mxu0 0
        %9488 = vmatpush1.bf16.msra.mxu0 0
        %9489 = vmatprep.subr.bf16.mxu0 0
        %9490 = vmatpush1.bf16.msra.mxu0 0
        %9491 = vmatprep.subr.bf16.mxu0 0
        %9492 = vmatpush1.bf16.msra.mxu0 0
        %9493 = vmatprep.subr.bf16.mxu0 0
        %9494 = vmatpush1.bf16.msra.mxu0 0
        %9495 = vmatprep.subr.bf16.mxu0 0
        %9496 = vmatpush1.bf16.msra.mxu0 0
        %9497 = vmatprep.subr.bf16.mxu0 0
        %9498 = vmatpush1.bf16.msra.mxu0 0
        %9499 = vmatprep.mubr.bf16.mxu0 0
        %9500 = vmatmul.mubr.bf16.gmra.mrb[0].mxu0 %v9411
        %v9501 = vpop.f32.mrb[0].mxu0
        %v9502 = vadd.f32 0.0, %v9501
        %v9503 = vpop.f32.mrb[0].mxu0
        %v9504 = vpop.f32.mrb[0].mxu0
        %v9505 = vadd.f32 0.0, %v9504
        %v9506 = vpop.f32.mrb[0].mxu0
        %9507 = vmatprep.mubr.bf16.mxu0 0
        %9508 = vmatmul.mubr.bf16.gmra.mrb[0].mxu0 %v9412
        %v9509 = vpop.f32.mrb[0].mxu0
        %v9510 = vadd.f32 0.0, %v9509
        %v9511 = vpop.f32.mrb[0].mxu0
        %v9512 = vpop.f32.mrb[0].mxu0
        %v9513 = vadd.f32 0.0, %v9512
        %v9514 = vpop.f32.mrb[0].mxu0
        %9515 = vmatprep.mubr.bf16.mxu0 0
        %9516 = vmatmul.mubr.bf16.gmra.mrb[0].mxu0 %v9413
        %v9517 = vpop.f32.mrb[0].mxu0
        %v9518 = vadd.f32 0.0, %v9517
        %v9519 = vpop.f32.mrb[0].mxu0
        %v9520 = vpop.f32.mrb[0].mxu0
        %v9521 = vadd.f32 0.0, %v9520
        %v9522 = vpop.f32.mrb[0].mxu0
        %9523 = vmatprep.mubr.bf16.mxu0 0
        %9524 = vmatmul.mubr.bf16.gmra.mrb[0].mxu0 %v9414
        %v9525 = vpop.f32.mrb[0].mxu0
        %v9526 = vadd.f32 0.0, %v9525
        %v9527 = vpop.f32.mrb[0].mxu0
        %v9528 = vpop.f32.mrb[0].mxu0
        %v9529 = vadd.f32 0.0, %v9528
        %v9530 = vpop.f32.mrb[0].mxu0
        %9531 = vdwg.mxu0
        %v9532 = vadd.f32 %v9361, %v9502
        %v9533 = vadd.f32 %v9362, %v9505
        %v9534 = vadd.f32 %v9363, %v9510
        %v9535 = vadd.f32 %v9364, %v9513
        %v9536 = vadd.f32 %v9365, %v9518
        %v9537 = vadd.f32 %v9366, %v9521
        %v9538 = vadd.f32 %v9367, %v9526
        %v9539 = vadd.f32 %v9368, %v9529
        %v9540 = vld [vmem:[%s9369] sm:$0xf]
        %v9541 = vld [vmem:[%s9369 + $0x4] sm:$0x1]
        %v9542 = vld [vmem:[%s9369 + $0x8] sm:$0xf]
        %v9543 = vld [vmem:[%s9369 + $0xc] sm:$0x1]
        %v9544 = vld [vmem:[%s9369 + $0x10] sm:$0xf]
        %v9545 = vld [vmem:[%s9369 + $0x14] sm:$0x1]
        %v9546 = vld [vmem:[%s9369 + $0x18] sm:$0xf]
        %v9547 = vld [vmem:[%s9369 + $0x1c] sm:$0x1]
        %v9548 = vld [vmem:[%s9369 + $0x20] sm:$0xf]
        %v9549 = vld [vmem:[%s9369 + $0x24] sm:$0x1]
        %v9550 = vld [vmem:[%s9369 + $0x28] sm:$0xf]
        %v9551 = vld [vmem:[%s9369 + $0x2c] sm:$0x1]
        %v9552 = vld [vmem:[%s9369 + $0x30] sm:$0xf]
        %v9553 = vld [vmem:[%s9369 + $0x34] sm:$0x1]
        %v9554 = vld [vmem:[%s9369 + $0x38] sm:$0xf]
        %v9555 = vld [vmem:[%s9369 + $0x3c] sm:$0x1]
        %v9557 = vshrl.u32 %v9540, 16
        %v9559 = vrot.slane %v9557, 4
        %v9560 = vshll.u32 %v9540, 16
        %v9562 = vrot.slane %v9560, 5
        %v9563 = vor.u32 %v9559, %v9562
        %v9564 = vrot.slane %v9563, 4
        %v9566 = vshll.u32 %v9541, 16
        %v9568 = vrot.slane %v9566, 5
        %v9569 = vsel %vm955, %v9564, %v9568
        %v9571 = vshrl.u32 %v9542, 16
        %v9573 = vrot.slane %v9571, 4
        %v9574 = vshll.u32 %v9542, 16
        %v9576 = vrot.slane %v9574, 5
        %v9577 = vor.u32 %v9573, %v9576
        %v9578 = vrot.slane %v9577, 4
        %v9580 = vshll.u32 %v9543, 16
        %v9582 = vrot.slane %v9580, 5
        %v9583 = vsel %vm955, %v9578, %v9582
        %v9585 = vshrl.u32 %v9544, 16
        %v9587 = vrot.slane %v9585, 4
        %v9588 = vshll.u32 %v9544, 16
        %v9590 = vrot.slane %v9588, 5
        %v9591 = vor.u32 %v9587, %v9590
        %v9592 = vrot.slane %v9591, 4
        %v9594 = vshll.u32 %v9545, 16
        %v9596 = vrot.slane %v9594, 5
        %v9597 = vsel %vm955, %v9592, %v9596
        %v9599 = vshrl.u32 %v9546, 16
        %v9601 = vrot.slane %v9599, 4
        %v9602 = vshll.u32 %v9546, 16
        %v9604 = vrot.slane %v9602, 5
        %v9605 = vor.u32 %v9601, %v9604
        %v9606 = vrot.slane %v9605, 4
        %v9608 = vshll.u32 %v9547, 16
        %v9610 = vrot.slane %v9608, 5
        %v9611 = vsel %vm955, %v9606, %v9610
        %v9613 = vshrl.u32 %v9548, 16
        %v9615 = vrot.slane %v9613, 4
        %v9616 = vshll.u32 %v9548, 16
        %v9618 = vrot.slane %v9616, 5
        %v9619 = vor.u32 %v9615, %v9618
        %v9620 = vrot.slane %v9619, 4
        %v9622 = vshll.u32 %v9549, 16
        %v9624 = vrot.slane %v9622, 5
        %v9625 = vsel %vm955, %v9620, %v9624
        %v9627 = vshrl.u32 %v9550, 16
        %v9629 = vrot.slane %v9627, 4
        %v9630 = vshll.u32 %v9550, 16
        %v9632 = vrot.slane %v9630, 5
        %v9633 = vor.u32 %v9629, %v9632
        %v9634 = vrot.slane %v9633, 4
        %v9636 = vshll.u32 %v9551, 16
        %v9638 = vrot.slane %v9636, 5
        %v9639 = vsel %vm955, %v9634, %v9638
        %v9641 = vshrl.u32 %v9552, 16
        %v9643 = vrot.slane %v9641, 4
        %v9644 = vshll.u32 %v9552, 16
        %v9646 = vrot.slane %v9644, 5
        %v9647 = vor.u32 %v9643, %v9646
        %v9648 = vrot.slane %v9647, 4
        %v9650 = vshll.u32 %v9553, 16
        %v9652 = vrot.slane %v9650, 5
        %v9653 = vsel %vm955, %v9648, %v9652
        %v9655 = vshrl.u32 %v9554, 16
        %v9657 = vrot.slane %v9655, 4
        %v9658 = vshll.u32 %v9554, 16
        %v9660 = vrot.slane %v9658, 5
        %v9661 = vor.u32 %v9657, %v9660
        %v9662 = vrot.slane %v9661, 4
        %v9664 = vshll.u32 %v9555, 16
        %v9666 = vrot.slane %v9664, 5
        %v9667 = vsel %vm955, %v9662, %v9666
        %s9668 = scalar_lea.vmem [#allocation8], 448
        %v9669 = vld [vmem:[%s9668] sm:$0xf]
        %v9670 = vld [vmem:[%s9668 + $0x4] sm:$0xf]
        %v9671 = vld [vmem:[%s9668 + $0x8] sm:$0xf]
        %v9672 = vld [vmem:[%s9668 + $0xc] sm:$0xf]
        %v9673 = vld [vmem:[%s9668 + $0x10] sm:$0xf]
        %v9674 = vld [vmem:[%s9668 + $0x14] sm:$0xf]
        %v9675 = vld [vmem:[%s9668 + $0x18] sm:$0xf]
        %v9676 = vld [vmem:[%s9668 + $0x1c] sm:$0xf]
        %v9677 = vld [vmem:[%s9668 + $0x20] sm:$0xf]
        %v9678 = vld [vmem:[%s9668 + $0x24] sm:$0xf]
        %v9679 = vld [vmem:[%s9668 + $0x28] sm:$0xf]
        %v9680 = vld [vmem:[%s9668 + $0x2c] sm:$0xf]
        %v9681 = vld [vmem:[%s9668 + $0x30] sm:$0xf]
        %v9682 = vld [vmem:[%s9668 + $0x34] sm:$0xf]
        %v9683 = vld [vmem:[%s9668 + $0x38] sm:$0xf]
        %v9684 = vld [vmem:[%s9668 + $0x3c] sm:$0xf]
        %v9685 = vunpack.c.l.b16 %v9569
        %v9686 = vunpack.c.l.b16 %v9583
        %v9687 = vunpack.c.l.b16 %v9597
        %v9688 = vunpack.c.l.b16 %v9611
        %v9689 = vunpack.c.l.b16 %v9625
        %v9690 = vunpack.c.l.b16 %v9639
        %v9691 = vunpack.c.l.b16 %v9653
        %v9692 = vunpack.c.l.b16 %v9667
        %v9693 = vpack.c.b16 %v9686, %v9685
        %v9694 = vpack.c.b16 %v9688, %v9687
        %v9695 = vpack.c.b16 %v9690, %v9689
        %v9696 = vpack.c.b16 %v9692, %v9691
        %v9717 = vunpack.c.l.b16 %v9669
        %v9718 = vunpack.c.l.b16 %v9670
        %v9719 = vunpack.c.l.b16 %v9671
        %v9720 = vunpack.c.l.b16 %v9672
        %v9721 = vunpack.c.l.b16 %v9673
        %v9722 = vunpack.c.l.b16 %v9674
        %v9723 = vunpack.c.l.b16 %v9675
        %v9724 = vunpack.c.l.b16 %v9676
        %v9725 = vunpack.c.l.b16 %v9677
        %v9726 = vunpack.c.l.b16 %v9678
        %v9727 = vunpack.c.l.b16 %v9679
        %v9728 = vunpack.c.l.b16 %v9680
        %v9729 = vunpack.c.l.b16 %v9681
        %v9730 = vunpack.c.l.b16 %v9682
        %v9731 = vunpack.c.l.b16 %v9683
        %v9732 = vunpack.c.l.b16 %v9684
        %v9733 = vpack.c.b16 %v9718, %v9717
        %v9734 = vpack.c.b16 %v9720, %v9719
        %v9735 = vpack.c.b16 %v9722, %v9721
        %v9736 = vpack.c.b16 %v9724, %v9723
        %v9737 = vpack.c.b16 %v9726, %v9725
        %v9738 = vpack.c.b16 %v9728, %v9727
        %v9739 = vpack.c.b16 %v9730, %v9729
        %v9740 = vpack.c.b16 %v9732, %v9731
        %9749 = vmatprep.subr.bf16.mxu0 0
        %9750 = vmatpush1.bf16.msra.mxu0 %v9733
        %9751 = vmatprep.subr.bf16.mxu0 0
        %9752 = vmatpush1.bf16.msra.mxu0 %v9734
        %9753 = vmatprep.subr.bf16.mxu0 0
        %9754 = vmatpush1.bf16.msra.mxu0 %v9735
        %9755 = vmatprep.subr.bf16.mxu0 0
        %9756 = vmatpush1.bf16.msra.mxu0 %v9736
        %9757 = vmatprep.subr.bf16.mxu0 0
        %9758 = vmatpush1.bf16.msra.mxu0 %v9737
        %9759 = vmatprep.subr.bf16.mxu0 0
        %9760 = vmatpush1.bf16.msra.mxu0 %v9738
        %9761 = vmatprep.subr.bf16.mxu0 0
        %9762 = vmatpush1.bf16.msra.mxu0 %v9739
        %9763 = vmatprep.subr.bf16.mxu0 0
        %9764 = vmatpush1.bf16.msra.mxu0 %v9740
        %9765 = vmatprep.subr.bf16.mxu0 0
        %9766 = vmatpush1.bf16.msra.mxu0 0
        %9767 = vmatprep.subr.bf16.mxu0 0
        %9768 = vmatpush1.bf16.msra.mxu0 0
        %9769 = vmatprep.subr.bf16.mxu0 0
        %9770 = vmatpush1.bf16.msra.mxu0 0
        %9771 = vmatprep.subr.bf16.mxu0 0
        %9772 = vmatpush1.bf16.msra.mxu0 0
        %9773 = vmatprep.subr.bf16.mxu0 0
        %9774 = vmatpush1.bf16.msra.mxu0 0
        %9775 = vmatprep.subr.bf16.mxu0 0
        %9776 = vmatpush1.bf16.msra.mxu0 0
        %9777 = vmatprep.subr.bf16.mxu0 0
        %9778 = vmatpush1.bf16.msra.mxu0 0
        %9779 = vmatprep.subr.bf16.mxu0 0
        %9780 = vmatpush1.bf16.msra.mxu0 0
        %9781 = vmatprep.mubr.bf16.mxu0 0
        %9782 = vmatmul.mubr.bf16.gmra.mrb[0].mxu0 %v9693
        %v9783 = vpop.f32.mrb[0].mxu0
        %v9784 = vadd.f32 0.0, %v9783
        %v9785 = vpop.f32.mrb[0].mxu0
        %v9786 = vpop.f32.mrb[0].mxu0
        %v9787 = vadd.f32 0.0, %v9786
        %v9788 = vpop.f32.mrb[0].mxu0
        %9789 = vmatprep.mubr.bf16.mxu0 0
        %9790 = vmatmul.mubr.bf16.gmra.mrb[0].mxu0 %v9694
        %v9791 = vpop.f32.mrb[0].mxu0
        %v9792 = vadd.f32 0.0, %v9791
        %v9793 = vpop.f32.mrb[0].mxu0
        %v9794 = vpop.f32.mrb[0].mxu0
        %v9795 = vadd.f32 0.0, %v9794
        %v9796 = vpop.f32.mrb[0].mxu0
        %9797 = vmatprep.mubr.bf16.mxu0 0
        %9798 = vmatmul.mubr.bf16.gmra.mrb[0].mxu0 %v9695
        %v9799 = vpop.f32.mrb[0].mxu0
        %v9800 = vadd.f32 0.0, %v9799
        %v9801 = vpop.f32.mrb[0].mxu0
        %v9802 = vpop.f32.mrb[0].mxu0
        %v9803 = vadd.f32 0.0, %v9802
        %v9804 = vpop.f32.mrb[0].mxu0
        %9805 = vmatprep.mubr.bf16.mxu0 0
        %9806 = vmatmul.mubr.bf16.gmra.mrb[0].mxu0 %v9696
        %v9807 = vpop.f32.mrb[0].mxu0
        %v9808 = vadd.f32 0.0, %v9807
        %v9809 = vpop.f32.mrb[0].mxu0
        %v9810 = vpop.f32.mrb[0].mxu0
        %v9811 = vadd.f32 0.0, %v9810
        %v9812 = vpop.f32.mrb[0].mxu0
        %9813 = vdwg.mxu0
        %v9814 = vadd.f32 %v9532, %v9784
        %v9815 = vadd.f32 %v9533, %v9787
        %v9816 = vadd.f32 %v9534, %v9792
        %v9817 = vadd.f32 %v9535, %v9795
        %v9818 = vadd.f32 %v9536, %v9800
        %v9819 = vadd.f32 %v9537, %v9803
        %v9820 = vadd.f32 %v9538, %v9808
        %v9821 = vadd.f32 %v9539, %v9811
        %v9822 = vld [vmem:[%s9369] sm:$0xe]
        %v9823 = vld [vmem:[%s9369 + $0x8] sm:$0xe]
        %v9824 = vld [vmem:[%s9369 + $0x10] sm:$0xe]
        %v9825 = vld [vmem:[%s9369 + $0x18] sm:$0xe]
        %v9826 = vld [vmem:[%s9369 + $0x20] sm:$0xe]
        %v9827 = vld [vmem:[%s9369 + $0x28] sm:$0xe]
        %v9828 = vld [vmem:[%s9369 + $0x30] sm:$0xe]
        %v9829 = vld [vmem:[%s9369 + $0x38] sm:$0xe]
        %v9846 = vrot.slane %v9822, 5
        %v9847 = vrot.slane %v9846, 4
        %v9848 = vrot.slane %v9541, 5
        %v9849 = vsel %vm1248, %v9847, %v9848
        %v9850 = vrot.slane %v9823, 5
        %v9851 = vrot.slane %v9850, 4
        %v9852 = vrot.slane %v9543, 5
        %v9853 = vsel %vm1248, %v9851, %v9852
        %v9854 = vrot.slane %v9824, 5
        %v9855 = vrot.slane %v9854, 4
        %v9856 = vrot.slane %v9545, 5
        %v9857 = vsel %vm1248, %v9855, %v9856
        %v9858 = vrot.slane %v9825, 5
        %v9859 = vrot.slane %v9858, 4
        %v9860 = vrot.slane %v9547, 5
        %v9861 = vsel %vm1248, %v9859, %v9860
        %v9862 = vrot.slane %v9826, 5
        %v9863 = vrot.slane %v9862, 4
        %v9864 = vrot.slane %v9549, 5
        %v9865 = vsel %vm1248, %v9863, %v9864
        %v9866 = vrot.slane %v9827, 5
        %v9867 = vrot.slane %v9866, 4
        %v9868 = vrot.slane %v9551, 5
        %v9869 = vsel %vm1248, %v9867, %v9868
        %v9870 = vrot.slane %v9828, 5
        %v9871 = vrot.slane %v9870, 4
        %v9872 = vrot.slane %v9553, 5
        %v9873 = vsel %vm1248, %v9871, %v9872
        %v9874 = vrot.slane %v9829, 5
        %v9875 = vrot.slane %v9874, 4
        %v9876 = vrot.slane %v9555, 5
        %v9877 = vsel %vm1248, %v9875, %v9876
        %s9878 = scalar_lea.vmem [#allocation8], 512
        %v9879 = vld [vmem:[%s9878] sm:$0xf]
        %v9880 = vld [vmem:[%s9878 + $0x4] sm:$0xf]
        %v9881 = vld [vmem:[%s9878 + $0x8] sm:$0xf]
        %v9882 = vld [vmem:[%s9878 + $0xc] sm:$0xf]
        %v9883 = vld [vmem:[%s9878 + $0x10] sm:$0xf]
        %v9884 = vld [vmem:[%s9878 + $0x14] sm:$0xf]
        %v9885 = vld [vmem:[%s9878 + $0x18] sm:$0xf]
        %v9886 = vld [vmem:[%s9878 + $0x1c] sm:$0xf]
        %v9887 = vld [vmem:[%s9878 + $0x20] sm:$0xf]
        %v9888 = vld [vmem:[%s9878 + $0x24] sm:$0xf]
        %v9889 = vld [vmem:[%s9878 + $0x28] sm:$0xf]
        %v9890 = vld [vmem:[%s9878 + $0x2c] sm:$0xf]
        %v9891 = vld [vmem:[%s9878 + $0x30] sm:$0xf]
        %v9892 = vld [vmem:[%s9878 + $0x34] sm:$0xf]
        %v9893 = vld [vmem:[%s9878 + $0x38] sm:$0xf]
        %v9894 = vld [vmem:[%s9878 + $0x3c] sm:$0xf]
        %v9895 = vunpack.c.l.b16 %v9849
        %v9896 = vunpack.c.l.b16 %v9853
        %v9897 = vunpack.c.l.b16 %v9857
        %v9898 = vunpack.c.l.b16 %v9861
        %v9899 = vunpack.c.l.b16 %v9865
        %v9900 = vunpack.c.l.b16 %v9869
        %v9901 = vunpack.c.l.b16 %v9873
        %v9902 = vunpack.c.l.b16 %v9877
        %v9903 = vpack.c.b16 %v9896, %v9895
        %v9904 = vpack.c.b16 %v9898, %v9897
        %v9905 = vpack.c.b16 %v9900, %v9899
        %v9906 = vpack.c.b16 %v9902, %v9901
        %v9927 = vunpack.c.l.b16 %v9879
        %v9928 = vunpack.c.l.b16 %v9880
        %v9929 = vunpack.c.l.b16 %v9881
        %v9930 = vunpack.c.l.b16 %v9882
        %v9931 = vunpack.c.l.b16 %v9883
        %v9932 = vunpack.c.l.b16 %v9884
        %v9933 = vunpack.c.l.b16 %v9885
        %v9934 = vunpack.c.l.b16 %v9886
        %v9935 = vunpack.c.l.b16 %v9887
        %v9936 = vunpack.c.l.b16 %v9888
        %v9937 = vunpack.c.l.b16 %v9889
        %v9938 = vunpack.c.l.b16 %v9890
        %v9939 = vunpack.c.l.b16 %v9891
        %v9940 = vunpack.c.l.b16 %v9892
        %v9941 = vunpack.c.l.b16 %v9893
        %v9942 = vunpack.c.l.b16 %v9894
        %v9943 = vpack.c.b16 %v9928, %v9927
        %v9944 = vpack.c.b16 %v9930, %v9929
        %v9945 = vpack.c.b16 %v9932, %v9931
        %v9946 = vpack.c.b16 %v9934, %v9933
        %v9947 = vpack.c.b16 %v9936, %v9935
        %v9948 = vpack.c.b16 %v9938, %v9937
        %v9949 = vpack.c.b16 %v9940, %v9939
        %v9950 = vpack.c.b16 %v9942, %v9941
        %9959 = vmatprep.subr.bf16.mxu0 0
        %9960 = vmatpush1.bf16.msra.mxu0 %v9943
        %9961 = vmatprep.subr.bf16.mxu0 0
        %9962 = vmatpush1.bf16.msra.mxu0 %v9944
        %9963 = vmatprep.subr.bf16.mxu0 0
        %9964 = vmatpush1.bf16.msra.mxu0 %v9945
        %9965 = vmatprep.subr.bf16.mxu0 0
        %9966 = vmatpush1.bf16.msra.mxu0 %v9946
        %9967 = vmatprep.subr.bf16.mxu0 0
        %9968 = vmatpush1.bf16.msra.mxu0 %v9947
        %9969 = vmatprep.subr.bf16.mxu0 0
        %9970 = vmatpush1.bf16.msra.mxu0 %v9948
        %9971 = vmatprep.subr.bf16.mxu0 0
        %9972 = vmatpush1.bf16.msra.mxu0 %v9949
        %9973 = vmatprep.subr.bf16.mxu0 0
        %9974 = vmatpush1.bf16.msra.mxu0 %v9950
        %9975 = vmatprep.subr.bf16.mxu0 0
        %9976 = vmatpush1.bf16.msra.mxu0 0
        %9977 = vmatprep.subr.bf16.mxu0 0
        %9978 = vmatpush1.bf16.msra.mxu0 0
        %9979 = vmatprep.subr.bf16.mxu0 0
        %9980 = vmatpush1.bf16.msra.mxu0 0
        %9981 = vmatprep.subr.bf16.mxu0 0
        %9982 = vmatpush1.bf16.msra.mxu0 0
        %9983 = vmatprep.subr.bf16.mxu0 0
        %9984 = vmatpush1.bf16.msra.mxu0 0
        %9985 = vmatprep.subr.bf16.mxu0 0
        %9986 = vmatpush1.bf16.msra.mxu0 0
        %9987 = vmatprep.subr.bf16.mxu0 0
        %9988 = vmatpush1.bf16.msra.mxu0 0
        %9989 = vmatprep.subr.bf16.mxu0 0
        %9990 = vmatpush1.bf16.msra.mxu0 0
        %9991 = vmatprep.mubr.bf16.mxu0 0
        %9992 = vmatmul.mubr.bf16.gmra.mrb[0].mxu0 %v9903
        %v9993 = vpop.f32.mrb[0].mxu0
        %v9994 = vadd.f32 0.0, %v9993
        %v9995 = vpop.f32.mrb[0].mxu0
        %v9996 = vpop.f32.mrb[0].mxu0
        %v9997 = vadd.f32 0.0, %v9996
        %v9998 = vpop.f32.mrb[0].mxu0
        %9999 = vmatprep.mubr.bf16.mxu0 0
        %10000 = vmatmul.mubr.bf16.gmra.mrb[0].mxu0 %v9904
        %v10001 = vpop.f32.mrb[0].mxu0
        %v10002 = vadd.f32 0.0, %v10001
        %v10003 = vpop.f32.mrb[0].mxu0
        %v10004 = vpop.f32.mrb[0].mxu0
        %v10005 = vadd.f32 0.0, %v10004
        %v10006 = vpop.f32.mrb[0].mxu0
        %10007 = vmatprep.mubr.bf16.mxu0 0
        %10008 = vmatmul.mubr.bf16.gmra.mrb[0].mxu0 %v9905
        %v10009 = vpop.f32.mrb[0].mxu0
        %v10010 = vadd.f32 0.0, %v10009
        %v10011 = vpop.f32.mrb[0].mxu0
        %v10012 = vpop.f32.mrb[0].mxu0
        %v10013 = vadd.f32 0.0, %v10012
        %v10014 = vpop.f32.mrb[0].mxu0
        %10015 = vmatprep.mubr.bf16.mxu0 0
        %10016 = vmatmul.mubr.bf16.gmra.mrb[0].mxu0 %v9906
        %v10017 = vpop.f32.mrb[0].mxu0
        %v10018 = vadd.f32 0.0, %v10017
        %v10019 = vpop.f32.mrb[0].mxu0
        %v10020 = vpop.f32.mrb[0].mxu0
        %v10021 = vadd.f32 0.0, %v10020
        %v10022 = vpop.f32.mrb[0].mxu0
        %10023 = vdwg.mxu0
        %v10024 = vadd.f32 %v9814, %v9994
        %v10025 = vadd.f32 %v9815, %v9997
        %v10026 = vadd.f32 %v9816, %v10002
        %v10027 = vadd.f32 %v9817, %v10005
        %v10028 = vadd.f32 %v9818, %v10010
        %v10029 = vadd.f32 %v9819, %v10013
        %v10030 = vadd.f32 %v9820, %v10018
        %v10031 = vadd.f32 %v9821, %v10021
        %10032 = vst [vmem:[%s376] sm:$0xff] %v10024
        %10033 = vst [vmem:[%s376 + $0x8] sm:$0xff] %v10025
        %10034 = vst [vmem:[%s376 + $0x10] sm:$0xff] %v10026
        %10035 = vst [vmem:[%s376 + $0x18] sm:$0xff] %v10027
        %10036 = vst [vmem:[%s376 + $0x20] sm:$0xff] %v10028
        %10037 = vst [vmem:[%s376 + $0x28] sm:$0xff] %v10029
        %10038 = vst [vmem:[%s376 + $0x30] sm:$0xff] %v10030
        %10039 = vst [vmem:[%s376 + $0x38] sm:$0xff] %v10031
        %p10040 = scmp.lt.s32.totalorder %s22, 1
        %s10041 = scalar_select %p10040, %s22, 1
        %s10042 = smul.addr %s10041, 8
        %s10043 = smul.addr %s10042, 8
        %s10044 = scalar_lea.vmem %s9, %s10043
        // Predicated region
        $region69: #{_lambda_.1} parent=55 // pred_check
          %p10045 = pneg %p234
        $region70: #{_lambda_.1} parent=55 // pred_check_branch
          %10047 = sbr.rel (%p10045) target = $region72
        $region71: #{_lambda_.1} parent=55 // pred_region
          _
        $region72: #{_lambda_.1} parent=55 // pred_fallthru
          _
      $region56: #{_lambda_.1} parent=5 // pred_fallthru
        _
      %p10048 = scmp.le.s32.totalorder 2, %s17
      // Predicated region
      $region73: #{_lambda_.1} parent=5 // pred_check
        %p10049 = pneg %p10048
      $region74: #{_lambda_.1} parent=5 // pred_check_branch
        %10051 = sbr.rel (%p10049) target = $region76
      $region75: #{_lambda_.1} parent=5 // pred_region
        %s10052 = ssub.s32 %s17, 2
        // Predicated region
        $region77: #{_lambda_.1} parent=75 // pred_check
          %p10053 = pneg %p240
        $region78: #{_lambda_.1} parent=75 // pred_check_branch
          %10055 = sbr.rel (%p10053) target = $region80
        $region79: #{_lambda_.1} parent=75 // pred_region
          %p10056 = scmp.lt.s32.totalorder %s23, 1
          %s10057 = scalar_select %p10056, %s23, 1
          %s10058 = smul.addr %s10057, 8
          %s10059 = smul.addr %s10058, 8
          %s10060 = scalar_lea.vmem %s9, %s10059
        $region80: #{_lambda_.1} parent=75 // pred_fallthru
          _
      $region76: #{_lambda_.1} parent=5 // pred_fallthru
        _
    $region6: #{_lambda_.1} parent=1 // loop_footer
      %s21 = sadd.s32 1, %s17
    $region7: #{_lambda_.1} parent=1 // loop_footer_branch
      %16 = sbr.rel target = $region3
    $region8: #{_lambda_.1} parent=1 // loop_exit
      _
    %10061 = vsyncpa [#allocation5], 1
    %s10062 = scalar_lea.sflag [#allocation5], 1
    %10063 = vsyncpa %s10062, 1
    %10064 = vsyncpa [#allocation7], 1

</llo_original>
